<compile_context>
chip_gen: v7x
topology: tpu7x:2x2x1
jax: 0.10.0
libtpu: 0.0.40
codegen_flags: <defaults>
</compile_context>

<pallas_src>
import math

import jax
import jax.numpy as jnp
from jax.experimental import pallas as pl
from jax.experimental.pallas import tpu as pltpu

# ----------------------- small deterministic configuration -----------------------
NUM_CLASSES = 16          # original: 1000
IMG_SIZE = (16, 16)       # original: (224, 224)
IMG_CHANNELS = 3
NUM_SELF_ATTENDS = 2      # original: 6
NUM_BLOCKS = 2            # original: 8 (weights shared across blocks)
NUM_LATENTS = 8           # original: 512
LATENT_CHANNELS = 32      # original: 1024
NUM_SELF_HEADS = 4        # original: 8
NUM_CROSS_HEADS = 1       # Perceiver default for cross attention
CONV_CHANNELS = 16        # original Conv2DDownsample: 64
NUM_BANDS = 4             # original fourier kwargs: 64
MAX_RESOLUTION = (4, 4)   # original: (56, 56) == conv-downsampled grid
LN_EPS = 1e-5
BN_EPS = 1e-5

BATCH_TILE = 2            # batch elements processed per grid step
LOGIT_LANES = 128         # classes padded to a lane-dense store width

# ----- static packing layout (all offsets multiples of 8/16 -> aligned slices) -----
NBLK = 1 + NUM_SELF_ATTENDS + 1          # encoder cross, self layers, decoder cross
W_PAGE = 224                             # bf16 weight-slab rows per block
OFF_WQ, OFF_WK, OFF_WV, OFF_WO, OFF_W1, OFF_W2 = 0, 32, 80, 128, 160, 192
P_PAGE = 16                              # f32 LN/bias-slab rows per block
R_LNQ, R_LNKV, R_BQ, R_BK, R_BV, R_BO, R_LNM, R_B1, R_B2 = 0, 2, 4, 5, 6, 7, 8, 10, 11


# =========================== in-kernel math helpers ===========================

def _mm(x, w):
    """MXU matmul, bf16 operands / f32 accumulation (weights are already bf16)."""
    return jnp.dot(x.astype(jnp.bfloat16), w.astype(jnp.bfloat16),
                   preferred_element_type=jnp.float32)


def _gelu(x):
    # TODO(synk): PyTorch nn.GELU default is exact erf; tanh approximation used here
    # (EUP-friendly on TPU).
    c = math.sqrt(2.0 / math.pi)
    return 0.5 * x * (1.0 + jnp.tanh(c * (x + 0.044715 * x * x * x)))


def _layer_norm(x, gb):
    """x: (L, W); gb: (2, W) packed [gamma; beta]."""
    g = gb[0:1, :]
    b = gb[1:2, :]
    mu = jnp.mean(x, axis=-1, keepdims=True)
    xc = x - mu
    var = jnp.mean(xc * xc, axis=-1, keepdims=True)
    return xc * jax.lax.rsqrt(var + LN_EPS) * g + b


def _block_weights(w_ref, blk, kv_rows):
    """Static, 8/16-aligned row slices of the resident bf16 weight slab."""
    c = LATENT_CHANNELS
    b = blk * W_PAGE
    wq = w_ref[b + OFF_WQ:b + OFF_WQ + c, :]
    wk = w_ref[b + OFF_WK:b + OFF_WK + kv_rows, :]
    wv = w_ref[b + OFF_WV:b + OFF_WV + kv_rows, :]
    wo = w_ref[b + OFF_WO:b + OFF_WO + c, :]
    w1 = w_ref[b + OFF_W1:b + OFF_W1 + c, :]
    w2 = w_ref[b + OFF_W2:b + OFF_W2 + c, :]
    return wq, wk, wv, wo, w1, w2


def _attention(q_n, kv_n, wq, wk, wv, wo, pv, num_heads):
    """Multi-head attention with FUSED (din, C) projections; heads only appear in the
    small score/context dots and are merged back with one lane concat + one out matmul."""
    c = LATENT_CHANNELS
    q = _mm(q_n, wq) + pv[R_BQ:R_BQ + 1, :]     # (Lq, C)
    k = _mm(kv_n, wk) + pv[R_BK:R_BK + 1, :]    # (Lk, C)
    v = _mm(kv_n, wv) + pv[R_BV:R_BV + 1, :]    # (Lk, C)
    dh = c // num_heads
    scale = 1.0 / math.sqrt(dh)
    ctx = []
    for h in range(num_heads):
        sl = slice(h * dh, (h + 1) * dh)
        s = jax.lax.dot_general(q[:, sl].astype(jnp.bfloat16),
                                k[:, sl].astype(jnp.bfloat16),
                                (((1,), (1,)), ((), ())),
                                preferred_element_type=jnp.float32) * scale
        s = s - jnp.max(s, axis=-1, keepdims=True)
        p = jnp.exp(s)
        p = p * pl.reciprocal(jnp.sum(p, axis=-1, keepdims=True), approx=True)
        ctx.append(_mm(p, v[:, sl]))            # (Lq, dh)
    o = ctx[0] if num_heads == 1 else jnp.concatenate(ctx, axis=-1)   # (Lq, C)
    return _mm(o, wo) + pv[R_BO:R_BO + 1, :]


def _mlp(xn, w1, w2, pv):
    h = _gelu(_mm(xn, w1) + pv[R_B1:R_B1 + 1, :])
    return _mm(h, w2) + pv[R_B2:R_B2 + 1, :]


def _cross_block(w_ref, p_ref, blk, q_in, kv_in, kv_gb, num_heads):
    """Cross-attention (query residual) + MLP, all in VMEM."""
    pv = p_ref[blk * P_PAGE:(blk + 1) * P_PAGE, :]             # (16, C) f32 page
    wq, wk, wv, wo, w1, w2 = _block_weights(w_ref, blk, kv_in.shape[-1])
    q_n = _layer_norm(q_in, pv[R_LNQ:R_LNQ + 2, :])
    kv_n = _layer_norm(kv_in, kv_gb if kv_gb is not None else pv[R_LNKV:R_LNKV + 2, :])
    x = q_in + _attention(q_n, kv_n, wq, wk, wv, wo, pv, num_heads)   # use_query_residual
    return x + _mlp(_layer_norm(x, pv[R_LNM:R_LNM + 2, :]), w1, w2, pv)


def _self_block(w_ref, p_ref, blk, x, num_heads):
    """Self-attention + MLP, all in VMEM."""
    pv = p_ref[blk * P_PAGE:(blk + 1) * P_PAGE, :]
    wq, wk, wv, wo, w1, w2 = _block_weights(w_ref, blk, LATENT_CHANNELS)
    xn = _layer_norm(x, pv[R_LNQ:R_LNQ + 2, :])
    x = x + _attention(xn, xn, wq, wk, wv, wo, pv, num_heads)
    return x + _mlp(_layer_norm(x, pv[R_LNM:R_LNM + 2, :]), w1, w2, pv)


# ========================= fused Perceiver core kernel =========================

def _perceiver_core_kernel(x_ref, lat_ref, q0_ref, w_ref, p_ref, enc_lnkv_ref,
                           wf_ref, bf_ref, out_ref):
    """One grid step == BATCH_TILE batch elements. Everything stays in VMEM."""
    tb = x_ref.shape[0]
    lat = lat_ref[...]                         # (NUM_LATENTS, C) f32
    q0 = q0_ref[...]                           # (1, C) f32 (decoder query row 0 only)
    enc_lnkv = enc_lnkv_ref[...]               # (2, C_in) f32
    wf = wf_ref[...]                           # (C, 128) bf16 (classes lane-padded)
    bf = bf_ref[...]                           # (1, 128) f32
    dec_blk = 1 + NUM_SELF_ATTENDS

    rows = []
    # TODO(synk): for larger B/L, flatten the batch tile into the sublane (M) dim of the
    # fused projections instead of this per-element loop.
    for t in range(tb):
        x_in = x_ref[t]                        # (L_in, C_in) preprocessed inputs
        # encoder cross-attention (1 head, query residual)
        z = _cross_block(w_ref, p_ref, 0, lat, x_in, enc_lnkv, NUM_CROSS_HEADS)

        # weight-shared self-attention stack: fori_loop over shared-weight repeats,
        # inner per-layer list unrolled.
        def body(_, zz):
            for j in range(NUM_SELF_ATTENDS):
                zz = _self_block(w_ref, p_ref, 1 + j, zz, NUM_SELF_HEADS)
            return zz
        z = jax.lax.fori_loop(0, NUM_BLOCKS, body, z)

        # decoder: ClassificationPostprocessor(project=False) keeps only query row 0,
        # and every decoder op is row-wise -> compute only that row.
        d = _cross_block(w_ref, p_ref, dec_blk, q0, z, None, NUM_CROSS_HEADS)   # (1, C)
        rows.append(jnp.dot(d.astype(jnp.bfloat16), wf,
                            preferred_element_type=jnp.float32) + bf)           # (1, 128)

    out_ref[...] = jnp.concatenate(rows, axis=0) if tb > 1 else rows[0]


def perceiver_core(inputs, latents, q0, w_slab, p_slab, enc_lnkv, wf_pad, bf_pad):
    b, l_in, c_in = inputs.shape
    tb = min(BATCH_TILE, b)
    assert b % tb == 0, (b, tb)

    def resident(a):
        # Whole-array VMEM block, same block index every step (stays resident).
        # TODO(synk): at the original 1024-ch / 6-layer config the weights must be
        # streamed per layer (v7x has 64 MiB VMEM) with pl.Buffered(1) residents and an
        # explicit vmem_limit_bytes instead of this all-resident layout.
        nd = a.ndim
        return pl.BlockSpec(a.shape, lambda i, _n=nd: (0,) * _n)

    out = pl.pallas_call(
        _perceiver_core_kernel,
        out_shape=jax.ShapeDtypeStruct((b, LOGIT_LANES), jnp.float32),
        grid=(b // tb,),
        in_specs=[pl.BlockSpec((tb, l_in, c_in), lambda i: (i, 0, 0)),
                  resident(latents), resident(q0), resident(w_slab), resident(p_slab),
                  resident(enc_lnkv), resident(wf_pad), resident(bf_pad)],
        out_specs=pl.BlockSpec((tb, LOGIT_LANES), lambda i: (i, 0)),
        compiler_params=pltpu.CompilerParams(dimension_semantics=("parallel",)),
    )(inputs, latents, q0, w_slab, p_slab, enc_lnkv, wf_pad, bf_pad)
    return out[:, :NUM_CLASSES]                # strip lane padding -> (B, NUM_CLASSES)


# =================== conv-as-GEMM + BN(eval) + ReLU kernel ===================

def _conv_gemm_kernel(x_ref, w_ref, s_ref, t_ref, o_ref):
    y = jnp.dot(x_ref[...].astype(jnp.bfloat16), w_ref[...],
                preferred_element_type=jnp.float32)
    o_ref[...] = jnp.maximum(y * s_ref[...] + t_ref[...], 0.0)


def conv_bn_relu_gemm(patches, w_bf16, scale, shift):
    m, k = patches.shape
    n = w_bf16.shape[1]
    tm = m if m <= 512 else 512                # M-tiled grid; "parallel" for v7x 2-TC
    # TODO(synk): at the original 224x224 config, assemble im2col patches in-kernel
    # (strided loads) instead of materializing the 49x-expanded patches tensor in HBM.
    return pl.pallas_call(
        _conv_gemm_kernel,
        out_shape=jax.ShapeDtypeStruct((m, n), jnp.float32),
        grid=(pl.cdiv(m, tm),),
        in_specs=[pl.BlockSpec((tm, k), lambda i: (i, 0)),
                  pl.BlockSpec((k, n), lambda i: (0, 0)),
                  pl.BlockSpec((1, n), lambda i: (0, 0)),
                  pl.BlockSpec((1, n), lambda i: (0, 0))],
        out_specs=pl.BlockSpec((tm, n), lambda i: (i, 0)),
        compiler_params=pltpu.CompilerParams(dimension_semantics=("parallel",)),
    )(patches, w_bf16, scale.reshape(1, n), shift.reshape(1, n))


# ============================== preprocessing glue ==============================

def fourier_position_encoding(spatial_shape, max_res, num_bands):
    ranges = [jnp.linspace(-1.0, 1.0, n) for n in spatial_shape]
    grid = jnp.stack(jnp.meshgrid(*ranges, indexing="ij"), axis=-1)
    pos = grid.reshape(-1, len(spatial_shape))                       # (N, 2)
    freqs = jnp.stack([jnp.linspace(1.0, r / 2.0, num_bands) for r in max_res], axis=0)
    per_pos = (pos[:, :, None] * freqs[None, :, :]).reshape(pos.shape[0], -1)
    feat = jnp.concatenate([jnp.sin(jnp.pi * per_pos), jnp.cos(jnp.pi * per_pos)], axis=-1)
    return jnp.concatenate([pos, feat], axis=-1)                     # concat_pos=True


def image_preprocess(p, img_nchw):
    x = jnp.transpose(img_nchw, (0, 2, 3, 1)).astype(jnp.float32)    # NCHW -> NHWC
    b, h, w, c = x.shape
    # Conv2d(7x7, stride 2, pad 3, bias=False) + BatchNorm(eval) + ReLU fused into one
    # Pallas GEMM kernel; im2col patch extraction is plain-JAX glue at this toy size.
    xp = jnp.pad(x, ((0, 0), (3, 3), (3, 3), (0, 0)))
    ho = (h + 2 * 3 - 7) // 2 + 1
    wo = (w + 2 * 3 - 7) // 2 + 1
    cols = []
    for di in range(7):
        for dj in range(7):
            cols.append(xp[:, di:di + 2 * (ho - 1) + 1:2, dj:dj + 2 * (wo - 1) + 1:2, :])
    patches = jnp.stack(cols, axis=3).reshape(b * ho * wo, 49 * c)   # (di, dj, cin) order
    w_mat = p["conv_w"].reshape(49 * c, CONV_CHANNELS).astype(jnp.bfloat16)
    scale = p["bn_g"] / jnp.sqrt(p["bn_v"] + BN_EPS)                 # eval-mode BN folded
    shift = p["bn_b"] - p["bn_m"] * scale
    y = conv_bn_relu_gemm(patches, w_mat, scale, shift)
    y = y.reshape(b, ho, wo, CONV_CHANNELS)
    # MaxPool2d(kernel=3, stride=2, padding=1) — tiny window reduction, plain-JAX glue.
    y = jax.lax.reduce_window(y, jnp.array(-jnp.inf, y.dtype), jax.lax.max,
                              (1, 3, 3, 1), (1, 2, 2, 1),
                              ((0, 0), (1, 1), (1, 1), (0, 0)))
    hp, wp = y.shape[1], y.shape[2]
    feats = y.reshape(b, hp * wp, CONV_CHANNELS)
    pos = fourier_position_encoding((hp, wp), MAX_RESOLUTION, NUM_BANDS)
    pos = jnp.broadcast_to(pos[None], (b, hp * wp, pos.shape[-1]))
    return jnp.concatenate([feats, pos], axis=-1)                    # 'concat' pos


# =========================== parameter slab packing ===========================
# Pack all matmul weights into ONE bf16 slab (static, 8/16-aligned page offsets) and all
# LN params / biases into ONE f32 slab, so the fused kernel has ~8 resident operands.

def _pad_rows(m, rows):
    return jnp.pad(m, ((0, rows - m.shape[0]), (0, 0)))


def _w_page(attn, mlp):
    return jnp.concatenate([
        _pad_rows(attn["q"]["w"], OFF_WK - OFF_WQ),
        _pad_rows(attn["k"]["w"], OFF_WV - OFF_WK),
        _pad_rows(attn["v"]["w"], OFF_WO - OFF_WV),
        _pad_rows(attn["out"]["w"], OFF_W1 - OFF_WO),
        _pad_rows(mlp["fc1"]["w"], OFF_W2 - OFF_W1),
        _pad_rows(mlp["fc2"]["w"], W_PAGE - OFF_W2),
    ], axis=0)


def _p_page(ln_q, ln_kv, attn, ln_mlp, mlp):
    z = jnp.zeros((LATENT_CHANNELS,), jnp.float32)
    kv_g, kv_b = (ln_kv["g"], ln_kv["b"]) if ln_kv is not None else (z, z)
    rows = [ln_q["g"], ln_q["b"], kv_g, kv_b,
            attn["q"]["b"], attn["k"]["b"], attn["v"]["b"], attn["out"]["b"],
            ln_mlp["g"], ln_mlp["b"], mlp["fc1"]["b"], mlp["fc2"]["b"]]
    rows += [z] * (P_PAGE - len(rows))
    return jnp.stack(rows, axis=0)


def pack_core_params(params):
    enc, dec = params["enc_cross"], params["dec_cross"]
    w_pages = [_w_page(enc["attn"], enc["mlp"])]
    p_pages = [_p_page(enc["ln_q"], None, enc["attn"], enc["ln_mlp"], enc["mlp"])]
    for lp in params["self_attends"]:
        w_pages.append(_w_page(lp["attn"], lp["mlp"]))
        p_pages.append(_p_page(lp["ln"], None, lp["attn"], lp["ln_mlp"], lp["mlp"]))
    w_pages.append(_w_page(dec["attn"], dec["mlp"]))
    p_pages.append(_p_page(dec["ln_q"], dec["ln_kv"], dec["attn"], dec["ln_mlp"], dec["mlp"]))

    w_slab = jnp.concatenate(w_pages, axis=0).astype(jnp.bfloat16)   # (NBLK*224, C) bf16
    p_slab = jnp.concatenate(p_pages, axis=0)                        # (NBLK*16,  C) f32
    enc_lnkv = jnp.stack([enc["ln_kv"]["g"], enc["ln_kv"]["b"]], axis=0)   # (2, C_in)

    q0 = params["output_query"][0:1, :]                              # decoder query row 0
    wf_pad = jnp.zeros((LATENT_CHANNELS, LOGIT_LANES), jnp.float32)
    wf_pad = wf_pad.at[:, :NUM_CLASSES].set(params["final"]["w"]).astype(jnp.bfloat16)
    bf_pad = jnp.zeros((1, LOGIT_LANES), jnp.float32)
    bf_pad = bf_pad.at[0, :NUM_CLASSES].set(params["final"]["b"])
    return q0, w_slab, p_slab, enc_lnkv, wf_pad, bf_pad


# ================================ forward pass ================================

def perceiver_forward(params, img):
    inputs = image_preprocess(params["prep"], img)                   # (B, L_in, C_in)
    q0, w_slab, p_slab, enc_lnkv, wf_pad, bf_pad = pack_core_params(params)
    return perceiver_core(inputs, params["latents"], q0, w_slab, p_slab,
                          enc_lnkv, wf_pad, bf_pad)


# ================================ parameter init ================================

def _init_linear(key, din, dout):
    return {"w": 0.02 * jax.random.normal(key, (din, dout), jnp.float32),
            "b": jnp.zeros((dout,), jnp.float32)}


def _init_ln(c):
    return {"g": jnp.ones((c,), jnp.float32), "b": jnp.zeros((c,), jnp.float32)}


def _init_attention(key, q_dim, kv_dim, qk_ch, v_ch, out_ch):
    kq, kk, kv, ko = jax.random.split(key, 4)
    return {"q": _init_linear(kq, q_dim, qk_ch),
            "k": _init_linear(kk, kv_dim, qk_ch),
            "v": _init_linear(kv, kv_dim, v_ch),
            "out": _init_linear(ko, v_ch, out_ch)}


def _init_mlp(key, c):
    k1, k2 = jax.random.split(key)
    return {"fc1": _init_linear(k1, c, c), "fc2": _init_linear(k2, c, c)}


def _init_cross(key, q_dim, kv_dim):
    ka, km = jax.random.split(key)
    return {"ln_q": _init_ln(q_dim), "ln_kv": _init_ln(kv_dim),
            "attn": _init_attention(ka, q_dim, kv_dim, q_dim, q_dim, q_dim),
            "ln_mlp": _init_ln(q_dim), "mlp": _init_mlp(km, q_dim)}


def _init_self(key, c):
    ka, km = jax.random.split(key)
    return {"ln": _init_ln(c), "attn": _init_attention(ka, c, c, c, c, c),
            "ln_mlp": _init_ln(c), "mlp": _init_mlp(km, c)}


def init_params(key):
    keys = jax.random.split(key, 7)
    self_keys = jax.random.split(keys[4], NUM_SELF_ATTENDS)
    return {
        "prep": {
            # stored (kh, kw, cin, cout); PyTorch stores (cout, cin, kh, kw)
            "conv_w": 0.02 * jax.random.normal(
                keys[0], (7, 7, IMG_CHANNELS, CONV_CHANNELS), jnp.float32),
            "bn_g": jnp.ones((CONV_CHANNELS,), jnp.float32),
            "bn_b": jnp.zeros((CONV_CHANNELS,), jnp.float32),
            "bn_m": jnp.zeros((CONV_CHANNELS,), jnp.float32),
            "bn_v": jnp.ones((CONV_CHANNELS,), jnp.float32),
        },
        "latents": 0.02 * jax.random.normal(keys[1], (NUM_LATENTS, LATENT_CHANNELS), jnp.float32),
        "output_query": 0.02 * jax.random.normal(keys[2], (NUM_CLASSES, LATENT_CHANNELS), jnp.float32),
        "enc_cross": _init_cross(keys[3], LATENT_CHANNELS,
                                 CONV_CHANNELS + 2 * (2 * NUM_BANDS + 1)),
        "self_attends": [_init_self(k, LATENT_CHANNELS) for k in self_keys],
        "dec_cross": _init_cross(keys[5], LATENT_CHANNELS, LATENT_CHANNELS),
        "final": _init_linear(keys[6], LATENT_CHANNELS, NUM_CLASSES),
    }


# ===================================== main =====================================

if __name__ == "__main__":
    root = jax.random.PRNGKey(0)
    kp, kx = jax.random.split(root)
    params = init_params(kp)
    img = jax.random.normal(kx, (2, IMG_CHANNELS) + IMG_SIZE, jnp.float32)  # NCHW

    fwd = jax.jit(perceiver_forward)
    logits = jax.block_until_ready(fwd(params, img))

    assert logits.shape == (2, NUM_CLASSES), logits.shape
    assert bool(jnp.all(jnp.isfinite(logits)))
    print("KERNEL_OK")
</pallas_src>

<mosaic_0001>
module attributes {stable_mosaic.version = 11 : i64} {
  func.func @_conv_gemm_kernel(%arg0: i32, %arg1: memref<128x147xf32, #tpu.memory_space<vmem>>, %arg2: memref<147x16xbf16, #tpu.memory_space<vmem>>, %arg3: memref<1x16xf32, #tpu.memory_space<vmem>>, %arg4: memref<1x16xf32, #tpu.memory_space<vmem>>, %arg5: memref<128x16xf32, #tpu.memory_space<vmem>>) attributes {dimension_semantics = [#tpu.dimension_semantics<parallel>], iteration_bounds = array<i64: 1>, scalar_prefetch = 0 : i64, scratch_operands = 0 : i64, tpu.core_type = #tpu.core_type<tc>, window_params = [{transform_indices = @transform_0, window_bounds = array<i64: 128, 147>}, {pipeline_mode = #tpu.pipeline_mode<synchronous>, transform_indices = @transform_1, window_bounds = array<i64: 147, 16>}, {pipeline_mode = #tpu.pipeline_mode<synchronous>, transform_indices = @transform_2, window_bounds = array<i64: 1, 16>}, {pipeline_mode = #tpu.pipeline_mode<synchronous>, transform_indices = @transform_3, window_bounds = array<i64: 1, 16>}, {transform_indices = @transform_4, window_bounds = array<i64: 128, 16>}]} {
    %c0 = arith.constant 0 : index
    %c0_0 = arith.constant 0 : index
    %0 = vector.load %arg1[%c0, %c0_0] : memref<128x147xf32, #tpu.memory_space<vmem>>, vector<128x147xf32>
    %1 = arith.truncf %0 : vector<128x147xf32> to vector<128x147xbf16>
    %c0_1 = arith.constant 0 : index
    %c0_2 = arith.constant 0 : index
    %2 = vector.load %arg2[%c0_1, %c0_2] : memref<147x16xbf16, #tpu.memory_space<vmem>>, vector<147x16xbf16>
    %cst = arith.constant dense<0.000000e+00> : vector<128x16xf32>
    %3 = tpu.matmul %1, %2, %cst {dimension_numbers = #tpu.dot_dimension_numbers<[1], [0], [0], [1], [0, 0, 1, 1], [], []>} : vector<128x147xbf16>, vector<147x16xbf16>, vector<128x16xf32> -> vector<128x16xf32>
    %c0_3 = arith.constant 0 : index
    %c0_4 = arith.constant 0 : index
    %4 = vector.load %arg3[%c0_3, %c0_4] : memref<1x16xf32, #tpu.memory_space<vmem>>, vector<1x16xf32>
    %5 = vector.broadcast %4 : vector<1x16xf32> to vector<128x16xf32>
    %6 = arith.mulf %3, %5 : vector<128x16xf32>
    %c0_5 = arith.constant 0 : index
    %c0_6 = arith.constant 0 : index
    %7 = vector.load %arg4[%c0_5, %c0_6] : memref<1x16xf32, #tpu.memory_space<vmem>>, vector<1x16xf32>
    %8 = vector.broadcast %7 : vector<1x16xf32> to vector<128x16xf32>
    %9 = arith.addf %6, %8 : vector<128x16xf32>
    %cst_7 = arith.constant 0.000000e+00 : f32
    %10 = vector.broadcast %cst_7 : f32 to vector<128x16xf32>
    %11 = arith.maximumf %9, %10 : vector<128x16xf32>
    %c0_8 = arith.constant 0 : index
    %c0_9 = arith.constant 0 : index
    %12 = vector.load %arg5[%c0_8, %c0_9] : memref<128x16xf32, #tpu.memory_space<vmem>>, vector<128x16xf32>
    tpu.vector_store %arg5[%c0_8, %c0_9], %11 {strides = array<i32>} : memref<128x16xf32, #tpu.memory_space<vmem>>, vector<128x16xf32>,
    return
  }
  func.func @transform_0(%arg0: i32) -> (i32, i32) {
    %c0_i32 = arith.constant 0 : i32
    %c0_i32_0 = arith.constant 0 : i32
    return %arg0, %c0_i32 : i32, i32
  }
  func.func @transform_1(%arg0: i32) -> (i32, i32) {
    %c0_i32 = arith.constant 0 : i32
    %c0_i32_0 = arith.constant 0 : i32
    %c0_i32_1 = arith.constant 0 : i32
    return %c0_i32, %c0_i32_0 : i32, i32
  }
  func.func @transform_2(%arg0: i32) -> (i32, i32) {
    %c0_i32 = arith.constant 0 : i32
    %c0_i32_0 = arith.constant 0 : i32
    %c0_i32_1 = arith.constant 0 : i32
    return %c0_i32, %c0_i32_0 : i32, i32
  }
  func.func @transform_3(%arg0: i32) -> (i32, i32) {
    %c0_i32 = arith.constant 0 : i32
    %c0_i32_0 = arith.constant 0 : i32
    %c0_i32_1 = arith.constant 0 : i32
    return %c0_i32, %c0_i32_0 : i32, i32
  }
  func.func @transform_4(%arg0: i32) -> (i32, i32) {
    %c0_i32 = arith.constant 0 : i32
    %c0_i32_0 = arith.constant 0 : i32
    return %arg0, %c0_i32 : i32, i32
  }
}

module attributes {stable_mosaic.version = 11 : i64} {
  func.func @_perceiver_core_kernel(%arg0: i32, %arg1: memref<2x16x34xf32, #tpu.memory_space<vmem>>, %arg2: memref<8x32xf32, #tpu.memory_space<vmem>>, %arg3: memref<1x32xf32, #tpu.memory_space<vmem>>, %arg4: memref<896x32xbf16, #tpu.memory_space<vmem>>, %arg5: memref<64x32xf32, #tpu.memory_space<vmem>>, %arg6: memref<2x34xf32, #tpu.memory_space<vmem>>, %arg7: memref<32x128xbf16, #tpu.memory_space<vmem>>, %arg8: memref<1x128xf32, #tpu.memory_space<vmem>>, %arg9: memref<2x128xf32, #tpu.memory_space<vmem>>) attributes {dimension_semantics = [#tpu.dimension_semantics<parallel>], iteration_bounds = array<i64: 1>, scalar_prefetch = 0 : i64, scratch_operands = 0 : i64, tpu.core_type = #tpu.core_type<tc>, window_params = [{transform_indices = @transform_0, window_bounds = array<i64: 2, 16, 34>}, {pipeline_mode = #tpu.pipeline_mode<synchronous>, transform_indices = @transform_1, window_bounds = array<i64: 8, 32>}, {pipeline_mode = #tpu.pipeline_mode<synchronous>, transform_indices = @transform_2, window_bounds = array<i64: 1, 32>}, {pipeline_mode = #tpu.pipeline_mode<synchronous>, transform_indices = @transform_3, window_bounds = array<i64: 896, 32>}, {pipeline_mode = #tpu.pipeline_mode<synchronous>, transform_indices = @transform_4, window_bounds = array<i64: 64, 32>}, {pipeline_mode = #tpu.pipeline_mode<synchronous>, transform_indices = @transform_5, window_bounds = array<i64: 2, 34>}, {pipeline_mode = #tpu.pipeline_mode<synchronous>, transform_indices = @transform_6, window_bounds = array<i64: 32, 128>}, {pipeline_mode = #tpu.pipeline_mode<synchronous>, transform_indices = @transform_7, window_bounds = array<i64: 1, 128>}, {transform_indices = @transform_8, window_bounds = array<i64: 2, 128>}]} {
    %c0 = arith.constant 0 : index
    %c0_0 = arith.constant 0 : index
    %0 = vector.load %arg2[%c0, %c0_0] : memref<8x32xf32, #tpu.memory_space<vmem>>, vector<8x32xf32>
    %c0_1 = arith.constant 0 : index
    %c0_2 = arith.constant 0 : index
    %1 = vector.load %arg3[%c0_1, %c0_2] : memref<1x32xf32, #tpu.memory_space<vmem>>, vector<1x32xf32>
    %c0_3 = arith.constant 0 : index
    %c0_4 = arith.constant 0 : index
    %2 = vector.load %arg6[%c0_3, %c0_4] : memref<2x34xf32, #tpu.memory_space<vmem>>, vector<2x34xf32>
    %c0_5 = arith.constant 0 : index
    %c0_6 = arith.constant 0 : index
    %3 = vector.load %arg7[%c0_5, %c0_6] : memref<32x128xbf16, #tpu.memory_space<vmem>>, vector<32x128xbf16>
    %c0_7 = arith.constant 0 : index
    %c0_8 = arith.constant 0 : index
    %4 = vector.load %arg8[%c0_7, %c0_8] : memref<1x128xf32, #tpu.memory_space<vmem>>, vector<1x128xf32>
    %c0_9 = arith.constant 0 : index
    %c0_10 = arith.constant 0 : index
    %c0_11 = arith.constant 0 : index
    %5 = vector.load %arg1[%c0_9, %c0_10, %c0_11] : memref<2x16x34xf32, #tpu.memory_space<vmem>>, vector<1x16x34xf32>
    %6 = vector.shape_cast %5 : vector<1x16x34xf32> to vector<16x34xf32>
    %c0_12 = arith.constant 0 : index
    %c0_13 = arith.constant 0 : index
    %7 = vector.load %arg5[%c0_12, %c0_13] : memref<64x32xf32, #tpu.memory_space<vmem>>, vector<16x32xf32>
    %c0_14 = arith.constant 0 : index
    %c0_15 = arith.constant 0 : index
    %8 = vector.load %arg4[%c0_14, %c0_15] : memref<896x32xbf16, #tpu.memory_space<vmem>>, vector<32x32xbf16>
    %c32 = arith.constant 32 : index
    %c0_16 = arith.constant 0 : index
    %9 = vector.load %arg4[%c32, %c0_16] : memref<896x32xbf16, #tpu.memory_space<vmem>>, vector<34x32xbf16>
    %c80 = arith.constant 80 : index
    %c0_17 = arith.constant 0 : index
    %10 = vector.load %arg4[%c80, %c0_17] : memref<896x32xbf16, #tpu.memory_space<vmem>>, vector<34x32xbf16>
    %c128 = arith.constant 128 : index
    %c0_18 = arith.constant 0 : index
    %11 = vector.load %arg4[%c128, %c0_18] : memref<896x32xbf16, #tpu.memory_space<vmem>>, vector<32x32xbf16>
    %c160 = arith.constant 160 : index
    %c0_19 = arith.constant 0 : index
    %12 = vector.load %arg4[%c160, %c0_19] : memref<896x32xbf16, #tpu.memory_space<vmem>>, vector<32x32xbf16>
    %c192 = arith.constant 192 : index
    %c0_20 = arith.constant 0 : index
    %13 = vector.load %arg4[%c192, %c0_20] : memref<896x32xbf16, #tpu.memory_space<vmem>>, vector<32x32xbf16>
    %14 = vector.extract_strided_slice %7 {offsets = [0, 0], sizes = [2, 32], strides = [1, 1]} : vector<16x32xf32> to vector<2x32xf32>
    %15 = vector.extract_strided_slice %14 {offsets = [0, 0], sizes = [1, 32], strides = [1, 1]} : vector<2x32xf32> to vector<1x32xf32>
    %16 = vector.extract_strided_slice %14 {offsets = [1, 0], sizes = [1, 32], strides = [1, 1]} : vector<2x32xf32> to vector<1x32xf32>
    %cst = arith.constant dense<0.000000e+00> : vector<8xf32>
    %17 = vector.multi_reduction <add>, %0, %cst [1] : vector<8x32xf32> to vector<8xf32>
    %18 = vector.shape_cast %17 : vector<8xf32> to vector<8x1xf32>
    %cst_21 = arith.constant 3.200000e+01 : f32
    %19 = vector.broadcast %cst_21 : f32 to vector<8x1xf32>
    %20 = arith.divf %18, %19 : vector<8x1xf32>
    %21 = vector.broadcast %20 : vector<8x1xf32> to vector<8x32xf32>
    %22 = arith.subf %0, %21 : vector<8x32xf32>
    %23 = arith.mulf %22, %22 : vector<8x32xf32>
    %cst_22 = arith.constant dense<0.000000e+00> : vector<8xf32>
    %24 = vector.multi_reduction <add>, %23, %cst_22 [1] : vector<8x32xf32> to vector<8xf32>
    %25 = vector.shape_cast %24 : vector<8xf32> to vector<8x1xf32>
    %cst_23 = arith.constant 3.200000e+01 : f32
    %26 = vector.broadcast %cst_23 : f32 to vector<8x1xf32>
    %27 = arith.divf %25, %26 : vector<8x1xf32>
    %cst_24 = arith.constant 9.99999974E-6 : f32
    %28 = vector.broadcast %cst_24 : f32 to vector<8x1xf32>
    %29 = arith.addf %27, %28 : vector<8x1xf32>
    %30 = math.rsqrt %29 : vector<8x1xf32>
    %31 = vector.broadcast %30 : vector<8x1xf32> to vector<8x32xf32>
    %32 = arith.mulf %22, %31 : vector<8x32xf32>
    %33 = vector.broadcast %15 : vector<1x32xf32> to vector<8x32xf32>
    %34 = arith.mulf %32, %33 : vector<8x32xf32>
    %35 = vector.broadcast %16 : vector<1x32xf32> to vector<8x32xf32>
    %36 = arith.addf %34, %35 : vector<8x32xf32>
    %37 = vector.extract_strided_slice %2 {offsets = [0, 0], sizes = [1, 34], strides = [1, 1]} : vector<2x34xf32> to vector<1x34xf32>
    %38 = vector.extract_strided_slice %2 {offsets = [1, 0], sizes = [1, 34], strides = [1, 1]} : vector<2x34xf32> to vector<1x34xf32>
    %cst_25 = arith.constant dense<0.000000e+00> : vector<16xf32>
    %39 = vector.multi_reduction <add>, %6, %cst_25 [1] : vector<16x34xf32> to vector<16xf32>
    %40 = vector.shape_cast %39 : vector<16xf32> to vector<16x1xf32>
    %cst_26 = arith.constant 3.400000e+01 : f32
    %41 = vector.broadcast %cst_26 : f32 to vector<16x1xf32>
    %42 = arith.divf %40, %41 : vector<16x1xf32>
    %43 = vector.broadcast %42 : vector<16x1xf32> to vector<16x34xf32>
    %44 = arith.subf %6, %43 : vector<16x34xf32>
    %45 = arith.mulf %44, %44 : vector<16x34xf32>
    %cst_27 = arith.constant dense<0.000000e+00> : vector<16xf32>
    %46 = vector.multi_reduction <add>, %45, %cst_27 [1] : vector<16x34xf32> to vector<16xf32>
    %47 = vector.shape_cast %46 : vector<16xf32> to vector<16x1xf32>
    %cst_28 = arith.constant 3.400000e+01 : f32
    %48 = vector.broadcast %cst_28 : f32 to vector<16x1xf32>
    %49 = arith.divf %47, %48 : vector<16x1xf32>
    %cst_29 = arith.constant 9.99999974E-6 : f32
    %50 = vector.broadcast %cst_29 : f32 to vector<16x1xf32>
    %51 = arith.addf %49, %50 : vector<16x1xf32>
    %52 = math.rsqrt %51 : vector<16x1xf32>
    %53 = vector.broadcast %52 : vector<16x1xf32> to vector<16x34xf32>
    %54 = arith.mulf %44, %53 : vector<16x34xf32>
    %55 = vector.broadcast %37 : vector<1x34xf32> to vector<16x34xf32>
    %56 = arith.mulf %54, %55 : vector<16x34xf32>
    %57 = vector.broadcast %38 : vector<1x34xf32> to vector<16x34xf32>
    %58 = arith.addf %56, %57 : vector<16x34xf32>
    %59 = arith.truncf %36 : vector<8x32xf32> to vector<8x32xbf16>
    %cst_30 = arith.constant dense<0.000000e+00> : vector<8x32xf32>
    %60 = tpu.matmul %59, %8, %cst_30 {dimension_numbers = #tpu.dot_dimension_numbers<[1], [0], [0], [1], [0, 0, 1, 1], [], []>} : vector<8x32xbf16>, vector<32x32xbf16>, vector<8x32xf32> -> vector<8x32xf32>
    %61 = vector.extract_strided_slice %7 {offsets = [4, 0], sizes = [1, 32], strides = [1, 1]} : vector<16x32xf32> to vector<1x32xf32>
    %62 = vector.broadcast %61 : vector<1x32xf32> to vector<8x32xf32>
    %63 = arith.addf %60, %62 : vector<8x32xf32>
    %64 = arith.truncf %58 : vector<16x34xf32> to vector<16x34xbf16>
    %cst_31 = arith.constant dense<0.000000e+00> : vector<16x32xf32>
    %65 = tpu.matmul %64, %9, %cst_31 {dimension_numbers = #tpu.dot_dimension_numbers<[1], [0], [0], [1], [0, 0, 1, 1], [], []>} : vector<16x34xbf16>, vector<34x32xbf16>, vector<16x32xf32> -> vector<16x32xf32>
    %66 = vector.extract_strided_slice %7 {offsets = [5, 0], sizes = [1, 32], strides = [1, 1]} : vector<16x32xf32> to vector<1x32xf32>
    %67 = vector.broadcast %66 : vector<1x32xf32> to vector<16x32xf32>
    %68 = arith.addf %65, %67 : vector<16x32xf32>
    %69 = arith.truncf %58 : vector<16x34xf32> to vector<16x34xbf16>
    %cst_32 = arith.constant dense<0.000000e+00> : vector<16x32xf32>
    %70 = tpu.matmul %69, %10, %cst_32 {dimension_numbers = #tpu.dot_dimension_numbers<[1], [0], [0], [1], [0, 0, 1, 1], [], []>} : vector<16x34xbf16>, vector<34x32xbf16>, vector<16x32xf32> -> vector<16x32xf32>
    %71 = vector.extract_strided_slice %7 {offsets = [6, 0], sizes = [1, 32], strides = [1, 1]} : vector<16x32xf32> to vector<1x32xf32>
    %72 = vector.broadcast %71 : vector<1x32xf32> to vector<16x32xf32>
    %73 = arith.addf %70, %72 : vector<16x32xf32>
    %74 = arith.truncf %63 : vector<8x32xf32> to vector<8x32xbf16>
    %75 = arith.truncf %68 : vector<16x32xf32> to vector<16x32xbf16>
    %cst_33 = arith.constant dense<0.000000e+00> : vector<8x16xf32>
    %76 = tpu.matmul %74, %75, %cst_33 {dimension_numbers = #tpu.dot_dimension_numbers<[1], [1], [0], [0], [0, 0, 1, 0], [], []>} : vector<8x32xbf16>, vector<16x32xbf16>, vector<8x16xf32> -> vector<8x16xf32>
    %cst_34 = arith.constant 0.176776692 : f32
    %77 = vector.broadcast %cst_34 : f32 to vector<8x16xf32>
    %78 = arith.mulf %76, %77 : vector<8x16xf32>
    %cst_35 = arith.constant dense<0xFF800000> : vector<8xf32>
    %79 = vector.multi_reduction <maximumf>, %78, %cst_35 [1] : vector<8x16xf32> to vector<8xf32>
    %80 = vector.shape_cast %79 : vector<8xf32> to vector<8x1xf32>
    %81 = vector.broadcast %80 : vector<8x1xf32> to vector<8x16xf32>
    %82 = arith.subf %78, %81 : vector<8x16xf32>
    %83 = math.exp %82 : vector<8x16xf32>
    %cst_36 = arith.constant dense<0.000000e+00> : vector<8xf32>
    %84 = vector.multi_reduction <add>, %83, %cst_36 [1] : vector<8x16xf32> to vector<8xf32>
    %85 = vector.shape_cast %84 : vector<8xf32> to vector<8x1xf32>
    %86 = tpu.reciprocal %85 {approx = true} : vector<8x1xf32> -> vector<8x1xf32>
    %87 = vector.broadcast %86 : vector<8x1xf32> to vector<8x16xf32>
    %88 = arith.mulf %83, %87 : vector<8x16xf32>
    %89 = arith.truncf %88 : vector<8x16xf32> to vector<8x16xbf16>
    %90 = arith.truncf %73 : vector<16x32xf32> to vector<16x32xbf16>
    %cst_37 = arith.constant dense<0.000000e+00> : vector<8x32xf32>
    %91 = tpu.matmul %89, %90, %cst_37 {dimension_numbers = #tpu.dot_dimension_numbers<[1], [0], [0], [1], [0, 0, 1, 1], [], []>} : vector<8x16xbf16>, vector<16x32xbf16>, vector<8x32xf32> -> vector<8x32xf32>
    %92 = arith.truncf %91 : vector<8x32xf32> to vector<8x32xbf16>
    %cst_38 = arith.constant dense<0.000000e+00> : vector<8x32xf32>
    %93 = tpu.matmul %92, %11, %cst_38 {dimension_numbers = #tpu.dot_dimension_numbers<[1], [0], [0], [1], [0, 0, 1, 1], [], []>} : vector<8x32xbf16>, vector<32x32xbf16>, vector<8x32xf32> -> vector<8x32xf32>
    %94 = vector.extract_strided_slice %7 {offsets = [7, 0], sizes = [1, 32], strides = [1, 1]} : vector<16x32xf32> to vector<1x32xf32>
    %95 = vector.broadcast %94 : vector<1x32xf32> to vector<8x32xf32>
    %96 = arith.addf %93, %95 : vector<8x32xf32>
    %97 = arith.addf %0, %96 : vector<8x32xf32>
    %98 = vector.extract_strided_slice %7 {offsets = [8, 0], sizes = [2, 32], strides = [1, 1]} : vector<16x32xf32> to vector<2x32xf32>
    %99 = vector.extract_strided_slice %98 {offsets = [0, 0], sizes = [1, 32], strides = [1, 1]} : vector<2x32xf32> to vector<1x32xf32>
    %100 = vector.extract_strided_slice %98 {offsets = [1, 0], sizes = [1, 32], strides = [1, 1]} : vector<2x32xf32> to vector<1x32xf32>
    %cst_39 = arith.constant dense<0.000000e+00> : vector<8xf32>
    %101 = vector.multi_reduction <add>, %97, %cst_39 [1] : vector<8x32xf32> to vector<8xf32>
    %102 = vector.shape_cast %101 : vector<8xf32> to vector<8x1xf32>
    %cst_40 = arith.constant 3.200000e+01 : f32
    %103 = vector.broadcast %cst_40 : f32 to vector<8x1xf32>
    %104 = arith.divf %102, %103 : vector<8x1xf32>
    %105 = vector.broadcast %104 : vector<8x1xf32> to vector<8x32xf32>
    %106 = arith.subf %97, %105 : vector<8x32xf32>
    %107 = arith.mulf %106, %106 : vector<8x32xf32>
    %cst_41 = arith.constant dense<0.000000e+00> : vector<8xf32>
    %108 = vector.multi_reduction <add>, %107, %cst_41 [1] : vector<8x32xf32> to vector<8xf32>
    %109 = vector.shape_cast %108 : vector<8xf32> to vector<8x1xf32>
    %cst_42 = arith.constant 3.200000e+01 : f32
    %110 = vector.broadcast %cst_42 : f32 to vector<8x1xf32>
    %111 = arith.divf %109, %110 : vector<8x1xf32>
    %cst_43 = arith.constant 9.99999974E-6 : f32
    %112 = vector.broadcast %cst_43 : f32 to vector<8x1xf32>
    %113 = arith.addf %111, %112 : vector<8x1xf32>
    %114 = math.rsqrt %113 : vector<8x1xf32>
    %115 = vector.broadcast %114 : vector<8x1xf32> to vector<8x32xf32>
    %116 = arith.mulf %106, %115 : vector<8x32xf32>
    %117 = vector.broadcast %99 : vector<1x32xf32> to vector<8x32xf32>
    %118 = arith.mulf %116, %117 : vector<8x32xf32>
    %119 = vector.broadcast %100 : vector<1x32xf32> to vector<8x32xf32>
    %120 = arith.addf %118, %119 : vector<8x32xf32>
    %121 = arith.truncf %120 : vector<8x32xf32> to vector<8x32xbf16>
    %cst_44 = arith.constant dense<0.000000e+00> : vector<8x32xf32>
    %122 = tpu.matmul %121, %12, %cst_44 {dimension_numbers = #tpu.dot_dimension_numbers<[1], [0], [0], [1], [0, 0, 1, 1], [], []>} : vector<8x32xbf16>, vector<32x32xbf16>, vector<8x32xf32> -> vector<8x32xf32>
    %123 = vector.extract_strided_slice %7 {offsets = [10, 0], sizes = [1, 32], strides = [1, 1]} : vector<16x32xf32> to vector<1x32xf32>
    %124 = vector.broadcast %123 : vector<1x32xf32> to vector<8x32xf32>
    %125 = arith.addf %122, %124 : vector<8x32xf32>
    %cst_45 = arith.constant 5.000000e-01 : f32
    %126 = vector.broadcast %cst_45 : f32 to vector<8x32xf32>
    %127 = arith.mulf %126, %125 : vector<8x32xf32>
    %cst_46 = arith.constant 4.471500e-02 : f32
    %128 = vector.broadcast %cst_46 : f32 to vector<8x32xf32>
    %129 = arith.mulf %128, %125 : vector<8x32xf32>
    %130 = arith.mulf %129, %125 : vector<8x32xf32>
    %131 = arith.mulf %130, %125 : vector<8x32xf32>
    %132 = arith.addf %125, %131 : vector<8x32xf32>
    %cst_47 = arith.constant 0.797884583 : f32
    %133 = vector.broadcast %cst_47 : f32 to vector<8x32xf32>
    %134 = arith.mulf %133, %132 : vector<8x32xf32>
    %135 = math.tanh %134 : vector<8x32xf32>
    %cst_48 = arith.constant 1.000000e+00 : f32
    %136 = vector.broadcast %cst_48 : f32 to vector<8x32xf32>
    %137 = arith.addf %136, %135 : vector<8x32xf32>
    %138 = arith.mulf %127, %137 : vector<8x32xf32>
    %139 = arith.truncf %138 : vector<8x32xf32> to vector<8x32xbf16>
    %cst_49 = arith.constant dense<0.000000e+00> : vector<8x32xf32>
    %140 = tpu.matmul %139, %13, %cst_49 {dimension_numbers = #tpu.dot_dimension_numbers<[1], [0], [0], [1], [0, 0, 1, 1], [], []>} : vector<8x32xbf16>, vector<32x32xbf16>, vector<8x32xf32> -> vector<8x32xf32>
    %141 = vector.extract_strided_slice %7 {offsets = [11, 0], sizes = [1, 32], strides = [1, 1]} : vector<16x32xf32> to vector<1x32xf32>
    %142 = vector.broadcast %141 : vector<1x32xf32> to vector<8x32xf32>
    %143 = arith.addf %140, %142 : vector<8x32xf32>
    %144 = arith.addf %97, %143 : vector<8x32xf32>
    %c0_i32 = arith.constant 0 : i32
    %c2_i32 = arith.constant 2 : i32
    %145 = arith.addi %c0_i32, %c2_i32 : i32
    %c1_i32 = arith.constant 1 : i32
    %146 = scf.for %arg10 = %c0_i32 to %145 step %c1_i32 iter_args(%arg11 = %144) -> (vector<8x32xf32>)  : i32 {
      %c16 = arith.constant 16 : index
      %c0_184 = arith.constant 0 : index
      %559 = vector.load %arg5[%c16, %c0_184] : memref<64x32xf32, #tpu.memory_space<vmem>>, vector<16x32xf32>
      %c224 = arith.constant 224 : index
      %c0_185 = arith.constant 0 : index
      %560 = vector.load %arg4[%c224, %c0_185] : memref<896x32xbf16, #tpu.memory_space<vmem>>, vector<32x32xbf16>
      %c256 = arith.constant 256 : index
      %c0_186 = arith.constant 0 : index
      %561 = vector.load %arg4[%c256, %c0_186] : memref<896x32xbf16, #tpu.memory_space<vmem>>, vector<32x32xbf16>
      %c304 = arith.constant 304 : index
      %c0_187 = arith.constant 0 : index
      %562 = vector.load %arg4[%c304, %c0_187] : memref<896x32xbf16, #tpu.memory_space<vmem>>, vector<32x32xbf16>
      %c352 = arith.constant 352 : index
      %c0_188 = arith.constant 0 : index
      %563 = vector.load %arg4[%c352, %c0_188] : memref<896x32xbf16, #tpu.memory_space<vmem>>, vector<32x32xbf16>
      %c384 = arith.constant 384 : index
      %c0_189 = arith.constant 0 : index
      %564 = vector.load %arg4[%c384, %c0_189] : memref<896x32xbf16, #tpu.memory_space<vmem>>, vector<32x32xbf16>
      %c416 = arith.constant 416 : index
      %c0_190 = arith.constant 0 : index
      %565 = vector.load %arg4[%c416, %c0_190] : memref<896x32xbf16, #tpu.memory_space<vmem>>, vector<32x32xbf16>
      %566 = vector.extract_strided_slice %559 {offsets = [0, 0], sizes = [2, 32], strides = [1, 1]} : vector<16x32xf32> to vector<2x32xf32>
      %567 = vector.extract_strided_slice %566 {offsets = [0, 0], sizes = [1, 32], strides = [1, 1]} : vector<2x32xf32> to vector<1x32xf32>
      %568 = vector.extract_strided_slice %566 {offsets = [1, 0], sizes = [1, 32], strides = [1, 1]} : vector<2x32xf32> to vector<1x32xf32>
      %cst_191 = arith.constant dense<0.000000e+00> : vector<8xf32>
      %569 = vector.multi_reduction <add>, %arg11, %cst_191 [1] : vector<8x32xf32> to vector<8xf32>
      %570 = vector.shape_cast %569 : vector<8xf32> to vector<8x1xf32>
      %cst_192 = arith.constant 3.200000e+01 : f32
      %571 = vector.broadcast %cst_192 : f32 to vector<8x1xf32>
      %572 = arith.divf %570, %571 : vector<8x1xf32>
      %573 = vector.broadcast %572 : vector<8x1xf32> to vector<8x32xf32>
      %574 = arith.subf %arg11, %573 : vector<8x32xf32>
      %575 = arith.mulf %574, %574 : vector<8x32xf32>
      %cst_193 = arith.constant dense<0.000000e+00> : vector<8xf32>
      %576 = vector.multi_reduction <add>, %575, %cst_193 [1] : vector<8x32xf32> to vector<8xf32>
      %577 = vector.shape_cast %576 : vector<8xf32> to vector<8x1xf32>
      %cst_194 = arith.constant 3.200000e+01 : f32
      %578 = vector.broadcast %cst_194 : f32 to vector<8x1xf32>
      %579 = arith.divf %577, %578 : vector<8x1xf32>
      %cst_195 = arith.constant 9.99999974E-6 : f32
      %580 = vector.broadcast %cst_195 : f32 to vector<8x1xf32>
      %581 = arith.addf %579, %580 : vector<8x1xf32>
      %582 = math.rsqrt %581 : vector<8x1xf32>
      %583 = vector.broadcast %582 : vector<8x1xf32> to vector<8x32xf32>
      %584 = arith.mulf %574, %583 : vector<8x32xf32>
      %585 = vector.broadcast %567 : vector<1x32xf32> to vector<8x32xf32>
      %586 = arith.mulf %584, %585 : vector<8x32xf32>
      %587 = vector.broadcast %568 : vector<1x32xf32> to vector<8x32xf32>
      %588 = arith.addf %586, %587 : vector<8x32xf32>
      %589 = arith.truncf %588 : vector<8x32xf32> to vector<8x32xbf16>
      %cst_196 = arith.constant dense<0.000000e+00> : vector<8x32xf32>
      %590 = tpu.matmul %589, %560, %cst_196 {dimension_numbers = #tpu.dot_dimension_numbers<[1], [0], [0], [1], [0, 0, 1, 1], [], []>} : vector<8x32xbf16>, vector<32x32xbf16>, vector<8x32xf32> -> vector<8x32xf32>
      %591 = vector.extract_strided_slice %559 {offsets = [4, 0], sizes = [1, 32], strides = [1, 1]} : vector<16x32xf32> to vector<1x32xf32>
      %592 = vector.broadcast %591 : vector<1x32xf32> to vector<8x32xf32>
      %593 = arith.addf %590, %592 : vector<8x32xf32>
      %594 = arith.truncf %588 : vector<8x32xf32> to vector<8x32xbf16>
      %cst_197 = arith.constant dense<0.000000e+00> : vector<8x32xf32>
      %595 = tpu.matmul %594, %561, %cst_197 {dimension_numbers = #tpu.dot_dimension_numbers<[1], [0], [0], [1], [0, 0, 1, 1], [], []>} : vector<8x32xbf16>, vector<32x32xbf16>, vector<8x32xf32> -> vector<8x32xf32>
      %596 = vector.extract_strided_slice %559 {offsets = [5, 0], sizes = [1, 32], strides = [1, 1]} : vector<16x32xf32> to vector<1x32xf32>
      %597 = vector.broadcast %596 : vector<1x32xf32> to vector<8x32xf32>
      %598 = arith.addf %595, %597 : vector<8x32xf32>
      %599 = arith.truncf %588 : vector<8x32xf32> to vector<8x32xbf16>
      %cst_198 = arith.constant dense<0.000000e+00> : vector<8x32xf32>
      %600 = tpu.matmul %599, %562, %cst_198 {dimension_numbers = #tpu.dot_dimension_numbers<[1], [0], [0], [1], [0, 0, 1, 1], [], []>} : vector<8x32xbf16>, vector<32x32xbf16>, vector<8x32xf32> -> vector<8x32xf32>
      %601 = vector.extract_strided_slice %559 {offsets = [6, 0], sizes = [1, 32], strides = [1, 1]} : vector<16x32xf32> to vector<1x32xf32>
      %602 = vector.broadcast %601 : vector<1x32xf32> to vector<8x32xf32>
      %603 = arith.addf %600, %602 : vector<8x32xf32>
      %604 = vector.extract_strided_slice %593 {offsets = [0, 0], sizes = [8, 8], strides = [1, 1]} : vector<8x32xf32> to vector<8x8xf32>
      %605 = arith.truncf %604 : vector<8x8xf32> to vector<8x8xbf16>
      %606 = vector.extract_strided_slice %598 {offsets = [0, 0], sizes = [8, 8], strides = [1, 1]} : vector<8x32xf32> to vector<8x8xf32>
      %607 = arith.truncf %606 : vector<8x8xf32> to vector<8x8xbf16>
      %cst_199 = arith.constant dense<0.000000e+00> : vector<8x8xf32>
      %608 = tpu.matmul %605, %607, %cst_199 {dimension_numbers = #tpu.dot_dimension_numbers<[1], [1], [0], [0], [0, 0, 1, 0], [], []>} : vector<8x8xbf16>, vector<8x8xbf16>, vector<8x8xf32> -> vector<8x8xf32>
      %cst_200 = arith.constant 0.353553385 : f32
      %609 = vector.broadcast %cst_200 : f32 to vector<8x8xf32>
      %610 = arith.mulf %608, %609 : vector<8x8xf32>
      %cst_201 = arith.constant dense<0xFF800000> : vector<8xf32>
      %611 = vector.multi_reduction <maximumf>, %610, %cst_201 [1] : vector<8x8xf32> to vector<8xf32>
      %612 = vector.shape_cast %611 : vector<8xf32> to vector<8x1xf32>
      %613 = vector.broadcast %612 : vector<8x1xf32> to vector<8x8xf32>
      %614 = arith.subf %610, %613 : vector<8x8xf32>
      %615 = math.exp %614 : vector<8x8xf32>
      %cst_202 = arith.constant dense<0.000000e+00> : vector<8xf32>
      %616 = vector.multi_reduction <add>, %615, %cst_202 [1] : vector<8x8xf32> to vector<8xf32>
      %617 = vector.shape_cast %616 : vector<8xf32> to vector<8x1xf32>
      %618 = tpu.reciprocal %617 {approx = true} : vector<8x1xf32> -> vector<8x1xf32>
      %619 = vector.broadcast %618 : vector<8x1xf32> to vector<8x8xf32>
      %620 = arith.mulf %615, %619 : vector<8x8xf32>
      %621 = vector.extract_strided_slice %603 {offsets = [0, 0], sizes = [8, 8], strides = [1, 1]} : vector<8x32xf32> to vector<8x8xf32>
      %622 = arith.truncf %620 : vector<8x8xf32> to vector<8x8xbf16>
      %623 = arith.truncf %621 : vector<8x8xf32> to vector<8x8xbf16>
      %cst_203 = arith.constant dense<0.000000e+00> : vector<8x8xf32>
      %624 = tpu.matmul %622, %623, %cst_203 {dimension_numbers = #tpu.dot_dimension_numbers<[1], [0], [0], [1], [0, 0, 1, 1], [], []>} : vector<8x8xbf16>, vector<8x8xbf16>, vector<8x8xf32> -> vector<8x8xf32>
      %625 = vector.extract_strided_slice %593 {offsets = [0, 8], sizes = [8, 8], strides = [1, 1]} : vector<8x32xf32> to vector<8x8xf32>
      %626 = arith.truncf %625 : vector<8x8xf32> to vector<8x8xbf16>
      %627 = vector.extract_strided_slice %598 {offsets = [0, 8], sizes = [8, 8], strides = [1, 1]} : vector<8x32xf32> to vector<8x8xf32>
      %628 = arith.truncf %627 : vector<8x8xf32> to vector<8x8xbf16>
      %cst_204 = arith.constant dense<0.000000e+00> : vector<8x8xf32>
      %629 = tpu.matmul %626, %628, %cst_204 {dimension_numbers = #tpu.dot_dimension_numbers<[1], [1], [0], [0], [0, 0, 1, 0], [], []>} : vector<8x8xbf16>, vector<8x8xbf16>, vector<8x8xf32> -> vector<8x8xf32>
      %cst_205 = arith.constant 0.353553385 : f32
      %630 = vector.broadcast %cst_205 : f32 to vector<8x8xf32>
      %631 = arith.mulf %629, %630 : vector<8x8xf32>
      %cst_206 = arith.constant dense<0xFF800000> : vector<8xf32>
      %632 = vector.multi_reduction <maximumf>, %631, %cst_206 [1] : vector<8x8xf32> to vector<8xf32>
      %633 = vector.shape_cast %632 : vector<8xf32> to vector<8x1xf32>
      %634 = vector.broadcast %633 : vector<8x1xf32> to vector<8x8xf32>
      %635 = arith.subf %631, %634 : vector<8x8xf32>
      %636 = math.exp %635 : vector<8x8xf32>
      %cst_207 = arith.constant dense<0.000000e+00> : vector<8xf32>
      %637 = vector.multi_reduction <add>, %636, %cst_207 [1] : vector<8x8xf32> to vector<8xf32>
      %638 = vector.shape_cast %637 : vector<8xf32> to vector<8x1xf32>
      %639 = tpu.reciprocal %638 {approx = true} : vector<8x1xf32> -> vector<8x1xf32>
      %640 = vector.broadcast %639 : vector<8x1xf32> to vector<8x8xf32>
      %641 = arith.mulf %636, %640 : vector<8x8xf32>
      %642 = vector.extract_strided_slice %603 {offsets = [0, 8], sizes = [8, 8], strides = [1, 1]} : vector<8x32xf32> to vector<8x8xf32>
      %643 = arith.truncf %641 : vector<8x8xf32> to vector<8x8xbf16>
      %644 = arith.truncf %642 : vector<8x8xf32> to vector<8x8xbf16>
      %cst_208 = arith.constant dense<0.000000e+00> : vector<8x8xf32>
      %645 = tpu.matmul %643, %644, %cst_208 {dimension_numbers = #tpu.dot_dimension_numbers<[1], [0], [0], [1], [0, 0, 1, 1], [], []>} : vector<8x8xbf16>, vector<8x8xbf16>, vector<8x8xf32> -> vector<8x8xf32>
      %646 = vector.extract_strided_slice %593 {offsets = [0, 16], sizes = [8, 8], strides = [1, 1]} : vector<8x32xf32> to vector<8x8xf32>
      %647 = arith.truncf %646 : vector<8x8xf32> to vector<8x8xbf16>
      %648 = vector.extract_strided_slice %598 {offsets = [0, 16], sizes = [8, 8], strides = [1, 1]} : vector<8x32xf32> to vector<8x8xf32>
      %649 = arith.truncf %648 : vector<8x8xf32> to vector<8x8xbf16>
      %cst_209 = arith.constant dense<0.000000e+00> : vector<8x8xf32>
      %650 = tpu.matmul %647, %649, %cst_209 {dimension_numbers = #tpu.dot_dimension_numbers<[1], [1], [0], [0], [0, 0, 1, 0], [], []>} : vector<8x8xbf16>, vector<8x8xbf16>, vector<8x8xf32> -> vector<8x8xf32>
      %cst_210 = arith.constant 0.353553385 : f32
      %651 = vector.broadcast %cst_210 : f32 to vector<8x8xf32>
      %652 = arith.mulf %650, %651 : vector<8x8xf32>
      %cst_211 = arith.constant dense<0xFF800000> : vector<8xf32>
      %653 = vector.multi_reduction <maximumf>, %652, %cst_211 [1] : vector<8x8xf32> to vector<8xf32>
      %654 = vector.shape_cast %653 : vector<8xf32> to vector<8x1xf32>
      %655 = vector.broadcast %654 : vector<8x1xf32> to vector<8x8xf32>
      %656 = arith.subf %652, %655 : vector<8x8xf32>
      %657 = math.exp %656 : vector<8x8xf32>
      %cst_212 = arith.constant dense<0.000000e+00> : vector<8xf32>
      %658 = vector.multi_reduction <add>, %657, %cst_212 [1] : vector<8x8xf32> to vector<8xf32>
      %659 = vector.shape_cast %658 : vector<8xf32> to vector<8x1xf32>
      %660 = tpu.reciprocal %659 {approx = true} : vector<8x1xf32> -> vector<8x1xf32>
      %661 = vector.broadcast %660 : vector<8x1xf32> to vector<8x8xf32>
      %662 = arith.mulf %657, %661 : vector<8x8xf32>
      %663 = vector.extract_strided_slice %603 {offsets = [0, 16], sizes = [8, 8], strides = [1, 1]} : vector<8x32xf32> to vector<8x8xf32>
      %664 = arith.truncf %662 : vector<8x8xf32> to vector<8x8xbf16>
      %665 = arith.truncf %663 : vector<8x8xf32> to vector<8x8xbf16>
      %cst_213 = arith.constant dense<0.000000e+00> : vector<8x8xf32>
      %666 = tpu.matmul %664, %665, %cst_213 {dimension_numbers = #tpu.dot_dimension_numbers<[1], [0], [0], [1], [0, 0, 1, 1], [], []>} : vector<8x8xbf16>, vector<8x8xbf16>, vector<8x8xf32> -> vector<8x8xf32>
      %667 = vector.extract_strided_slice %593 {offsets = [0, 24], sizes = [8, 8], strides = [1, 1]} : vector<8x32xf32> to vector<8x8xf32>
      %668 = arith.truncf %667 : vector<8x8xf32> to vector<8x8xbf16>
      %669 = vector.extract_strided_slice %598 {offsets = [0, 24], sizes = [8, 8], strides = [1, 1]} : vector<8x32xf32> to vector<8x8xf32>
      %670 = arith.truncf %669 : vector<8x8xf32> to vector<8x8xbf16>
      %cst_214 = arith.constant dense<0.000000e+00> : vector<8x8xf32>
      %671 = tpu.matmul %668, %670, %cst_214 {dimension_numbers = #tpu.dot_dimension_numbers<[1], [1], [0], [0], [0, 0, 1, 0], [], []>} : vector<8x8xbf16>, vector<8x8xbf16>, vector<8x8xf32> -> vector<8x8xf32>
      %cst_215 = arith.constant 0.353553385 : f32
      %672 = vector.broadcast %cst_215 : f32 to vector<8x8xf32>
      %673 = arith.mulf %671, %672 : vector<8x8xf32>
      %cst_216 = arith.constant dense<0xFF800000> : vector<8xf32>
      %674 = vector.multi_reduction <maximumf>, %673, %cst_216 [1] : vector<8x8xf32> to vector<8xf32>
      %675 = vector.shape_cast %674 : vector<8xf32> to vector<8x1xf32>
      %676 = vector.broadcast %675 : vector<8x1xf32> to vector<8x8xf32>
      %677 = arith.subf %673, %676 : vector<8x8xf32>
      %678 = math.exp %677 : vector<8x8xf32>
      %cst_217 = arith.constant dense<0.000000e+00> : vector<8xf32>
      %679 = vector.multi_reduction <add>, %678, %cst_217 [1] : vector<8x8xf32> to vector<8xf32>
      %680 = vector.shape_cast %679 : vector<8xf32> to vector<8x1xf32>
      %681 = tpu.reciprocal %680 {approx = true} : vector<8x1xf32> -> vector<8x1xf32>
      %682 = vector.broadcast %681 : vector<8x1xf32> to vector<8x8xf32>
      %683 = arith.mulf %678, %682 : vector<8x8xf32>
      %684 = vector.extract_strided_slice %603 {offsets = [0, 24], sizes = [8, 8], strides = [1, 1]} : vector<8x32xf32> to vector<8x8xf32>
      %685 = arith.truncf %683 : vector<8x8xf32> to vector<8x8xbf16>
      %686 = arith.truncf %684 : vector<8x8xf32> to vector<8x8xbf16>
      %cst_218 = arith.constant dense<0.000000e+00> : vector<8x8xf32>
      %687 = tpu.matmul %685, %686, %cst_218 {dimension_numbers = #tpu.dot_dimension_numbers<[1], [0], [0], [1], [0, 0, 1, 1], [], []>} : vector<8x8xbf16>, vector<8x8xbf16>, vector<8x8xf32> -> vector<8x8xf32>
      %688 = tpu.concatenate %624, %645, %666, %687 in 1 : vector<8x8xf32>, vector<8x8xf32>, vector<8x8xf32>, vector<8x8xf32> -> vector<8x32xf32>
      %689 = arith.truncf %688 : vector<8x32xf32> to vector<8x32xbf16>
      %cst_219 = arith.constant dense<0.000000e+00> : vector<8x32xf32>
      %690 = tpu.matmul %689, %563, %cst_219 {dimension_numbers = #tpu.dot_dimension_numbers<[1], [0], [0], [1], [0, 0, 1, 1], [], []>} : vector<8x32xbf16>, vector<32x32xbf16>, vector<8x32xf32> -> vector<8x32xf32>
      %691 = vector.extract_strided_slice %559 {offsets = [7, 0], sizes = [1, 32], strides = [1, 1]} : vector<16x32xf32> to vector<1x32xf32>
      %692 = vector.broadcast %691 : vector<1x32xf32> to vector<8x32xf32>
      %693 = arith.addf %690, %692 : vector<8x32xf32>
      %694 = arith.addf %arg11, %693 : vector<8x32xf32>
      %695 = vector.extract_strided_slice %559 {offsets = [8, 0], sizes = [2, 32], strides = [1, 1]} : vector<16x32xf32> to vector<2x32xf32>
      %696 = vector.extract_strided_slice %695 {offsets = [0, 0], sizes = [1, 32], strides = [1, 1]} : vector<2x32xf32> to vector<1x32xf32>
      %697 = vector.extract_strided_slice %695 {offsets = [1, 0], sizes = [1, 32], strides = [1, 1]} : vector<2x32xf32> to vector<1x32xf32>
      %cst_220 = arith.constant dense<0.000000e+00> : vector<8xf32>
      %698 = vector.multi_reduction <add>, %694, %cst_220 [1] : vector<8x32xf32> to vector<8xf32>
      %699 = vector.shape_cast %698 : vector<8xf32> to vector<8x1xf32>
      %cst_221 = arith.constant 3.200000e+01 : f32
      %700 = vector.broadcast %cst_221 : f32 to vector<8x1xf32>
      %701 = arith.divf %699, %700 : vector<8x1xf32>
      %702 = vector.broadcast %701 : vector<8x1xf32> to vector<8x32xf32>
      %703 = arith.subf %694, %702 : vector<8x32xf32>
      %704 = arith.mulf %703, %703 : vector<8x32xf32>
      %cst_222 = arith.constant dense<0.000000e+00> : vector<8xf32>
      %705 = vector.multi_reduction <add>, %704, %cst_222 [1] : vector<8x32xf32> to vector<8xf32>
      %706 = vector.shape_cast %705 : vector<8xf32> to vector<8x1xf32>
      %cst_223 = arith.constant 3.200000e+01 : f32
      %707 = vector.broadcast %cst_223 : f32 to vector<8x1xf32>
      %708 = arith.divf %706, %707 : vector<8x1xf32>
      %cst_224 = arith.constant 9.99999974E-6 : f32
      %709 = vector.broadcast %cst_224 : f32 to vector<8x1xf32>
      %710 = arith.addf %708, %709 : vector<8x1xf32>
      %711 = math.rsqrt %710 : vector<8x1xf32>
      %712 = vector.broadcast %711 : vector<8x1xf32> to vector<8x32xf32>
      %713 = arith.mulf %703, %712 : vector<8x32xf32>
      %714 = vector.broadcast %696 : vector<1x32xf32> to vector<8x32xf32>
      %715 = arith.mulf %713, %714 : vector<8x32xf32>
      %716 = vector.broadcast %697 : vector<1x32xf32> to vector<8x32xf32>
      %717 = arith.addf %715, %716 : vector<8x32xf32>
      %718 = arith.truncf %717 : vector<8x32xf32> to vector<8x32xbf16>
      %cst_225 = arith.constant dense<0.000000e+00> : vector<8x32xf32>
      %719 = tpu.matmul %718, %564, %cst_225 {dimension_numbers = #tpu.dot_dimension_numbers<[1], [0], [0], [1], [0, 0, 1, 1], [], []>} : vector<8x32xbf16>, vector<32x32xbf16>, vector<8x32xf32> -> vector<8x32xf32>
      %720 = vector.extract_strided_slice %559 {offsets = [10, 0], sizes = [1, 32], strides = [1, 1]} : vector<16x32xf32> to vector<1x32xf32>
      %721 = vector.broadcast %720 : vector<1x32xf32> to vector<8x32xf32>
      %722 = arith.addf %719, %721 : vector<8x32xf32>
      %cst_226 = arith.constant 5.000000e-01 : f32
      %723 = vector.broadcast %cst_226 : f32 to vector<8x32xf32>
      %724 = arith.mulf %723, %722 : vector<8x32xf32>
      %cst_227 = arith.constant 4.471500e-02 : f32
      %725 = vector.broadcast %cst_227 : f32 to vector<8x32xf32>
      %726 = arith.mulf %725, %722 : vector<8x32xf32>
      %727 = arith.mulf %726, %722 : vector<8x32xf32>
      %728 = arith.mulf %727, %722 : vector<8x32xf32>
      %729 = arith.addf %722, %728 : vector<8x32xf32>
      %cst_228 = arith.constant 0.797884583 : f32
      %730 = vector.broadcast %cst_228 : f32 to vector<8x32xf32>
      %731 = arith.mulf %730, %729 : vector<8x32xf32>
      %732 = math.tanh %731 : vector<8x32xf32>
      %cst_229 = arith.constant 1.000000e+00 : f32
      %733 = vector.broadcast %cst_229 : f32 to vector<8x32xf32>
      %734 = arith.addf %733, %732 : vector<8x32xf32>
      %735 = arith.mulf %724, %734 : vector<8x32xf32>
      %736 = arith.truncf %735 : vector<8x32xf32> to vector<8x32xbf16>
      %cst_230 = arith.constant dense<0.000000e+00> : vector<8x32xf32>
      %737 = tpu.matmul %736, %565, %cst_230 {dimension_numbers = #tpu.dot_dimension_numbers<[1], [0], [0], [1], [0, 0, 1, 1], [], []>} : vector<8x32xbf16>, vector<32x32xbf16>, vector<8x32xf32> -> vector<8x32xf32>
      %738 = vector.extract_strided_slice %559 {offsets = [11, 0], sizes = [1, 32], strides = [1, 1]} : vector<16x32xf32> to vector<1x32xf32>
      %739 = vector.broadcast %738 : vector<1x32xf32> to vector<8x32xf32>
      %740 = arith.addf %737, %739 : vector<8x32xf32>
      %741 = arith.addf %694, %740 : vector<8x32xf32>
      %c32_231 = arith.constant 32 : index
      %c0_232 = arith.constant 0 : index
      %742 = vector.load %arg5[%c32_231, %c0_232] : memref<64x32xf32, #tpu.memory_space<vmem>>, vector<16x32xf32>
      %c448 = arith.constant 448 : index
      %c0_233 = arith.constant 0 : index
      %743 = vector.load %arg4[%c448, %c0_233] : memref<896x32xbf16, #tpu.memory_space<vmem>>, vector<32x32xbf16>
      %c480 = arith.constant 480 : index
      %c0_234 = arith.constant 0 : index
      %744 = vector.load %arg4[%c480, %c0_234] : memref<896x32xbf16, #tpu.memory_space<vmem>>, vector<32x32xbf16>
      %c528 = arith.constant 528 : index
      %c0_235 = arith.constant 0 : index
      %745 = vector.load %arg4[%c528, %c0_235] : memref<896x32xbf16, #tpu.memory_space<vmem>>, vector<32x32xbf16>
      %c576 = arith.constant 576 : index
      %c0_236 = arith.constant 0 : index
      %746 = vector.load %arg4[%c576, %c0_236] : memref<896x32xbf16, #tpu.memory_space<vmem>>, vector<32x32xbf16>
      %c608 = arith.constant 608 : index
      %c0_237 = arith.constant 0 : index
      %747 = vector.load %arg4[%c608, %c0_237] : memref<896x32xbf16, #tpu.memory_space<vmem>>, vector<32x32xbf16>
      %c640 = arith.constant 640 : index
      %c0_238 = arith.constant 0 : index
      %748 = vector.load %arg4[%c640, %c0_238] : memref<896x32xbf16, #tpu.memory_space<vmem>>, vector<32x32xbf16>
      %749 = vector.extract_strided_slice %742 {offsets = [0, 0], sizes = [2, 32], strides = [1, 1]} : vector<16x32xf32> to vector<2x32xf32>
      %750 = vector.extract_strided_slice %749 {offsets = [0, 0], sizes = [1, 32], strides = [1, 1]} : vector<2x32xf32> to vector<1x32xf32>
      %751 = vector.extract_strided_slice %749 {offsets = [1, 0], sizes = [1, 32], strides = [1, 1]} : vector<2x32xf32> to vector<1x32xf32>
      %cst_239 = arith.constant dense<0.000000e+00> : vector<8xf32>
      %752 = vector.multi_reduction <add>, %741, %cst_239 [1] : vector<8x32xf32> to vector<8xf32>
      %753 = vector.shape_cast %752 : vector<8xf32> to vector<8x1xf32>
      %cst_240 = arith.constant 3.200000e+01 : f32
      %754 = vector.broadcast %cst_240 : f32 to vector<8x1xf32>
      %755 = arith.divf %753, %754 : vector<8x1xf32>
      %756 = vector.broadcast %755 : vector<8x1xf32> to vector<8x32xf32>
      %757 = arith.subf %741, %756 : vector<8x32xf32>
      %758 = arith.mulf %757, %757 : vector<8x32xf32>
      %cst_241 = arith.constant dense<0.000000e+00> : vector<8xf32>
      %759 = vector.multi_reduction <add>, %758, %cst_241 [1] : vector<8x32xf32> to vector<8xf32>
      %760 = vector.shape_cast %759 : vector<8xf32> to vector<8x1xf32>
      %cst_242 = arith.constant 3.200000e+01 : f32
      %761 = vector.broadcast %cst_242 : f32 to vector<8x1xf32>
      %762 = arith.divf %760, %761 : vector<8x1xf32>
      %cst_243 = arith.constant 9.99999974E-6 : f32
      %763 = vector.broadcast %cst_243 : f32 to vector<8x1xf32>
      %764 = arith.addf %762, %763 : vector<8x1xf32>
      %765 = math.rsqrt %764 : vector<8x1xf32>
      %766 = vector.broadcast %765 : vector<8x1xf32> to vector<8x32xf32>
      %767 = arith.mulf %757, %766 : vector<8x32xf32>
      %768 = vector.broadcast %750 : vector<1x32xf32> to vector<8x32xf32>
      %769 = arith.mulf %767, %768 : vector<8x32xf32>
      %770 = vector.broadcast %751 : vector<1x32xf32> to vector<8x32xf32>
      %771 = arith.addf %769, %770 : vector<8x32xf32>
      %772 = arith.truncf %771 : vector<8x32xf32> to vector<8x32xbf16>
      %cst_244 = arith.constant dense<0.000000e+00> : vector<8x32xf32>
      %773 = tpu.matmul %772, %743, %cst_244 {dimension_numbers = #tpu.dot_dimension_numbers<[1], [0], [0], [1], [0, 0, 1, 1], [], []>} : vector<8x32xbf16>, vector<32x32xbf16>, vector<8x32xf32> -> vector<8x32xf32>
      %774 = vector.extract_strided_slice %742 {offsets = [4, 0], sizes = [1, 32], strides = [1, 1]} : vector<16x32xf32> to vector<1x32xf32>
      %775 = vector.broadcast %774 : vector<1x32xf32> to vector<8x32xf32>
      %776 = arith.addf %773, %775 : vector<8x32xf32>
      %777 = arith.truncf %771 : vector<8x32xf32> to vector<8x32xbf16>
      %cst_245 = arith.constant dense<0.000000e+00> : vector<8x32xf32>
      %778 = tpu.matmul %777, %744, %cst_245 {dimension_numbers = #tpu.dot_dimension_numbers<[1], [0], [0], [1], [0, 0, 1, 1], [], []>} : vector<8x32xbf16>, vector<32x32xbf16>, vector<8x32xf32> -> vector<8x32xf32>
      %779 = vector.extract_strided_slice %742 {offsets = [5, 0], sizes = [1, 32], strides = [1, 1]} : vector<16x32xf32> to vector<1x32xf32>
      %780 = vector.broadcast %779 : vector<1x32xf32> to vector<8x32xf32>
      %781 = arith.addf %778, %780 : vector<8x32xf32>
      %782 = arith.truncf %771 : vector<8x32xf32> to vector<8x32xbf16>
      %cst_246 = arith.constant dense<0.000000e+00> : vector<8x32xf32>
      %783 = tpu.matmul %782, %745, %cst_246 {dimension_numbers = #tpu.dot_dimension_numbers<[1], [0], [0], [1], [0, 0, 1, 1], [], []>} : vector<8x32xbf16>, vector<32x32xbf16>, vector<8x32xf32> -> vector<8x32xf32>
      %784 = vector.extract_strided_slice %742 {offsets = [6, 0], sizes = [1, 32], strides = [1, 1]} : vector<16x32xf32> to vector<1x32xf32>
      %785 = vector.broadcast %784 : vector<1x32xf32> to vector<8x32xf32>
      %786 = arith.addf %783, %785 : vector<8x32xf32>
      %787 = vector.extract_strided_slice %776 {offsets = [0, 0], sizes = [8, 8], strides = [1, 1]} : vector<8x32xf32> to vector<8x8xf32>
      %788 = arith.truncf %787 : vector<8x8xf32> to vector<8x8xbf16>
      %789 = vector.extract_strided_slice %781 {offsets = [0, 0], sizes = [8, 8], strides = [1, 1]} : vector<8x32xf32> to vector<8x8xf32>
      %790 = arith.truncf %789 : vector<8x8xf32> to vector<8x8xbf16>
      %cst_247 = arith.constant dense<0.000000e+00> : vector<8x8xf32>
      %791 = tpu.matmul %788, %790, %cst_247 {dimension_numbers = #tpu.dot_dimension_numbers<[1], [1], [0], [0], [0, 0, 1, 0], [], []>} : vector<8x8xbf16>, vector<8x8xbf16>, vector<8x8xf32> -> vector<8x8xf32>
      %cst_248 = arith.constant 0.353553385 : f32
      %792 = vector.broadcast %cst_248 : f32 to vector<8x8xf32>
      %793 = arith.mulf %791, %792 : vector<8x8xf32>
      %cst_249 = arith.constant dense<0xFF800000> : vector<8xf32>
      %794 = vector.multi_reduction <maximumf>, %793, %cst_249 [1] : vector<8x8xf32> to vector<8xf32>
      %795 = vector.shape_cast %794 : vector<8xf32> to vector<8x1xf32>
      %796 = vector.broadcast %795 : vector<8x1xf32> to vector<8x8xf32>
      %797 = arith.subf %793, %796 : vector<8x8xf32>
      %798 = math.exp %797 : vector<8x8xf32>
      %cst_250 = arith.constant dense<0.000000e+00> : vector<8xf32>
      %799 = vector.multi_reduction <add>, %798, %cst_250 [1] : vector<8x8xf32> to vector<8xf32>
      %800 = vector.shape_cast %799 : vector<8xf32> to vector<8x1xf32>
      %801 = tpu.reciprocal %800 {approx = true} : vector<8x1xf32> -> vector<8x1xf32>
      %802 = vector.broadcast %801 : vector<8x1xf32> to vector<8x8xf32>
      %803 = arith.mulf %798, %802 : vector<8x8xf32>
      %804 = vector.extract_strided_slice %786 {offsets = [0, 0], sizes = [8, 8], strides = [1, 1]} : vector<8x32xf32> to vector<8x8xf32>
      %805 = arith.truncf %803 : vector<8x8xf32> to vector<8x8xbf16>
      %806 = arith.truncf %804 : vector<8x8xf32> to vector<8x8xbf16>
      %cst_251 = arith.constant dense<0.000000e+00> : vector<8x8xf32>
      %807 = tpu.matmul %805, %806, %cst_251 {dimension_numbers = #tpu.dot_dimension_numbers<[1], [0], [0], [1], [0, 0, 1, 1], [], []>} : vector<8x8xbf16>, vector<8x8xbf16>, vector<8x8xf32> -> vector<8x8xf32>
      %808 = vector.extract_strided_slice %776 {offsets = [0, 8], sizes = [8, 8], strides = [1, 1]} : vector<8x32xf32> to vector<8x8xf32>
      %809 = arith.truncf %808 : vector<8x8xf32> to vector<8x8xbf16>
      %810 = vector.extract_strided_slice %781 {offsets = [0, 8], sizes = [8, 8], strides = [1, 1]} : vector<8x32xf32> to vector<8x8xf32>
      %811 = arith.truncf %810 : vector<8x8xf32> to vector<8x8xbf16>
      %cst_252 = arith.constant dense<0.000000e+00> : vector<8x8xf32>
      %812 = tpu.matmul %809, %811, %cst_252 {dimension_numbers = #tpu.dot_dimension_numbers<[1], [1], [0], [0], [0, 0, 1, 0], [], []>} : vector<8x8xbf16>, vector<8x8xbf16>, vector<8x8xf32> -> vector<8x8xf32>
      %cst_253 = arith.constant 0.353553385 : f32
      %813 = vector.broadcast %cst_253 : f32 to vector<8x8xf32>
      %814 = arith.mulf %812, %813 : vector<8x8xf32>
      %cst_254 = arith.constant dense<0xFF800000> : vector<8xf32>
      %815 = vector.multi_reduction <maximumf>, %814, %cst_254 [1] : vector<8x8xf32> to vector<8xf32>
      %816 = vector.shape_cast %815 : vector<8xf32> to vector<8x1xf32>
      %817 = vector.broadcast %816 : vector<8x1xf32> to vector<8x8xf32>
      %818 = arith.subf %814, %817 : vector<8x8xf32>
      %819 = math.exp %818 : vector<8x8xf32>
      %cst_255 = arith.constant dense<0.000000e+00> : vector<8xf32>
      %820 = vector.multi_reduction <add>, %819, %cst_255 [1] : vector<8x8xf32> to vector<8xf32>
      %821 = vector.shape_cast %820 : vector<8xf32> to vector<8x1xf32>
      %822 = tpu.reciprocal %821 {approx = true} : vector<8x1xf32> -> vector<8x1xf32>
      %823 = vector.broadcast %822 : vector<8x1xf32> to vector<8x8xf32>
      %824 = arith.mulf %819, %823 : vector<8x8xf32>
      %825 = vector.extract_strided_slice %786 {offsets = [0, 8], sizes = [8, 8], strides = [1, 1]} : vector<8x32xf32> to vector<8x8xf32>
      %826 = arith.truncf %824 : vector<8x8xf32> to vector<8x8xbf16>
      %827 = arith.truncf %825 : vector<8x8xf32> to vector<8x8xbf16>
      %cst_256 = arith.constant dense<0.000000e+00> : vector<8x8xf32>
      %828 = tpu.matmul %826, %827, %cst_256 {dimension_numbers = #tpu.dot_dimension_numbers<[1], [0], [0], [1], [0, 0, 1, 1], [], []>} : vector<8x8xbf16>, vector<8x8xbf16>, vector<8x8xf32> -> vector<8x8xf32>
      %829 = vector.extract_strided_slice %776 {offsets = [0, 16], sizes = [8, 8], strides = [1, 1]} : vector<8x32xf32> to vector<8x8xf32>
      %830 = arith.truncf %829 : vector<8x8xf32> to vector<8x8xbf16>
      %831 = vector.extract_strided_slice %781 {offsets = [0, 16], sizes = [8, 8], strides = [1, 1]} : vector<8x32xf32> to vector<8x8xf32>
      %832 = arith.truncf %831 : vector<8x8xf32> to vector<8x8xbf16>
      %cst_257 = arith.constant dense<0.000000e+00> : vector<8x8xf32>
      %833 = tpu.matmul %830, %832, %cst_257 {dimension_numbers = #tpu.dot_dimension_numbers<[1], [1], [0], [0], [0, 0, 1, 0], [], []>} : vector<8x8xbf16>, vector<8x8xbf16>, vector<8x8xf32> -> vector<8x8xf32>
      %cst_258 = arith.constant 0.353553385 : f32
      %834 = vector.broadcast %cst_258 : f32 to vector<8x8xf32>
      %835 = arith.mulf %833, %834 : vector<8x8xf32>
      %cst_259 = arith.constant dense<0xFF800000> : vector<8xf32>
      %836 = vector.multi_reduction <maximumf>, %835, %cst_259 [1] : vector<8x8xf32> to vector<8xf32>
      %837 = vector.shape_cast %836 : vector<8xf32> to vector<8x1xf32>
      %838 = vector.broadcast %837 : vector<8x1xf32> to vector<8x8xf32>
      %839 = arith.subf %835, %838 : vector<8x8xf32>
      %840 = math.exp %839 : vector<8x8xf32>
      %cst_260 = arith.constant dense<0.000000e+00> : vector<8xf32>
      %841 = vector.multi_reduction <add>, %840, %cst_260 [1] : vector<8x8xf32> to vector<8xf32>
      %842 = vector.shape_cast %841 : vector<8xf32> to vector<8x1xf32>
      %843 = tpu.reciprocal %842 {approx = true} : vector<8x1xf32> -> vector<8x1xf32>
      %844 = vector.broadcast %843 : vector<8x1xf32> to vector<8x8xf32>
      %845 = arith.mulf %840, %844 : vector<8x8xf32>
      %846 = vector.extract_strided_slice %786 {offsets = [0, 16], sizes = [8, 8], strides = [1, 1]} : vector<8x32xf32> to vector<8x8xf32>
      %847 = arith.truncf %845 : vector<8x8xf32> to vector<8x8xbf16>
      %848 = arith.truncf %846 : vector<8x8xf32> to vector<8x8xbf16>
      %cst_261 = arith.constant dense<0.000000e+00> : vector<8x8xf32>
      %849 = tpu.matmul %847, %848, %cst_261 {dimension_numbers = #tpu.dot_dimension_numbers<[1], [0], [0], [1], [0, 0, 1, 1], [], []>} : vector<8x8xbf16>, vector<8x8xbf16>, vector<8x8xf32> -> vector<8x8xf32>
      %850 = vector.extract_strided_slice %776 {offsets = [0, 24], sizes = [8, 8], strides = [1, 1]} : vector<8x32xf32> to vector<8x8xf32>
      %851 = arith.truncf %850 : vector<8x8xf32> to vector<8x8xbf16>
      %852 = vector.extract_strided_slice %781 {offsets = [0, 24], sizes = [8, 8], strides = [1, 1]} : vector<8x32xf32> to vector<8x8xf32>
      %853 = arith.truncf %852 : vector<8x8xf32> to vector<8x8xbf16>
      %cst_262 = arith.constant dense<0.000000e+00> : vector<8x8xf32>
      %854 = tpu.matmul %851, %853, %cst_262 {dimension_numbers = #tpu.dot_dimension_numbers<[1], [1], [0], [0], [0, 0, 1, 0], [], []>} : vector<8x8xbf16>, vector<8x8xbf16>, vector<8x8xf32> -> vector<8x8xf32>
      %cst_263 = arith.constant 0.353553385 : f32
      %855 = vector.broadcast %cst_263 : f32 to vector<8x8xf32>
      %856 = arith.mulf %854, %855 : vector<8x8xf32>
      %cst_264 = arith.constant dense<0xFF800000> : vector<8xf32>
      %857 = vector.multi_reduction <maximumf>, %856, %cst_264 [1] : vector<8x8xf32> to vector<8xf32>
      %858 = vector.shape_cast %857 : vector<8xf32> to vector<8x1xf32>
      %859 = vector.broadcast %858 : vector<8x1xf32> to vector<8x8xf32>
      %860 = arith.subf %856, %859 : vector<8x8xf32>
      %861 = math.exp %860 : vector<8x8xf32>
      %cst_265 = arith.constant dense<0.000000e+00> : vector<8xf32>
      %862 = vector.multi_reduction <add>, %861, %cst_265 [1] : vector<8x8xf32> to vector<8xf32>
      %863 = vector.shape_cast %862 : vector<8xf32> to vector<8x1xf32>
      %864 = tpu.reciprocal %863 {approx = true} : vector<8x1xf32> -> vector<8x1xf32>
      %865 = vector.broadcast %864 : vector<8x1xf32> to vector<8x8xf32>
      %866 = arith.mulf %861, %865 : vector<8x8xf32>
      %867 = vector.extract_strided_slice %786 {offsets = [0, 24], sizes = [8, 8], strides = [1, 1]} : vector<8x32xf32> to vector<8x8xf32>
      %868 = arith.truncf %866 : vector<8x8xf32> to vector<8x8xbf16>
      %869 = arith.truncf %867 : vector<8x8xf32> to vector<8x8xbf16>
      %cst_266 = arith.constant dense<0.000000e+00> : vector<8x8xf32>
      %870 = tpu.matmul %868, %869, %cst_266 {dimension_numbers = #tpu.dot_dimension_numbers<[1], [0], [0], [1], [0, 0, 1, 1], [], []>} : vector<8x8xbf16>, vector<8x8xbf16>, vector<8x8xf32> -> vector<8x8xf32>
      %871 = tpu.concatenate %807, %828, %849, %870 in 1 : vector<8x8xf32>, vector<8x8xf32>, vector<8x8xf32>, vector<8x8xf32> -> vector<8x32xf32>
      %872 = arith.truncf %871 : vector<8x32xf32> to vector<8x32xbf16>
      %cst_267 = arith.constant dense<0.000000e+00> : vector<8x32xf32>
      %873 = tpu.matmul %872, %746, %cst_267 {dimension_numbers = #tpu.dot_dimension_numbers<[1], [0], [0], [1], [0, 0, 1, 1], [], []>} : vector<8x32xbf16>, vector<32x32xbf16>, vector<8x32xf32> -> vector<8x32xf32>
      %874 = vector.extract_strided_slice %742 {offsets = [7, 0], sizes = [1, 32], strides = [1, 1]} : vector<16x32xf32> to vector<1x32xf32>
      %875 = vector.broadcast %874 : vector<1x32xf32> to vector<8x32xf32>
      %876 = arith.addf %873, %875 : vector<8x32xf32>
      %877 = arith.addf %741, %876 : vector<8x32xf32>
      %878 = vector.extract_strided_slice %742 {offsets = [8, 0], sizes = [2, 32], strides = [1, 1]} : vector<16x32xf32> to vector<2x32xf32>
      %879 = vector.extract_strided_slice %878 {offsets = [0, 0], sizes = [1, 32], strides = [1, 1]} : vector<2x32xf32> to vector<1x32xf32>
      %880 = vector.extract_strided_slice %878 {offsets = [1, 0], sizes = [1, 32], strides = [1, 1]} : vector<2x32xf32> to vector<1x32xf32>
      %cst_268 = arith.constant dense<0.000000e+00> : vector<8xf32>
      %881 = vector.multi_reduction <add>, %877, %cst_268 [1] : vector<8x32xf32> to vector<8xf32>
      %882 = vector.shape_cast %881 : vector<8xf32> to vector<8x1xf32>
      %cst_269 = arith.constant 3.200000e+01 : f32
      %883 = vector.broadcast %cst_269 : f32 to vector<8x1xf32>
      %884 = arith.divf %882, %883 : vector<8x1xf32>
      %885 = vector.broadcast %884 : vector<8x1xf32> to vector<8x32xf32>
      %886 = arith.subf %877, %885 : vector<8x32xf32>
      %887 = arith.mulf %886, %886 : vector<8x32xf32>
      %cst_270 = arith.constant dense<0.000000e+00> : vector<8xf32>
      %888 = vector.multi_reduction <add>, %887, %cst_270 [1] : vector<8x32xf32> to vector<8xf32>
      %889 = vector.shape_cast %888 : vector<8xf32> to vector<8x1xf32>
      %cst_271 = arith.constant 3.200000e+01 : f32
      %890 = vector.broadcast %cst_271 : f32 to vector<8x1xf32>
      %891 = arith.divf %889, %890 : vector<8x1xf32>
      %cst_272 = arith.constant 9.99999974E-6 : f32
      %892 = vector.broadcast %cst_272 : f32 to vector<8x1xf32>
      %893 = arith.addf %891, %892 : vector<8x1xf32>
      %894 = math.rsqrt %893 : vector<8x1xf32>
      %895 = vector.broadcast %894 : vector<8x1xf32> to vector<8x32xf32>
      %896 = arith.mulf %886, %895 : vector<8x32xf32>
      %897 = vector.broadcast %879 : vector<1x32xf32> to vector<8x32xf32>
      %898 = arith.mulf %896, %897 : vector<8x32xf32>
      %899 = vector.broadcast %880 : vector<1x32xf32> to vector<8x32xf32>
      %900 = arith.addf %898, %899 : vector<8x32xf32>
      %901 = arith.truncf %900 : vector<8x32xf32> to vector<8x32xbf16>
      %cst_273 = arith.constant dense<0.000000e+00> : vector<8x32xf32>
      %902 = tpu.matmul %901, %747, %cst_273 {dimension_numbers = #tpu.dot_dimension_numbers<[1], [0], [0], [1], [0, 0, 1, 1], [], []>} : vector<8x32xbf16>, vector<32x32xbf16>, vector<8x32xf32> -> vector<8x32xf32>
      %903 = vector.extract_strided_slice %742 {offsets = [10, 0], sizes = [1, 32], strides = [1, 1]} : vector<16x32xf32> to vector<1x32xf32>
      %904 = vector.broadcast %903 : vector<1x32xf32> to vector<8x32xf32>
      %905 = arith.addf %902, %904 : vector<8x32xf32>
      %cst_274 = arith.constant 5.000000e-01 : f32
      %906 = vector.broadcast %cst_274 : f32 to vector<8x32xf32>
      %907 = arith.mulf %906, %905 : vector<8x32xf32>
      %cst_275 = arith.constant 4.471500e-02 : f32
      %908 = vector.broadcast %cst_275 : f32 to vector<8x32xf32>
      %909 = arith.mulf %908, %905 : vector<8x32xf32>
      %910 = arith.mulf %909, %905 : vector<8x32xf32>
      %911 = arith.mulf %910, %905 : vector<8x32xf32>
      %912 = arith.addf %905, %911 : vector<8x32xf32>
      %cst_276 = arith.constant 0.797884583 : f32
      %913 = vector.broadcast %cst_276 : f32 to vector<8x32xf32>
      %914 = arith.mulf %913, %912 : vector<8x32xf32>
      %915 = math.tanh %914 : vector<8x32xf32>
      %cst_277 = arith.constant 1.000000e+00 : f32
      %916 = vector.broadcast %cst_277 : f32 to vector<8x32xf32>
      %917 = arith.addf %916, %915 : vector<8x32xf32>
      %918 = arith.mulf %907, %917 : vector<8x32xf32>
      %919 = arith.truncf %918 : vector<8x32xf32> to vector<8x32xbf16>
      %cst_278 = arith.constant dense<0.000000e+00> : vector<8x32xf32>
      %920 = tpu.matmul %919, %748, %cst_278 {dimension_numbers = #tpu.dot_dimension_numbers<[1], [0], [0], [1], [0, 0, 1, 1], [], []>} : vector<8x32xbf16>, vector<32x32xbf16>, vector<8x32xf32> -> vector<8x32xf32>
      %921 = vector.extract_strided_slice %742 {offsets = [11, 0], sizes = [1, 32], strides = [1, 1]} : vector<16x32xf32> to vector<1x32xf32>
      %922 = vector.broadcast %921 : vector<1x32xf32> to vector<8x32xf32>
      %923 = arith.addf %920, %922 : vector<8x32xf32>
      %924 = arith.addf %877, %923 : vector<8x32xf32>
      scf.yield %924 : vector<8x32xf32>
    }
    %c48 = arith.constant 48 : index
    %c0_50 = arith.constant 0 : index
    %147 = vector.load %arg5[%c48, %c0_50] : memref<64x32xf32, #tpu.memory_space<vmem>>, vector<16x32xf32>
    %c672 = arith.constant 672 : index
    %c0_51 = arith.constant 0 : index
    %148 = vector.load %arg4[%c672, %c0_51] : memref<896x32xbf16, #tpu.memory_space<vmem>>, vector<32x32xbf16>
    %c704 = arith.constant 704 : index
    %c0_52 = arith.constant 0 : index
    %149 = vector.load %arg4[%c704, %c0_52] : memref<896x32xbf16, #tpu.memory_space<vmem>>, vector<32x32xbf16>
    %c752 = arith.constant 752 : index
    %c0_53 = arith.constant 0 : index
    %150 = vector.load %arg4[%c752, %c0_53] : memref<896x32xbf16, #tpu.memory_space<vmem>>, vector<32x32xbf16>
    %c800 = arith.constant 800 : index
    %c0_54 = arith.constant 0 : index
    %151 = vector.load %arg4[%c800, %c0_54] : memref<896x32xbf16, #tpu.memory_space<vmem>>, vector<32x32xbf16>
    %c832 = arith.constant 832 : index
    %c0_55 = arith.constant 0 : index
    %152 = vector.load %arg4[%c832, %c0_55] : memref<896x32xbf16, #tpu.memory_space<vmem>>, vector<32x32xbf16>
    %c864 = arith.constant 864 : index
    %c0_56 = arith.constant 0 : index
    %153 = vector.load %arg4[%c864, %c0_56] : memref<896x32xbf16, #tpu.memory_space<vmem>>, vector<32x32xbf16>
    %154 = vector.extract_strided_slice %147 {offsets = [0, 0], sizes = [2, 32], strides = [1, 1]} : vector<16x32xf32> to vector<2x32xf32>
    %155 = vector.extract_strided_slice %154 {offsets = [0, 0], sizes = [1, 32], strides = [1, 1]} : vector<2x32xf32> to vector<1x32xf32>
    %156 = vector.extract_strided_slice %154 {offsets = [1, 0], sizes = [1, 32], strides = [1, 1]} : vector<2x32xf32> to vector<1x32xf32>
    %cst_57 = arith.constant dense<0.000000e+00> : vector<1xf32>
    %157 = vector.multi_reduction <add>, %1, %cst_57 [1] : vector<1x32xf32> to vector<1xf32>
    %158 = vector.shape_cast %157 : vector<1xf32> to vector<1x1xf32>
    %cst_58 = arith.constant 3.200000e+01 : f32
    %159 = vector.broadcast %cst_58 : f32 to vector<1x1xf32>
    %160 = arith.divf %158, %159 : vector<1x1xf32>
    %161 = vector.broadcast %160 : vector<1x1xf32> to vector<1x32xf32>
    %162 = arith.subf %1, %161 : vector<1x32xf32>
    %163 = arith.mulf %162, %162 : vector<1x32xf32>
    %cst_59 = arith.constant dense<0.000000e+00> : vector<1xf32>
    %164 = vector.multi_reduction <add>, %163, %cst_59 [1] : vector<1x32xf32> to vector<1xf32>
    %165 = vector.shape_cast %164 : vector<1xf32> to vector<1x1xf32>
    %cst_60 = arith.constant 3.200000e+01 : f32
    %166 = vector.broadcast %cst_60 : f32 to vector<1x1xf32>
    %167 = arith.divf %165, %166 : vector<1x1xf32>
    %cst_61 = arith.constant 9.99999974E-6 : f32
    %168 = vector.broadcast %cst_61 : f32 to vector<1x1xf32>
    %169 = arith.addf %167, %168 : vector<1x1xf32>
    %170 = math.rsqrt %169 : vector<1x1xf32>
    %171 = vector.broadcast %170 : vector<1x1xf32> to vector<1x32xf32>
    %172 = arith.mulf %162, %171 : vector<1x32xf32>
    %173 = arith.mulf %172, %155 : vector<1x32xf32>
    %174 = arith.addf %173, %156 : vector<1x32xf32>
    %175 = vector.extract_strided_slice %147 {offsets = [2, 0], sizes = [2, 32], strides = [1, 1]} : vector<16x32xf32> to vector<2x32xf32>
    %176 = vector.extract_strided_slice %175 {offsets = [0, 0], sizes = [1, 32], strides = [1, 1]} : vector<2x32xf32> to vector<1x32xf32>
    %177 = vector.extract_strided_slice %175 {offsets = [1, 0], sizes = [1, 32], strides = [1, 1]} : vector<2x32xf32> to vector<1x32xf32>
    %cst_62 = arith.constant dense<0.000000e+00> : vector<8xf32>
    %178 = vector.multi_reduction <add>, %146, %cst_62 [1] : vector<8x32xf32> to vector<8xf32>
    %179 = vector.shape_cast %178 : vector<8xf32> to vector<8x1xf32>
    %cst_63 = arith.constant 3.200000e+01 : f32
    %180 = vector.broadcast %cst_63 : f32 to vector<8x1xf32>
    %181 = arith.divf %179, %180 : vector<8x1xf32>
    %182 = vector.broadcast %181 : vector<8x1xf32> to vector<8x32xf32>
    %183 = arith.subf %146, %182 : vector<8x32xf32>
    %184 = arith.mulf %183, %183 : vector<8x32xf32>
    %cst_64 = arith.constant dense<0.000000e+00> : vector<8xf32>
    %185 = vector.multi_reduction <add>, %184, %cst_64 [1] : vector<8x32xf32> to vector<8xf32>
    %186 = vector.shape_cast %185 : vector<8xf32> to vector<8x1xf32>
    %cst_65 = arith.constant 3.200000e+01 : f32
    %187 = vector.broadcast %cst_65 : f32 to vector<8x1xf32>
    %188 = arith.divf %186, %187 : vector<8x1xf32>
    %cst_66 = arith.constant 9.99999974E-6 : f32
    %189 = vector.broadcast %cst_66 : f32 to vector<8x1xf32>
    %190 = arith.addf %188, %189 : vector<8x1xf32>
    %191 = math.rsqrt %190 : vector<8x1xf32>
    %192 = vector.broadcast %191 : vector<8x1xf32> to vector<8x32xf32>
    %193 = arith.mulf %183, %192 : vector<8x32xf32>
    %194 = vector.broadcast %176 : vector<1x32xf32> to vector<8x32xf32>
    %195 = arith.mulf %193, %194 : vector<8x32xf32>
    %196 = vector.broadcast %177 : vector<1x32xf32> to vector<8x32xf32>
    %197 = arith.addf %195, %196 : vector<8x32xf32>
    %198 = arith.truncf %174 : vector<1x32xf32> to vector<1x32xbf16>
    %cst_67 = arith.constant dense<0.000000e+00> : vector<1x32xf32>
    %199 = tpu.matmul %198, %148, %cst_67 {dimension_numbers = #tpu.dot_dimension_numbers<[1], [0], [0], [1], [0, 0, 1, 1], [], []>} : vector<1x32xbf16>, vector<32x32xbf16>, vector<1x32xf32> -> vector<1x32xf32>
    %200 = vector.extract_strided_slice %147 {offsets = [4, 0], sizes = [1, 32], strides = [1, 1]} : vector<16x32xf32> to vector<1x32xf32>
    %201 = arith.addf %199, %200 : vector<1x32xf32>
    %202 = arith.truncf %197 : vector<8x32xf32> to vector<8x32xbf16>
    %cst_68 = arith.constant dense<0.000000e+00> : vector<8x32xf32>
    %203 = tpu.matmul %202, %149, %cst_68 {dimension_numbers = #tpu.dot_dimension_numbers<[1], [0], [0], [1], [0, 0, 1, 1], [], []>} : vector<8x32xbf16>, vector<32x32xbf16>, vector<8x32xf32> -> vector<8x32xf32>
    %204 = vector.extract_strided_slice %147 {offsets = [5, 0], sizes = [1, 32], strides = [1, 1]} : vector<16x32xf32> to vector<1x32xf32>
    %205 = vector.broadcast %204 : vector<1x32xf32> to vector<8x32xf32>
    %206 = arith.addf %203, %205 : vector<8x32xf32>
    %207 = arith.truncf %197 : vector<8x32xf32> to vector<8x32xbf16>
    %cst_69 = arith.constant dense<0.000000e+00> : vector<8x32xf32>
    %208 = tpu.matmul %207, %150, %cst_69 {dimension_numbers = #tpu.dot_dimension_numbers<[1], [0], [0], [1], [0, 0, 1, 1], [], []>} : vector<8x32xbf16>, vector<32x32xbf16>, vector<8x32xf32> -> vector<8x32xf32>
    %209 = vector.extract_strided_slice %147 {offsets = [6, 0], sizes = [1, 32], strides = [1, 1]} : vector<16x32xf32> to vector<1x32xf32>
    %210 = vector.broadcast %209 : vector<1x32xf32> to vector<8x32xf32>
    %211 = arith.addf %208, %210 : vector<8x32xf32>
    %212 = arith.truncf %201 : vector<1x32xf32> to vector<1x32xbf16>
    %213 = arith.truncf %206 : vector<8x32xf32> to vector<8x32xbf16>
    %cst_70 = arith.constant dense<0.000000e+00> : vector<1x8xf32>
    %214 = tpu.matmul %212, %213, %cst_70 {dimension_numbers = #tpu.dot_dimension_numbers<[1], [1], [0], [0], [0, 0, 1, 0], [], []>} : vector<1x32xbf16>, vector<8x32xbf16>, vector<1x8xf32> -> vector<1x8xf32>
    %cst_71 = arith.constant 0.176776692 : f32
    %215 = vector.broadcast %cst_71 : f32 to vector<1x8xf32>
    %216 = arith.mulf %214, %215 : vector<1x8xf32>
    %cst_72 = arith.constant dense<0xFF800000> : vector<1xf32>
    %217 = vector.multi_reduction <maximumf>, %216, %cst_72 [1] : vector<1x8xf32> to vector<1xf32>
    %218 = vector.shape_cast %217 : vector<1xf32> to vector<1x1xf32>
    %219 = vector.broadcast %218 : vector<1x1xf32> to vector<1x8xf32>
    %220 = arith.subf %216, %219 : vector<1x8xf32>
    %221 = math.exp %220 : vector<1x8xf32>
    %cst_73 = arith.constant dense<0.000000e+00> : vector<1xf32>
    %222 = vector.multi_reduction <add>, %221, %cst_73 [1] : vector<1x8xf32> to vector<1xf32>
    %223 = vector.shape_cast %222 : vector<1xf32> to vector<1x1xf32>
    %224 = tpu.reciprocal %223 {approx = true} : vector<1x1xf32> -> vector<1x1xf32>
    %225 = vector.broadcast %224 : vector<1x1xf32> to vector<1x8xf32>
    %226 = arith.mulf %221, %225 : vector<1x8xf32>
    %227 = arith.truncf %226 : vector<1x8xf32> to vector<1x8xbf16>
    %228 = arith.truncf %211 : vector<8x32xf32> to vector<8x32xbf16>
    %cst_74 = arith.constant dense<0.000000e+00> : vector<1x32xf32>
    %229 = tpu.matmul %227, %228, %cst_74 {dimension_numbers = #tpu.dot_dimension_numbers<[1], [0], [0], [1], [0, 0, 1, 1], [], []>} : vector<1x8xbf16>, vector<8x32xbf16>, vector<1x32xf32> -> vector<1x32xf32>
    %230 = arith.truncf %229 : vector<1x32xf32> to vector<1x32xbf16>
    %cst_75 = arith.constant dense<0.000000e+00> : vector<1x32xf32>
    %231 = tpu.matmul %230, %151, %cst_75 {dimension_numbers = #tpu.dot_dimension_numbers<[1], [0], [0], [1], [0, 0, 1, 1], [], []>} : vector<1x32xbf16>, vector<32x32xbf16>, vector<1x32xf32> -> vector<1x32xf32>
    %232 = vector.extract_strided_slice %147 {offsets = [7, 0], sizes = [1, 32], strides = [1, 1]} : vector<16x32xf32> to vector<1x32xf32>
    %233 = arith.addf %231, %232 : vector<1x32xf32>
    %234 = arith.addf %1, %233 : vector<1x32xf32>
    %235 = vector.extract_strided_slice %147 {offsets = [8, 0], sizes = [2, 32], strides = [1, 1]} : vector<16x32xf32> to vector<2x32xf32>
    %236 = vector.extract_strided_slice %235 {offsets = [0, 0], sizes = [1, 32], strides = [1, 1]} : vector<2x32xf32> to vector<1x32xf32>
    %237 = vector.extract_strided_slice %235 {offsets = [1, 0], sizes = [1, 32], strides = [1, 1]} : vector<2x32xf32> to vector<1x32xf32>
    %cst_76 = arith.constant dense<0.000000e+00> : vector<1xf32>
    %238 = vector.multi_reduction <add>, %234, %cst_76 [1] : vector<1x32xf32> to vector<1xf32>
    %239 = vector.shape_cast %238 : vector<1xf32> to vector<1x1xf32>
    %cst_77 = arith.constant 3.200000e+01 : f32
    %240 = vector.broadcast %cst_77 : f32 to vector<1x1xf32>
    %241 = arith.divf %239, %240 : vector<1x1xf32>
    %242 = vector.broadcast %241 : vector<1x1xf32> to vector<1x32xf32>
    %243 = arith.subf %234, %242 : vector<1x32xf32>
    %244 = arith.mulf %243, %243 : vector<1x32xf32>
    %cst_78 = arith.constant dense<0.000000e+00> : vector<1xf32>
    %245 = vector.multi_reduction <add>, %244, %cst_78 [1] : vector<1x32xf32> to vector<1xf32>
    %246 = vector.shape_cast %245 : vector<1xf32> to vector<1x1xf32>
    %cst_79 = arith.constant 3.200000e+01 : f32
    %247 = vector.broadcast %cst_79 : f32 to vector<1x1xf32>
    %248 = arith.divf %246, %247 : vector<1x1xf32>
    %cst_80 = arith.constant 9.99999974E-6 : f32
    %249 = vector.broadcast %cst_80 : f32 to vector<1x1xf32>
    %250 = arith.addf %248, %249 : vector<1x1xf32>
    %251 = math.rsqrt %250 : vector<1x1xf32>
    %252 = vector.broadcast %251 : vector<1x1xf32> to vector<1x32xf32>
    %253 = arith.mulf %243, %252 : vector<1x32xf32>
    %254 = arith.mulf %253, %236 : vector<1x32xf32>
    %255 = arith.addf %254, %237 : vector<1x32xf32>
    %256 = arith.truncf %255 : vector<1x32xf32> to vector<1x32xbf16>
    %cst_81 = arith.constant dense<0.000000e+00> : vector<1x32xf32>
    %257 = tpu.matmul %256, %152, %cst_81 {dimension_numbers = #tpu.dot_dimension_numbers<[1], [0], [0], [1], [0, 0, 1, 1], [], []>} : vector<1x32xbf16>, vector<32x32xbf16>, vector<1x32xf32> -> vector<1x32xf32>
    %258 = vector.extract_strided_slice %147 {offsets = [10, 0], sizes = [1, 32], strides = [1, 1]} : vector<16x32xf32> to vector<1x32xf32>
    %259 = arith.addf %257, %258 : vector<1x32xf32>
    %cst_82 = arith.constant 5.000000e-01 : f32
    %260 = vector.broadcast %cst_82 : f32 to vector<1x32xf32>
    %261 = arith.mulf %260, %259 : vector<1x32xf32>
    %cst_83 = arith.constant 4.471500e-02 : f32
    %262 = vector.broadcast %cst_83 : f32 to vector<1x32xf32>
    %263 = arith.mulf %262, %259 : vector<1x32xf32>
    %264 = arith.mulf %263, %259 : vector<1x32xf32>
    %265 = arith.mulf %264, %259 : vector<1x32xf32>
    %266 = arith.addf %259, %265 : vector<1x32xf32>
    %cst_84 = arith.constant 0.797884583 : f32
    %267 = vector.broadcast %cst_84 : f32 to vector<1x32xf32>
    %268 = arith.mulf %267, %266 : vector<1x32xf32>
    %269 = math.tanh %268 : vector<1x32xf32>
    %cst_85 = arith.constant 1.000000e+00 : f32
    %270 = vector.broadcast %cst_85 : f32 to vector<1x32xf32>
    %271 = arith.addf %270, %269 : vector<1x32xf32>
    %272 = arith.mulf %261, %271 : vector<1x32xf32>
    %273 = arith.truncf %272 : vector<1x32xf32> to vector<1x32xbf16>
    %cst_86 = arith.constant dense<0.000000e+00> : vector<1x32xf32>
    %274 = tpu.matmul %273, %153, %cst_86 {dimension_numbers = #tpu.dot_dimension_numbers<[1], [0], [0], [1], [0, 0, 1, 1], [], []>} : vector<1x32xbf16>, vector<32x32xbf16>, vector<1x32xf32> -> vector<1x32xf32>
    %275 = vector.extract_strided_slice %147 {offsets = [11, 0], sizes = [1, 32], strides = [1, 1]} : vector<16x32xf32> to vector<1x32xf32>
    %276 = arith.addf %274, %275 : vector<1x32xf32>
    %277 = arith.addf %234, %276 : vector<1x32xf32>
    %278 = arith.truncf %277 : vector<1x32xf32> to vector<1x32xbf16>
    %cst_87 = arith.constant dense<0.000000e+00> : vector<1x128xf32>
    %279 = tpu.matmul %278, %3, %cst_87 {dimension_numbers = #tpu.dot_dimension_numbers<[1], [0], [0], [1], [0, 0, 1, 1], [], []>} : vector<1x32xbf16>, vector<32x128xbf16>, vector<1x128xf32> -> vector<1x128xf32>
    %280 = arith.addf %279, %4 : vector<1x128xf32>
    %c1 = arith.constant 1 : index
    %c0_88 = arith.constant 0 : index
    %c0_89 = arith.constant 0 : index
    %281 = vector.load %arg1[%c1, %c0_88, %c0_89] : memref<2x16x34xf32, #tpu.memory_space<vmem>>, vector<1x16x34xf32>
    %282 = vector.shape_cast %281 : vector<1x16x34xf32> to vector<16x34xf32>
    %c0_90 = arith.constant 0 : index
    %c0_91 = arith.constant 0 : index
    %283 = vector.load %arg5[%c0_90, %c0_91] : memref<64x32xf32, #tpu.memory_space<vmem>>, vector<16x32xf32>
    %c0_92 = arith.constant 0 : index
    %c0_93 = arith.constant 0 : index
    %284 = vector.load %arg4[%c0_92, %c0_93] : memref<896x32xbf16, #tpu.memory_space<vmem>>, vector<32x32xbf16>
    %c32_94 = arith.constant 32 : index
    %c0_95 = arith.constant 0 : index
    %285 = vector.load %arg4[%c32_94, %c0_95] : memref<896x32xbf16, #tpu.memory_space<vmem>>, vector<34x32xbf16>
    %c80_96 = arith.constant 80 : index
    %c0_97 = arith.constant 0 : index
    %286 = vector.load %arg4[%c80_96, %c0_97] : memref<896x32xbf16, #tpu.memory_space<vmem>>, vector<34x32xbf16>
    %c128_98 = arith.constant 128 : index
    %c0_99 = arith.constant 0 : index
    %287 = vector.load %arg4[%c128_98, %c0_99] : memref<896x32xbf16, #tpu.memory_space<vmem>>, vector<32x32xbf16>
    %c160_100 = arith.constant 160 : index
    %c0_101 = arith.constant 0 : index
    %288 = vector.load %arg4[%c160_100, %c0_101] : memref<896x32xbf16, #tpu.memory_space<vmem>>, vector<32x32xbf16>
    %c192_102 = arith.constant 192 : index
    %c0_103 = arith.constant 0 : index
    %289 = vector.load %arg4[%c192_102, %c0_103] : memref<896x32xbf16, #tpu.memory_space<vmem>>, vector<32x32xbf16>
    %290 = vector.extract_strided_slice %283 {offsets = [0, 0], sizes = [2, 32], strides = [1, 1]} : vector<16x32xf32> to vector<2x32xf32>
    %291 = vector.extract_strided_slice %290 {offsets = [0, 0], sizes = [1, 32], strides = [1, 1]} : vector<2x32xf32> to vector<1x32xf32>
    %292 = vector.extract_strided_slice %290 {offsets = [1, 0], sizes = [1, 32], strides = [1, 1]} : vector<2x32xf32> to vector<1x32xf32>
    %cst_104 = arith.constant dense<0.000000e+00> : vector<8xf32>
    %293 = vector.multi_reduction <add>, %0, %cst_104 [1] : vector<8x32xf32> to vector<8xf32>
    %294 = vector.shape_cast %293 : vector<8xf32> to vector<8x1xf32>
    %cst_105 = arith.constant 3.200000e+01 : f32
    %295 = vector.broadcast %cst_105 : f32 to vector<8x1xf32>
    %296 = arith.divf %294, %295 : vector<8x1xf32>
    %297 = vector.broadcast %296 : vector<8x1xf32> to vector<8x32xf32>
    %298 = arith.subf %0, %297 : vector<8x32xf32>
    %299 = arith.mulf %298, %298 : vector<8x32xf32>
    %cst_106 = arith.constant dense<0.000000e+00> : vector<8xf32>
    %300 = vector.multi_reduction <add>, %299, %cst_106 [1] : vector<8x32xf32> to vector<8xf32>
    %301 = vector.shape_cast %300 : vector<8xf32> to vector<8x1xf32>
    %cst_107 = arith.constant 3.200000e+01 : f32
    %302 = vector.broadcast %cst_107 : f32 to vector<8x1xf32>
    %303 = arith.divf %301, %302 : vector<8x1xf32>
    %cst_108 = arith.constant 9.99999974E-6 : f32
    %304 = vector.broadcast %cst_108 : f32 to vector<8x1xf32>
    %305 = arith.addf %303, %304 : vector<8x1xf32>
    %306 = math.rsqrt %305 : vector<8x1xf32>
    %307 = vector.broadcast %306 : vector<8x1xf32> to vector<8x32xf32>
    %308 = arith.mulf %298, %307 : vector<8x32xf32>
    %309 = vector.broadcast %291 : vector<1x32xf32> to vector<8x32xf32>
    %310 = arith.mulf %308, %309 : vector<8x32xf32>
    %311 = vector.broadcast %292 : vector<1x32xf32> to vector<8x32xf32>
    %312 = arith.addf %310, %311 : vector<8x32xf32>
    %313 = vector.extract_strided_slice %2 {offsets = [0, 0], sizes = [1, 34], strides = [1, 1]} : vector<2x34xf32> to vector<1x34xf32>
    %314 = vector.extract_strided_slice %2 {offsets = [1, 0], sizes = [1, 34], strides = [1, 1]} : vector<2x34xf32> to vector<1x34xf32>
    %cst_109 = arith.constant dense<0.000000e+00> : vector<16xf32>
    %315 = vector.multi_reduction <add>, %282, %cst_109 [1] : vector<16x34xf32> to vector<16xf32>
    %316 = vector.shape_cast %315 : vector<16xf32> to vector<16x1xf32>
    %cst_110 = arith.constant 3.400000e+01 : f32
    %317 = vector.broadcast %cst_110 : f32 to vector<16x1xf32>
    %318 = arith.divf %316, %317 : vector<16x1xf32>
    %319 = vector.broadcast %318 : vector<16x1xf32> to vector<16x34xf32>
    %320 = arith.subf %282, %319 : vector<16x34xf32>
    %321 = arith.mulf %320, %320 : vector<16x34xf32>
    %cst_111 = arith.constant dense<0.000000e+00> : vector<16xf32>
    %322 = vector.multi_reduction <add>, %321, %cst_111 [1] : vector<16x34xf32> to vector<16xf32>
    %323 = vector.shape_cast %322 : vector<16xf32> to vector<16x1xf32>
    %cst_112 = arith.constant 3.400000e+01 : f32
    %324 = vector.broadcast %cst_112 : f32 to vector<16x1xf32>
    %325 = arith.divf %323, %324 : vector<16x1xf32>
    %cst_113 = arith.constant 9.99999974E-6 : f32
    %326 = vector.broadcast %cst_113 : f32 to vector<16x1xf32>
    %327 = arith.addf %325, %326 : vector<16x1xf32>
    %328 = math.rsqrt %327 : vector<16x1xf32>
    %329 = vector.broadcast %328 : vector<16x1xf32> to vector<16x34xf32>
    %330 = arith.mulf %320, %329 : vector<16x34xf32>
    %331 = vector.broadcast %313 : vector<1x34xf32> to vector<16x34xf32>
    %332 = arith.mulf %330, %331 : vector<16x34xf32>
    %333 = vector.broadcast %314 : vector<1x34xf32> to vector<16x34xf32>
    %334 = arith.addf %332, %333 : vector<16x34xf32>
    %335 = arith.truncf %312 : vector<8x32xf32> to vector<8x32xbf16>
    %cst_114 = arith.constant dense<0.000000e+00> : vector<8x32xf32>
    %336 = tpu.matmul %335, %284, %cst_114 {dimension_numbers = #tpu.dot_dimension_numbers<[1], [0], [0], [1], [0, 0, 1, 1], [], []>} : vector<8x32xbf16>, vector<32x32xbf16>, vector<8x32xf32> -> vector<8x32xf32>
    %337 = vector.extract_strided_slice %283 {offsets = [4, 0], sizes = [1, 32], strides = [1, 1]} : vector<16x32xf32> to vector<1x32xf32>
    %338 = vector.broadcast %337 : vector<1x32xf32> to vector<8x32xf32>
    %339 = arith.addf %336, %338 : vector<8x32xf32>
    %340 = arith.truncf %334 : vector<16x34xf32> to vector<16x34xbf16>
    %cst_115 = arith.constant dense<0.000000e+00> : vector<16x32xf32>
    %341 = tpu.matmul %340, %285, %cst_115 {dimension_numbers = #tpu.dot_dimension_numbers<[1], [0], [0], [1], [0, 0, 1, 1], [], []>} : vector<16x34xbf16>, vector<34x32xbf16>, vector<16x32xf32> -> vector<16x32xf32>
    %342 = vector.extract_strided_slice %283 {offsets = [5, 0], sizes = [1, 32], strides = [1, 1]} : vector<16x32xf32> to vector<1x32xf32>
    %343 = vector.broadcast %342 : vector<1x32xf32> to vector<16x32xf32>
    %344 = arith.addf %341, %343 : vector<16x32xf32>
    %345 = arith.truncf %334 : vector<16x34xf32> to vector<16x34xbf16>
    %cst_116 = arith.constant dense<0.000000e+00> : vector<16x32xf32>
    %346 = tpu.matmul %345, %286, %cst_116 {dimension_numbers = #tpu.dot_dimension_numbers<[1], [0], [0], [1], [0, 0, 1, 1], [], []>} : vector<16x34xbf16>, vector<34x32xbf16>, vector<16x32xf32> -> vector<16x32xf32>
    %347 = vector.extract_strided_slice %283 {offsets = [6, 0], sizes = [1, 32], strides = [1, 1]} : vector<16x32xf32> to vector<1x32xf32>
    %348 = vector.broadcast %347 : vector<1x32xf32> to vector<16x32xf32>
    %349 = arith.addf %346, %348 : vector<16x32xf32>
    %350 = arith.truncf %339 : vector<8x32xf32> to vector<8x32xbf16>
    %351 = arith.truncf %344 : vector<16x32xf32> to vector<16x32xbf16>
    %cst_117 = arith.constant dense<0.000000e+00> : vector<8x16xf32>
    %352 = tpu.matmul %350, %351, %cst_117 {dimension_numbers = #tpu.dot_dimension_numbers<[1], [1], [0], [0], [0, 0, 1, 0], [], []>} : vector<8x32xbf16>, vector<16x32xbf16>, vector<8x16xf32> -> vector<8x16xf32>
    %cst_118 = arith.constant 0.176776692 : f32
    %353 = vector.broadcast %cst_118 : f32 to vector<8x16xf32>
    %354 = arith.mulf %352, %353 : vector<8x16xf32>
    %cst_119 = arith.constant dense<0xFF800000> : vector<8xf32>
    %355 = vector.multi_reduction <maximumf>, %354, %cst_119 [1] : vector<8x16xf32> to vector<8xf32>
    %356 = vector.shape_cast %355 : vector<8xf32> to vector<8x1xf32>
    %357 = vector.broadcast %356 : vector<8x1xf32> to vector<8x16xf32>
    %358 = arith.subf %354, %357 : vector<8x16xf32>
    %359 = math.exp %358 : vector<8x16xf32>
    %cst_120 = arith.constant dense<0.000000e+00> : vector<8xf32>
    %360 = vector.multi_reduction <add>, %359, %cst_120 [1] : vector<8x16xf32> to vector<8xf32>
    %361 = vector.shape_cast %360 : vector<8xf32> to vector<8x1xf32>
    %362 = tpu.reciprocal %361 {approx = true} : vector<8x1xf32> -> vector<8x1xf32>
    %363 = vector.broadcast %362 : vector<8x1xf32> to vector<8x16xf32>
    %364 = arith.mulf %359, %363 : vector<8x16xf32>
    %365 = arith.truncf %364 : vector<8x16xf32> to vector<8x16xbf16>
    %366 = arith.truncf %349 : vector<16x32xf32> to vector<16x32xbf16>
    %cst_121 = arith.constant dense<0.000000e+00> : vector<8x32xf32>
    %367 = tpu.matmul %365, %366, %cst_121 {dimension_numbers = #tpu.dot_dimension_numbers<[1], [0], [0], [1], [0, 0, 1, 1], [], []>} : vector<8x16xbf16>, vector<16x32xbf16>, vector<8x32xf32> -> vector<8x32xf32>
    %368 = arith.truncf %367 : vector<8x32xf32> to vector<8x32xbf16>
    %cst_122 = arith.constant dense<0.000000e+00> : vector<8x32xf32>
    %369 = tpu.matmul %368, %287, %cst_122 {dimension_numbers = #tpu.dot_dimension_numbers<[1], [0], [0], [1], [0, 0, 1, 1], [], []>} : vector<8x32xbf16>, vector<32x32xbf16>, vector<8x32xf32> -> vector<8x32xf32>
    %370 = vector.extract_strided_slice %283 {offsets = [7, 0], sizes = [1, 32], strides = [1, 1]} : vector<16x32xf32> to vector<1x32xf32>
    %371 = vector.broadcast %370 : vector<1x32xf32> to vector<8x32xf32>
    %372 = arith.addf %369, %371 : vector<8x32xf32>
    %373 = arith.addf %0, %372 : vector<8x32xf32>
    %374 = vector.extract_strided_slice %283 {offsets = [8, 0], sizes = [2, 32], strides = [1, 1]} : vector<16x32xf32> to vector<2x32xf32>
    %375 = vector.extract_strided_slice %374 {offsets = [0, 0], sizes = [1, 32], strides = [1, 1]} : vector<2x32xf32> to vector<1x32xf32>
    %376 = vector.extract_strided_slice %374 {offsets = [1, 0], sizes = [1, 32], strides = [1, 1]} : vector<2x32xf32> to vector<1x32xf32>
    %cst_123 = arith.constant dense<0.000000e+00> : vector<8xf32>
    %377 = vector.multi_reduction <add>, %373, %cst_123 [1] : vector<8x32xf32> to vector<8xf32>
    %378 = vector.shape_cast %377 : vector<8xf32> to vector<8x1xf32>
    %cst_124 = arith.constant 3.200000e+01 : f32
    %379 = vector.broadcast %cst_124 : f32 to vector<8x1xf32>
    %380 = arith.divf %378, %379 : vector<8x1xf32>
    %381 = vector.broadcast %380 : vector<8x1xf32> to vector<8x32xf32>
    %382 = arith.subf %373, %381 : vector<8x32xf32>
    %383 = arith.mulf %382, %382 : vector<8x32xf32>
    %cst_125 = arith.constant dense<0.000000e+00> : vector<8xf32>
    %384 = vector.multi_reduction <add>, %383, %cst_125 [1] : vector<8x32xf32> to vector<8xf32>
    %385 = vector.shape_cast %384 : vector<8xf32> to vector<8x1xf32>
    %cst_126 = arith.constant 3.200000e+01 : f32
    %386 = vector.broadcast %cst_126 : f32 to vector<8x1xf32>
    %387 = arith.divf %385, %386 : vector<8x1xf32>
    %cst_127 = arith.constant 9.99999974E-6 : f32
    %388 = vector.broadcast %cst_127 : f32 to vector<8x1xf32>
    %389 = arith.addf %387, %388 : vector<8x1xf32>
    %390 = math.rsqrt %389 : vector<8x1xf32>
    %391 = vector.broadcast %390 : vector<8x1xf32> to vector<8x32xf32>
    %392 = arith.mulf %382, %391 : vector<8x32xf32>
    %393 = vector.broadcast %375 : vector<1x32xf32> to vector<8x32xf32>
    %394 = arith.mulf %392, %393 : vector<8x32xf32>
    %395 = vector.broadcast %376 : vector<1x32xf32> to vector<8x32xf32>
    %396 = arith.addf %394, %395 : vector<8x32xf32>
    %397 = arith.truncf %396 : vector<8x32xf32> to vector<8x32xbf16>
    %cst_128 = arith.constant dense<0.000000e+00> : vector<8x32xf32>
    %398 = tpu.matmul %397, %288, %cst_128 {dimension_numbers = #tpu.dot_dimension_numbers<[1], [0], [0], [1], [0, 0, 1, 1], [], []>} : vector<8x32xbf16>, vector<32x32xbf16>, vector<8x32xf32> -> vector<8x32xf32>
    %399 = vector.extract_strided_slice %283 {offsets = [10, 0], sizes = [1, 32], strides = [1, 1]} : vector<16x32xf32> to vector<1x32xf32>
    %400 = vector.broadcast %399 : vector<1x32xf32> to vector<8x32xf32>
    %401 = arith.addf %398, %400 : vector<8x32xf32>
    %cst_129 = arith.constant 5.000000e-01 : f32
    %402 = vector.broadcast %cst_129 : f32 to vector<8x32xf32>
    %403 = arith.mulf %402, %401 : vector<8x32xf32>
    %cst_130 = arith.constant 4.471500e-02 : f32
    %404 = vector.broadcast %cst_130 : f32 to vector<8x32xf32>
    %405 = arith.mulf %404, %401 : vector<8x32xf32>
    %406 = arith.mulf %405, %401 : vector<8x32xf32>
    %407 = arith.mulf %406, %401 : vector<8x32xf32>
    %408 = arith.addf %401, %407 : vector<8x32xf32>
    %cst_131 = arith.constant 0.797884583 : f32
    %409 = vector.broadcast %cst_131 : f32 to vector<8x32xf32>
    %410 = arith.mulf %409, %408 : vector<8x32xf32>
    %411 = math.tanh %410 : vector<8x32xf32>
    %cst_132 = arith.constant 1.000000e+00 : f32
    %412 = vector.broadcast %cst_132 : f32 to vector<8x32xf32>
    %413 = arith.addf %412, %411 : vector<8x32xf32>
    %414 = arith.mulf %403, %413 : vector<8x32xf32>
    %415 = arith.truncf %414 : vector<8x32xf32> to vector<8x32xbf16>
    %cst_133 = arith.constant dense<0.000000e+00> : vector<8x32xf32>
    %416 = tpu.matmul %415, %289, %cst_133 {dimension_numbers = #tpu.dot_dimension_numbers<[1], [0], [0], [1], [0, 0, 1, 1], [], []>} : vector<8x32xbf16>, vector<32x32xbf16>, vector<8x32xf32> -> vector<8x32xf32>
    %417 = vector.extract_strided_slice %283 {offsets = [11, 0], sizes = [1, 32], strides = [1, 1]} : vector<16x32xf32> to vector<1x32xf32>
    %418 = vector.broadcast %417 : vector<1x32xf32> to vector<8x32xf32>
    %419 = arith.addf %416, %418 : vector<8x32xf32>
    %420 = arith.addf %373, %419 : vector<8x32xf32>
    %c0_i32_134 = arith.constant 0 : i32
    %c2_i32_135 = arith.constant 2 : i32
    %421 = arith.addi %c0_i32_134, %c2_i32_135 : i32
    %c1_i32_136 = arith.constant 1 : i32
    %422 = scf.for %arg10 = %c0_i32_134 to %421 step %c1_i32_136 iter_args(%arg11 = %420) -> (vector<8x32xf32>)  : i32 {
      %c16 = arith.constant 16 : index
      %c0_184 = arith.constant 0 : index
      %559 = vector.load %arg5[%c16, %c0_184] : memref<64x32xf32, #tpu.memory_space<vmem>>, vector<16x32xf32>
      %c224 = arith.constant 224 : index
      %c0_185 = arith.constant 0 : index
      %560 = vector.load %arg4[%c224, %c0_185] : memref<896x32xbf16, #tpu.memory_space<vmem>>, vector<32x32xbf16>
      %c256 = arith.constant 256 : index
      %c0_186 = arith.constant 0 : index
      %561 = vector.load %arg4[%c256, %c0_186] : memref<896x32xbf16, #tpu.memory_space<vmem>>, vector<32x32xbf16>
      %c304 = arith.constant 304 : index
      %c0_187 = arith.constant 0 : index
      %562 = vector.load %arg4[%c304, %c0_187] : memref<896x32xbf16, #tpu.memory_space<vmem>>, vector<32x32xbf16>
      %c352 = arith.constant 352 : index
      %c0_188 = arith.constant 0 : index
      %563 = vector.load %arg4[%c352, %c0_188] : memref<896x32xbf16, #tpu.memory_space<vmem>>, vector<32x32xbf16>
      %c384 = arith.constant 384 : index
      %c0_189 = arith.constant 0 : index
      %564 = vector.load %arg4[%c384, %c0_189] : memref<896x32xbf16, #tpu.memory_space<vmem>>, vector<32x32xbf16>
      %c416 = arith.constant 416 : index
      %c0_190 = arith.constant 0 : index
      %565 = vector.load %arg4[%c416, %c0_190] : memref<896x32xbf16, #tpu.memory_space<vmem>>, vector<32x32xbf16>
      %566 = vector.extract_strided_slice %559 {offsets = [0, 0], sizes = [2, 32], strides = [1, 1]} : vector<16x32xf32> to vector<2x32xf32>
      %567 = vector.extract_strided_slice %566 {offsets = [0, 0], sizes = [1, 32], strides = [1, 1]} : vector<2x32xf32> to vector<1x32xf32>
      %568 = vector.extract_strided_slice %566 {offsets = [1, 0], sizes = [1, 32], strides = [1, 1]} : vector<2x32xf32> to vector<1x32xf32>
      %cst_191 = arith.constant dense<0.000000e+00> : vector<8xf32>
      %569 = vector.multi_reduction <add>, %arg11, %cst_191 [1] : vector<8x32xf32> to vector<8xf32>
      %570 = vector.shape_cast %569 : vector<8xf32> to vector<8x1xf32>
      %cst_192 = arith.constant 3.200000e+01 : f32
      %571 = vector.broadcast %cst_192 : f32 to vector<8x1xf32>
      %572 = arith.divf %570, %571 : vector<8x1xf32>
      %573 = vector.broadcast %572 : vector<8x1xf32> to vector<8x32xf32>
      %574 = arith.subf %arg11, %573 : vector<8x32xf32>
      %575 = arith.mulf %574, %574 : vector<8x32xf32>
      %cst_193 = arith.constant dense<0.000000e+00> : vector<8xf32>
      %576 = vector.multi_reduction <add>, %575, %cst_193 [1] : vector<8x32xf32> to vector<8xf32>
      %577 = vector.shape_cast %576 : vector<8xf32> to vector<8x1xf32>
      %cst_194 = arith.constant 3.200000e+01 : f32
      %578 = vector.broadcast %cst_194 : f32 to vector<8x1xf32>
      %579 = arith.divf %577, %578 : vector<8x1xf32>
      %cst_195 = arith.constant 9.99999974E-6 : f32
      %580 = vector.broadcast %cst_195 : f32 to vector<8x1xf32>
      %581 = arith.addf %579, %580 : vector<8x1xf32>
      %582 = math.rsqrt %581 : vector<8x1xf32>
      %583 = vector.broadcast %582 : vector<8x1xf32> to vector<8x32xf32>
      %584 = arith.mulf %574, %583 : vector<8x32xf32>
      %585 = vector.broadcast %567 : vector<1x32xf32> to vector<8x32xf32>
      %586 = arith.mulf %584, %585 : vector<8x32xf32>
      %587 = vector.broadcast %568 : vector<1x32xf32> to vector<8x32xf32>
      %588 = arith.addf %586, %587 : vector<8x32xf32>
      %589 = arith.truncf %588 : vector<8x32xf32> to vector<8x32xbf16>
      %cst_196 = arith.constant dense<0.000000e+00> : vector<8x32xf32>
      %590 = tpu.matmul %589, %560, %cst_196 {dimension_numbers = #tpu.dot_dimension_numbers<[1], [0], [0], [1], [0, 0, 1, 1], [], []>} : vector<8x32xbf16>, vector<32x32xbf16>, vector<8x32xf32> -> vector<8x32xf32>
      %591 = vector.extract_strided_slice %559 {offsets = [4, 0], sizes = [1, 32], strides = [1, 1]} : vector<16x32xf32> to vector<1x32xf32>
      %592 = vector.broadcast %591 : vector<1x32xf32> to vector<8x32xf32>
      %593 = arith.addf %590, %592 : vector<8x32xf32>
      %594 = arith.truncf %588 : vector<8x32xf32> to vector<8x32xbf16>
      %cst_197 = arith.constant dense<0.000000e+00> : vector<8x32xf32>
      %595 = tpu.matmul %594, %561, %cst_197 {dimension_numbers = #tpu.dot_dimension_numbers<[1], [0], [0], [1], [0, 0, 1, 1], [], []>} : vector<8x32xbf16>, vector<32x32xbf16>, vector<8x32xf32> -> vector<8x32xf32>
      %596 = vector.extract_strided_slice %559 {offsets = [5, 0], sizes = [1, 32], strides = [1, 1]} : vector<16x32xf32> to vector<1x32xf32>
      %597 = vector.broadcast %596 : vector<1x32xf32> to vector<8x32xf32>
      %598 = arith.addf %595, %597 : vector<8x32xf32>
      %599 = arith.truncf %588 : vector<8x32xf32> to vector<8x32xbf16>
      %cst_198 = arith.constant dense<0.000000e+00> : vector<8x32xf32>
      %600 = tpu.matmul %599, %562, %cst_198 {dimension_numbers = #tpu.dot_dimension_numbers<[1], [0], [0], [1], [0, 0, 1, 1], [], []>} : vector<8x32xbf16>, vector<32x32xbf16>, vector<8x32xf32> -> vector<8x32xf32>
      %601 = vector.extract_strided_slice %559 {offsets = [6, 0], sizes = [1, 32], strides = [1, 1]} : vector<16x32xf32> to vector<1x32xf32>
      %602 = vector.broadcast %601 : vector<1x32xf32> to vector<8x32xf32>
      %603 = arith.addf %600, %602 : vector<8x32xf32>
      %604 = vector.extract_strided_slice %593 {offsets = [0, 0], sizes = [8, 8], strides = [1, 1]} : vector<8x32xf32> to vector<8x8xf32>
      %605 = arith.truncf %604 : vector<8x8xf32> to vector<8x8xbf16>
      %606 = vector.extract_strided_slice %598 {offsets = [0, 0], sizes = [8, 8], strides = [1, 1]} : vector<8x32xf32> to vector<8x8xf32>
      %607 = arith.truncf %606 : vector<8x8xf32> to vector<8x8xbf16>
      %cst_199 = arith.constant dense<0.000000e+00> : vector<8x8xf32>
      %608 = tpu.matmul %605, %607, %cst_199 {dimension_numbers = #tpu.dot_dimension_numbers<[1], [1], [0], [0], [0, 0, 1, 0], [], []>} : vector<8x8xbf16>, vector<8x8xbf16>, vector<8x8xf32> -> vector<8x8xf32>
      %cst_200 = arith.constant 0.353553385 : f32
      %609 = vector.broadcast %cst_200 : f32 to vector<8x8xf32>
      %610 = arith.mulf %608, %609 : vector<8x8xf32>
      %cst_201 = arith.constant dense<0xFF800000> : vector<8xf32>
      %611 = vector.multi_reduction <maximumf>, %610, %cst_201 [1] : vector<8x8xf32> to vector<8xf32>
      %612 = vector.shape_cast %611 : vector<8xf32> to vector<8x1xf32>
      %613 = vector.broadcast %612 : vector<8x1xf32> to vector<8x8xf32>
      %614 = arith.subf %610, %613 : vector<8x8xf32>
      %615 = math.exp %614 : vector<8x8xf32>
      %cst_202 = arith.constant dense<0.000000e+00> : vector<8xf32>
      %616 = vector.multi_reduction <add>, %615, %cst_202 [1] : vector<8x8xf32> to vector<8xf32>
      %617 = vector.shape_cast %616 : vector<8xf32> to vector<8x1xf32>
      %618 = tpu.reciprocal %617 {approx = true} : vector<8x1xf32> -> vector<8x1xf32>
      %619 = vector.broadcast %618 : vector<8x1xf32> to vector<8x8xf32>
      %620 = arith.mulf %615, %619 : vector<8x8xf32>
      %621 = vector.extract_strided_slice %603 {offsets = [0, 0], sizes = [8, 8], strides = [1, 1]} : vector<8x32xf32> to vector<8x8xf32>
      %622 = arith.truncf %620 : vector<8x8xf32> to vector<8x8xbf16>
      %623 = arith.truncf %621 : vector<8x8xf32> to vector<8x8xbf16>
      %cst_203 = arith.constant dense<0.000000e+00> : vector<8x8xf32>
      %624 = tpu.matmul %622, %623, %cst_203 {dimension_numbers = #tpu.dot_dimension_numbers<[1], [0], [0], [1], [0, 0, 1, 1], [], []>} : vector<8x8xbf16>, vector<8x8xbf16>, vector<8x8xf32> -> vector<8x8xf32>
      %625 = vector.extract_strided_slice %593 {offsets = [0, 8], sizes = [8, 8], strides = [1, 1]} : vector<8x32xf32> to vector<8x8xf32>
      %626 = arith.truncf %625 : vector<8x8xf32> to vector<8x8xbf16>
      %627 = vector.extract_strided_slice %598 {offsets = [0, 8], sizes = [8, 8], strides = [1, 1]} : vector<8x32xf32> to vector<8x8xf32>
      %628 = arith.truncf %627 : vector<8x8xf32> to vector<8x8xbf16>
      %cst_204 = arith.constant dense<0.000000e+00> : vector<8x8xf32>
      %629 = tpu.matmul %626, %628, %cst_204 {dimension_numbers = #tpu.dot_dimension_numbers<[1], [1], [0], [0], [0, 0, 1, 0], [], []>} : vector<8x8xbf16>, vector<8x8xbf16>, vector<8x8xf32> -> vector<8x8xf32>
      %cst_205 = arith.constant 0.353553385 : f32
      %630 = vector.broadcast %cst_205 : f32 to vector<8x8xf32>
      %631 = arith.mulf %629, %630 : vector<8x8xf32>
      %cst_206 = arith.constant dense<0xFF800000> : vector<8xf32>
      %632 = vector.multi_reduction <maximumf>, %631, %cst_206 [1] : vector<8x8xf32> to vector<8xf32>
      %633 = vector.shape_cast %632 : vector<8xf32> to vector<8x1xf32>
      %634 = vector.broadcast %633 : vector<8x1xf32> to vector<8x8xf32>
      %635 = arith.subf %631, %634 : vector<8x8xf32>
      %636 = math.exp %635 : vector<8x8xf32>
      %cst_207 = arith.constant dense<0.000000e+00> : vector<8xf32>
      %637 = vector.multi_reduction <add>, %636, %cst_207 [1] : vector<8x8xf32> to vector<8xf32>
      %638 = vector.shape_cast %637 : vector<8xf32> to vector<8x1xf32>
      %639 = tpu.reciprocal %638 {approx = true} : vector<8x1xf32> -> vector<8x1xf32>
      %640 = vector.broadcast %639 : vector<8x1xf32> to vector<8x8xf32>
      %641 = arith.mulf %636, %640 : vector<8x8xf32>
      %642 = vector.extract_strided_slice %603 {offsets = [0, 8], sizes = [8, 8], strides = [1, 1]} : vector<8x32xf32> to vector<8x8xf32>
      %643 = arith.truncf %641 : vector<8x8xf32> to vector<8x8xbf16>
      %644 = arith.truncf %642 : vector<8x8xf32> to vector<8x8xbf16>
      %cst_208 = arith.constant dense<0.000000e+00> : vector<8x8xf32>
      %645 = tpu.matmul %643, %644, %cst_208 {dimension_numbers = #tpu.dot_dimension_numbers<[1], [0], [0], [1], [0, 0, 1, 1], [], []>} : vector<8x8xbf16>, vector<8x8xbf16>, vector<8x8xf32> -> vector<8x8xf32>
      %646 = vector.extract_strided_slice %593 {offsets = [0, 16], sizes = [8, 8], strides = [1, 1]} : vector<8x32xf32> to vector<8x8xf32>
      %647 = arith.truncf %646 : vector<8x8xf32> to vector<8x8xbf16>
      %648 = vector.extract_strided_slice %598 {offsets = [0, 16], sizes = [8, 8], strides = [1, 1]} : vector<8x32xf32> to vector<8x8xf32>
      %649 = arith.truncf %648 : vector<8x8xf32> to vector<8x8xbf16>
      %cst_209 = arith.constant dense<0.000000e+00> : vector<8x8xf32>
      %650 = tpu.matmul %647, %649, %cst_209 {dimension_numbers = #tpu.dot_dimension_numbers<[1], [1], [0], [0], [0, 0, 1, 0], [], []>} : vector<8x8xbf16>, vector<8x8xbf16>, vector<8x8xf32> -> vector<8x8xf32>
      %cst_210 = arith.constant 0.353553385 : f32
      %651 = vector.broadcast %cst_210 : f32 to vector<8x8xf32>
      %652 = arith.mulf %650, %651 : vector<8x8xf32>
      %cst_211 = arith.constant dense<0xFF800000> : vector<8xf32>
      %653 = vector.multi_reduction <maximumf>, %652, %cst_211 [1] : vector<8x8xf32> to vector<8xf32>
      %654 = vector.shape_cast %653 : vector<8xf32> to vector<8x1xf32>
      %655 = vector.broadcast %654 : vector<8x1xf32> to vector<8x8xf32>
      %656 = arith.subf %652, %655 : vector<8x8xf32>
      %657 = math.exp %656 : vector<8x8xf32>
      %cst_212 = arith.constant dense<0.000000e+00> : vector<8xf32>
      %658 = vector.multi_reduction <add>, %657, %cst_212 [1] : vector<8x8xf32> to vector<8xf32>
      %659 = vector.shape_cast %658 : vector<8xf32> to vector<8x1xf32>
      %660 = tpu.reciprocal %659 {approx = true} : vector<8x1xf32> -> vector<8x1xf32>
      %661 = vector.broadcast %660 : vector<8x1xf32> to vector<8x8xf32>
      %662 = arith.mulf %657, %661 : vector<8x8xf32>
      %663 = vector.extract_strided_slice %603 {offsets = [0, 16], sizes = [8, 8], strides = [1, 1]} : vector<8x32xf32> to vector<8x8xf32>
      %664 = arith.truncf %662 : vector<8x8xf32> to vector<8x8xbf16>
      %665 = arith.truncf %663 : vector<8x8xf32> to vector<8x8xbf16>
      %cst_213 = arith.constant dense<0.000000e+00> : vector<8x8xf32>
      %666 = tpu.matmul %664, %665, %cst_213 {dimension_numbers = #tpu.dot_dimension_numbers<[1], [0], [0], [1], [0, 0, 1, 1], [], []>} : vector<8x8xbf16>, vector<8x8xbf16>, vector<8x8xf32> -> vector<8x8xf32>
      %667 = vector.extract_strided_slice %593 {offsets = [0, 24], sizes = [8, 8], strides = [1, 1]} : vector<8x32xf32> to vector<8x8xf32>
      %668 = arith.truncf %667 : vector<8x8xf32> to vector<8x8xbf16>
      %669 = vector.extract_strided_slice %598 {offsets = [0, 24], sizes = [8, 8], strides = [1, 1]} : vector<8x32xf32> to vector<8x8xf32>
      %670 = arith.truncf %669 : vector<8x8xf32> to vector<8x8xbf16>
      %cst_214 = arith.constant dense<0.000000e+00> : vector<8x8xf32>
      %671 = tpu.matmul %668, %670, %cst_214 {dimension_numbers = #tpu.dot_dimension_numbers<[1], [1], [0], [0], [0, 0, 1, 0], [], []>} : vector<8x8xbf16>, vector<8x8xbf16>, vector<8x8xf32> -> vector<8x8xf32>
      %cst_215 = arith.constant 0.353553385 : f32
      %672 = vector.broadcast %cst_215 : f32 to vector<8x8xf32>
      %673 = arith.mulf %671, %672 : vector<8x8xf32>
      %cst_216 = arith.constant dense<0xFF800000> : vector<8xf32>
      %674 = vector.multi_reduction <maximumf>, %673, %cst_216 [1] : vector<8x8xf32> to vector<8xf32>
      %675 = vector.shape_cast %674 : vector<8xf32> to vector<8x1xf32>
      %676 = vector.broadcast %675 : vector<8x1xf32> to vector<8x8xf32>
      %677 = arith.subf %673, %676 : vector<8x8xf32>
      %678 = math.exp %677 : vector<8x8xf32>
      %cst_217 = arith.constant dense<0.000000e+00> : vector<8xf32>
      %679 = vector.multi_reduction <add>, %678, %cst_217 [1] : vector<8x8xf32> to vector<8xf32>
      %680 = vector.shape_cast %679 : vector<8xf32> to vector<8x1xf32>
      %681 = tpu.reciprocal %680 {approx = true} : vector<8x1xf32> -> vector<8x1xf32>
      %682 = vector.broadcast %681 : vector<8x1xf32> to vector<8x8xf32>
      %683 = arith.mulf %678, %682 : vector<8x8xf32>
      %684 = vector.extract_strided_slice %603 {offsets = [0, 24], sizes = [8, 8], strides = [1, 1]} : vector<8x32xf32> to vector<8x8xf32>
      %685 = arith.truncf %683 : vector<8x8xf32> to vector<8x8xbf16>
      %686 = arith.truncf %684 : vector<8x8xf32> to vector<8x8xbf16>
      %cst_218 = arith.constant dense<0.000000e+00> : vector<8x8xf32>
      %687 = tpu.matmul %685, %686, %cst_218 {dimension_numbers = #tpu.dot_dimension_numbers<[1], [0], [0], [1], [0, 0, 1, 1], [], []>} : vector<8x8xbf16>, vector<8x8xbf16>, vector<8x8xf32> -> vector<8x8xf32>
      %688 = tpu.concatenate %624, %645, %666, %687 in 1 : vector<8x8xf32>, vector<8x8xf32>, vector<8x8xf32>, vector<8x8xf32> -> vector<8x32xf32>
      %689 = arith.truncf %688 : vector<8x32xf32> to vector<8x32xbf16>
      %cst_219 = arith.constant dense<0.000000e+00> : vector<8x32xf32>
      %690 = tpu.matmul %689, %563, %cst_219 {dimension_numbers = #tpu.dot_dimension_numbers<[1], [0], [0], [1], [0, 0, 1, 1], [], []>} : vector<8x32xbf16>, vector<32x32xbf16>, vector<8x32xf32> -> vector<8x32xf32>
      %691 = vector.extract_strided_slice %559 {offsets = [7, 0], sizes = [1, 32], strides = [1, 1]} : vector<16x32xf32> to vector<1x32xf32>
      %692 = vector.broadcast %691 : vector<1x32xf32> to vector<8x32xf32>
      %693 = arith.addf %690, %692 : vector<8x32xf32>
      %694 = arith.addf %arg11, %693 : vector<8x32xf32>
      %695 = vector.extract_strided_slice %559 {offsets = [8, 0], sizes = [2, 32], strides = [1, 1]} : vector<16x32xf32> to vector<2x32xf32>
      %696 = vector.extract_strided_slice %695 {offsets = [0, 0], sizes = [1, 32], strides = [1, 1]} : vector<2x32xf32> to vector<1x32xf32>
      %697 = vector.extract_strided_slice %695 {offsets = [1, 0], sizes = [1, 32], strides = [1, 1]} : vector<2x32xf32> to vector<1x32xf32>
      %cst_220 = arith.constant dense<0.000000e+00> : vector<8xf32>
      %698 = vector.multi_reduction <add>, %694, %cst_220 [1] : vector<8x32xf32> to vector<8xf32>
      %699 = vector.shape_cast %698 : vector<8xf32> to vector<8x1xf32>
      %cst_221 = arith.constant 3.200000e+01 : f32
      %700 = vector.broadcast %cst_221 : f32 to vector<8x1xf32>
      %701 = arith.divf %699, %700 : vector<8x1xf32>
      %702 = vector.broadcast %701 : vector<8x1xf32> to vector<8x32xf32>
      %703 = arith.subf %694, %702 : vector<8x32xf32>
      %704 = arith.mulf %703, %703 : vector<8x32xf32>
      %cst_222 = arith.constant dense<0.000000e+00> : vector<8xf32>
      %705 = vector.multi_reduction <add>, %704, %cst_222 [1] : vector<8x32xf32> to vector<8xf32>
      %706 = vector.shape_cast %705 : vector<8xf32> to vector<8x1xf32>
      %cst_223 = arith.constant 3.200000e+01 : f32
      %707 = vector.broadcast %cst_223 : f32 to vector<8x1xf32>
      %708 = arith.divf %706, %707 : vector<8x1xf32>
      %cst_224 = arith.constant 9.99999974E-6 : f32
      %709 = vector.broadcast %cst_224 : f32 to vector<8x1xf32>
      %710 = arith.addf %708, %709 : vector<8x1xf32>
      %711 = math.rsqrt %710 : vector<8x1xf32>
      %712 = vector.broadcast %711 : vector<8x1xf32> to vector<8x32xf32>
      %713 = arith.mulf %703, %712 : vector<8x32xf32>
      %714 = vector.broadcast %696 : vector<1x32xf32> to vector<8x32xf32>
      %715 = arith.mulf %713, %714 : vector<8x32xf32>
      %716 = vector.broadcast %697 : vector<1x32xf32> to vector<8x32xf32>
      %717 = arith.addf %715, %716 : vector<8x32xf32>
      %718 = arith.truncf %717 : vector<8x32xf32> to vector<8x32xbf16>
      %cst_225 = arith.constant dense<0.000000e+00> : vector<8x32xf32>
      %719 = tpu.matmul %718, %564, %cst_225 {dimension_numbers = #tpu.dot_dimension_numbers<[1], [0], [0], [1], [0, 0, 1, 1], [], []>} : vector<8x32xbf16>, vector<32x32xbf16>, vector<8x32xf32> -> vector<8x32xf32>
      %720 = vector.extract_strided_slice %559 {offsets = [10, 0], sizes = [1, 32], strides = [1, 1]} : vector<16x32xf32> to vector<1x32xf32>
      %721 = vector.broadcast %720 : vector<1x32xf32> to vector<8x32xf32>
      %722 = arith.addf %719, %721 : vector<8x32xf32>
      %cst_226 = arith.constant 5.000000e-01 : f32
      %723 = vector.broadcast %cst_226 : f32 to vector<8x32xf32>
      %724 = arith.mulf %723, %722 : vector<8x32xf32>
      %cst_227 = arith.constant 4.471500e-02 : f32
      %725 = vector.broadcast %cst_227 : f32 to vector<8x32xf32>
      %726 = arith.mulf %725, %722 : vector<8x32xf32>
      %727 = arith.mulf %726, %722 : vector<8x32xf32>
      %728 = arith.mulf %727, %722 : vector<8x32xf32>
      %729 = arith.addf %722, %728 : vector<8x32xf32>
      %cst_228 = arith.constant 0.797884583 : f32
      %730 = vector.broadcast %cst_228 : f32 to vector<8x32xf32>
      %731 = arith.mulf %730, %729 : vector<8x32xf32>
      %732 = math.tanh %731 : vector<8x32xf32>
      %cst_229 = arith.constant 1.000000e+00 : f32
      %733 = vector.broadcast %cst_229 : f32 to vector<8x32xf32>
      %734 = arith.addf %733, %732 : vector<8x32xf32>
      %735 = arith.mulf %724, %734 : vector<8x32xf32>
      %736 = arith.truncf %735 : vector<8x32xf32> to vector<8x32xbf16>
      %cst_230 = arith.constant dense<0.000000e+00> : vector<8x32xf32>
      %737 = tpu.matmul %736, %565, %cst_230 {dimension_numbers = #tpu.dot_dimension_numbers<[1], [0], [0], [1], [0, 0, 1, 1], [], []>} : vector<8x32xbf16>, vector<32x32xbf16>, vector<8x32xf32> -> vector<8x32xf32>
      %738 = vector.extract_strided_slice %559 {offsets = [11, 0], sizes = [1, 32], strides = [1, 1]} : vector<16x32xf32> to vector<1x32xf32>
      %739 = vector.broadcast %738 : vector<1x32xf32> to vector<8x32xf32>
      %740 = arith.addf %737, %739 : vector<8x32xf32>
      %741 = arith.addf %694, %740 : vector<8x32xf32>
      %c32_231 = arith.constant 32 : index
      %c0_232 = arith.constant 0 : index
      %742 = vector.load %arg5[%c32_231, %c0_232] : memref<64x32xf32, #tpu.memory_space<vmem>>, vector<16x32xf32>
      %c448 = arith.constant 448 : index
      %c0_233 = arith.constant 0 : index
      %743 = vector.load %arg4[%c448, %c0_233] : memref<896x32xbf16, #tpu.memory_space<vmem>>, vector<32x32xbf16>
      %c480 = arith.constant 480 : index
      %c0_234 = arith.constant 0 : index
      %744 = vector.load %arg4[%c480, %c0_234] : memref<896x32xbf16, #tpu.memory_space<vmem>>, vector<32x32xbf16>
      %c528 = arith.constant 528 : index
      %c0_235 = arith.constant 0 : index
      %745 = vector.load %arg4[%c528, %c0_235] : memref<896x32xbf16, #tpu.memory_space<vmem>>, vector<32x32xbf16>
      %c576 = arith.constant 576 : index
      %c0_236 = arith.constant 0 : index
      %746 = vector.load %arg4[%c576, %c0_236] : memref<896x32xbf16, #tpu.memory_space<vmem>>, vector<32x32xbf16>
      %c608 = arith.constant 608 : index
      %c0_237 = arith.constant 0 : index
      %747 = vector.load %arg4[%c608, %c0_237] : memref<896x32xbf16, #tpu.memory_space<vmem>>, vector<32x32xbf16>
      %c640 = arith.constant 640 : index
      %c0_238 = arith.constant 0 : index
      %748 = vector.load %arg4[%c640, %c0_238] : memref<896x32xbf16, #tpu.memory_space<vmem>>, vector<32x32xbf16>
      %749 = vector.extract_strided_slice %742 {offsets = [0, 0], sizes = [2, 32], strides = [1, 1]} : vector<16x32xf32> to vector<2x32xf32>
      %750 = vector.extract_strided_slice %749 {offsets = [0, 0], sizes = [1, 32], strides = [1, 1]} : vector<2x32xf32> to vector<1x32xf32>
      %751 = vector.extract_strided_slice %749 {offsets = [1, 0], sizes = [1, 32], strides = [1, 1]} : vector<2x32xf32> to vector<1x32xf32>
      %cst_239 = arith.constant dense<0.000000e+00> : vector<8xf32>
      %752 = vector.multi_reduction <add>, %741, %cst_239 [1] : vector<8x32xf32> to vector<8xf32>
      %753 = vector.shape_cast %752 : vector<8xf32> to vector<8x1xf32>
      %cst_240 = arith.constant 3.200000e+01 : f32
      %754 = vector.broadcast %cst_240 : f32 to vector<8x1xf32>
      %755 = arith.divf %753, %754 : vector<8x1xf32>
      %756 = vector.broadcast %755 : vector<8x1xf32> to vector<8x32xf32>
      %757 = arith.subf %741, %756 : vector<8x32xf32>
      %758 = arith.mulf %757, %757 : vector<8x32xf32>
      %cst_241 = arith.constant dense<0.000000e+00> : vector<8xf32>
      %759 = vector.multi_reduction <add>, %758, %cst_241 [1] : vector<8x32xf32> to vector<8xf32>
      %760 = vector.shape_cast %759 : vector<8xf32> to vector<8x1xf32>
      %cst_242 = arith.constant 3.200000e+01 : f32
      %761 = vector.broadcast %cst_242 : f32 to vector<8x1xf32>
      %762 = arith.divf %760, %761 : vector<8x1xf32>
      %cst_243 = arith.constant 9.99999974E-6 : f32
      %763 = vector.broadcast %cst_243 : f32 to vector<8x1xf32>
      %764 = arith.addf %762, %763 : vector<8x1xf32>
      %765 = math.rsqrt %764 : vector<8x1xf32>
      %766 = vector.broadcast %765 : vector<8x1xf32> to vector<8x32xf32>
      %767 = arith.mulf %757, %766 : vector<8x32xf32>
      %768 = vector.broadcast %750 : vector<1x32xf32> to vector<8x32xf32>
      %769 = arith.mulf %767, %768 : vector<8x32xf32>
      %770 = vector.broadcast %751 : vector<1x32xf32> to vector<8x32xf32>
      %771 = arith.addf %769, %770 : vector<8x32xf32>
      %772 = arith.truncf %771 : vector<8x32xf32> to vector<8x32xbf16>
      %cst_244 = arith.constant dense<0.000000e+00> : vector<8x32xf32>
      %773 = tpu.matmul %772, %743, %cst_244 {dimension_numbers = #tpu.dot_dimension_numbers<[1], [0], [0], [1], [0, 0, 1, 1], [], []>} : vector<8x32xbf16>, vector<32x32xbf16>, vector<8x32xf32> -> vector<8x32xf32>
      %774 = vector.extract_strided_slice %742 {offsets = [4, 0], sizes = [1, 32], strides = [1, 1]} : vector<16x32xf32> to vector<1x32xf32>
      %775 = vector.broadcast %774 : vector<1x32xf32> to vector<8x32xf32>
      %776 = arith.addf %773, %775 : vector<8x32xf32>
      %777 = arith.truncf %771 : vector<8x32xf32> to vector<8x32xbf16>
      %cst_245 = arith.constant dense<0.000000e+00> : vector<8x32xf32>
      %778 = tpu.matmul %777, %744, %cst_245 {dimension_numbers = #tpu.dot_dimension_numbers<[1], [0], [0], [1], [0, 0, 1, 1], [], []>} : vector<8x32xbf16>, vector<32x32xbf16>, vector<8x32xf32> -> vector<8x32xf32>
      %779 = vector.extract_strided_slice %742 {offsets = [5, 0], sizes = [1, 32], strides = [1, 1]} : vector<16x32xf32> to vector<1x32xf32>
      %780 = vector.broadcast %779 : vector<1x32xf32> to vector<8x32xf32>
      %781 = arith.addf %778, %780 : vector<8x32xf32>
      %782 = arith.truncf %771 : vector<8x32xf32> to vector<8x32xbf16>
      %cst_246 = arith.constant dense<0.000000e+00> : vector<8x32xf32>
      %783 = tpu.matmul %782, %745, %cst_246 {dimension_numbers = #tpu.dot_dimension_numbers<[1], [0], [0], [1], [0, 0, 1, 1], [], []>} : vector<8x32xbf16>, vector<32x32xbf16>, vector<8x32xf32> -> vector<8x32xf32>
      %784 = vector.extract_strided_slice %742 {offsets = [6, 0], sizes = [1, 32], strides = [1, 1]} : vector<16x32xf32> to vector<1x32xf32>
      %785 = vector.broadcast %784 : vector<1x32xf32> to vector<8x32xf32>
      %786 = arith.addf %783, %785 : vector<8x32xf32>
      %787 = vector.extract_strided_slice %776 {offsets = [0, 0], sizes = [8, 8], strides = [1, 1]} : vector<8x32xf32> to vector<8x8xf32>
      %788 = arith.truncf %787 : vector<8x8xf32> to vector<8x8xbf16>
      %789 = vector.extract_strided_slice %781 {offsets = [0, 0], sizes = [8, 8], strides = [1, 1]} : vector<8x32xf32> to vector<8x8xf32>
      %790 = arith.truncf %789 : vector<8x8xf32> to vector<8x8xbf16>
      %cst_247 = arith.constant dense<0.000000e+00> : vector<8x8xf32>
      %791 = tpu.matmul %788, %790, %cst_247 {dimension_numbers = #tpu.dot_dimension_numbers<[1], [1], [0], [0], [0, 0, 1, 0], [], []>} : vector<8x8xbf16>, vector<8x8xbf16>, vector<8x8xf32> -> vector<8x8xf32>
      %cst_248 = arith.constant 0.353553385 : f32
      %792 = vector.broadcast %cst_248 : f32 to vector<8x8xf32>
      %793 = arith.mulf %791, %792 : vector<8x8xf32>
      %cst_249 = arith.constant dense<0xFF800000> : vector<8xf32>
      %794 = vector.multi_reduction <maximumf>, %793, %cst_249 [1] : vector<8x8xf32> to vector<8xf32>
      %795 = vector.shape_cast %794 : vector<8xf32> to vector<8x1xf32>
      %796 = vector.broadcast %795 : vector<8x1xf32> to vector<8x8xf32>
      %797 = arith.subf %793, %796 : vector<8x8xf32>
      %798 = math.exp %797 : vector<8x8xf32>
      %cst_250 = arith.constant dense<0.000000e+00> : vector<8xf32>
      %799 = vector.multi_reduction <add>, %798, %cst_250 [1] : vector<8x8xf32> to vector<8xf32>
      %800 = vector.shape_cast %799 : vector<8xf32> to vector<8x1xf32>
      %801 = tpu.reciprocal %800 {approx = true} : vector<8x1xf32> -> vector<8x1xf32>
      %802 = vector.broadcast %801 : vector<8x1xf32> to vector<8x8xf32>
      %803 = arith.mulf %798, %802 : vector<8x8xf32>
      %804 = vector.extract_strided_slice %786 {offsets = [0, 0], sizes = [8, 8], strides = [1, 1]} : vector<8x32xf32> to vector<8x8xf32>
      %805 = arith.truncf %803 : vector<8x8xf32> to vector<8x8xbf16>
      %806 = arith.truncf %804 : vector<8x8xf32> to vector<8x8xbf16>
      %cst_251 = arith.constant dense<0.000000e+00> : vector<8x8xf32>
      %807 = tpu.matmul %805, %806, %cst_251 {dimension_numbers = #tpu.dot_dimension_numbers<[1], [0], [0], [1], [0, 0, 1, 1], [], []>} : vector<8x8xbf16>, vector<8x8xbf16>, vector<8x8xf32> -> vector<8x8xf32>
      %808 = vector.extract_strided_slice %776 {offsets = [0, 8], sizes = [8, 8], strides = [1, 1]} : vector<8x32xf32> to vector<8x8xf32>
      %809 = arith.truncf %808 : vector<8x8xf32> to vector<8x8xbf16>
      %810 = vector.extract_strided_slice %781 {offsets = [0, 8], sizes = [8, 8], strides = [1, 1]} : vector<8x32xf32> to vector<8x8xf32>
      %811 = arith.truncf %810 : vector<8x8xf32> to vector<8x8xbf16>
      %cst_252 = arith.constant dense<0.000000e+00> : vector<8x8xf32>
      %812 = tpu.matmul %809, %811, %cst_252 {dimension_numbers = #tpu.dot_dimension_numbers<[1], [1], [0], [0], [0, 0, 1, 0], [], []>} : vector<8x8xbf16>, vector<8x8xbf16>, vector<8x8xf32> -> vector<8x8xf32>
      %cst_253 = arith.constant 0.353553385 : f32
      %813 = vector.broadcast %cst_253 : f32 to vector<8x8xf32>
      %814 = arith.mulf %812, %813 : vector<8x8xf32>
      %cst_254 = arith.constant dense<0xFF800000> : vector<8xf32>
      %815 = vector.multi_reduction <maximumf>, %814, %cst_254 [1] : vector<8x8xf32> to vector<8xf32>
      %816 = vector.shape_cast %815 : vector<8xf32> to vector<8x1xf32>
      %817 = vector.broadcast %816 : vector<8x1xf32> to vector<8x8xf32>
      %818 = arith.subf %814, %817 : vector<8x8xf32>
      %819 = math.exp %818 : vector<8x8xf32>
      %cst_255 = arith.constant dense<0.000000e+00> : vector<8xf32>
      %820 = vector.multi_reduction <add>, %819, %cst_255 [1] : vector<8x8xf32> to vector<8xf32>
      %821 = vector.shape_cast %820 : vector<8xf32> to vector<8x1xf32>
      %822 = tpu.reciprocal %821 {approx = true} : vector<8x1xf32> -> vector<8x1xf32>
      %823 = vector.broadcast %822 : vector<8x1xf32> to vector<8x8xf32>
      %824 = arith.mulf %819, %823 : vector<8x8xf32>
      %825 = vector.extract_strided_slice %786 {offsets = [0, 8], sizes = [8, 8], strides = [1, 1]} : vector<8x32xf32> to vector<8x8xf32>
      %826 = arith.truncf %824 : vector<8x8xf32> to vector<8x8xbf16>
      %827 = arith.truncf %825 : vector<8x8xf32> to vector<8x8xbf16>
      %cst_256 = arith.constant dense<0.000000e+00> : vector<8x8xf32>
      %828 = tpu.matmul %826, %827, %cst_256 {dimension_numbers = #tpu.dot_dimension_numbers<[1], [0], [0], [1], [0, 0, 1, 1], [], []>} : vector<8x8xbf16>, vector<8x8xbf16>, vector<8x8xf32> -> vector<8x8xf32>
      %829 = vector.extract_strided_slice %776 {offsets = [0, 16], sizes = [8, 8], strides = [1, 1]} : vector<8x32xf32> to vector<8x8xf32>
      %830 = arith.truncf %829 : vector<8x8xf32> to vector<8x8xbf16>
      %831 = vector.extract_strided_slice %781 {offsets = [0, 16], sizes = [8, 8], strides = [1, 1]} : vector<8x32xf32> to vector<8x8xf32>
      %832 = arith.truncf %831 : vector<8x8xf32> to vector<8x8xbf16>
      %cst_257 = arith.constant dense<0.000000e+00> : vector<8x8xf32>
      %833 = tpu.matmul %830, %832, %cst_257 {dimension_numbers = #tpu.dot_dimension_numbers<[1], [1], [0], [0], [0, 0, 1, 0], [], []>} : vector<8x8xbf16>, vector<8x8xbf16>, vector<8x8xf32> -> vector<8x8xf32>
      %cst_258 = arith.constant 0.353553385 : f32
      %834 = vector.broadcast %cst_258 : f32 to vector<8x8xf32>
      %835 = arith.mulf %833, %834 : vector<8x8xf32>
      %cst_259 = arith.constant dense<0xFF800000> : vector<8xf32>
      %836 = vector.multi_reduction <maximumf>, %835, %cst_259 [1] : vector<8x8xf32> to vector<8xf32>
      %837 = vector.shape_cast %836 : vector<8xf32> to vector<8x1xf32>
      %838 = vector.broadcast %837 : vector<8x1xf32> to vector<8x8xf32>
      %839 = arith.subf %835, %838 : vector<8x8xf32>
      %840 = math.exp %839 : vector<8x8xf32>
      %cst_260 = arith.constant dense<0.000000e+00> : vector<8xf32>
      %841 = vector.multi_reduction <add>, %840, %cst_260 [1] : vector<8x8xf32> to vector<8xf32>
      %842 = vector.shape_cast %841 : vector<8xf32> to vector<8x1xf32>
      %843 = tpu.reciprocal %842 {approx = true} : vector<8x1xf32> -> vector<8x1xf32>
      %844 = vector.broadcast %843 : vector<8x1xf32> to vector<8x8xf32>
      %845 = arith.mulf %840, %844 : vector<8x8xf32>
      %846 = vector.extract_strided_slice %786 {offsets = [0, 16], sizes = [8, 8], strides = [1, 1]} : vector<8x32xf32> to vector<8x8xf32>
      %847 = arith.truncf %845 : vector<8x8xf32> to vector<8x8xbf16>
      %848 = arith.truncf %846 : vector<8x8xf32> to vector<8x8xbf16>
      %cst_261 = arith.constant dense<0.000000e+00> : vector<8x8xf32>
      %849 = tpu.matmul %847, %848, %cst_261 {dimension_numbers = #tpu.dot_dimension_numbers<[1], [0], [0], [1], [0, 0, 1, 1], [], []>} : vector<8x8xbf16>, vector<8x8xbf16>, vector<8x8xf32> -> vector<8x8xf32>
      %850 = vector.extract_strided_slice %776 {offsets = [0, 24], sizes = [8, 8], strides = [1, 1]} : vector<8x32xf32> to vector<8x8xf32>
      %851 = arith.truncf %850 : vector<8x8xf32> to vector<8x8xbf16>
      %852 = vector.extract_strided_slice %781 {offsets = [0, 24], sizes = [8, 8], strides = [1, 1]} : vector<8x32xf32> to vector<8x8xf32>
      %853 = arith.truncf %852 : vector<8x8xf32> to vector<8x8xbf16>
      %cst_262 = arith.constant dense<0.000000e+00> : vector<8x8xf32>
      %854 = tpu.matmul %851, %853, %cst_262 {dimension_numbers = #tpu.dot_dimension_numbers<[1], [1], [0], [0], [0, 0, 1, 0], [], []>} : vector<8x8xbf16>, vector<8x8xbf16>, vector<8x8xf32> -> vector<8x8xf32>
      %cst_263 = arith.constant 0.353553385 : f32
      %855 = vector.broadcast %cst_263 : f32 to vector<8x8xf32>
      %856 = arith.mulf %854, %855 : vector<8x8xf32>
      %cst_264 = arith.constant dense<0xFF800000> : vector<8xf32>
      %857 = vector.multi_reduction <maximumf>, %856, %cst_264 [1] : vector<8x8xf32> to vector<8xf32>
      %858 = vector.shape_cast %857 : vector<8xf32> to vector<8x1xf32>
      %859 = vector.broadcast %858 : vector<8x1xf32> to vector<8x8xf32>
      %860 = arith.subf %856, %859 : vector<8x8xf32>
      %861 = math.exp %860 : vector<8x8xf32>
      %cst_265 = arith.constant dense<0.000000e+00> : vector<8xf32>
      %862 = vector.multi_reduction <add>, %861, %cst_265 [1] : vector<8x8xf32> to vector<8xf32>
      %863 = vector.shape_cast %862 : vector<8xf32> to vector<8x1xf32>
      %864 = tpu.reciprocal %863 {approx = true} : vector<8x1xf32> -> vector<8x1xf32>
      %865 = vector.broadcast %864 : vector<8x1xf32> to vector<8x8xf32>
      %866 = arith.mulf %861, %865 : vector<8x8xf32>
      %867 = vector.extract_strided_slice %786 {offsets = [0, 24], sizes = [8, 8], strides = [1, 1]} : vector<8x32xf32> to vector<8x8xf32>
      %868 = arith.truncf %866 : vector<8x8xf32> to vector<8x8xbf16>
      %869 = arith.truncf %867 : vector<8x8xf32> to vector<8x8xbf16>
      %cst_266 = arith.constant dense<0.000000e+00> : vector<8x8xf32>
      %870 = tpu.matmul %868, %869, %cst_266 {dimension_numbers = #tpu.dot_dimension_numbers<[1], [0], [0], [1], [0, 0, 1, 1], [], []>} : vector<8x8xbf16>, vector<8x8xbf16>, vector<8x8xf32> -> vector<8x8xf32>
      %871 = tpu.concatenate %807, %828, %849, %870 in 1 : vector<8x8xf32>, vector<8x8xf32>, vector<8x8xf32>, vector<8x8xf32> -> vector<8x32xf32>
      %872 = arith.truncf %871 : vector<8x32xf32> to vector<8x32xbf16>
      %cst_267 = arith.constant dense<0.000000e+00> : vector<8x32xf32>
      %873 = tpu.matmul %872, %746, %cst_267 {dimension_numbers = #tpu.dot_dimension_numbers<[1], [0], [0], [1], [0, 0, 1, 1], [], []>} : vector<8x32xbf16>, vector<32x32xbf16>, vector<8x32xf32> -> vector<8x32xf32>
      %874 = vector.extract_strided_slice %742 {offsets = [7, 0], sizes = [1, 32], strides = [1, 1]} : vector<16x32xf32> to vector<1x32xf32>
      %875 = vector.broadcast %874 : vector<1x32xf32> to vector<8x32xf32>
      %876 = arith.addf %873, %875 : vector<8x32xf32>
      %877 = arith.addf %741, %876 : vector<8x32xf32>
      %878 = vector.extract_strided_slice %742 {offsets = [8, 0], sizes = [2, 32], strides = [1, 1]} : vector<16x32xf32> to vector<2x32xf32>
      %879 = vector.extract_strided_slice %878 {offsets = [0, 0], sizes = [1, 32], strides = [1, 1]} : vector<2x32xf32> to vector<1x32xf32>
      %880 = vector.extract_strided_slice %878 {offsets = [1, 0], sizes = [1, 32], strides = [1, 1]} : vector<2x32xf32> to vector<1x32xf32>
      %cst_268 = arith.constant dense<0.000000e+00> : vector<8xf32>
      %881 = vector.multi_reduction <add>, %877, %cst_268 [1] : vector<8x32xf32> to vector<8xf32>
      %882 = vector.shape_cast %881 : vector<8xf32> to vector<8x1xf32>
      %cst_269 = arith.constant 3.200000e+01 : f32
      %883 = vector.broadcast %cst_269 : f32 to vector<8x1xf32>
      %884 = arith.divf %882, %883 : vector<8x1xf32>
      %885 = vector.broadcast %884 : vector<8x1xf32> to vector<8x32xf32>
      %886 = arith.subf %877, %885 : vector<8x32xf32>
      %887 = arith.mulf %886, %886 : vector<8x32xf32>
      %cst_270 = arith.constant dense<0.000000e+00> : vector<8xf32>
      %888 = vector.multi_reduction <add>, %887, %cst_270 [1] : vector<8x32xf32> to vector<8xf32>
      %889 = vector.shape_cast %888 : vector<8xf32> to vector<8x1xf32>
      %cst_271 = arith.constant 3.200000e+01 : f32
      %890 = vector.broadcast %cst_271 : f32 to vector<8x1xf32>
      %891 = arith.divf %889, %890 : vector<8x1xf32>
      %cst_272 = arith.constant 9.99999974E-6 : f32
      %892 = vector.broadcast %cst_272 : f32 to vector<8x1xf32>
      %893 = arith.addf %891, %892 : vector<8x1xf32>
      %894 = math.rsqrt %893 : vector<8x1xf32>
      %895 = vector.broadcast %894 : vector<8x1xf32> to vector<8x32xf32>
      %896 = arith.mulf %886, %895 : vector<8x32xf32>
      %897 = vector.broadcast %879 : vector<1x32xf32> to vector<8x32xf32>
      %898 = arith.mulf %896, %897 : vector<8x32xf32>
      %899 = vector.broadcast %880 : vector<1x32xf32> to vector<8x32xf32>
      %900 = arith.addf %898, %899 : vector<8x32xf32>
      %901 = arith.truncf %900 : vector<8x32xf32> to vector<8x32xbf16>
      %cst_273 = arith.constant dense<0.000000e+00> : vector<8x32xf32>
      %902 = tpu.matmul %901, %747, %cst_273 {dimension_numbers = #tpu.dot_dimension_numbers<[1], [0], [0], [1], [0, 0, 1, 1], [], []>} : vector<8x32xbf16>, vector<32x32xbf16>, vector<8x32xf32> -> vector<8x32xf32>
      %903 = vector.extract_strided_slice %742 {offsets = [10, 0], sizes = [1, 32], strides = [1, 1]} : vector<16x32xf32> to vector<1x32xf32>
      %904 = vector.broadcast %903 : vector<1x32xf32> to vector<8x32xf32>
      %905 = arith.addf %902, %904 : vector<8x32xf32>
      %cst_274 = arith.constant 5.000000e-01 : f32
      %906 = vector.broadcast %cst_274 : f32 to vector<8x32xf32>
      %907 = arith.mulf %906, %905 : vector<8x32xf32>
      %cst_275 = arith.constant 4.471500e-02 : f32
      %908 = vector.broadcast %cst_275 : f32 to vector<8x32xf32>
      %909 = arith.mulf %908, %905 : vector<8x32xf32>
      %910 = arith.mulf %909, %905 : vector<8x32xf32>
      %911 = arith.mulf %910, %905 : vector<8x32xf32>
      %912 = arith.addf %905, %911 : vector<8x32xf32>
      %cst_276 = arith.constant 0.797884583 : f32
      %913 = vector.broadcast %cst_276 : f32 to vector<8x32xf32>
      %914 = arith.mulf %913, %912 : vector<8x32xf32>
      %915 = math.tanh %914 : vector<8x32xf32>
      %cst_277 = arith.constant 1.000000e+00 : f32
      %916 = vector.broadcast %cst_277 : f32 to vector<8x32xf32>
      %917 = arith.addf %916, %915 : vector<8x32xf32>
      %918 = arith.mulf %907, %917 : vector<8x32xf32>
      %919 = arith.truncf %918 : vector<8x32xf32> to vector<8x32xbf16>
      %cst_278 = arith.constant dense<0.000000e+00> : vector<8x32xf32>
      %920 = tpu.matmul %919, %748, %cst_278 {dimension_numbers = #tpu.dot_dimension_numbers<[1], [0], [0], [1], [0, 0, 1, 1], [], []>} : vector<8x32xbf16>, vector<32x32xbf16>, vector<8x32xf32> -> vector<8x32xf32>
      %921 = vector.extract_strided_slice %742 {offsets = [11, 0], sizes = [1, 32], strides = [1, 1]} : vector<16x32xf32> to vector<1x32xf32>
      %922 = vector.broadcast %921 : vector<1x32xf32> to vector<8x32xf32>
      %923 = arith.addf %920, %922 : vector<8x32xf32>
      %924 = arith.addf %877, %923 : vector<8x32xf32>
      scf.yield %924 : vector<8x32xf32>
    }
    %c48_137 = arith.constant 48 : index
    %c0_138 = arith.constant 0 : index
    %423 = vector.load %arg5[%c48_137, %c0_138] : memref<64x32xf32, #tpu.memory_space<vmem>>, vector<16x32xf32>
    %c672_139 = arith.constant 672 : index
    %c0_140 = arith.constant 0 : index
    %424 = vector.load %arg4[%c672_139, %c0_140] : memref<896x32xbf16, #tpu.memory_space<vmem>>, vector<32x32xbf16>
    %c704_141 = arith.constant 704 : index
    %c0_142 = arith.constant 0 : index
    %425 = vector.load %arg4[%c704_141, %c0_142] : memref<896x32xbf16, #tpu.memory_space<vmem>>, vector<32x32xbf16>
    %c752_143 = arith.constant 752 : index
    %c0_144 = arith.constant 0 : index
    %426 = vector.load %arg4[%c752_143, %c0_144] : memref<896x32xbf16, #tpu.memory_space<vmem>>, vector<32x32xbf16>
    %c800_145 = arith.constant 800 : index
    %c0_146 = arith.constant 0 : index
    %427 = vector.load %arg4[%c800_145, %c0_146] : memref<896x32xbf16, #tpu.memory_space<vmem>>, vector<32x32xbf16>
    %c832_147 = arith.constant 832 : index
    %c0_148 = arith.constant 0 : index
    %428 = vector.load %arg4[%c832_147, %c0_148] : memref<896x32xbf16, #tpu.memory_space<vmem>>, vector<32x32xbf16>
    %c864_149 = arith.constant 864 : index
    %c0_150 = arith.constant 0 : index
    %429 = vector.load %arg4[%c864_149, %c0_150] : memref<896x32xbf16, #tpu.memory_space<vmem>>, vector<32x32xbf16>
    %430 = vector.extract_strided_slice %423 {offsets = [0, 0], sizes = [2, 32], strides = [1, 1]} : vector<16x32xf32> to vector<2x32xf32>
    %431 = vector.extract_strided_slice %430 {offsets = [0, 0], sizes = [1, 32], strides = [1, 1]} : vector<2x32xf32> to vector<1x32xf32>
    %432 = vector.extract_strided_slice %430 {offsets = [1, 0], sizes = [1, 32], strides = [1, 1]} : vector<2x32xf32> to vector<1x32xf32>
    %cst_151 = arith.constant dense<0.000000e+00> : vector<1xf32>
    %433 = vector.multi_reduction <add>, %1, %cst_151 [1] : vector<1x32xf32> to vector<1xf32>
    %434 = vector.shape_cast %433 : vector<1xf32> to vector<1x1xf32>
    %cst_152 = arith.constant 3.200000e+01 : f32
    %435 = vector.broadcast %cst_152 : f32 to vector<1x1xf32>
    %436 = arith.divf %434, %435 : vector<1x1xf32>
    %437 = vector.broadcast %436 : vector<1x1xf32> to vector<1x32xf32>
    %438 = arith.subf %1, %437 : vector<1x32xf32>
    %439 = arith.mulf %438, %438 : vector<1x32xf32>
    %cst_153 = arith.constant dense<0.000000e+00> : vector<1xf32>
    %440 = vector.multi_reduction <add>, %439, %cst_153 [1] : vector<1x32xf32> to vector<1xf32>
    %441 = vector.shape_cast %440 : vector<1xf32> to vector<1x1xf32>
    %cst_154 = arith.constant 3.200000e+01 : f32
    %442 = vector.broadcast %cst_154 : f32 to vector<1x1xf32>
    %443 = arith.divf %441, %442 : vector<1x1xf32>
    %cst_155 = arith.constant 9.99999974E-6 : f32
    %444 = vector.broadcast %cst_155 : f32 to vector<1x1xf32>
    %445 = arith.addf %443, %444 : vector<1x1xf32>
    %446 = math.rsqrt %445 : vector<1x1xf32>
    %447 = vector.broadcast %446 : vector<1x1xf32> to vector<1x32xf32>
    %448 = arith.mulf %438, %447 : vector<1x32xf32>
    %449 = arith.mulf %448, %431 : vector<1x32xf32>
    %450 = arith.addf %449, %432 : vector<1x32xf32>
    %451 = vector.extract_strided_slice %423 {offsets = [2, 0], sizes = [2, 32], strides = [1, 1]} : vector<16x32xf32> to vector<2x32xf32>
    %452 = vector.extract_strided_slice %451 {offsets = [0, 0], sizes = [1, 32], strides = [1, 1]} : vector<2x32xf32> to vector<1x32xf32>
    %453 = vector.extract_strided_slice %451 {offsets = [1, 0], sizes = [1, 32], strides = [1, 1]} : vector<2x32xf32> to vector<1x32xf32>
    %cst_156 = arith.constant dense<0.000000e+00> : vector<8xf32>
    %454 = vector.multi_reduction <add>, %422, %cst_156 [1] : vector<8x32xf32> to vector<8xf32>
    %455 = vector.shape_cast %454 : vector<8xf32> to vector<8x1xf32>
    %cst_157 = arith.constant 3.200000e+01 : f32
    %456 = vector.broadcast %cst_157 : f32 to vector<8x1xf32>
    %457 = arith.divf %455, %456 : vector<8x1xf32>
    %458 = vector.broadcast %457 : vector<8x1xf32> to vector<8x32xf32>
    %459 = arith.subf %422, %458 : vector<8x32xf32>
    %460 = arith.mulf %459, %459 : vector<8x32xf32>
    %cst_158 = arith.constant dense<0.000000e+00> : vector<8xf32>
    %461 = vector.multi_reduction <add>, %460, %cst_158 [1] : vector<8x32xf32> to vector<8xf32>
    %462 = vector.shape_cast %461 : vector<8xf32> to vector<8x1xf32>
    %cst_159 = arith.constant 3.200000e+01 : f32
    %463 = vector.broadcast %cst_159 : f32 to vector<8x1xf32>
    %464 = arith.divf %462, %463 : vector<8x1xf32>
    %cst_160 = arith.constant 9.99999974E-6 : f32
    %465 = vector.broadcast %cst_160 : f32 to vector<8x1xf32>
    %466 = arith.addf %464, %465 : vector<8x1xf32>
    %467 = math.rsqrt %466 : vector<8x1xf32>
    %468 = vector.broadcast %467 : vector<8x1xf32> to vector<8x32xf32>
    %469 = arith.mulf %459, %468 : vector<8x32xf32>
    %470 = vector.broadcast %452 : vector<1x32xf32> to vector<8x32xf32>
    %471 = arith.mulf %469, %470 : vector<8x32xf32>
    %472 = vector.broadcast %453 : vector<1x32xf32> to vector<8x32xf32>
    %473 = arith.addf %471, %472 : vector<8x32xf32>
    %474 = arith.truncf %450 : vector<1x32xf32> to vector<1x32xbf16>
    %cst_161 = arith.constant dense<0.000000e+00> : vector<1x32xf32>
    %475 = tpu.matmul %474, %424, %cst_161 {dimension_numbers = #tpu.dot_dimension_numbers<[1], [0], [0], [1], [0, 0, 1, 1], [], []>} : vector<1x32xbf16>, vector<32x32xbf16>, vector<1x32xf32> -> vector<1x32xf32>
    %476 = vector.extract_strided_slice %423 {offsets = [4, 0], sizes = [1, 32], strides = [1, 1]} : vector<16x32xf32> to vector<1x32xf32>
    %477 = arith.addf %475, %476 : vector<1x32xf32>
    %478 = arith.truncf %473 : vector<8x32xf32> to vector<8x32xbf16>
    %cst_162 = arith.constant dense<0.000000e+00> : vector<8x32xf32>
    %479 = tpu.matmul %478, %425, %cst_162 {dimension_numbers = #tpu.dot_dimension_numbers<[1], [0], [0], [1], [0, 0, 1, 1], [], []>} : vector<8x32xbf16>, vector<32x32xbf16>, vector<8x32xf32> -> vector<8x32xf32>
    %480 = vector.extract_strided_slice %423 {offsets = [5, 0], sizes = [1, 32], strides = [1, 1]} : vector<16x32xf32> to vector<1x32xf32>
    %481 = vector.broadcast %480 : vector<1x32xf32> to vector<8x32xf32>
    %482 = arith.addf %479, %481 : vector<8x32xf32>
    %483 = arith.truncf %473 : vector<8x32xf32> to vector<8x32xbf16>
    %cst_163 = arith.constant dense<0.000000e+00> : vector<8x32xf32>
    %484 = tpu.matmul %483, %426, %cst_163 {dimension_numbers = #tpu.dot_dimension_numbers<[1], [0], [0], [1], [0, 0, 1, 1], [], []>} : vector<8x32xbf16>, vector<32x32xbf16>, vector<8x32xf32> -> vector<8x32xf32>
    %485 = vector.extract_strided_slice %423 {offsets = [6, 0], sizes = [1, 32], strides = [1, 1]} : vector<16x32xf32> to vector<1x32xf32>
    %486 = vector.broadcast %485 : vector<1x32xf32> to vector<8x32xf32>
    %487 = arith.addf %484, %486 : vector<8x32xf32>
    %488 = arith.truncf %477 : vector<1x32xf32> to vector<1x32xbf16>
    %489 = arith.truncf %482 : vector<8x32xf32> to vector<8x32xbf16>
    %cst_164 = arith.constant dense<0.000000e+00> : vector<1x8xf32>
    %490 = tpu.matmul %488, %489, %cst_164 {dimension_numbers = #tpu.dot_dimension_numbers<[1], [1], [0], [0], [0, 0, 1, 0], [], []>} : vector<1x32xbf16>, vector<8x32xbf16>, vector<1x8xf32> -> vector<1x8xf32>
    %cst_165 = arith.constant 0.176776692 : f32
    %491 = vector.broadcast %cst_165 : f32 to vector<1x8xf32>
    %492 = arith.mulf %490, %491 : vector<1x8xf32>
    %cst_166 = arith.constant dense<0xFF800000> : vector<1xf32>
    %493 = vector.multi_reduction <maximumf>, %492, %cst_166 [1] : vector<1x8xf32> to vector<1xf32>
    %494 = vector.shape_cast %493 : vector<1xf32> to vector<1x1xf32>
    %495 = vector.broadcast %494 : vector<1x1xf32> to vector<1x8xf32>
    %496 = arith.subf %492, %495 : vector<1x8xf32>
    %497 = math.exp %496 : vector<1x8xf32>
    %cst_167 = arith.constant dense<0.000000e+00> : vector<1xf32>
    %498 = vector.multi_reduction <add>, %497, %cst_167 [1] : vector<1x8xf32> to vector<1xf32>
    %499 = vector.shape_cast %498 : vector<1xf32> to vector<1x1xf32>
    %500 = tpu.reciprocal %499 {approx = true} : vector<1x1xf32> -> vector<1x1xf32>
    %501 = vector.broadcast %500 : vector<1x1xf32> to vector<1x8xf32>
    %502 = arith.mulf %497, %501 : vector<1x8xf32>
    %503 = arith.truncf %502 : vector<1x8xf32> to vector<1x8xbf16>
    %504 = arith.truncf %487 : vector<8x32xf32> to vector<8x32xbf16>
    %cst_168 = arith.constant dense<0.000000e+00> : vector<1x32xf32>
    %505 = tpu.matmul %503, %504, %cst_168 {dimension_numbers = #tpu.dot_dimension_numbers<[1], [0], [0], [1], [0, 0, 1, 1], [], []>} : vector<1x8xbf16>, vector<8x32xbf16>, vector<1x32xf32> -> vector<1x32xf32>
    %506 = arith.truncf %505 : vector<1x32xf32> to vector<1x32xbf16>
    %cst_169 = arith.constant dense<0.000000e+00> : vector<1x32xf32>
    %507 = tpu.matmul %506, %427, %cst_169 {dimension_numbers = #tpu.dot_dimension_numbers<[1], [0], [0], [1], [0, 0, 1, 1], [], []>} : vector<1x32xbf16>, vector<32x32xbf16>, vector<1x32xf32> -> vector<1x32xf32>
    %508 = vector.extract_strided_slice %423 {offsets = [7, 0], sizes = [1, 32], strides = [1, 1]} : vector<16x32xf32> to vector<1x32xf32>
    %509 = arith.addf %507, %508 : vector<1x32xf32>
    %510 = arith.addf %1, %509 : vector<1x32xf32>
    %511 = vector.extract_strided_slice %423 {offsets = [8, 0], sizes = [2, 32], strides = [1, 1]} : vector<16x32xf32> to vector<2x32xf32>
    %512 = vector.extract_strided_slice %511 {offsets = [0, 0], sizes = [1, 32], strides = [1, 1]} : vector<2x32xf32> to vector<1x32xf32>
    %513 = vector.extract_strided_slice %511 {offsets = [1, 0], sizes = [1, 32], strides = [1, 1]} : vector<2x32xf32> to vector<1x32xf32>
    %cst_170 = arith.constant dense<0.000000e+00> : vector<1xf32>
    %514 = vector.multi_reduction <add>, %510, %cst_170 [1] : vector<1x32xf32> to vector<1xf32>
    %515 = vector.shape_cast %514 : vector<1xf32> to vector<1x1xf32>
    %cst_171 = arith.constant 3.200000e+01 : f32
    %516 = vector.broadcast %cst_171 : f32 to vector<1x1xf32>
    %517 = arith.divf %515, %516 : vector<1x1xf32>
    %518 = vector.broadcast %517 : vector<1x1xf32> to vector<1x32xf32>
    %519 = arith.subf %510, %518 : vector<1x32xf32>
    %520 = arith.mulf %519, %519 : vector<1x32xf32>
    %cst_172 = arith.constant dense<0.000000e+00> : vector<1xf32>
    %521 = vector.multi_reduction <add>, %520, %cst_172 [1] : vector<1x32xf32> to vector<1xf32>
    %522 = vector.shape_cast %521 : vector<1xf32> to vector<1x1xf32>
    %cst_173 = arith.constant 3.200000e+01 : f32
    %523 = vector.broadcast %cst_173 : f32 to vector<1x1xf32>
    %524 = arith.divf %522, %523 : vector<1x1xf32>
    %cst_174 = arith.constant 9.99999974E-6 : f32
    %525 = vector.broadcast %cst_174 : f32 to vector<1x1xf32>
    %526 = arith.addf %524, %525 : vector<1x1xf32>
    %527 = math.rsqrt %526 : vector<1x1xf32>
    %528 = vector.broadcast %527 : vector<1x1xf32> to vector<1x32xf32>
    %529 = arith.mulf %519, %528 : vector<1x32xf32>
    %530 = arith.mulf %529, %512 : vector<1x32xf32>
    %531 = arith.addf %530, %513 : vector<1x32xf32>
    %532 = arith.truncf %531 : vector<1x32xf32> to vector<1x32xbf16>
    %cst_175 = arith.constant dense<0.000000e+00> : vector<1x32xf32>
    %533 = tpu.matmul %532, %428, %cst_175 {dimension_numbers = #tpu.dot_dimension_numbers<[1], [0], [0], [1], [0, 0, 1, 1], [], []>} : vector<1x32xbf16>, vector<32x32xbf16>, vector<1x32xf32> -> vector<1x32xf32>
    %534 = vector.extract_strided_slice %423 {offsets = [10, 0], sizes = [1, 32], strides = [1, 1]} : vector<16x32xf32> to vector<1x32xf32>
    %535 = arith.addf %533, %534 : vector<1x32xf32>
    %cst_176 = arith.constant 5.000000e-01 : f32
    %536 = vector.broadcast %cst_176 : f32 to vector<1x32xf32>
    %537 = arith.mulf %536, %535 : vector<1x32xf32>
    %cst_177 = arith.constant 4.471500e-02 : f32
    %538 = vector.broadcast %cst_177 : f32 to vector<1x32xf32>
    %539 = arith.mulf %538, %535 : vector<1x32xf32>
    %540 = arith.mulf %539, %535 : vector<1x32xf32>
    %541 = arith.mulf %540, %535 : vector<1x32xf32>
    %542 = arith.addf %535, %541 : vector<1x32xf32>
    %cst_178 = arith.constant 0.797884583 : f32
    %543 = vector.broadcast %cst_178 : f32 to vector<1x32xf32>
    %544 = arith.mulf %543, %542 : vector<1x32xf32>
    %545 = math.tanh %544 : vector<1x32xf32>
    %cst_179 = arith.constant 1.000000e+00 : f32
    %546 = vector.broadcast %cst_179 : f32 to vector<1x32xf32>
    %547 = arith.addf %546, %545 : vector<1x32xf32>
    %548 = arith.mulf %537, %547 : vector<1x32xf32>
    %549 = arith.truncf %548 : vector<1x32xf32> to vector<1x32xbf16>
    %cst_180 = arith.constant dense<0.000000e+00> : vector<1x32xf32>
    %550 = tpu.matmul %549, %429, %cst_180 {dimension_numbers = #tpu.dot_dimension_numbers<[1], [0], [0], [1], [0, 0, 1, 1], [], []>} : vector<1x32xbf16>, vector<32x32xbf16>, vector<1x32xf32> -> vector<1x32xf32>
    %551 = vector.extract_strided_slice %423 {offsets = [11, 0], sizes = [1, 32], strides = [1, 1]} : vector<16x32xf32> to vector<1x32xf32>
    %552 = arith.addf %550, %551 : vector<1x32xf32>
    %553 = arith.addf %510, %552 : vector<1x32xf32>
    %554 = arith.truncf %553 : vector<1x32xf32> to vector<1x32xbf16>
    %cst_181 = arith.constant dense<0.000000e+00> : vector<1x128xf32>
    %555 = tpu.matmul %554, %3, %cst_181 {dimension_numbers = #tpu.dot_dimension_numbers<[1], [0], [0], [1], [0, 0, 1, 1], [], []>} : vector<1x32xbf16>, vector<32x128xbf16>, vector<1x128xf32> -> vector<1x128xf32>
    %556 = arith.addf %555, %4 : vector<1x128xf32>
    %557 = tpu.concatenate %280, %556 in 0 : vector<1x128xf32>, vector<1x128xf32> -> vector<2x128xf32>
    %c0_182 = arith.constant 0 : index
    %c0_183 = arith.constant 0 : index
    %558 = vector.load %arg9[%c0_182, %c0_183] : memref<2x128xf32, #tpu.memory_space<vmem>>, vector<2x128xf32>
    tpu.vector_store %arg9[%c0_182, %c0_183], %557 {strides = array<i32>} : memref<2x128xf32, #tpu.memory_space<vmem>>, vector<2x128xf32>,
    return
  }
  func.func @transform_0(%arg0: i32) -> (i32, i32, i32) {
    %c0_i32 = arith.constant 0 : i32
    %c0_i32_0 = arith.constant 0 : i32
    %c0_i32_1 = arith.constant 0 : i32
    return %arg0, %c0_i32, %c0_i32_0 : i32, i32, i32
  }
  func.func @transform_1(%arg0: i32) -> (i32, i32) {
    %c0_i32 = arith.constant 0 : i32
    %c0_i32_0 = arith.constant 0 : i32
    %c0_i32_1 = arith.constant 0 : i32
    return %c0_i32, %c0_i32_0 : i32, i32
  }
  func.func @transform_2(%arg0: i32) -> (i32, i32) {
    %c0_i32 = arith.constant 0 : i32
    %c0_i32_0 = arith.constant 0 : i32
    %c0_i32_1 = arith.constant 0 : i32
    return %c0_i32, %c0_i32_0 : i32, i32
  }
  func.func @transform_3(%arg0: i32) -> (i32, i32) {
    %c0_i32 = arith.constant 0 : i32
    %c0_i32_0 = arith.constant 0 : i32
    %c0_i32_1 = arith.constant 0 : i32
    return %c0_i32, %c0_i32_0 : i32, i32
  }
  func.func @transform_4(%arg0: i32) -> (i32, i32) {
    %c0_i32 = arith.constant 0 : i32
    %c0_i32_0 = arith.constant 0 : i32
    %c0_i32_1 = arith.constant 0 : i32
    return %c0_i32, %c0_i32_0 : i32, i32
  }
  func.func @transform_5(%arg0: i32) -> (i32, i32) {
    %c0_i32 = arith.constant 0 : i32
    %c0_i32_0 = arith.constant 0 : i32
    %c0_i32_1 = arith.constant 0 : i32
    return %c0_i32, %c0_i32_0 : i32, i32
  }
  func.func @transform_6(%arg0: i32) -> (i32, i32) {
    %c0_i32 = arith.constant 0 : i32
    %c0_i32_0 = arith.constant 0 : i32
    %c0_i32_1 = arith.constant 0 : i32
    return %c0_i32, %c0_i32_0 : i32, i32
  }
  func.func @transform_7(%arg0: i32) -> (i32, i32) {
    %c0_i32 = arith.constant 0 : i32
    %c0_i32_0 = arith.constant 0 : i32
    %c0_i32_1 = arith.constant 0 : i32
    return %c0_i32, %c0_i32_0 : i32, i32
  }
  func.func @transform_8(%arg0: i32) -> (i32, i32) {
    %c0_i32 = arith.constant 0 : i32
    %c0_i32_0 = arith.constant 0 : i32
    return %arg0, %c0_i32 : i32, i32
  }
}

</mosaic_0001>

<llo_original>
// kernel: perceiver_forward.2
$region0: #{perceiver_forward.2}
  #allocation0 [shape = 'u32[]', space=smem, size = 0x4, offset = 0x4, fixed_abs, tag = 'smem constant byte address 0x4 - core index']
  #allocation1 [shape = 'u32[144,128]{1,0:T(1,128)}', space=vmem, size = 0x12000, scoped, tag = 'internal scratch']
  %s0 = inlined_call_operand.vmem [shape: f32[128,147], index: 0, kind: input, shape index: {}]
  %s1 = inlined_call_operand.vmem [shape: bf16[147,16], index: 1, kind: input, shape index: {}]
  %s2 = inlined_call_operand.vmem [shape: f32[1,16], index: 2, kind: input, shape index: {}]
  %s3 = inlined_call_operand.vmem [shape: f32[1,16], index: 3, kind: input, shape index: {}]
  %s4 = inlined_call_operand.vmem [shape: f32[128,16], index: 4, kind: output, shape index: {}]
  %s5 = sld [smem:[#allocation0]]
  $region26: #{perceiver_forward.2} parent=0
    _
  %s7 = ssub.s32 1, %s5
  %s8 = scalar_select 0, %s7, %s5
  // Predicated region
  $region2: #{perceiver_forward.2} parent=0 // pred_check
    _
  $region3: #{perceiver_forward.2} parent=0 // pred_check_branch
    %10 = sbr.rel (0) target = $region5
  $region4: #{perceiver_forward.2} parent=0 // pred_region
    _
  $region5: #{perceiver_forward.2} parent=0 // pred_fallthru
    _
  // Predicated region
  $region6: #{perceiver_forward.2} parent=0 // pred_check
    _
  $region7: #{perceiver_forward.2} parent=0 // pred_check_branch
    %12 = sbr.rel (0) target = $region9
  $region8: #{perceiver_forward.2} parent=0 // pred_region
    _
  $region9: #{perceiver_forward.2} parent=0 // pred_fallthru
    _
  // Predicated region
  $region10: #{perceiver_forward.2} parent=0 // pred_check
    _
  $region11: #{perceiver_forward.2} parent=0 // pred_check_branch
    %14 = sbr.rel (0) target = $region13
  $region12: #{perceiver_forward.2} parent=0 // pred_region
    _
  $region13: #{perceiver_forward.2} parent=0 // pred_fallthru
    _
  // Predicated region
  $region14: #{perceiver_forward.2} parent=0 // pred_check
    _
  $region15: #{perceiver_forward.2} parent=0 // pred_check_branch
    %16 = sbr.rel (0) target = $region17
  $region16: #{perceiver_forward.2} parent=0 // pred_region
    _
  $region17: #{perceiver_forward.2} parent=0 // pred_fallthru
    _
  %v18 = vld [vmem:[%s0] sm:$0xff]
  %v19 = vld [vmem:[%s0 + $0x8] sm:$0xff]
  %v20 = vld [vmem:[%s0 + $0x10] sm:$0xff]
  %v21 = vld [vmem:[%s0 + $0x18] sm:$0xff]
  %v22 = vld [vmem:[%s0 + $0x20] sm:$0xff]
  %v23 = vld [vmem:[%s0 + $0x28] sm:$0xff]
  %v24 = vld [vmem:[%s0 + $0x30] sm:$0xff]
  %v25 = vld [vmem:[%s0 + $0x38] sm:$0xff]
  %v26 = vld [vmem:[%s0 + $0x40] sm:$0xff]
  %v27 = vld [vmem:[%s0 + $0x48] sm:$0xff]
  %v28 = vld [vmem:[%s0 + $0x50] sm:$0xff]
  %v29 = vld [vmem:[%s0 + $0x58] sm:$0xff]
  %v30 = vld [vmem:[%s0 + $0x60] sm:$0xff]
  %v31 = vld [vmem:[%s0 + $0x68] sm:$0xff]
  %v32 = vld [vmem:[%s0 + $0x70] sm:$0xff]
  %v33 = vld [vmem:[%s0 + $0x78] sm:$0xff]
  %v34 = vld [vmem:[%s0 + $0x80] sm:$0xff]
  %v35 = vld [vmem:[%s0 + $0x88] sm:$0xff]
  %v36 = vld [vmem:[%s0 + $0x90] sm:$0xff]
  %v37 = vld [vmem:[%s0 + $0x98] sm:$0xff]
  %v38 = vld [vmem:[%s0 + $0xa0] sm:$0xff]
  %v39 = vld [vmem:[%s0 + $0xa8] sm:$0xff]
  %v40 = vld [vmem:[%s0 + $0xb0] sm:$0xff]
  %v41 = vld [vmem:[%s0 + $0xb8] sm:$0xff]
  %v42 = vld [vmem:[%s0 + $0xc0] sm:$0xff]
  %v43 = vld [vmem:[%s0 + $0xc8] sm:$0xff]
  %v44 = vld [vmem:[%s0 + $0xd0] sm:$0xff]
  %v45 = vld [vmem:[%s0 + $0xd8] sm:$0xff]
  %v46 = vld [vmem:[%s0 + $0xe0] sm:$0xff]
  %v47 = vld [vmem:[%s0 + $0xe8] sm:$0xff]
  %v48 = vld [vmem:[%s0 + $0xf0] sm:$0xff]
  %v49 = vld [vmem:[%s0 + $0xf8] sm:$0xff]
  %v50 = vpack.c.bf16 %v20, %v18
  %v51 = vpack.c.bf16 %v21, %v19
  %v52 = vpack.c.bf16 %v24, %v22
  %v53 = vpack.c.bf16 %v25, %v23
  %v54 = vpack.c.bf16 %v28, %v26
  %v55 = vpack.c.bf16 %v29, %v27
  %v56 = vpack.c.bf16 %v32, %v30
  %v57 = vpack.c.bf16 %v33, %v31
  %v58 = vpack.c.bf16 %v36, %v34
  %v59 = vpack.c.bf16 %v37, %v35
  %v60 = vpack.c.bf16 %v40, %v38
  %v61 = vpack.c.bf16 %v41, %v39
  %v62 = vpack.c.bf16 %v44, %v42
  %v63 = vpack.c.bf16 %v45, %v43
  %v64 = vpack.c.bf16 %v48, %v46
  %v65 = vpack.c.bf16 %v49, %v47
  %v66 = vld [vmem:[%s1] sm:$0xf]
  %v67 = vld [vmem:[%s1 + $0x4] sm:$0xf]
  %v68 = vld [vmem:[%s1 + $0x8] sm:$0xf]
  %v69 = vld [vmem:[%s1 + $0xc] sm:$0xf]
  %v70 = vld [vmem:[%s1 + $0x10] sm:$0xf]
  %v71 = vld [vmem:[%s1 + $0x14] sm:$0xf]
  %v72 = vld [vmem:[%s1 + $0x18] sm:$0xf]
  %v73 = vld [vmem:[%s1 + $0x1c] sm:$0xf]
  %v74 = vld [vmem:[%s1 + $0x20] sm:$0xf]
  %v75 = vld [vmem:[%s1 + $0x24] sm:$0xf]
  %v76 = vld [vmem:[%s1 + $0x28] sm:$0xf]
  %v77 = vld [vmem:[%s1 + $0x2c] sm:$0xf]
  %v78 = vld [vmem:[%s1 + $0x30] sm:$0xf]
  %v79 = vld [vmem:[%s1 + $0x34] sm:$0xf]
  %v80 = vld [vmem:[%s1 + $0x38] sm:$0xf]
  %v81 = vld [vmem:[%s1 + $0x3c] sm:$0xf]
  %v82 = vld [vmem:[%s1 + $0x40] sm:$0xf]
  %v83 = vld [vmem:[%s1 + $0x44] sm:$0xf]
  %v84 = vld [vmem:[%s1 + $0x48] sm:$0x3]
  %v104 = vunpack.c.l.b16 %v66
  %v105 = vunpack.c.l.b16 %v67
  %v106 = vunpack.c.l.b16 %v68
  %v107 = vunpack.c.l.b16 %v69
  %v108 = vunpack.c.l.b16 %v70
  %v109 = vunpack.c.l.b16 %v71
  %v110 = vunpack.c.l.b16 %v72
  %v111 = vunpack.c.l.b16 %v73
  %v112 = vunpack.c.l.b16 %v74
  %v113 = vunpack.c.l.b16 %v75
  %v114 = vunpack.c.l.b16 %v76
  %v115 = vunpack.c.l.b16 %v77
  %v116 = vunpack.c.l.b16 %v78
  %v117 = vunpack.c.l.b16 %v79
  %v118 = vunpack.c.l.b16 %v80
  %v119 = vunpack.c.l.b16 %v81
  %v120 = vunpack.c.l.b16 %v82
  %v121 = vunpack.c.l.b16 %v83
  %v122 = vunpack.c.l.b16 %v84
  %v123 = vpack.c.b16 %v105, %v104
  %v124 = vpack.c.b16 %v107, %v106
  %v125 = vpack.c.b16 %v109, %v108
  %v126 = vpack.c.b16 %v111, %v110
  %v127 = vpack.c.b16 %v113, %v112
  %v128 = vpack.c.b16 %v115, %v114
  %v129 = vpack.c.b16 %v117, %v116
  %v130 = vpack.c.b16 %v119, %v118
  %v131 = vpack.c.b16 %v121, %v120
  %v132 = vpack.c.b16 %v122, %v122
  %vm142 = vcmask 154624
  %v144 = vsel %vm142, %v51, 0
  %v147 = vsel %vm142, %v53, 0
  %v150 = vsel %vm142, %v55, 0
  %v153 = vsel %vm142, %v57, 0
  %v156 = vsel %vm142, %v59, 0
  %v159 = vsel %vm142, %v61, 0
  %v162 = vsel %vm142, %v63, 0
  %v165 = vsel %vm142, %v65, 0
  %vm167 = vcmask 1040384
  %vm168 = vcmask 1041408
  %v169 = vsel %vm167, 4294967295, 65535
  %v170 = vsel %vm168, %v169, 0
  %v172 = vand.u32 %v132, %v170
  %174 = vmatprep.subr.bf16.mxu0 0
  %175 = vmatpush1.bf16.msra.mxu0 %v123
  %176 = vmatprep.subr.bf16.mxu0 0
  %177 = vmatpush1.bf16.msra.mxu0 %v124
  %178 = vmatprep.subr.bf16.mxu0 0
  %179 = vmatpush1.bf16.msra.mxu0 %v125
  %180 = vmatprep.subr.bf16.mxu0 0
  %181 = vmatpush1.bf16.msra.mxu0 %v126
  %182 = vmatprep.subr.bf16.mxu0 0
  %183 = vmatpush1.bf16.msra.mxu0 %v127
  %184 = vmatprep.subr.bf16.mxu0 0
  %185 = vmatpush1.bf16.msra.mxu0 %v128
  %186 = vmatprep.subr.bf16.mxu0 0
  %187 = vmatpush1.bf16.msra.mxu0 %v129
  %188 = vmatprep.subr.bf16.mxu0 0
  %189 = vmatpush1.bf16.msra.mxu0 %v130
  %190 = vmatprep.subr.bf16.mxu0 0
  %191 = vmatpush1.bf16.msra.mxu0 %v131
  %192 = vmatprep.subr.bf16.mxu0 0
  %193 = vmatpush1.bf16.msra.mxu0 %v172
  %194 = vmatprep.subr.bf16.mxu0 0
  %195 = vmatpush1.bf16.msra.mxu0 0
  %196 = vmatprep.subr.bf16.mxu0 0
  %197 = vmatpush1.bf16.msra.mxu0 0
  %198 = vmatprep.subr.bf16.mxu0 0
  %199 = vmatpush1.bf16.msra.mxu0 0
  %200 = vmatprep.subr.bf16.mxu0 0
  %201 = vmatpush1.bf16.msra.mxu0 0
  %202 = vmatprep.subr.bf16.mxu0 0
  %203 = vmatpush1.bf16.msra.mxu0 0
  %204 = vmatprep.subr.bf16.mxu0 0
  %205 = vmatpush1.bf16.msra.mxu0 0
  %206 = vmatprep.mubr.bf16.mxu0 %v144
  %207 = vmatmul.mubr.bf16.gmra.mrb[0].mxu0 %v50
  %v208 = vpop.f32.mrb[0].mxu0
  %v209 = vadd.f32 0.0, %v208
  %v210 = vpop.f32.mrb[0].mxu0
  %v211 = vpop.f32.mrb[0].mxu0
  %v212 = vadd.f32 0.0, %v211
  %v213 = vpop.f32.mrb[0].mxu0
  %214 = vmatprep.mubr.bf16.mxu0 %v147
  %215 = vmatmul.mubr.bf16.gmra.mrb[0].mxu0 %v52
  %v216 = vpop.f32.mrb[0].mxu0
  %v217 = vadd.f32 0.0, %v216
  %v218 = vpop.f32.mrb[0].mxu0
  %v219 = vpop.f32.mrb[0].mxu0
  %v220 = vadd.f32 0.0, %v219
  %v221 = vpop.f32.mrb[0].mxu0
  %222 = vmatprep.mubr.bf16.mxu0 %v150
  %223 = vmatmul.mubr.bf16.gmra.mrb[0].mxu0 %v54
  %v224 = vpop.f32.mrb[0].mxu0
  %v225 = vadd.f32 0.0, %v224
  %v226 = vpop.f32.mrb[0].mxu0
  %v227 = vpop.f32.mrb[0].mxu0
  %v228 = vadd.f32 0.0, %v227
  %v229 = vpop.f32.mrb[0].mxu0
  %230 = vmatprep.mubr.bf16.mxu0 %v153
  %231 = vmatmul.mubr.bf16.gmra.mrb[0].mxu0 %v56
  %v232 = vpop.f32.mrb[0].mxu0
  %v233 = vadd.f32 0.0, %v232
  %v234 = vpop.f32.mrb[0].mxu0
  %v235 = vpop.f32.mrb[0].mxu0
  %v236 = vadd.f32 0.0, %v235
  %v237 = vpop.f32.mrb[0].mxu0
  %238 = vmatprep.mubr.bf16.mxu0 %v156
  %239 = vmatmul.mubr.bf16.gmra.mrb[0].mxu0 %v58
  %v240 = vpop.f32.mrb[0].mxu0
  %v241 = vadd.f32 0.0, %v240
  %v242 = vpop.f32.mrb[0].mxu0
  %v243 = vpop.f32.mrb[0].mxu0
  %v244 = vadd.f32 0.0, %v243
  %v245 = vpop.f32.mrb[0].mxu0
  %246 = vmatprep.mubr.bf16.mxu0 %v159
  %247 = vmatmul.mubr.bf16.gmra.mrb[0].mxu0 %v60
  %v248 = vpop.f32.mrb[0].mxu0
  %v249 = vadd.f32 0.0, %v248
  %v250 = vpop.f32.mrb[0].mxu0
  %v251 = vpop.f32.mrb[0].mxu0
  %v252 = vadd.f32 0.0, %v251
  %v253 = vpop.f32.mrb[0].mxu0
  %254 = vmatprep.mubr.bf16.mxu0 %v162
  %255 = vmatmul.mubr.bf16.gmra.mrb[0].mxu0 %v62
  %v256 = vpop.f32.mrb[0].mxu0
  %v257 = vadd.f32 0.0, %v256
  %v258 = vpop.f32.mrb[0].mxu0
  %v259 = vpop.f32.mrb[0].mxu0
  %v260 = vadd.f32 0.0, %v259
  %v261 = vpop.f32.mrb[0].mxu0
  %262 = vmatprep.mubr.bf16.mxu0 %v165
  %263 = vmatmul.mubr.bf16.gmra.mrb[0].mxu0 %v64
  %v264 = vpop.f32.mrb[0].mxu0
  %v265 = vadd.f32 0.0, %v264
  %v266 = vpop.f32.mrb[0].mxu0
  %v267 = vpop.f32.mrb[0].mxu0
  %v268 = vadd.f32 0.0, %v267
  %v269 = vpop.f32.mrb[0].mxu0
  %270 = vdwg.mxu0
  %v271 = vld [vmem:[%s2] sm:$0x1]
  %v273 = vlaneseq
  %v274 = vshrl.u32 %v273, 7
  %v275 = vsub.s32 0, %v274
  %v276 = vrot.slane %v271, %v275
  %v278 = vmul.f32 %v209, %v276
  %v279 = vmul.f32 %v212, %v276
  %v280 = vmul.f32 %v217, %v276
  %v281 = vmul.f32 %v220, %v276
  %v282 = vmul.f32 %v225, %v276
  %v283 = vmul.f32 %v228, %v276
  %v284 = vmul.f32 %v233, %v276
  %v285 = vmul.f32 %v236, %v276
  %v286 = vmul.f32 %v241, %v276
  %v287 = vmul.f32 %v244, %v276
  %v288 = vmul.f32 %v249, %v276
  %v289 = vmul.f32 %v252, %v276
  %v290 = vmul.f32 %v257, %v276
  %v291 = vmul.f32 %v260, %v276
  %v292 = vmul.f32 %v265, %v276
  %v293 = vmul.f32 %v268, %v276
  %v294 = vld [vmem:[%s3] sm:$0x1]
  %v296 = vlaneseq
  %v297 = vshrl.u32 %v296, 7
  %v298 = vsub.s32 0, %v297
  %v299 = vrot.slane %v294, %v298
  %v301 = vadd.f32 %v278, %v299
  %v302 = vadd.f32 %v279, %v299
  %v303 = vadd.f32 %v280, %v299
  %v304 = vadd.f32 %v281, %v299
  %v305 = vadd.f32 %v282, %v299
  %v306 = vadd.f32 %v283, %v299
  %v307 = vadd.f32 %v284, %v299
  %v308 = vadd.f32 %v285, %v299
  %v309 = vadd.f32 %v286, %v299
  %v310 = vadd.f32 %v287, %v299
  %v311 = vadd.f32 %v288, %v299
  %v312 = vadd.f32 %v289, %v299
  %v313 = vadd.f32 %v290, %v299
  %v314 = vadd.f32 %v291, %v299
  %v315 = vadd.f32 %v292, %v299
  %v316 = vadd.f32 %v293, %v299
  %v317 = vmax.f32 %v301, 0.0
  %v318 = vmax.f32 %v302, 0.0
  %v319 = vmax.f32 %v303, 0.0
  %v320 = vmax.f32 %v304, 0.0
  %v321 = vmax.f32 %v305, 0.0
  %v322 = vmax.f32 %v306, 0.0
  %v323 = vmax.f32 %v307, 0.0
  %v324 = vmax.f32 %v308, 0.0
  %v325 = vmax.f32 %v309, 0.0
  %v326 = vmax.f32 %v310, 0.0
  %v327 = vmax.f32 %v311, 0.0
  %v328 = vmax.f32 %v312, 0.0
  %v329 = vmax.f32 %v313, 0.0
  %v330 = vmax.f32 %v314, 0.0
  %v331 = vmax.f32 %v315, 0.0
  %v332 = vmax.f32 %v316, 0.0
  %vm333 = vcmask 130048
  %334 = vst.msk [vmem:[%s4] sm:$0xff] %vm333, %v317
  %335 = vst.msk [vmem:[%s4 + $0x8] sm:$0xff] %vm333, %v318
  %336 = vst.msk [vmem:[%s4 + $0x10] sm:$0xff] %vm333, %v319
  %337 = vst.msk [vmem:[%s4 + $0x18] sm:$0xff] %vm333, %v320
  %338 = vst.msk [vmem:[%s4 + $0x20] sm:$0xff] %vm333, %v321
  %339 = vst.msk [vmem:[%s4 + $0x28] sm:$0xff] %vm333, %v322
  %340 = vst.msk [vmem:[%s4 + $0x30] sm:$0xff] %vm333, %v323
  %341 = vst.msk [vmem:[%s4 + $0x38] sm:$0xff] %vm333, %v324
  %342 = vst.msk [vmem:[%s4 + $0x40] sm:$0xff] %vm333, %v325
  %343 = vst.msk [vmem:[%s4 + $0x48] sm:$0xff] %vm333, %v326
  %344 = vst.msk [vmem:[%s4 + $0x50] sm:$0xff] %vm333, %v327
  %345 = vst.msk [vmem:[%s4 + $0x58] sm:$0xff] %vm333, %v328
  %346 = vst.msk [vmem:[%s4 + $0x60] sm:$0xff] %vm333, %v329
  %347 = vst.msk [vmem:[%s4 + $0x68] sm:$0xff] %vm333, %v330
  %348 = vst.msk [vmem:[%s4 + $0x70] sm:$0xff] %vm333, %v331
  %349 = vst.msk [vmem:[%s4 + $0x78] sm:$0xff] %vm333, %v332
  // Predicated region
  $region18: #{perceiver_forward.2} parent=0 // pred_check
    _
  $region19: #{perceiver_forward.2} parent=0 // pred_check_branch
    %351 = sbr.rel (0) target = $region21
  $region20: #{perceiver_forward.2} parent=0 // pred_region
    _
  $region21: #{perceiver_forward.2} parent=0 // pred_fallthru
    _
  // Predicated region
  $region22: #{perceiver_forward.2} parent=0 // pred_check
    _
  $region23: #{perceiver_forward.2} parent=0 // pred_check_branch
    %353 = sbr.rel (0) target = $region25
  $region24: #{perceiver_forward.2} parent=0 // pred_region
    _
  $region25: #{perceiver_forward.2} parent=0 // pred_fallthru
    _

// kernel: perceiver_forward.3
$region0: #{perceiver_forward.3}
  #allocation0 [shape = 'u32[]', space=smem, size = 0x4, offset = 0x4, fixed_abs, tag = 'smem constant byte address 0x4 - core index']
  #allocation1 [shape = 'u32[144,128]{1,0:T(1,128)}', space=vmem, size = 0x12000, scoped, tag = 'internal scratch']
  %s0 = inlined_call_operand.vmem [shape: f32[2,16,34], index: 0, kind: input, shape index: {}]
  %s1 = inlined_call_operand.vmem [shape: f32[8,32], index: 1, kind: input, shape index: {}]
  %s2 = inlined_call_operand.vmem [shape: f32[1,32], index: 2, kind: input, shape index: {}]
  %s3 = inlined_call_operand.vmem [shape: bf16[896,32], index: 3, kind: input, shape index: {}]
  %s4 = inlined_call_operand.vmem [shape: f32[64,32], index: 4, kind: input, shape index: {}]
  %s5 = inlined_call_operand.vmem [shape: f32[2,34], index: 5, kind: input, shape index: {}]
  %s6 = inlined_call_operand.vmem [shape: bf16[32,128], index: 6, kind: input, shape index: {}]
  %s7 = inlined_call_operand.vmem [shape: f32[1,128], index: 7, kind: input, shape index: {}]
  %s8 = inlined_call_operand.hbm [shape: f32[2,128], index: 8, kind: output, shape index: {}]
  %s9 = sld [smem:[#allocation0]]
  $region56: #{perceiver_forward.3} parent=0
    _
  %s11 = ssub.s32 1, %s9
  %s12 = scalar_select 0, %s11, %s9
  $region1: #{perceiver_forward.3} parent=0
    #allocation2 [shape = 'u8[1024]{0}', space=vmem, size = 0x400, scoped, tag = 'output window, operand 0, single buffered']
    #allocation3 [shape = 's32[1]{0}', space=sflag, size = 0x4, scoped, tag = 'scoped memory for perceiver_forward.3']
    %13 = vsyncpa [#allocation3], 0
    // Predicated region
    $region2: #{perceiver_forward.3} parent=1 // pred_check
      _
    $region3: #{perceiver_forward.3} parent=1 // pred_check_branch
      %15 = sbr.rel (0) target = $region5
    $region4: #{perceiver_forward.3} parent=1 // pred_region
      _
    $region5: #{perceiver_forward.3} parent=1 // pred_fallthru
      _
    // Predicated region
    $region6: #{perceiver_forward.3} parent=1 // pred_check
      _
    $region7: #{perceiver_forward.3} parent=1 // pred_check_branch
      %17 = sbr.rel (0) target = $region9
    $region8: #{perceiver_forward.3} parent=1 // pred_region
      _
    $region9: #{perceiver_forward.3} parent=1 // pred_fallthru
      _
    // Predicated region
    $region10: #{perceiver_forward.3} parent=1 // pred_check
      _
    $region11: #{perceiver_forward.3} parent=1 // pred_check_branch
      %19 = sbr.rel (0) target = $region13
    $region12: #{perceiver_forward.3} parent=1 // pred_region
      _
    $region13: #{perceiver_forward.3} parent=1 // pred_fallthru
      _
    // Predicated region
    $region14: #{perceiver_forward.3} parent=1 // pred_check
      _
    $region15: #{perceiver_forward.3} parent=1 // pred_check_branch
      %21 = sbr.rel (0) target = $region17
    $region16: #{perceiver_forward.3} parent=1 // pred_region
      _
    $region17: #{perceiver_forward.3} parent=1 // pred_fallthru
      _
    // Predicated region
    $region18: #{perceiver_forward.3} parent=1 // pred_check
      _
    $region19: #{perceiver_forward.3} parent=1 // pred_check_branch
      %23 = sbr.rel (0) target = $region21
    $region20: #{perceiver_forward.3} parent=1 // pred_region
      _
    $region21: #{perceiver_forward.3} parent=1 // pred_fallthru
      _
    // Predicated region
    $region22: #{perceiver_forward.3} parent=1 // pred_check
      _
    $region23: #{perceiver_forward.3} parent=1 // pred_check_branch
      %25 = sbr.rel (0) target = $region25
    $region24: #{perceiver_forward.3} parent=1 // pred_region
      _
    $region25: #{perceiver_forward.3} parent=1 // pred_fallthru
      _
    // Predicated region
    $region26: #{perceiver_forward.3} parent=1 // pred_check
      _
    $region27: #{perceiver_forward.3} parent=1 // pred_check_branch
      %27 = sbr.rel (0) target = $region29
    $region28: #{perceiver_forward.3} parent=1 // pred_region
      _
    $region29: #{perceiver_forward.3} parent=1 // pred_fallthru
      _
    // Predicated region
    $region30: #{perceiver_forward.3} parent=1 // pred_check
      _
    $region31: #{perceiver_forward.3} parent=1 // pred_check_branch
      %29 = sbr.rel (0) target = $region33
    $region32: #{perceiver_forward.3} parent=1 // pred_region
      _
    $region33: #{perceiver_forward.3} parent=1 // pred_fallthru
      _
    %v31 = vld [vmem:[%s1] sm:$0xff]
    %v32 = vld [vmem:[%s2] sm:$0x1]
    %v33 = vld [vmem:[%s5] sm:$0x3]
    %v34 = vld [vmem:[%s6] sm:$0xf]
    %v35 = vld [vmem:[%s6 + $0x4] sm:$0xf]
    %v36 = vld [vmem:[%s6 + $0x8] sm:$0xf]
    %v37 = vld [vmem:[%s6 + $0xc] sm:$0xf]
    %v38 = vld [vmem:[%s7] sm:$0x1]
    %v39 = vld [vmem:[%s0] sm:$0xff]
    %v40 = vld [vmem:[%s0 + $0x8] sm:$0xff]
    %v41 = vld [vmem:[%s4] sm:$0xff]
    %v42 = vld [vmem:[%s4 + $0x8] sm:$0xff]
    %v43 = vld [vmem:[%s3] sm:$0xf]
    %v44 = vld [vmem:[%s3 + $0x4] sm:$0xf]
    %v45 = vld [vmem:[%s3 + $0x8] sm:$0xf]
    %v46 = vld [vmem:[%s3 + $0xc] sm:$0xf]
    %v47 = vld [vmem:[%s3 + $0x10] sm:$0xf]
    %v48 = vld [vmem:[%s3 + $0x14] sm:$0xf]
    %v49 = vld [vmem:[%s3 + $0x18] sm:$0xf]
    %v50 = vld [vmem:[%s3 + $0x1c] sm:$0xf]
    %v51 = vld [vmem:[%s3 + $0x20] sm:$0x1]
    %v52 = vld [vmem:[%s3 + $0x28] sm:$0xf]
    %v53 = vld [vmem:[%s3 + $0x2c] sm:$0xf]
    %v54 = vld [vmem:[%s3 + $0x30] sm:$0xf]
    %v55 = vld [vmem:[%s3 + $0x34] sm:$0xf]
    %v56 = vld [vmem:[%s3 + $0x38] sm:$0x1]
    %v57 = vld [vmem:[%s3 + $0x40] sm:$0xf]
    %v58 = vld [vmem:[%s3 + $0x44] sm:$0xf]
    %v59 = vld [vmem:[%s3 + $0x48] sm:$0xf]
    %v60 = vld [vmem:[%s3 + $0x4c] sm:$0xf]
    %v61 = vld [vmem:[%s3 + $0x50] sm:$0xf]
    %v62 = vld [vmem:[%s3 + $0x54] sm:$0xf]
    %v63 = vld [vmem:[%s3 + $0x58] sm:$0xf]
    %v64 = vld [vmem:[%s3 + $0x5c] sm:$0xf]
    %v65 = vld [vmem:[%s3 + $0x60] sm:$0xf]
    %v66 = vld [vmem:[%s3 + $0x64] sm:$0xf]
    %v67 = vld [vmem:[%s3 + $0x68] sm:$0xf]
    %v68 = vld [vmem:[%s3 + $0x6c] sm:$0xf]
    %vm69 = vcmask 261120
    %v70 = vsel %vm69, %v31, 0.0
    %71 = vadd.xlane.f32.xlu0 %v70
    %v72 = vpop.xlane.xlu0 %71
    %v73 = vrcp.pop 32.0
    %v74 = vmul.f32 %v72, %v73
    %v75 = vsub.f32 %v31, %v74
    %v76 = vmul.f32 %v75, %v75
    %v77 = vsel %vm69, %v76, 0.0
    %78 = vadd.xlane.f32.xlu0 %v77
    %v79 = vpop.xlane.xlu0 %78
    %v80 = vmul.f32 %v79, %v73
    %v81 = vadd.f32 %v80, 1e-05
    %v82 = vrsqrt.pop %v81
    %v83 = vmul.f32 %v75, %v82
    %v84 = vlaneseq
    %v85 = vshrl.u32 %v84, 7
    %v86 = vsub.s32 0, %v85
    %v87 = vrot.slane %v41, %v86
    %v88 = vmul.f32 %v83, %v87
    %v89 = vlaneseq
    %v90 = vshrl.u32 %v89, 7
    %v91 = vsub.s32 1, %v90
    %v92 = vrot.slane %v41, %v91
    %v93 = vadd.f32 %v88, %v92
    %vm94 = vcmask 277504
    %v95 = vsel %vm94, %v39, 0.0
    %96 = vadd.xlane.f32.xlu0 %v95
    %v97 = vpop.xlane.xlu0 %96
    %v98 = vsel %vm94, %v40, 0.0
    %99 = vadd.xlane.f32.xlu0 %v98
    %v100 = vpop.xlane.xlu0 %99
    %v101 = vrcp.pop 34.0
    %v102 = vmul.f32 %v97, %v101
    %v103 = vmul.f32 %v100, %v101
    %v104 = vsub.f32 %v39, %v102
    %v105 = vsub.f32 %v40, %v103
    %v106 = vmul.f32 %v104, %v104
    %v107 = vmul.f32 %v105, %v105
    %v108 = vsel %vm94, %v106, 0.0
    %109 = vadd.xlane.f32.xlu0 %v108
    %v110 = vpop.xlane.xlu0 %109
    %v111 = vsel %vm94, %v107, 0.0
    %112 = vadd.xlane.f32.xlu0 %v111
    %v113 = vpop.xlane.xlu0 %112
    %v114 = vmul.f32 %v110, %v101
    %v115 = vmul.f32 %v113, %v101
    %v116 = vadd.f32 %v114, 1e-05
    %v117 = vadd.f32 %v115, 1e-05
    %v118 = vrsqrt.pop %v116
    %v119 = vrsqrt.pop %v117
    %v120 = vmul.f32 %v104, %v118
    %v121 = vmul.f32 %v105, %v119
    %v122 = vlaneseq
    %v123 = vshrl.u32 %v122, 7
    %v124 = vsub.s32 0, %v123
    %v125 = vrot.slane %v33, %v124
    %v126 = vmul.f32 %v120, %v125
    %v127 = vmul.f32 %v121, %v125
    %v128 = vlaneseq
    %v129 = vshrl.u32 %v128, 7
    %v130 = vsub.s32 1, %v129
    %v131 = vrot.slane %v33, %v130
    %v132 = vadd.f32 %v126, %v131
    %v133 = vadd.f32 %v127, %v131
    %v134 = vpack.c.bf16 %v93, %v93
    %v135 = vlaneseq
    %v136 = vshrl.u32 %v135, 7
    %v137 = vsub.s32 4, %v136
    %v138 = vrot.slane %v41, %v137
    %v143 = vunpack.c.l.b16 %v43
    %v144 = vunpack.c.l.b16 %v44
    %v145 = vunpack.c.l.b16 %v45
    %v146 = vunpack.c.l.b16 %v46
    %v147 = vpack.c.b16 %v144, %v143
    %v148 = vpack.c.b16 %v146, %v145
    %v152 = vsel %vm69, %v134, 0
    %154 = vmatprep.subr.bf16.mxu0 0
    %155 = vmatpush1.bf16.msra.mxu0 %v147
    %156 = vmatprep.subr.bf16.mxu0 0
    %157 = vmatpush1.bf16.msra.mxu0 %v148
    %158 = vmatprep.subr.bf16.mxu0 0
    %159 = vmatpush1.bf16.msra.mxu0 0
    %160 = vmatprep.subr.bf16.mxu0 0
    %161 = vmatpush1.bf16.msra.mxu0 0
    %162 = vmatprep.subr.bf16.mxu0 0
    %163 = vmatpush1.bf16.msra.mxu0 0
    %164 = vmatprep.subr.bf16.mxu0 0
    %165 = vmatpush1.bf16.msra.mxu0 0
    %166 = vmatprep.subr.bf16.mxu0 0
    %167 = vmatpush1.bf16.msra.mxu0 0
    %168 = vmatprep.subr.bf16.mxu0 0
    %169 = vmatpush1.bf16.msra.mxu0 0
    %170 = vmatprep.subr.bf16.mxu0 0
    %171 = vmatpush1.bf16.msra.mxu0 0
    %172 = vmatprep.subr.bf16.mxu0 0
    %173 = vmatpush1.bf16.msra.mxu0 0
    %174 = vmatprep.subr.bf16.mxu0 0
    %175 = vmatpush1.bf16.msra.mxu0 0
    %176 = vmatprep.subr.bf16.mxu0 0
    %177 = vmatpush1.bf16.msra.mxu0 0
    %178 = vmatprep.subr.bf16.mxu0 0
    %179 = vmatpush1.bf16.msra.mxu0 0
    %180 = vmatprep.subr.bf16.mxu0 0
    %181 = vmatpush1.bf16.msra.mxu0 0
    %182 = vmatprep.subr.bf16.mxu0 0
    %183 = vmatpush1.bf16.msra.mxu0 0
    %184 = vmatprep.subr.bf16.mxu0 0
    %185 = vmatpush1.bf16.msra.mxu0 0
    %186 = vmatprep.mubr.bf16.mxu0 0
    %187 = vmatmul.mubr.bf16.gmra.mrb[0].mxu0 %v152
    %v188 = vpop.f32.mrb[0].mxu0
    %v189 = vadd.f32 %v138, %v188
    %v190 = vpop.f32.mrb[0].mxu0
    %v191 = vpop.f32.mrb[0].mxu0
    %v192 = vpop.f32.mrb[0].mxu0
    %193 = vdwg.mxu0
    %v194 = vpack.c.bf16 %v133, %v132
    %v195 = vlaneseq
    %v196 = vshrl.u32 %v195, 7
    %v197 = vsub.s32 5, %v196
    %v198 = vrot.slane %v41, %v197
    %v204 = vunpack.c.l.b16 %v47
    %v205 = vunpack.c.l.b16 %v48
    %v206 = vunpack.c.l.b16 %v49
    %v207 = vunpack.c.l.b16 %v50
    %v208 = vunpack.c.l.b16 %v51
    %v209 = vpack.c.b16 %v205, %v204
    %v210 = vpack.c.b16 %v207, %v206
    %v211 = vpack.c.b16 %v208, %v208
    %v215 = vsel %vm94, %v194, 0
    %vm217 = vcmask 1040384
    %v219 = vsel %vm217, %v211, 0
    %221 = vmatprep.subr.bf16.mxu0 0
    %222 = vmatpush1.bf16.msra.mxu0 %v209
    %223 = vmatprep.subr.bf16.mxu0 0
    %224 = vmatpush1.bf16.msra.mxu0 %v210
    %225 = vmatprep.subr.bf16.mxu0 0
    %226 = vmatpush1.bf16.msra.mxu0 %v219
    %227 = vmatprep.subr.bf16.mxu0 0
    %228 = vmatpush1.bf16.msra.mxu0 0
    %229 = vmatprep.subr.bf16.mxu0 0
    %230 = vmatpush1.bf16.msra.mxu0 0
    %231 = vmatprep.subr.bf16.mxu0 0
    %232 = vmatpush1.bf16.msra.mxu0 0
    %233 = vmatprep.subr.bf16.mxu0 0
    %234 = vmatpush1.bf16.msra.mxu0 0
    %235 = vmatprep.subr.bf16.mxu0 0
    %236 = vmatpush1.bf16.msra.mxu0 0
    %237 = vmatprep.subr.bf16.mxu0 0
    %238 = vmatpush1.bf16.msra.mxu0 0
    %239 = vmatprep.subr.bf16.mxu0 0
    %240 = vmatpush1.bf16.msra.mxu0 0
    %241 = vmatprep.subr.bf16.mxu0 0
    %242 = vmatpush1.bf16.msra.mxu0 0
    %243 = vmatprep.subr.bf16.mxu0 0
    %244 = vmatpush1.bf16.msra.mxu0 0
    %245 = vmatprep.subr.bf16.mxu0 0
    %246 = vmatpush1.bf16.msra.mxu0 0
    %247 = vmatprep.subr.bf16.mxu0 0
    %248 = vmatpush1.bf16.msra.mxu0 0
    %249 = vmatprep.subr.bf16.mxu0 0
    %250 = vmatpush1.bf16.msra.mxu0 0
    %251 = vmatprep.subr.bf16.mxu0 0
    %252 = vmatpush1.bf16.msra.mxu0 0
    %253 = vmatprep.mubr.bf16.mxu0 0
    %254 = vmatmul.mubr.bf16.gmra.mrb[0].mxu0 %v215
    %v255 = vpop.f32.mrb[0].mxu0
    %v256 = vadd.f32 %v198, %v255
    %v257 = vpop.f32.mrb[0].mxu0
    %v258 = vpop.f32.mrb[0].mxu0
    %v259 = vadd.f32 %v198, %v258
    %v260 = vpop.f32.mrb[0].mxu0
    %261 = vdwg.mxu0
    %v262 = vlaneseq
    %v263 = vshrl.u32 %v262, 7
    %v264 = vsub.s32 6, %v263
    %v265 = vrot.slane %v41, %v264
    %v271 = vunpack.c.l.b16 %v52
    %v272 = vunpack.c.l.b16 %v53
    %v273 = vunpack.c.l.b16 %v54
    %v274 = vunpack.c.l.b16 %v55
    %v275 = vunpack.c.l.b16 %v56
    %v276 = vpack.c.b16 %v272, %v271
    %v277 = vpack.c.b16 %v274, %v273
    %v278 = vpack.c.b16 %v275, %v275
    %v282 = vsel %vm217, %v278, 0
    %284 = vmatprep.subr.bf16.mxu0 0
    %285 = vmatpush1.bf16.msra.mxu0 %v276
    %286 = vmatprep.subr.bf16.mxu0 0
    %287 = vmatpush1.bf16.msra.mxu0 %v277
    %288 = vmatprep.subr.bf16.mxu0 0
    %289 = vmatpush1.bf16.msra.mxu0 %v282
    %290 = vmatprep.subr.bf16.mxu0 0
    %291 = vmatpush1.bf16.msra.mxu0 0
    %292 = vmatprep.subr.bf16.mxu0 0
    %293 = vmatpush1.bf16.msra.mxu0 0
    %294 = vmatprep.subr.bf16.mxu0 0
    %295 = vmatpush1.bf16.msra.mxu0 0
    %296 = vmatprep.subr.bf16.mxu0 0
    %297 = vmatpush1.bf16.msra.mxu0 0
    %298 = vmatprep.subr.bf16.mxu0 0
    %299 = vmatpush1.bf16.msra.mxu0 0
    %300 = vmatprep.subr.bf16.mxu0 0
    %301 = vmatpush1.bf16.msra.mxu0 0
    %302 = vmatprep.subr.bf16.mxu0 0
    %303 = vmatpush1.bf16.msra.mxu0 0
    %304 = vmatprep.subr.bf16.mxu0 0
    %305 = vmatpush1.bf16.msra.mxu0 0
    %306 = vmatprep.subr.bf16.mxu0 0
    %307 = vmatpush1.bf16.msra.mxu0 0
    %308 = vmatprep.subr.bf16.mxu0 0
    %309 = vmatpush1.bf16.msra.mxu0 0
    %310 = vmatprep.subr.bf16.mxu0 0
    %311 = vmatpush1.bf16.msra.mxu0 0
    %312 = vmatprep.subr.bf16.mxu0 0
    %313 = vmatpush1.bf16.msra.mxu0 0
    %314 = vmatprep.subr.bf16.mxu0 0
    %315 = vmatpush1.bf16.msra.mxu0 0
    %316 = vmatprep.mubr.bf16.mxu0 0
    %317 = vmatmul.mubr.bf16.gmra.mrb[0].mxu0 %v215
    %v318 = vpop.f32.mrb[0].mxu0
    %v319 = vadd.f32 %v265, %v318
    %v320 = vpop.f32.mrb[0].mxu0
    %v321 = vpop.f32.mrb[0].mxu0
    %v322 = vadd.f32 %v265, %v321
    %v323 = vpop.f32.mrb[0].mxu0
    %324 = vdwg.mxu0
    %v325 = vpack.c.bf16 %v189, %v189
    %v326 = vpack.c.bf16 %v259, %v256
    %v328 = vsel %vm69, %v325, 0
    %v331 = vsel %vm69, %v326, 0
    %333 = vmatprep.subr.bf16.mxu0 0
    %334 = vmatpush1.bf16.xpose.msra.mxu0 %v331
    %335 = vmatprep.subr.bf16.mxu0 0
    %336 = vmatpush1.bf16.xpose.msra.mxu0 0
    %337 = vmatprep.subr.bf16.mxu0 0
    %338 = vmatpush1.bf16.xpose.msra.mxu0 0
    %339 = vmatprep.subr.bf16.mxu0 0
    %340 = vmatpush1.bf16.xpose.msra.mxu0 0
    %341 = vmatprep.subr.bf16.mxu0 0
    %342 = vmatpush1.bf16.xpose.msra.mxu0 0
    %343 = vmatprep.subr.bf16.mxu0 0
    %344 = vmatpush1.bf16.xpose.msra.mxu0 0
    %345 = vmatprep.subr.bf16.mxu0 0
    %346 = vmatpush1.bf16.xpose.msra.mxu0 0
    %347 = vmatprep.subr.bf16.mxu0 0
    %348 = vmatpush1.bf16.xpose.msra.mxu0 0
    %349 = vmatprep.subr.bf16.mxu0 0
    %350 = vmatpush1.bf16.xpose.msra.mxu0 0
    %351 = vmatprep.subr.bf16.mxu0 0
    %352 = vmatpush1.bf16.xpose.msra.mxu0 0
    %353 = vmatprep.subr.bf16.mxu0 0
    %354 = vmatpush1.bf16.xpose.msra.mxu0 0
    %355 = vmatprep.subr.bf16.mxu0 0
    %356 = vmatpush1.bf16.xpose.msra.mxu0 0
    %357 = vmatprep.subr.bf16.mxu0 0
    %358 = vmatpush1.bf16.xpose.msra.mxu0 0
    %359 = vmatprep.subr.bf16.mxu0 0
    %360 = vmatpush1.bf16.xpose.msra.mxu0 0
    %361 = vmatprep.subr.bf16.mxu0 0
    %362 = vmatpush1.bf16.xpose.msra.mxu0 0
    %363 = vmatprep.subr.bf16.mxu0 0
    %364 = vmatpush1.bf16.xpose.msra.mxu0 0
    %365 = vmatprep.mubr.bf16.mxu0 0
    %366 = vmatmul.mubr.bf16.gmra.mrb[0].mxu0 %v328
    %v367 = vpop.f32.mrb[0].mxu0
    %v368 = vadd.f32 0.0, %v367
    %v369 = vpop.f32.mrb[0].mxu0
    %v370 = vpop.f32.mrb[0].mxu0
    %v371 = vpop.f32.mrb[0].mxu0
    %372 = vdwg.mxu0
    %v373 = vmul.f32 %v368, 0.17677669
    %vm374 = vcmask 130048
    %v375 = vsel %vm374, %v373, -inf
    %376 = vmax.xlane.f32.xlu0 %v375
    %v377 = vpop.xlane.xlu0 %376
    %v378 = vsub.f32 %v373, %v377
    %v379 = vmul.f32 %v378, 1.442695
    %v380 = vpow.pop %v379
    %v381 = vsel %vm374, %v380, 0.0
    %382 = vadd.xlane.f32.xlu0 %v381
    %v383 = vpop.xlane.xlu0 %382
    %v384 = vrcp.pop %v383
    %v385 = vmul.f32 %v380, %v384
    %v386 = vpack.c.bf16 %v385, %v385
    %v387 = vpack.c.bf16 %v322, %v319
    %v389 = vsel %vm374, %v386, 0
    %391 = vmatprep.subr.bf16.mxu0 0
    %392 = vmatpush1.bf16.msra.mxu0 %v387
    %393 = vmatprep.subr.bf16.mxu0 0
    %394 = vmatpush1.bf16.msra.mxu0 0
    %395 = vmatprep.subr.bf16.mxu0 0
    %396 = vmatpush1.bf16.msra.mxu0 0
    %397 = vmatprep.subr.bf16.mxu0 0
    %398 = vmatpush1.bf16.msra.mxu0 0
    %399 = vmatprep.subr.bf16.mxu0 0
    %400 = vmatpush1.bf16.msra.mxu0 0
    %401 = vmatprep.subr.bf16.mxu0 0
    %402 = vmatpush1.bf16.msra.mxu0 0
    %403 = vmatprep.subr.bf16.mxu0 0
    %404 = vmatpush1.bf16.msra.mxu0 0
    %405 = vmatprep.subr.bf16.mxu0 0
    %406 = vmatpush1.bf16.msra.mxu0 0
    %407 = vmatprep.subr.bf16.mxu0 0
    %408 = vmatpush1.bf16.msra.mxu0 0
    %409 = vmatprep.subr.bf16.mxu0 0
    %410 = vmatpush1.bf16.msra.mxu0 0
    %411 = vmatprep.subr.bf16.mxu0 0
    %412 = vmatpush1.bf16.msra.mxu0 0
    %413 = vmatprep.subr.bf16.mxu0 0
    %414 = vmatpush1.bf16.msra.mxu0 0
    %415 = vmatprep.subr.bf16.mxu0 0
    %416 = vmatpush1.bf16.msra.mxu0 0
    %417 = vmatprep.subr.bf16.mxu0 0
    %418 = vmatpush1.bf16.msra.mxu0 0
    %419 = vmatprep.subr.bf16.mxu0 0
    %420 = vmatpush1.bf16.msra.mxu0 0
    %421 = vmatprep.subr.bf16.mxu0 0
    %422 = vmatpush1.bf16.msra.mxu0 0
    %423 = vmatprep.mubr.bf16.mxu0 0
    %424 = vmatmul.mubr.bf16.gmra.mrb[0].mxu0 %v389
    %v425 = vpop.f32.mrb[0].mxu0
    %v426 = vadd.f32 0.0, %v425
    %v427 = vpop.f32.mrb[0].mxu0
    %v428 = vpop.f32.mrb[0].mxu0
    %v429 = vpop.f32.mrb[0].mxu0
    %430 = vdwg.mxu0
    %v431 = vpack.c.bf16 %v426, %v426
    %v432 = vlaneseq
    %v433 = vshrl.u32 %v432, 7
    %v434 = vsub.s32 7, %v433
    %v435 = vrot.slane %v41, %v434
    %v440 = vunpack.c.l.b16 %v57
    %v441 = vunpack.c.l.b16 %v58
    %v442 = vunpack.c.l.b16 %v59
    %v443 = vunpack.c.l.b16 %v60
    %v444 = vpack.c.b16 %v441, %v440
    %v445 = vpack.c.b16 %v443, %v442
    %v449 = vsel %vm69, %v431, 0
    %451 = vmatprep.subr.bf16.mxu0 0
    %452 = vmatpush1.bf16.msra.mxu0 %v444
    %453 = vmatprep.subr.bf16.mxu0 0
    %454 = vmatpush1.bf16.msra.mxu0 %v445
    %455 = vmatprep.subr.bf16.mxu0 0
    %456 = vmatpush1.bf16.msra.mxu0 0
    %457 = vmatprep.subr.bf16.mxu0 0
    %458 = vmatpush1.bf16.msra.mxu0 0
    %459 = vmatprep.subr.bf16.mxu0 0
    %460 = vmatpush1.bf16.msra.mxu0 0
    %461 = vmatprep.subr.bf16.mxu0 0
    %462 = vmatpush1.bf16.msra.mxu0 0
    %463 = vmatprep.subr.bf16.mxu0 0
    %464 = vmatpush1.bf16.msra.mxu0 0
    %465 = vmatprep.subr.bf16.mxu0 0
    %466 = vmatpush1.bf16.msra.mxu0 0
    %467 = vmatprep.subr.bf16.mxu0 0
    %468 = vmatpush1.bf16.msra.mxu0 0
    %469 = vmatprep.subr.bf16.mxu0 0
    %470 = vmatpush1.bf16.msra.mxu0 0
    %471 = vmatprep.subr.bf16.mxu0 0
    %472 = vmatpush1.bf16.msra.mxu0 0
    %473 = vmatprep.subr.bf16.mxu0 0
    %474 = vmatpush1.bf16.msra.mxu0 0
    %475 = vmatprep.subr.bf16.mxu0 0
    %476 = vmatpush1.bf16.msra.mxu0 0
    %477 = vmatprep.subr.bf16.mxu0 0
    %478 = vmatpush1.bf16.msra.mxu0 0
    %479 = vmatprep.subr.bf16.mxu0 0
    %480 = vmatpush1.bf16.msra.mxu0 0
    %481 = vmatprep.subr.bf16.mxu0 0
    %482 = vmatpush1.bf16.msra.mxu0 0
    %483 = vmatprep.mubr.bf16.mxu0 0
    %484 = vmatmul.mubr.bf16.gmra.mrb[0].mxu0 %v449
    %v485 = vpop.f32.mrb[0].mxu0
    %v486 = vadd.f32 %v435, %v485
    %v487 = vpop.f32.mrb[0].mxu0
    %v488 = vpop.f32.mrb[0].mxu0
    %v489 = vpop.f32.mrb[0].mxu0
    %490 = vdwg.mxu0
    %v491 = vadd.f32 %v31, %v486
    %v492 = vsel %vm69, %v491, 0.0
    %493 = vadd.xlane.f32.xlu0 %v492
    %v494 = vpop.xlane.xlu0 %493
    %v495 = vmul.f32 %v494, %v73
    %v496 = vsub.f32 %v491, %v495
    %v497 = vmul.f32 %v496, %v496
    %v498 = vsel %vm69, %v497, 0.0
    %499 = vadd.xlane.f32.xlu0 %v498
    %v500 = vpop.xlane.xlu0 %499
    %v501 = vmul.f32 %v500, %v73
    %v502 = vadd.f32 %v501, 1e-05
    %v503 = vrsqrt.pop %v502
    %v504 = vmul.f32 %v496, %v503
    %v505 = vlaneseq
    %v506 = vshrl.u32 %v505, 7
    %v507 = vsub.s32 0, %v506
    %v508 = vrot.slane %v42, %v507
    %v509 = vmul.f32 %v504, %v508
    %v510 = vlaneseq
    %v511 = vshrl.u32 %v510, 7
    %v512 = vsub.s32 1, %v511
    %v513 = vrot.slane %v42, %v512
    %v514 = vadd.f32 %v509, %v513
    %v515 = vpack.c.bf16 %v514, %v514
    %v516 = vlaneseq
    %v517 = vshrl.u32 %v516, 7
    %v518 = vsub.s32 2, %v517
    %v519 = vrot.slane %v42, %v518
    %v524 = vunpack.c.l.b16 %v61
    %v525 = vunpack.c.l.b16 %v62
    %v526 = vunpack.c.l.b16 %v63
    %v527 = vunpack.c.l.b16 %v64
    %v528 = vpack.c.b16 %v525, %v524
    %v529 = vpack.c.b16 %v527, %v526
    %v533 = vsel %vm69, %v515, 0
    %535 = vmatprep.subr.bf16.mxu0 0
    %536 = vmatpush1.bf16.msra.mxu0 %v528
    %537 = vmatprep.subr.bf16.mxu0 0
    %538 = vmatpush1.bf16.msra.mxu0 %v529
    %539 = vmatprep.subr.bf16.mxu0 0
    %540 = vmatpush1.bf16.msra.mxu0 0
    %541 = vmatprep.subr.bf16.mxu0 0
    %542 = vmatpush1.bf16.msra.mxu0 0
    %543 = vmatprep.subr.bf16.mxu0 0
    %544 = vmatpush1.bf16.msra.mxu0 0
    %545 = vmatprep.subr.bf16.mxu0 0
    %546 = vmatpush1.bf16.msra.mxu0 0
    %547 = vmatprep.subr.bf16.mxu0 0
    %548 = vmatpush1.bf16.msra.mxu0 0
    %549 = vmatprep.subr.bf16.mxu0 0
    %550 = vmatpush1.bf16.msra.mxu0 0
    %551 = vmatprep.subr.bf16.mxu0 0
    %552 = vmatpush1.bf16.msra.mxu0 0
    %553 = vmatprep.subr.bf16.mxu0 0
    %554 = vmatpush1.bf16.msra.mxu0 0
    %555 = vmatprep.subr.bf16.mxu0 0
    %556 = vmatpush1.bf16.msra.mxu0 0
    %557 = vmatprep.subr.bf16.mxu0 0
    %558 = vmatpush1.bf16.msra.mxu0 0
    %559 = vmatprep.subr.bf16.mxu0 0
    %560 = vmatpush1.bf16.msra.mxu0 0
    %561 = vmatprep.subr.bf16.mxu0 0
    %562 = vmatpush1.bf16.msra.mxu0 0
    %563 = vmatprep.subr.bf16.mxu0 0
    %564 = vmatpush1.bf16.msra.mxu0 0
    %565 = vmatprep.subr.bf16.mxu0 0
    %566 = vmatpush1.bf16.msra.mxu0 0
    %567 = vmatprep.mubr.bf16.mxu0 0
    %568 = vmatmul.mubr.bf16.gmra.mrb[0].mxu0 %v533
    %v569 = vpop.f32.mrb[0].mxu0
    %v570 = vadd.f32 %v519, %v569
    %v571 = vpop.f32.mrb[0].mxu0
    %v572 = vpop.f32.mrb[0].mxu0
    %v573 = vpop.f32.mrb[0].mxu0
    %574 = vdwg.mxu0
    %v575 = vmul.f32 %v570, 0.5
    %v576 = vmul.f32 %v570, 0.044715
    %v577 = vmul.f32 %v576, %v570
    %v578 = vmul.f32 %v577, %v570
    %v579 = vadd.f32 %v570, %v578
    %v580 = vmul.f32 %v579, 0.7978846
    %v581 = vtanh.pop %v580
    %v582 = vadd.f32 %v581, 1.0
    %v583 = vmul.f32 %v575, %v582
    %v584 = vpack.c.bf16 %v583, %v583
    %v585 = vlaneseq
    %v586 = vshrl.u32 %v585, 7
    %v587 = vsub.s32 3, %v586
    %v588 = vrot.slane %v42, %v587
    %v593 = vunpack.c.l.b16 %v65
    %v594 = vunpack.c.l.b16 %v66
    %v595 = vunpack.c.l.b16 %v67
    %v596 = vunpack.c.l.b16 %v68
    %v597 = vpack.c.b16 %v594, %v593
    %v598 = vpack.c.b16 %v596, %v595
    %v602 = vsel %vm69, %v584, 0
    %604 = vmatprep.subr.bf16.mxu0 0
    %605 = vmatpush1.bf16.msra.mxu0 %v597
    %606 = vmatprep.subr.bf16.mxu0 0
    %607 = vmatpush1.bf16.msra.mxu0 %v598
    %608 = vmatprep.subr.bf16.mxu0 0
    %609 = vmatpush1.bf16.msra.mxu0 0
    %610 = vmatprep.subr.bf16.mxu0 0
    %611 = vmatpush1.bf16.msra.mxu0 0
    %612 = vmatprep.subr.bf16.mxu0 0
    %613 = vmatpush1.bf16.msra.mxu0 0
    %614 = vmatprep.subr.bf16.mxu0 0
    %615 = vmatpush1.bf16.msra.mxu0 0
    %616 = vmatprep.subr.bf16.mxu0 0
    %617 = vmatpush1.bf16.msra.mxu0 0
    %618 = vmatprep.subr.bf16.mxu0 0
    %619 = vmatpush1.bf16.msra.mxu0 0
    %620 = vmatprep.subr.bf16.mxu0 0
    %621 = vmatpush1.bf16.msra.mxu0 0
    %622 = vmatprep.subr.bf16.mxu0 0
    %623 = vmatpush1.bf16.msra.mxu0 0
    %624 = vmatprep.subr.bf16.mxu0 0
    %625 = vmatpush1.bf16.msra.mxu0 0
    %626 = vmatprep.subr.bf16.mxu0 0
    %627 = vmatpush1.bf16.msra.mxu0 0
    %628 = vmatprep.subr.bf16.mxu0 0
    %629 = vmatpush1.bf16.msra.mxu0 0
    %630 = vmatprep.subr.bf16.mxu0 0
    %631 = vmatpush1.bf16.msra.mxu0 0
    %632 = vmatprep.subr.bf16.mxu0 0
    %633 = vmatpush1.bf16.msra.mxu0 0
    %634 = vmatprep.subr.bf16.mxu0 0
    %635 = vmatpush1.bf16.msra.mxu0 0
    %636 = vmatprep.mubr.bf16.mxu0 0
    %637 = vmatmul.mubr.bf16.gmra.mrb[0].mxu0 %v602
    %v638 = vpop.f32.mrb[0].mxu0
    %v639 = vadd.f32 %v588, %v638
    %v640 = vpop.f32.mrb[0].mxu0
    %v641 = vpop.f32.mrb[0].mxu0
    %v642 = vpop.f32.mrb[0].mxu0
    %643 = vdwg.mxu0
    %v644 = vadd.f32 %v491, %v639
    loop: start=0, step=1, limit=2
    $region34: #{perceiver_forward.3} parent=1 // loop_pre_header
      _
    $region35: #{perceiver_forward.3} parent=1 // loop_header
      %s646 = sphi 0, %s650
      %p647 = scmp.ge.s32.totalorder %s646, 2
      %v651 = vphi %v644, %v2442
    $region36: #{perceiver_forward.3} parent=1 // loop_header_branch
      %649 = sbr.rel (%p647) target = $region40
    $region37: #{perceiver_forward.3} parent=1 // loop_body
      %v652 = vld [vmem:[%s4 + $0x10] sm:$0xff]
      %v653 = vld [vmem:[%s4 + $0x18] sm:$0xff]
      %v654 = vld [vmem:[%s3 + $0x70] sm:$0xf]
      %v655 = vld [vmem:[%s3 + $0x74] sm:$0xf]
      %v656 = vld [vmem:[%s3 + $0x78] sm:$0xf]
      %v657 = vld [vmem:[%s3 + $0x7c] sm:$0xf]
      %v658 = vld [vmem:[%s3 + $0x80] sm:$0xf]
      %v659 = vld [vmem:[%s3 + $0x84] sm:$0xf]
      %v660 = vld [vmem:[%s3 + $0x88] sm:$0xf]
      %v661 = vld [vmem:[%s3 + $0x8c] sm:$0xf]
      %v662 = vld [vmem:[%s3 + $0x98] sm:$0xf]
      %v663 = vld [vmem:[%s3 + $0x9c] sm:$0xf]
      %v664 = vld [vmem:[%s3 + $0xa0] sm:$0xf]
      %v665 = vld [vmem:[%s3 + $0xa4] sm:$0xf]
      %v666 = vld [vmem:[%s3 + $0xb0] sm:$0xf]
      %v667 = vld [vmem:[%s3 + $0xb4] sm:$0xf]
      %v668 = vld [vmem:[%s3 + $0xb8] sm:$0xf]
      %v669 = vld [vmem:[%s3 + $0xbc] sm:$0xf]
      %v670 = vld [vmem:[%s3 + $0xc0] sm:$0xf]
      %v671 = vld [vmem:[%s3 + $0xc4] sm:$0xf]
      %v672 = vld [vmem:[%s3 + $0xc8] sm:$0xf]
      %v673 = vld [vmem:[%s3 + $0xcc] sm:$0xf]
      %v674 = vld [vmem:[%s3 + $0xd0] sm:$0xf]
      %v675 = vld [vmem:[%s3 + $0xd4] sm:$0xf]
      %v676 = vld [vmem:[%s3 + $0xd8] sm:$0xf]
      %v677 = vld [vmem:[%s3 + $0xdc] sm:$0xf]
      %v678 = vsel %vm69, %v651, 0.0
      %679 = vadd.xlane.f32.xlu0 %v678
      %v680 = vpop.xlane.xlu0 %679
      %v681 = vmul.f32 %v680, %v73
      %v682 = vsub.f32 %v651, %v681
      %v683 = vmul.f32 %v682, %v682
      %v684 = vsel %vm69, %v683, 0.0
      %685 = vadd.xlane.f32.xlu0 %v684
      %v686 = vpop.xlane.xlu0 %685
      %v687 = vmul.f32 %v686, %v73
      %v688 = vadd.f32 %v687, 1e-05
      %v689 = vrsqrt.pop %v688
      %v690 = vmul.f32 %v682, %v689
      %v691 = vlaneseq
      %v692 = vshrl.u32 %v691, 7
      %v693 = vsub.s32 0, %v692
      %v694 = vrot.slane %v652, %v693
      %v695 = vmul.f32 %v690, %v694
      %v696 = vlaneseq
      %v697 = vshrl.u32 %v696, 7
      %v698 = vsub.s32 1, %v697
      %v699 = vrot.slane %v652, %v698
      %v700 = vadd.f32 %v695, %v699
      %v701 = vpack.c.bf16 %v700, %v700
      %v702 = vlaneseq
      %v703 = vshrl.u32 %v702, 7
      %v704 = vsub.s32 4, %v703
      %v705 = vrot.slane %v652, %v704
      %v710 = vunpack.c.l.b16 %v654
      %v711 = vunpack.c.l.b16 %v655
      %v712 = vunpack.c.l.b16 %v656
      %v713 = vunpack.c.l.b16 %v657
      %v714 = vpack.c.b16 %v711, %v710
      %v715 = vpack.c.b16 %v713, %v712
      %v719 = vsel %vm69, %v701, 0
      %721 = vmatprep.subr.bf16.mxu0 0
      %722 = vmatpush1.bf16.msra.mxu0 %v714
      %723 = vmatprep.subr.bf16.mxu0 0
      %724 = vmatpush1.bf16.msra.mxu0 %v715
      %725 = vmatprep.subr.bf16.mxu0 0
      %726 = vmatpush1.bf16.msra.mxu0 0
      %727 = vmatprep.subr.bf16.mxu0 0
      %728 = vmatpush1.bf16.msra.mxu0 0
      %729 = vmatprep.subr.bf16.mxu0 0
      %730 = vmatpush1.bf16.msra.mxu0 0
      %731 = vmatprep.subr.bf16.mxu0 0
      %732 = vmatpush1.bf16.msra.mxu0 0
      %733 = vmatprep.subr.bf16.mxu0 0
      %734 = vmatpush1.bf16.msra.mxu0 0
      %735 = vmatprep.subr.bf16.mxu0 0
      %736 = vmatpush1.bf16.msra.mxu0 0
      %737 = vmatprep.subr.bf16.mxu0 0
      %738 = vmatpush1.bf16.msra.mxu0 0
      %739 = vmatprep.subr.bf16.mxu0 0
      %740 = vmatpush1.bf16.msra.mxu0 0
      %741 = vmatprep.subr.bf16.mxu0 0
      %742 = vmatpush1.bf16.msra.mxu0 0
      %743 = vmatprep.subr.bf16.mxu0 0
      %744 = vmatpush1.bf16.msra.mxu0 0
      %745 = vmatprep.subr.bf16.mxu0 0
      %746 = vmatpush1.bf16.msra.mxu0 0
      %747 = vmatprep.subr.bf16.mxu0 0
      %748 = vmatpush1.bf16.msra.mxu0 0
      %749 = vmatprep.subr.bf16.mxu0 0
      %750 = vmatpush1.bf16.msra.mxu0 0
      %751 = vmatprep.subr.bf16.mxu0 0
      %752 = vmatpush1.bf16.msra.mxu0 0
      %753 = vmatprep.mubr.bf16.mxu0 0
      %754 = vmatmul.mubr.bf16.gmra.mrb[0].mxu0 %v719
      %v755 = vpop.f32.mrb[0].mxu0
      %v756 = vadd.f32 %v705, %v755
      %v757 = vpop.f32.mrb[0].mxu0
      %v758 = vpop.f32.mrb[0].mxu0
      %v759 = vpop.f32.mrb[0].mxu0
      %760 = vdwg.mxu0
      %v761 = vlaneseq
      %v762 = vshrl.u32 %v761, 7
      %v763 = vsub.s32 5, %v762
      %v764 = vrot.slane %v652, %v763
      %v769 = vunpack.c.l.b16 %v658
      %v770 = vunpack.c.l.b16 %v659
      %v771 = vunpack.c.l.b16 %v660
      %v772 = vunpack.c.l.b16 %v661
      %v773 = vpack.c.b16 %v770, %v769
      %v774 = vpack.c.b16 %v772, %v771
      %777 = vmatprep.subr.bf16.mxu0 0
      %778 = vmatpush1.bf16.msra.mxu0 %v773
      %779 = vmatprep.subr.bf16.mxu0 0
      %780 = vmatpush1.bf16.msra.mxu0 %v774
      %781 = vmatprep.subr.bf16.mxu0 0
      %782 = vmatpush1.bf16.msra.mxu0 0
      %783 = vmatprep.subr.bf16.mxu0 0
      %784 = vmatpush1.bf16.msra.mxu0 0
      %785 = vmatprep.subr.bf16.mxu0 0
      %786 = vmatpush1.bf16.msra.mxu0 0
      %787 = vmatprep.subr.bf16.mxu0 0
      %788 = vmatpush1.bf16.msra.mxu0 0
      %789 = vmatprep.subr.bf16.mxu0 0
      %790 = vmatpush1.bf16.msra.mxu0 0
      %791 = vmatprep.subr.bf16.mxu0 0
      %792 = vmatpush1.bf16.msra.mxu0 0
      %793 = vmatprep.subr.bf16.mxu0 0
      %794 = vmatpush1.bf16.msra.mxu0 0
      %795 = vmatprep.subr.bf16.mxu0 0
      %796 = vmatpush1.bf16.msra.mxu0 0
      %797 = vmatprep.subr.bf16.mxu0 0
      %798 = vmatpush1.bf16.msra.mxu0 0
      %799 = vmatprep.subr.bf16.mxu0 0
      %800 = vmatpush1.bf16.msra.mxu0 0
      %801 = vmatprep.subr.bf16.mxu0 0
      %802 = vmatpush1.bf16.msra.mxu0 0
      %803 = vmatprep.subr.bf16.mxu0 0
      %804 = vmatpush1.bf16.msra.mxu0 0
      %805 = vmatprep.subr.bf16.mxu0 0
      %806 = vmatpush1.bf16.msra.mxu0 0
      %807 = vmatprep.subr.bf16.mxu0 0
      %808 = vmatpush1.bf16.msra.mxu0 0
      %809 = vmatprep.mubr.bf16.mxu0 0
      %810 = vmatmul.mubr.bf16.gmra.mrb[0].mxu0 %v719
      %v811 = vpop.f32.mrb[0].mxu0
      %v812 = vadd.f32 %v764, %v811
      %v813 = vpop.f32.mrb[0].mxu0
      %v814 = vpop.f32.mrb[0].mxu0
      %v815 = vpop.f32.mrb[0].mxu0
      %816 = vdwg.mxu0
      %v817 = vlaneseq
      %v818 = vshrl.u32 %v817, 7
      %v819 = vsub.s32 6, %v818
      %v820 = vrot.slane %v652, %v819
      %v825 = vunpack.c.l.b16 %v662
      %v826 = vunpack.c.l.b16 %v663
      %v827 = vunpack.c.l.b16 %v664
      %v828 = vunpack.c.l.b16 %v665
      %v829 = vpack.c.b16 %v826, %v825
      %v830 = vpack.c.b16 %v828, %v827
      %833 = vmatprep.subr.bf16.mxu0 0
      %834 = vmatpush1.bf16.msra.mxu0 %v829
      %835 = vmatprep.subr.bf16.mxu0 0
      %836 = vmatpush1.bf16.msra.mxu0 %v830
      %837 = vmatprep.subr.bf16.mxu0 0
      %838 = vmatpush1.bf16.msra.mxu0 0
      %839 = vmatprep.subr.bf16.mxu0 0
      %840 = vmatpush1.bf16.msra.mxu0 0
      %841 = vmatprep.subr.bf16.mxu0 0
      %842 = vmatpush1.bf16.msra.mxu0 0
      %843 = vmatprep.subr.bf16.mxu0 0
      %844 = vmatpush1.bf16.msra.mxu0 0
      %845 = vmatprep.subr.bf16.mxu0 0
      %846 = vmatpush1.bf16.msra.mxu0 0
      %847 = vmatprep.subr.bf16.mxu0 0
      %848 = vmatpush1.bf16.msra.mxu0 0
      %849 = vmatprep.subr.bf16.mxu0 0
      %850 = vmatpush1.bf16.msra.mxu0 0
      %851 = vmatprep.subr.bf16.mxu0 0
      %852 = vmatpush1.bf16.msra.mxu0 0
      %853 = vmatprep.subr.bf16.mxu0 0
      %854 = vmatpush1.bf16.msra.mxu0 0
      %855 = vmatprep.subr.bf16.mxu0 0
      %856 = vmatpush1.bf16.msra.mxu0 0
      %857 = vmatprep.subr.bf16.mxu0 0
      %858 = vmatpush1.bf16.msra.mxu0 0
      %859 = vmatprep.subr.bf16.mxu0 0
      %860 = vmatpush1.bf16.msra.mxu0 0
      %861 = vmatprep.subr.bf16.mxu0 0
      %862 = vmatpush1.bf16.msra.mxu0 0
      %863 = vmatprep.subr.bf16.mxu0 0
      %864 = vmatpush1.bf16.msra.mxu0 0
      %865 = vmatprep.mubr.bf16.mxu0 0
      %866 = vmatmul.mubr.bf16.gmra.mrb[0].mxu0 %v719
      %v867 = vpop.f32.mrb[0].mxu0
      %v868 = vadd.f32 %v820, %v867
      %v869 = vpop.f32.mrb[0].mxu0
      %v870 = vpop.f32.mrb[0].mxu0
      %v871 = vpop.f32.mrb[0].mxu0
      %872 = vdwg.mxu0
      %v873 = vpack.c.bf16 %v756, %v756
      %v874 = vpack.c.bf16 %v812, %v812
      %vm875 = vcmask 64512
      %v877 = vsel %vm875, %v873, 0
      %v880 = vsel %vm875, %v874, 0
      %882 = vmatprep.subr.bf16.mxu0 0
      %883 = vmatpush1.bf16.xpose.msra.mxu0 %v880
      %884 = vmatprep.subr.bf16.mxu0 0
      %885 = vmatpush1.bf16.xpose.msra.mxu0 0
      %886 = vmatprep.subr.bf16.mxu0 0
      %887 = vmatpush1.bf16.xpose.msra.mxu0 0
      %888 = vmatprep.subr.bf16.mxu0 0
      %889 = vmatpush1.bf16.xpose.msra.mxu0 0
      %890 = vmatprep.subr.bf16.mxu0 0
      %891 = vmatpush1.bf16.xpose.msra.mxu0 0
      %892 = vmatprep.subr.bf16.mxu0 0
      %893 = vmatpush1.bf16.xpose.msra.mxu0 0
      %894 = vmatprep.subr.bf16.mxu0 0
      %895 = vmatpush1.bf16.xpose.msra.mxu0 0
      %896 = vmatprep.subr.bf16.mxu0 0
      %897 = vmatpush1.bf16.xpose.msra.mxu0 0
      %898 = vmatprep.subr.bf16.mxu0 0
      %899 = vmatpush1.bf16.xpose.msra.mxu0 0
      %900 = vmatprep.subr.bf16.mxu0 0
      %901 = vmatpush1.bf16.xpose.msra.mxu0 0
      %902 = vmatprep.subr.bf16.mxu0 0
      %903 = vmatpush1.bf16.xpose.msra.mxu0 0
      %904 = vmatprep.subr.bf16.mxu0 0
      %905 = vmatpush1.bf16.xpose.msra.mxu0 0
      %906 = vmatprep.subr.bf16.mxu0 0
      %907 = vmatpush1.bf16.xpose.msra.mxu0 0
      %908 = vmatprep.subr.bf16.mxu0 0
      %909 = vmatpush1.bf16.xpose.msra.mxu0 0
      %910 = vmatprep.subr.bf16.mxu0 0
      %911 = vmatpush1.bf16.xpose.msra.mxu0 0
      %912 = vmatprep.subr.bf16.mxu0 0
      %913 = vmatpush1.bf16.xpose.msra.mxu0 0
      %914 = vmatprep.mubr.bf16.mxu0 0
      %915 = vmatmul.mubr.bf16.gmra.mrb[0].mxu0 %v877
      %v916 = vpop.f32.mrb[0].mxu0
      %v917 = vadd.f32 0.0, %v916
      %v918 = vpop.f32.mrb[0].mxu0
      %v919 = vpop.f32.mrb[0].mxu0
      %v920 = vpop.f32.mrb[0].mxu0
      %921 = vdwg.mxu0
      %v922 = vmul.f32 %v917, 0.35355338
      %v923 = vsel %vm875, %v922, -inf
      %924 = vmax.xlane.f32.xlu0 %v923
      %v925 = vpop.xlane.xlu0 %924
      %v926 = vsub.f32 %v922, %v925
      %v927 = vmul.f32 %v926, 1.442695
      %v928 = vpow.pop %v927
      %v929 = vsel %vm875, %v928, 0.0
      %930 = vadd.xlane.f32.xlu0 %v929
      %v931 = vpop.xlane.xlu0 %930
      %v932 = vrcp.pop %v931
      %v933 = vmul.f32 %v928, %v932
      %v934 = vpack.c.bf16 %v933, %v933
      %v935 = vpack.c.bf16 %v868, %v868
      %v937 = vsel %vm875, %v934, 0
      %vm939 = vcmask 1043456
      %v941 = vsel %vm939, %v935, 0
      %943 = vmatprep.subr.bf16.mxu0 0
      %944 = vmatpush1.bf16.msra.mxu0 %v941
      %945 = vmatprep.subr.bf16.mxu0 0
      %946 = vmatpush1.bf16.msra.mxu0 0
      %947 = vmatprep.subr.bf16.mxu0 0
      %948 = vmatpush1.bf16.msra.mxu0 0
      %949 = vmatprep.subr.bf16.mxu0 0
      %950 = vmatpush1.bf16.msra.mxu0 0
      %951 = vmatprep.subr.bf16.mxu0 0
      %952 = vmatpush1.bf16.msra.mxu0 0
      %953 = vmatprep.subr.bf16.mxu0 0
      %954 = vmatpush1.bf16.msra.mxu0 0
      %955 = vmatprep.subr.bf16.mxu0 0
      %956 = vmatpush1.bf16.msra.mxu0 0
      %957 = vmatprep.subr.bf16.mxu0 0
      %958 = vmatpush1.bf16.msra.mxu0 0
      %959 = vmatprep.subr.bf16.mxu0 0
      %960 = vmatpush1.bf16.msra.mxu0 0
      %961 = vmatprep.subr.bf16.mxu0 0
      %962 = vmatpush1.bf16.msra.mxu0 0
      %963 = vmatprep.subr.bf16.mxu0 0
      %964 = vmatpush1.bf16.msra.mxu0 0
      %965 = vmatprep.subr.bf16.mxu0 0
      %966 = vmatpush1.bf16.msra.mxu0 0
      %967 = vmatprep.subr.bf16.mxu0 0
      %968 = vmatpush1.bf16.msra.mxu0 0
      %969 = vmatprep.subr.bf16.mxu0 0
      %970 = vmatpush1.bf16.msra.mxu0 0
      %971 = vmatprep.subr.bf16.mxu0 0
      %972 = vmatpush1.bf16.msra.mxu0 0
      %973 = vmatprep.subr.bf16.mxu0 0
      %974 = vmatpush1.bf16.msra.mxu0 0
      %975 = vmatprep.mubr.bf16.mxu0 0
      %976 = vmatmul.mubr.bf16.gmra.mrb[0].mxu0 %v937
      %v977 = vpop.f32.mrb[0].mxu0
      %v978 = vadd.f32 0.0, %v977
      %v979 = vpop.f32.mrb[0].mxu0
      %v980 = vpop.f32.mrb[0].mxu0
      %v981 = vpop.f32.mrb[0].mxu0
      %982 = vdwg.mxu0
      %984 = vrot.lane.b32.xlu0 %v873, 120
      %v985 = vpop.permute.xlu0 %984
      %987 = vrot.lane.b32.xlu0 %v874, 120
      %v988 = vpop.permute.xlu0 %987
      %v990 = vsel %vm875, %v985, 0
      %v993 = vsel %vm875, %v988, 0
      %995 = vmatprep.subr.bf16.mxu0 0
      %996 = vmatpush1.bf16.xpose.msra.mxu0 %v993
      %997 = vmatprep.subr.bf16.mxu0 0
      %998 = vmatpush1.bf16.xpose.msra.mxu0 0
      %999 = vmatprep.subr.bf16.mxu0 0
      %1000 = vmatpush1.bf16.xpose.msra.mxu0 0
      %1001 = vmatprep.subr.bf16.mxu0 0
      %1002 = vmatpush1.bf16.xpose.msra.mxu0 0
      %1003 = vmatprep.subr.bf16.mxu0 0
      %1004 = vmatpush1.bf16.xpose.msra.mxu0 0
      %1005 = vmatprep.subr.bf16.mxu0 0
      %1006 = vmatpush1.bf16.xpose.msra.mxu0 0
      %1007 = vmatprep.subr.bf16.mxu0 0
      %1008 = vmatpush1.bf16.xpose.msra.mxu0 0
      %1009 = vmatprep.subr.bf16.mxu0 0
      %1010 = vmatpush1.bf16.xpose.msra.mxu0 0
      %1011 = vmatprep.subr.bf16.mxu0 0
      %1012 = vmatpush1.bf16.xpose.msra.mxu0 0
      %1013 = vmatprep.subr.bf16.mxu0 0
      %1014 = vmatpush1.bf16.xpose.msra.mxu0 0
      %1015 = vmatprep.subr.bf16.mxu0 0
      %1016 = vmatpush1.bf16.xpose.msra.mxu0 0
      %1017 = vmatprep.subr.bf16.mxu0 0
      %1018 = vmatpush1.bf16.xpose.msra.mxu0 0
      %1019 = vmatprep.subr.bf16.mxu0 0
      %1020 = vmatpush1.bf16.xpose.msra.mxu0 0
      %1021 = vmatprep.subr.bf16.mxu0 0
      %1022 = vmatpush1.bf16.xpose.msra.mxu0 0
      %1023 = vmatprep.subr.bf16.mxu0 0
      %1024 = vmatpush1.bf16.xpose.msra.mxu0 0
      %1025 = vmatprep.subr.bf16.mxu0 0
      %1026 = vmatpush1.bf16.xpose.msra.mxu0 0
      %1027 = vmatprep.mubr.bf16.mxu0 0
      %1028 = vmatmul.mubr.bf16.gmra.mrb[0].mxu0 %v990
      %v1029 = vpop.f32.mrb[0].mxu0
      %v1030 = vadd.f32 0.0, %v1029
      %v1031 = vpop.f32.mrb[0].mxu0
      %v1032 = vpop.f32.mrb[0].mxu0
      %v1033 = vpop.f32.mrb[0].mxu0
      %1034 = vdwg.mxu0
      %v1035 = vmul.f32 %v1030, 0.35355338
      %v1036 = vsel %vm875, %v1035, -inf
      %1037 = vmax.xlane.f32.xlu0 %v1036
      %v1038 = vpop.xlane.xlu0 %1037
      %v1039 = vsub.f32 %v1035, %v1038
      %v1040 = vmul.f32 %v1039, 1.442695
      %v1041 = vpow.pop %v1040
      %v1042 = vsel %vm875, %v1041, 0.0
      %1043 = vadd.xlane.f32.xlu0 %v1042
      %v1044 = vpop.xlane.xlu0 %1043
      %v1045 = vrcp.pop %v1044
      %v1046 = vmul.f32 %v1041, %v1045
      %v1047 = vpack.c.bf16 %v1046, %v1046
      %1049 = vrot.lane.b32.xlu0 %v935, 120
      %v1050 = vpop.permute.xlu0 %1049
      %v1052 = vsel %vm875, %v1047, 0
      %v1055 = vsel %vm939, %v1050, 0
      %1057 = vmatprep.subr.bf16.mxu0 0
      %1058 = vmatpush1.bf16.msra.mxu0 %v1055
      %1059 = vmatprep.subr.bf16.mxu0 0
      %1060 = vmatpush1.bf16.msra.mxu0 0
      %1061 = vmatprep.subr.bf16.mxu0 0
      %1062 = vmatpush1.bf16.msra.mxu0 0
      %1063 = vmatprep.subr.bf16.mxu0 0
      %1064 = vmatpush1.bf16.msra.mxu0 0
      %1065 = vmatprep.subr.bf16.mxu0 0
      %1066 = vmatpush1.bf16.msra.mxu0 0
      %1067 = vmatprep.subr.bf16.mxu0 0
      %1068 = vmatpush1.bf16.msra.mxu0 0
      %1069 = vmatprep.subr.bf16.mxu0 0
      %1070 = vmatpush1.bf16.msra.mxu0 0
      %1071 = vmatprep.subr.bf16.mxu0 0
      %1072 = vmatpush1.bf16.msra.mxu0 0
      %1073 = vmatprep.subr.bf16.mxu0 0
      %1074 = vmatpush1.bf16.msra.mxu0 0
      %1075 = vmatprep.subr.bf16.mxu0 0
      %1076 = vmatpush1.bf16.msra.mxu0 0
      %1077 = vmatprep.subr.bf16.mxu0 0
      %1078 = vmatpush1.bf16.msra.mxu0 0
      %1079 = vmatprep.subr.bf16.mxu0 0
      %1080 = vmatpush1.bf16.msra.mxu0 0
      %1081 = vmatprep.subr.bf16.mxu0 0
      %1082 = vmatpush1.bf16.msra.mxu0 0
      %1083 = vmatprep.subr.bf16.mxu0 0
      %1084 = vmatpush1.bf16.msra.mxu0 0
      %1085 = vmatprep.subr.bf16.mxu0 0
      %1086 = vmatpush1.bf16.msra.mxu0 0
      %1087 = vmatprep.subr.bf16.mxu0 0
      %1088 = vmatpush1.bf16.msra.mxu0 0
      %1089 = vmatprep.mubr.bf16.mxu0 0
      %1090 = vmatmul.mubr.bf16.gmra.mrb[0].mxu0 %v1052
      %v1091 = vpop.f32.mrb[0].mxu0
      %v1092 = vadd.f32 0.0, %v1091
      %v1093 = vpop.f32.mrb[0].mxu0
      %v1094 = vpop.f32.mrb[0].mxu0
      %v1095 = vpop.f32.mrb[0].mxu0
      %1096 = vdwg.mxu0
      %1097 = vrot.lane.b32.xlu0 %v873, 112
      %v1098 = vpop.permute.xlu0 %1097
      %1099 = vrot.lane.b32.xlu0 %v874, 112
      %v1100 = vpop.permute.xlu0 %1099
      %v1102 = vsel %vm875, %v1098, 0
      %v1105 = vsel %vm875, %v1100, 0
      %1107 = vmatprep.subr.bf16.mxu0 0
      %1108 = vmatpush1.bf16.xpose.msra.mxu0 %v1105
      %1109 = vmatprep.subr.bf16.mxu0 0
      %1110 = vmatpush1.bf16.xpose.msra.mxu0 0
      %1111 = vmatprep.subr.bf16.mxu0 0
      %1112 = vmatpush1.bf16.xpose.msra.mxu0 0
      %1113 = vmatprep.subr.bf16.mxu0 0
      %1114 = vmatpush1.bf16.xpose.msra.mxu0 0
      %1115 = vmatprep.subr.bf16.mxu0 0
      %1116 = vmatpush1.bf16.xpose.msra.mxu0 0
      %1117 = vmatprep.subr.bf16.mxu0 0
      %1118 = vmatpush1.bf16.xpose.msra.mxu0 0
      %1119 = vmatprep.subr.bf16.mxu0 0
      %1120 = vmatpush1.bf16.xpose.msra.mxu0 0
      %1121 = vmatprep.subr.bf16.mxu0 0
      %1122 = vmatpush1.bf16.xpose.msra.mxu0 0
      %1123 = vmatprep.subr.bf16.mxu0 0
      %1124 = vmatpush1.bf16.xpose.msra.mxu0 0
      %1125 = vmatprep.subr.bf16.mxu0 0
      %1126 = vmatpush1.bf16.xpose.msra.mxu0 0
      %1127 = vmatprep.subr.bf16.mxu0 0
      %1128 = vmatpush1.bf16.xpose.msra.mxu0 0
      %1129 = vmatprep.subr.bf16.mxu0 0
      %1130 = vmatpush1.bf16.xpose.msra.mxu0 0
      %1131 = vmatprep.subr.bf16.mxu0 0
      %1132 = vmatpush1.bf16.xpose.msra.mxu0 0
      %1133 = vmatprep.subr.bf16.mxu0 0
      %1134 = vmatpush1.bf16.xpose.msra.mxu0 0
      %1135 = vmatprep.subr.bf16.mxu0 0
      %1136 = vmatpush1.bf16.xpose.msra.mxu0 0
      %1137 = vmatprep.subr.bf16.mxu0 0
      %1138 = vmatpush1.bf16.xpose.msra.mxu0 0
      %1139 = vmatprep.mubr.bf16.mxu0 0
      %1140 = vmatmul.mubr.bf16.gmra.mrb[0].mxu0 %v1102
      %v1141 = vpop.f32.mrb[0].mxu0
      %v1142 = vadd.f32 0.0, %v1141
      %v1143 = vpop.f32.mrb[0].mxu0
      %v1144 = vpop.f32.mrb[0].mxu0
      %v1145 = vpop.f32.mrb[0].mxu0
      %1146 = vdwg.mxu0
      %v1147 = vmul.f32 %v1142, 0.35355338
      %v1148 = vsel %vm875, %v1147, -inf
      %1149 = vmax.xlane.f32.xlu0 %v1148
      %v1150 = vpop.xlane.xlu0 %1149
      %v1151 = vsub.f32 %v1147, %v1150
      %v1152 = vmul.f32 %v1151, 1.442695
      %v1153 = vpow.pop %v1152
      %v1154 = vsel %vm875, %v1153, 0.0
      %1155 = vadd.xlane.f32.xlu0 %v1154
      %v1156 = vpop.xlane.xlu0 %1155
      %v1157 = vrcp.pop %v1156
      %v1158 = vmul.f32 %v1153, %v1157
      %v1159 = vpack.c.bf16 %v1158, %v1158
      %1160 = vrot.lane.b32.xlu0 %v935, 112
      %v1161 = vpop.permute.xlu0 %1160
      %v1163 = vsel %vm875, %v1159, 0
      %v1166 = vsel %vm939, %v1161, 0
      %1168 = vmatprep.subr.bf16.mxu0 0
      %1169 = vmatpush1.bf16.msra.mxu0 %v1166
      %1170 = vmatprep.subr.bf16.mxu0 0
      %1171 = vmatpush1.bf16.msra.mxu0 0
      %1172 = vmatprep.subr.bf16.mxu0 0
      %1173 = vmatpush1.bf16.msra.mxu0 0
      %1174 = vmatprep.subr.bf16.mxu0 0
      %1175 = vmatpush1.bf16.msra.mxu0 0
      %1176 = vmatprep.subr.bf16.mxu0 0
      %1177 = vmatpush1.bf16.msra.mxu0 0
      %1178 = vmatprep.subr.bf16.mxu0 0
      %1179 = vmatpush1.bf16.msra.mxu0 0
      %1180 = vmatprep.subr.bf16.mxu0 0
      %1181 = vmatpush1.bf16.msra.mxu0 0
      %1182 = vmatprep.subr.bf16.mxu0 0
      %1183 = vmatpush1.bf16.msra.mxu0 0
      %1184 = vmatprep.subr.bf16.mxu0 0
      %1185 = vmatpush1.bf16.msra.mxu0 0
      %1186 = vmatprep.subr.bf16.mxu0 0
      %1187 = vmatpush1.bf16.msra.mxu0 0
      %1188 = vmatprep.subr.bf16.mxu0 0
      %1189 = vmatpush1.bf16.msra.mxu0 0
      %1190 = vmatprep.subr.bf16.mxu0 0
      %1191 = vmatpush1.bf16.msra.mxu0 0
      %1192 = vmatprep.subr.bf16.mxu0 0
      %1193 = vmatpush1.bf16.msra.mxu0 0
      %1194 = vmatprep.subr.bf16.mxu0 0
      %1195 = vmatpush1.bf16.msra.mxu0 0
      %1196 = vmatprep.subr.bf16.mxu0 0
      %1197 = vmatpush1.bf16.msra.mxu0 0
      %1198 = vmatprep.subr.bf16.mxu0 0
      %1199 = vmatpush1.bf16.msra.mxu0 0
      %1200 = vmatprep.mubr.bf16.mxu0 0
      %1201 = vmatmul.mubr.bf16.gmra.mrb[0].mxu0 %v1163
      %v1202 = vpop.f32.mrb[0].mxu0
      %v1203 = vadd.f32 0.0, %v1202
      %v1204 = vpop.f32.mrb[0].mxu0
      %v1205 = vpop.f32.mrb[0].mxu0
      %v1206 = vpop.f32.mrb[0].mxu0
      %1207 = vdwg.mxu0
      %1208 = vrot.lane.b32.xlu0 %v873, 104
      %v1209 = vpop.permute.xlu0 %1208
      %1210 = vrot.lane.b32.xlu0 %v874, 104
      %v1211 = vpop.permute.xlu0 %1210
      %v1213 = vsel %vm875, %v1209, 0
      %v1216 = vsel %vm875, %v1211, 0
      %1218 = vmatprep.subr.bf16.mxu0 0
      %1219 = vmatpush1.bf16.xpose.msra.mxu0 %v1216
      %1220 = vmatprep.subr.bf16.mxu0 0
      %1221 = vmatpush1.bf16.xpose.msra.mxu0 0
      %1222 = vmatprep.subr.bf16.mxu0 0
      %1223 = vmatpush1.bf16.xpose.msra.mxu0 0
      %1224 = vmatprep.subr.bf16.mxu0 0
      %1225 = vmatpush1.bf16.xpose.msra.mxu0 0
      %1226 = vmatprep.subr.bf16.mxu0 0
      %1227 = vmatpush1.bf16.xpose.msra.mxu0 0
      %1228 = vmatprep.subr.bf16.mxu0 0
      %1229 = vmatpush1.bf16.xpose.msra.mxu0 0
      %1230 = vmatprep.subr.bf16.mxu0 0
      %1231 = vmatpush1.bf16.xpose.msra.mxu0 0
      %1232 = vmatprep.subr.bf16.mxu0 0
      %1233 = vmatpush1.bf16.xpose.msra.mxu0 0
      %1234 = vmatprep.subr.bf16.mxu0 0
      %1235 = vmatpush1.bf16.xpose.msra.mxu0 0
      %1236 = vmatprep.subr.bf16.mxu0 0
      %1237 = vmatpush1.bf16.xpose.msra.mxu0 0
      %1238 = vmatprep.subr.bf16.mxu0 0
      %1239 = vmatpush1.bf16.xpose.msra.mxu0 0
      %1240 = vmatprep.subr.bf16.mxu0 0
      %1241 = vmatpush1.bf16.xpose.msra.mxu0 0
      %1242 = vmatprep.subr.bf16.mxu0 0
      %1243 = vmatpush1.bf16.xpose.msra.mxu0 0
      %1244 = vmatprep.subr.bf16.mxu0 0
      %1245 = vmatpush1.bf16.xpose.msra.mxu0 0
      %1246 = vmatprep.subr.bf16.mxu0 0
      %1247 = vmatpush1.bf16.xpose.msra.mxu0 0
      %1248 = vmatprep.subr.bf16.mxu0 0
      %1249 = vmatpush1.bf16.xpose.msra.mxu0 0
      %1250 = vmatprep.mubr.bf16.mxu0 0
      %1251 = vmatmul.mubr.bf16.gmra.mrb[0].mxu0 %v1213
      %v1252 = vpop.f32.mrb[0].mxu0
      %v1253 = vadd.f32 0.0, %v1252
      %v1254 = vpop.f32.mrb[0].mxu0
      %v1255 = vpop.f32.mrb[0].mxu0
      %v1256 = vpop.f32.mrb[0].mxu0
      %1257 = vdwg.mxu0
      %v1258 = vmul.f32 %v1253, 0.35355338
      %v1259 = vsel %vm875, %v1258, -inf
      %1260 = vmax.xlane.f32.xlu0 %v1259
      %v1261 = vpop.xlane.xlu0 %1260
      %v1262 = vsub.f32 %v1258, %v1261
      %v1263 = vmul.f32 %v1262, 1.442695
      %v1264 = vpow.pop %v1263
      %v1265 = vsel %vm875, %v1264, 0.0
      %1266 = vadd.xlane.f32.xlu0 %v1265
      %v1267 = vpop.xlane.xlu0 %1266
      %v1268 = vrcp.pop %v1267
      %v1269 = vmul.f32 %v1264, %v1268
      %v1270 = vpack.c.bf16 %v1269, %v1269
      %1271 = vrot.lane.b32.xlu0 %v935, 104
      %v1272 = vpop.permute.xlu0 %1271
      %v1274 = vsel %vm875, %v1270, 0
      %v1277 = vsel %vm939, %v1272, 0
      %1279 = vmatprep.subr.bf16.mxu0 0
      %1280 = vmatpush1.bf16.msra.mxu0 %v1277
      %1281 = vmatprep.subr.bf16.mxu0 0
      %1282 = vmatpush1.bf16.msra.mxu0 0
      %1283 = vmatprep.subr.bf16.mxu0 0
      %1284 = vmatpush1.bf16.msra.mxu0 0
      %1285 = vmatprep.subr.bf16.mxu0 0
      %1286 = vmatpush1.bf16.msra.mxu0 0
      %1287 = vmatprep.subr.bf16.mxu0 0
      %1288 = vmatpush1.bf16.msra.mxu0 0
      %1289 = vmatprep.subr.bf16.mxu0 0
      %1290 = vmatpush1.bf16.msra.mxu0 0
      %1291 = vmatprep.subr.bf16.mxu0 0
      %1292 = vmatpush1.bf16.msra.mxu0 0
      %1293 = vmatprep.subr.bf16.mxu0 0
      %1294 = vmatpush1.bf16.msra.mxu0 0
      %1295 = vmatprep.subr.bf16.mxu0 0
      %1296 = vmatpush1.bf16.msra.mxu0 0
      %1297 = vmatprep.subr.bf16.mxu0 0
      %1298 = vmatpush1.bf16.msra.mxu0 0
      %1299 = vmatprep.subr.bf16.mxu0 0
      %1300 = vmatpush1.bf16.msra.mxu0 0
      %1301 = vmatprep.subr.bf16.mxu0 0
      %1302 = vmatpush1.bf16.msra.mxu0 0
      %1303 = vmatprep.subr.bf16.mxu0 0
      %1304 = vmatpush1.bf16.msra.mxu0 0
      %1305 = vmatprep.subr.bf16.mxu0 0
      %1306 = vmatpush1.bf16.msra.mxu0 0
      %1307 = vmatprep.subr.bf16.mxu0 0
      %1308 = vmatpush1.bf16.msra.mxu0 0
      %1309 = vmatprep.subr.bf16.mxu0 0
      %1310 = vmatpush1.bf16.msra.mxu0 0
      %1311 = vmatprep.mubr.bf16.mxu0 0
      %1312 = vmatmul.mubr.bf16.gmra.mrb[0].mxu0 %v1274
      %v1313 = vpop.f32.mrb[0].mxu0
      %v1314 = vadd.f32 0.0, %v1313
      %v1315 = vpop.f32.mrb[0].mxu0
      %v1316 = vpop.f32.mrb[0].mxu0
      %v1317 = vpop.f32.mrb[0].mxu0
      %1318 = vdwg.mxu0
      %1320 = vrot.lane.b32.xlu0 %v1092, 8
      %v1321 = vpop.permute.xlu0 %1320
      %1324 = vrot.lane.b32.xlu0 %v1203, 16
      %v1325 = vpop.permute.xlu0 %1324
      %1328 = vrot.lane.b32.xlu0 %v1314, 24
      %v1329 = vpop.permute.xlu0 %1328
      %v1331 = vsel %vm875, %v978, %v1321
      %v1332 = vsel %vm374, %v1331, %v1325
      %vm1333 = vcmask 195584
      %v1334 = vsel %vm1333, %v1332, %v1329
      %v1335 = vpack.c.bf16 %v1334, %v1334
      %v1336 = vlaneseq
      %v1337 = vshrl.u32 %v1336, 7
      %v1338 = vsub.s32 7, %v1337
      %v1339 = vrot.slane %v652, %v1338
      %v1344 = vunpack.c.l.b16 %v666
      %v1345 = vunpack.c.l.b16 %v667
      %v1346 = vunpack.c.l.b16 %v668
      %v1347 = vunpack.c.l.b16 %v669
      %v1348 = vpack.c.b16 %v1345, %v1344
      %v1349 = vpack.c.b16 %v1347, %v1346
      %v1353 = vsel %vm69, %v1335, 0
      %1355 = vmatprep.subr.bf16.mxu0 0
      %1356 = vmatpush1.bf16.msra.mxu0 %v1348
      %1357 = vmatprep.subr.bf16.mxu0 0
      %1358 = vmatpush1.bf16.msra.mxu0 %v1349
      %1359 = vmatprep.subr.bf16.mxu0 0
      %1360 = vmatpush1.bf16.msra.mxu0 0
      %1361 = vmatprep.subr.bf16.mxu0 0
      %1362 = vmatpush1.bf16.msra.mxu0 0
      %1363 = vmatprep.subr.bf16.mxu0 0
      %1364 = vmatpush1.bf16.msra.mxu0 0
      %1365 = vmatprep.subr.bf16.mxu0 0
      %1366 = vmatpush1.bf16.msra.mxu0 0
      %1367 = vmatprep.subr.bf16.mxu0 0
      %1368 = vmatpush1.bf16.msra.mxu0 0
      %1369 = vmatprep.subr.bf16.mxu0 0
      %1370 = vmatpush1.bf16.msra.mxu0 0
      %1371 = vmatprep.subr.bf16.mxu0 0
      %1372 = vmatpush1.bf16.msra.mxu0 0
      %1373 = vmatprep.subr.bf16.mxu0 0
      %1374 = vmatpush1.bf16.msra.mxu0 0
      %1375 = vmatprep.subr.bf16.mxu0 0
      %1376 = vmatpush1.bf16.msra.mxu0 0
      %1377 = vmatprep.subr.bf16.mxu0 0
      %1378 = vmatpush1.bf16.msra.mxu0 0
      %1379 = vmatprep.subr.bf16.mxu0 0
      %1380 = vmatpush1.bf16.msra.mxu0 0
      %1381 = vmatprep.subr.bf16.mxu0 0
      %1382 = vmatpush1.bf16.msra.mxu0 0
      %1383 = vmatprep.subr.bf16.mxu0 0
      %1384 = vmatpush1.bf16.msra.mxu0 0
      %1385 = vmatprep.subr.bf16.mxu0 0
      %1386 = vmatpush1.bf16.msra.mxu0 0
      %1387 = vmatprep.mubr.bf16.mxu0 0
      %1388 = vmatmul.mubr.bf16.gmra.mrb[0].mxu0 %v1353
      %v1389 = vpop.f32.mrb[0].mxu0
      %v1390 = vadd.f32 %v1339, %v1389
      %v1391 = vpop.f32.mrb[0].mxu0
      %v1392 = vpop.f32.mrb[0].mxu0
      %v1393 = vpop.f32.mrb[0].mxu0
      %1394 = vdwg.mxu0
      %v1395 = vadd.f32 %v651, %v1390
      %v1396 = vsel %vm69, %v1395, 0.0
      %1397 = vadd.xlane.f32.xlu0 %v1396
      %v1398 = vpop.xlane.xlu0 %1397
      %v1399 = vmul.f32 %v1398, %v73
      %v1400 = vsub.f32 %v1395, %v1399
      %v1401 = vmul.f32 %v1400, %v1400
      %v1402 = vsel %vm69, %v1401, 0.0
      %1403 = vadd.xlane.f32.xlu0 %v1402
      %v1404 = vpop.xlane.xlu0 %1403
      %v1405 = vmul.f32 %v1404, %v73
      %v1406 = vadd.f32 %v1405, 1e-05
      %v1407 = vrsqrt.pop %v1406
      %v1408 = vmul.f32 %v1400, %v1407
      %v1409 = vlaneseq
      %v1410 = vshrl.u32 %v1409, 7
      %v1411 = vsub.s32 0, %v1410
      %v1412 = vrot.slane %v653, %v1411
      %v1413 = vmul.f32 %v1408, %v1412
      %v1414 = vlaneseq
      %v1415 = vshrl.u32 %v1414, 7
      %v1416 = vsub.s32 1, %v1415
      %v1417 = vrot.slane %v653, %v1416
      %v1418 = vadd.f32 %v1413, %v1417
      %v1419 = vpack.c.bf16 %v1418, %v1418
      %v1420 = vlaneseq
      %v1421 = vshrl.u32 %v1420, 7
      %v1422 = vsub.s32 2, %v1421
      %v1423 = vrot.slane %v653, %v1422
      %v1428 = vunpack.c.l.b16 %v670
      %v1429 = vunpack.c.l.b16 %v671
      %v1430 = vunpack.c.l.b16 %v672
      %v1431 = vunpack.c.l.b16 %v673
      %v1432 = vpack.c.b16 %v1429, %v1428
      %v1433 = vpack.c.b16 %v1431, %v1430
      %v1437 = vsel %vm69, %v1419, 0
      %1439 = vmatprep.subr.bf16.mxu0 0
      %1440 = vmatpush1.bf16.msra.mxu0 %v1432
      %1441 = vmatprep.subr.bf16.mxu0 0
      %1442 = vmatpush1.bf16.msra.mxu0 %v1433
      %1443 = vmatprep.subr.bf16.mxu0 0
      %1444 = vmatpush1.bf16.msra.mxu0 0
      %1445 = vmatprep.subr.bf16.mxu0 0
      %1446 = vmatpush1.bf16.msra.mxu0 0
      %1447 = vmatprep.subr.bf16.mxu0 0
      %1448 = vmatpush1.bf16.msra.mxu0 0
      %1449 = vmatprep.subr.bf16.mxu0 0
      %1450 = vmatpush1.bf16.msra.mxu0 0
      %1451 = vmatprep.subr.bf16.mxu0 0
      %1452 = vmatpush1.bf16.msra.mxu0 0
      %1453 = vmatprep.subr.bf16.mxu0 0
      %1454 = vmatpush1.bf16.msra.mxu0 0
      %1455 = vmatprep.subr.bf16.mxu0 0
      %1456 = vmatpush1.bf16.msra.mxu0 0
      %1457 = vmatprep.subr.bf16.mxu0 0
      %1458 = vmatpush1.bf16.msra.mxu0 0
      %1459 = vmatprep.subr.bf16.mxu0 0
      %1460 = vmatpush1.bf16.msra.mxu0 0
      %1461 = vmatprep.subr.bf16.mxu0 0
      %1462 = vmatpush1.bf16.msra.mxu0 0
      %1463 = vmatprep.subr.bf16.mxu0 0
      %1464 = vmatpush1.bf16.msra.mxu0 0
      %1465 = vmatprep.subr.bf16.mxu0 0
      %1466 = vmatpush1.bf16.msra.mxu0 0
      %1467 = vmatprep.subr.bf16.mxu0 0
      %1468 = vmatpush1.bf16.msra.mxu0 0
      %1469 = vmatprep.subr.bf16.mxu0 0
      %1470 = vmatpush1.bf16.msra.mxu0 0
      %1471 = vmatprep.mubr.bf16.mxu0 0
      %1472 = vmatmul.mubr.bf16.gmra.mrb[0].mxu0 %v1437
      %v1473 = vpop.f32.mrb[0].mxu0
      %v1474 = vadd.f32 %v1423, %v1473
      %v1475 = vpop.f32.mrb[0].mxu0
      %v1476 = vpop.f32.mrb[0].mxu0
      %v1477 = vpop.f32.mrb[0].mxu0
      %1478 = vdwg.mxu0
      %v1479 = vmul.f32 %v1474, 0.5
      %v1480 = vmul.f32 %v1474, 0.044715
      %v1481 = vmul.f32 %v1480, %v1474
      %v1482 = vmul.f32 %v1481, %v1474
      %v1483 = vadd.f32 %v1474, %v1482
      %v1484 = vmul.f32 %v1483, 0.7978846
      %v1485 = vtanh.pop %v1484
      %v1486 = vadd.f32 %v1485, 1.0
      %v1487 = vmul.f32 %v1479, %v1486
      %v1488 = vpack.c.bf16 %v1487, %v1487
      %v1489 = vlaneseq
      %v1490 = vshrl.u32 %v1489, 7
      %v1491 = vsub.s32 3, %v1490
      %v1492 = vrot.slane %v653, %v1491
      %v1497 = vunpack.c.l.b16 %v674
      %v1498 = vunpack.c.l.b16 %v675
      %v1499 = vunpack.c.l.b16 %v676
      %v1500 = vunpack.c.l.b16 %v677
      %v1501 = vpack.c.b16 %v1498, %v1497
      %v1502 = vpack.c.b16 %v1500, %v1499
      %v1506 = vsel %vm69, %v1488, 0
      %1508 = vmatprep.subr.bf16.mxu0 0
      %1509 = vmatpush1.bf16.msra.mxu0 %v1501
      %1510 = vmatprep.subr.bf16.mxu0 0
      %1511 = vmatpush1.bf16.msra.mxu0 %v1502
      %1512 = vmatprep.subr.bf16.mxu0 0
      %1513 = vmatpush1.bf16.msra.mxu0 0
      %1514 = vmatprep.subr.bf16.mxu0 0
      %1515 = vmatpush1.bf16.msra.mxu0 0
      %1516 = vmatprep.subr.bf16.mxu0 0
      %1517 = vmatpush1.bf16.msra.mxu0 0
      %1518 = vmatprep.subr.bf16.mxu0 0
      %1519 = vmatpush1.bf16.msra.mxu0 0
      %1520 = vmatprep.subr.bf16.mxu0 0
      %1521 = vmatpush1.bf16.msra.mxu0 0
      %1522 = vmatprep.subr.bf16.mxu0 0
      %1523 = vmatpush1.bf16.msra.mxu0 0
      %1524 = vmatprep.subr.bf16.mxu0 0
      %1525 = vmatpush1.bf16.msra.mxu0 0
      %1526 = vmatprep.subr.bf16.mxu0 0
      %1527 = vmatpush1.bf16.msra.mxu0 0
      %1528 = vmatprep.subr.bf16.mxu0 0
      %1529 = vmatpush1.bf16.msra.mxu0 0
      %1530 = vmatprep.subr.bf16.mxu0 0
      %1531 = vmatpush1.bf16.msra.mxu0 0
      %1532 = vmatprep.subr.bf16.mxu0 0
      %1533 = vmatpush1.bf16.msra.mxu0 0
      %1534 = vmatprep.subr.bf16.mxu0 0
      %1535 = vmatpush1.bf16.msra.mxu0 0
      %1536 = vmatprep.subr.bf16.mxu0 0
      %1537 = vmatpush1.bf16.msra.mxu0 0
      %1538 = vmatprep.subr.bf16.mxu0 0
      %1539 = vmatpush1.bf16.msra.mxu0 0
      %1540 = vmatprep.mubr.bf16.mxu0 0
      %1541 = vmatmul.mubr.bf16.gmra.mrb[0].mxu0 %v1506
      %v1542 = vpop.f32.mrb[0].mxu0
      %v1543 = vadd.f32 %v1492, %v1542
      %v1544 = vpop.f32.mrb[0].mxu0
      %v1545 = vpop.f32.mrb[0].mxu0
      %v1546 = vpop.f32.mrb[0].mxu0
      %1547 = vdwg.mxu0
      %v1548 = vadd.f32 %v1395, %v1543
      %v1549 = vld [vmem:[%s4 + $0x20] sm:$0xff]
      %v1550 = vld [vmem:[%s4 + $0x28] sm:$0xff]
      %v1551 = vld [vmem:[%s3 + $0xe0] sm:$0xf]
      %v1552 = vld [vmem:[%s3 + $0xe4] sm:$0xf]
      %v1553 = vld [vmem:[%s3 + $0xe8] sm:$0xf]
      %v1554 = vld [vmem:[%s3 + $0xec] sm:$0xf]
      %v1555 = vld [vmem:[%s3 + $0xf0] sm:$0xf]
      %v1556 = vld [vmem:[%s3 + $0xf4] sm:$0xf]
      %v1557 = vld [vmem:[%s3 + $0xf8] sm:$0xf]
      %v1558 = vld [vmem:[%s3 + $0xfc] sm:$0xf]
      %v1559 = vld [vmem:[%s3 + $0x108] sm:$0xf]
      %v1560 = vld [vmem:[%s3 + $0x10c] sm:$0xf]
      %v1561 = vld [vmem:[%s3 + $0x110] sm:$0xf]
      %v1562 = vld [vmem:[%s3 + $0x114] sm:$0xf]
      %v1563 = vld [vmem:[%s3 + $0x120] sm:$0xf]
      %v1564 = vld [vmem:[%s3 + $0x124] sm:$0xf]
      %v1565 = vld [vmem:[%s3 + $0x128] sm:$0xf]
      %v1566 = vld [vmem:[%s3 + $0x12c] sm:$0xf]
      %v1567 = vld [vmem:[%s3 + $0x130] sm:$0xf]
      %v1568 = vld [vmem:[%s3 + $0x134] sm:$0xf]
      %v1569 = vld [vmem:[%s3 + $0x138] sm:$0xf]
      %v1570 = vld [vmem:[%s3 + $0x13c] sm:$0xf]
      %v1571 = vld [vmem:[%s3 + $0x140] sm:$0xf]
      %v1572 = vld [vmem:[%s3 + $0x144] sm:$0xf]
      %v1573 = vld [vmem:[%s3 + $0x148] sm:$0xf]
      %v1574 = vld [vmem:[%s3 + $0x14c] sm:$0xf]
      %v1575 = vsel %vm69, %v1548, 0.0
      %1576 = vadd.xlane.f32.xlu0 %v1575
      %v1577 = vpop.xlane.xlu0 %1576
      %v1578 = vmul.f32 %v1577, %v73
      %v1579 = vsub.f32 %v1548, %v1578
      %v1580 = vmul.f32 %v1579, %v1579
      %v1581 = vsel %vm69, %v1580, 0.0
      %1582 = vadd.xlane.f32.xlu0 %v1581
      %v1583 = vpop.xlane.xlu0 %1582
      %v1584 = vmul.f32 %v1583, %v73
      %v1585 = vadd.f32 %v1584, 1e-05
      %v1586 = vrsqrt.pop %v1585
      %v1587 = vmul.f32 %v1579, %v1586
      %v1588 = vlaneseq
      %v1589 = vshrl.u32 %v1588, 7
      %v1590 = vsub.s32 0, %v1589
      %v1591 = vrot.slane %v1549, %v1590
      %v1592 = vmul.f32 %v1587, %v1591
      %v1593 = vlaneseq
      %v1594 = vshrl.u32 %v1593, 7
      %v1595 = vsub.s32 1, %v1594
      %v1596 = vrot.slane %v1549, %v1595
      %v1597 = vadd.f32 %v1592, %v1596
      %v1598 = vpack.c.bf16 %v1597, %v1597
      %v1599 = vlaneseq
      %v1600 = vshrl.u32 %v1599, 7
      %v1601 = vsub.s32 4, %v1600
      %v1602 = vrot.slane %v1549, %v1601
      %v1607 = vunpack.c.l.b16 %v1551
      %v1608 = vunpack.c.l.b16 %v1552
      %v1609 = vunpack.c.l.b16 %v1553
      %v1610 = vunpack.c.l.b16 %v1554
      %v1611 = vpack.c.b16 %v1608, %v1607
      %v1612 = vpack.c.b16 %v1610, %v1609
      %v1616 = vsel %vm69, %v1598, 0
      %1618 = vmatprep.subr.bf16.mxu0 0
      %1619 = vmatpush1.bf16.msra.mxu0 %v1611
      %1620 = vmatprep.subr.bf16.mxu0 0
      %1621 = vmatpush1.bf16.msra.mxu0 %v1612
      %1622 = vmatprep.subr.bf16.mxu0 0
      %1623 = vmatpush1.bf16.msra.mxu0 0
      %1624 = vmatprep.subr.bf16.mxu0 0
      %1625 = vmatpush1.bf16.msra.mxu0 0
      %1626 = vmatprep.subr.bf16.mxu0 0
      %1627 = vmatpush1.bf16.msra.mxu0 0
      %1628 = vmatprep.subr.bf16.mxu0 0
      %1629 = vmatpush1.bf16.msra.mxu0 0
      %1630 = vmatprep.subr.bf16.mxu0 0
      %1631 = vmatpush1.bf16.msra.mxu0 0
      %1632 = vmatprep.subr.bf16.mxu0 0
      %1633 = vmatpush1.bf16.msra.mxu0 0
      %1634 = vmatprep.subr.bf16.mxu0 0
      %1635 = vmatpush1.bf16.msra.mxu0 0
      %1636 = vmatprep.subr.bf16.mxu0 0
      %1637 = vmatpush1.bf16.msra.mxu0 0
      %1638 = vmatprep.subr.bf16.mxu0 0
      %1639 = vmatpush1.bf16.msra.mxu0 0
      %1640 = vmatprep.subr.bf16.mxu0 0
      %1641 = vmatpush1.bf16.msra.mxu0 0
      %1642 = vmatprep.subr.bf16.mxu0 0
      %1643 = vmatpush1.bf16.msra.mxu0 0
      %1644 = vmatprep.subr.bf16.mxu0 0
      %1645 = vmatpush1.bf16.msra.mxu0 0
      %1646 = vmatprep.subr.bf16.mxu0 0
      %1647 = vmatpush1.bf16.msra.mxu0 0
      %1648 = vmatprep.subr.bf16.mxu0 0
      %1649 = vmatpush1.bf16.msra.mxu0 0
      %1650 = vmatprep.mubr.bf16.mxu0 0
      %1651 = vmatmul.mubr.bf16.gmra.mrb[0].mxu0 %v1616
      %v1652 = vpop.f32.mrb[0].mxu0
      %v1653 = vadd.f32 %v1602, %v1652
      %v1654 = vpop.f32.mrb[0].mxu0
      %v1655 = vpop.f32.mrb[0].mxu0
      %v1656 = vpop.f32.mrb[0].mxu0
      %1657 = vdwg.mxu0
      %v1658 = vlaneseq
      %v1659 = vshrl.u32 %v1658, 7
      %v1660 = vsub.s32 5, %v1659
      %v1661 = vrot.slane %v1549, %v1660
      %v1666 = vunpack.c.l.b16 %v1555
      %v1667 = vunpack.c.l.b16 %v1556
      %v1668 = vunpack.c.l.b16 %v1557
      %v1669 = vunpack.c.l.b16 %v1558
      %v1670 = vpack.c.b16 %v1667, %v1666
      %v1671 = vpack.c.b16 %v1669, %v1668
      %1674 = vmatprep.subr.bf16.mxu0 0
      %1675 = vmatpush1.bf16.msra.mxu0 %v1670
      %1676 = vmatprep.subr.bf16.mxu0 0
      %1677 = vmatpush1.bf16.msra.mxu0 %v1671
      %1678 = vmatprep.subr.bf16.mxu0 0
      %1679 = vmatpush1.bf16.msra.mxu0 0
      %1680 = vmatprep.subr.bf16.mxu0 0
      %1681 = vmatpush1.bf16.msra.mxu0 0
      %1682 = vmatprep.subr.bf16.mxu0 0
      %1683 = vmatpush1.bf16.msra.mxu0 0
      %1684 = vmatprep.subr.bf16.mxu0 0
      %1685 = vmatpush1.bf16.msra.mxu0 0
      %1686 = vmatprep.subr.bf16.mxu0 0
      %1687 = vmatpush1.bf16.msra.mxu0 0
      %1688 = vmatprep.subr.bf16.mxu0 0
      %1689 = vmatpush1.bf16.msra.mxu0 0
      %1690 = vmatprep.subr.bf16.mxu0 0
      %1691 = vmatpush1.bf16.msra.mxu0 0
      %1692 = vmatprep.subr.bf16.mxu0 0
      %1693 = vmatpush1.bf16.msra.mxu0 0
      %1694 = vmatprep.subr.bf16.mxu0 0
      %1695 = vmatpush1.bf16.msra.mxu0 0
      %1696 = vmatprep.subr.bf16.mxu0 0
      %1697 = vmatpush1.bf16.msra.mxu0 0
      %1698 = vmatprep.subr.bf16.mxu0 0
      %1699 = vmatpush1.bf16.msra.mxu0 0
      %1700 = vmatprep.subr.bf16.mxu0 0
      %1701 = vmatpush1.bf16.msra.mxu0 0
      %1702 = vmatprep.subr.bf16.mxu0 0
      %1703 = vmatpush1.bf16.msra.mxu0 0
      %1704 = vmatprep.subr.bf16.mxu0 0
      %1705 = vmatpush1.bf16.msra.mxu0 0
      %1706 = vmatprep.mubr.bf16.mxu0 0
      %1707 = vmatmul.mubr.bf16.gmra.mrb[0].mxu0 %v1616
      %v1708 = vpop.f32.mrb[0].mxu0
      %v1709 = vadd.f32 %v1661, %v1708
      %v1710 = vpop.f32.mrb[0].mxu0
      %v1711 = vpop.f32.mrb[0].mxu0
      %v1712 = vpop.f32.mrb[0].mxu0
      %1713 = vdwg.mxu0
      %v1714 = vlaneseq
      %v1715 = vshrl.u32 %v1714, 7
      %v1716 = vsub.s32 6, %v1715
      %v1717 = vrot.slane %v1549, %v1716
      %v1722 = vunpack.c.l.b16 %v1559
      %v1723 = vunpack.c.l.b16 %v1560
      %v1724 = vunpack.c.l.b16 %v1561
      %v1725 = vunpack.c.l.b16 %v1562
      %v1726 = vpack.c.b16 %v1723, %v1722
      %v1727 = vpack.c.b16 %v1725, %v1724
      %1730 = vmatprep.subr.bf16.mxu0 0
      %1731 = vmatpush1.bf16.msra.mxu0 %v1726
      %1732 = vmatprep.subr.bf16.mxu0 0
      %1733 = vmatpush1.bf16.msra.mxu0 %v1727
      %1734 = vmatprep.subr.bf16.mxu0 0
      %1735 = vmatpush1.bf16.msra.mxu0 0
      %1736 = vmatprep.subr.bf16.mxu0 0
      %1737 = vmatpush1.bf16.msra.mxu0 0
      %1738 = vmatprep.subr.bf16.mxu0 0
      %1739 = vmatpush1.bf16.msra.mxu0 0
      %1740 = vmatprep.subr.bf16.mxu0 0
      %1741 = vmatpush1.bf16.msra.mxu0 0
      %1742 = vmatprep.subr.bf16.mxu0 0
      %1743 = vmatpush1.bf16.msra.mxu0 0
      %1744 = vmatprep.subr.bf16.mxu0 0
      %1745 = vmatpush1.bf16.msra.mxu0 0
      %1746 = vmatprep.subr.bf16.mxu0 0
      %1747 = vmatpush1.bf16.msra.mxu0 0
      %1748 = vmatprep.subr.bf16.mxu0 0
      %1749 = vmatpush1.bf16.msra.mxu0 0
      %1750 = vmatprep.subr.bf16.mxu0 0
      %1751 = vmatpush1.bf16.msra.mxu0 0
      %1752 = vmatprep.subr.bf16.mxu0 0
      %1753 = vmatpush1.bf16.msra.mxu0 0
      %1754 = vmatprep.subr.bf16.mxu0 0
      %1755 = vmatpush1.bf16.msra.mxu0 0
      %1756 = vmatprep.subr.bf16.mxu0 0
      %1757 = vmatpush1.bf16.msra.mxu0 0
      %1758 = vmatprep.subr.bf16.mxu0 0
      %1759 = vmatpush1.bf16.msra.mxu0 0
      %1760 = vmatprep.subr.bf16.mxu0 0
      %1761 = vmatpush1.bf16.msra.mxu0 0
      %1762 = vmatprep.mubr.bf16.mxu0 0
      %1763 = vmatmul.mubr.bf16.gmra.mrb[0].mxu0 %v1616
      %v1764 = vpop.f32.mrb[0].mxu0
      %v1765 = vadd.f32 %v1717, %v1764
      %v1766 = vpop.f32.mrb[0].mxu0
      %v1767 = vpop.f32.mrb[0].mxu0
      %v1768 = vpop.f32.mrb[0].mxu0
      %1769 = vdwg.mxu0
      %v1770 = vpack.c.bf16 %v1653, %v1653
      %v1771 = vpack.c.bf16 %v1709, %v1709
      %v1773 = vsel %vm875, %v1770, 0
      %v1776 = vsel %vm875, %v1771, 0
      %1778 = vmatprep.subr.bf16.mxu0 0
      %1779 = vmatpush1.bf16.xpose.msra.mxu0 %v1776
      %1780 = vmatprep.subr.bf16.mxu0 0
      %1781 = vmatpush1.bf16.xpose.msra.mxu0 0
      %1782 = vmatprep.subr.bf16.mxu0 0
      %1783 = vmatpush1.bf16.xpose.msra.mxu0 0
      %1784 = vmatprep.subr.bf16.mxu0 0
      %1785 = vmatpush1.bf16.xpose.msra.mxu0 0
      %1786 = vmatprep.subr.bf16.mxu0 0
      %1787 = vmatpush1.bf16.xpose.msra.mxu0 0
      %1788 = vmatprep.subr.bf16.mxu0 0
      %1789 = vmatpush1.bf16.xpose.msra.mxu0 0
      %1790 = vmatprep.subr.bf16.mxu0 0
      %1791 = vmatpush1.bf16.xpose.msra.mxu0 0
      %1792 = vmatprep.subr.bf16.mxu0 0
      %1793 = vmatpush1.bf16.xpose.msra.mxu0 0
      %1794 = vmatprep.subr.bf16.mxu0 0
      %1795 = vmatpush1.bf16.xpose.msra.mxu0 0
      %1796 = vmatprep.subr.bf16.mxu0 0
      %1797 = vmatpush1.bf16.xpose.msra.mxu0 0
      %1798 = vmatprep.subr.bf16.mxu0 0
      %1799 = vmatpush1.bf16.xpose.msra.mxu0 0
      %1800 = vmatprep.subr.bf16.mxu0 0
      %1801 = vmatpush1.bf16.xpose.msra.mxu0 0
      %1802 = vmatprep.subr.bf16.mxu0 0
      %1803 = vmatpush1.bf16.xpose.msra.mxu0 0
      %1804 = vmatprep.subr.bf16.mxu0 0
      %1805 = vmatpush1.bf16.xpose.msra.mxu0 0
      %1806 = vmatprep.subr.bf16.mxu0 0
      %1807 = vmatpush1.bf16.xpose.msra.mxu0 0
      %1808 = vmatprep.subr.bf16.mxu0 0
      %1809 = vmatpush1.bf16.xpose.msra.mxu0 0
      %1810 = vmatprep.mubr.bf16.mxu0 0
      %1811 = vmatmul.mubr.bf16.gmra.mrb[0].mxu0 %v1773
      %v1812 = vpop.f32.mrb[0].mxu0
      %v1813 = vadd.f32 0.0, %v1812
      %v1814 = vpop.f32.mrb[0].mxu0
      %v1815 = vpop.f32.mrb[0].mxu0
      %v1816 = vpop.f32.mrb[0].mxu0
      %1817 = vdwg.mxu0
      %v1818 = vmul.f32 %v1813, 0.35355338
      %v1819 = vsel %vm875, %v1818, -inf
      %1820 = vmax.xlane.f32.xlu0 %v1819
      %v1821 = vpop.xlane.xlu0 %1820
      %v1822 = vsub.f32 %v1818, %v1821
      %v1823 = vmul.f32 %v1822, 1.442695
      %v1824 = vpow.pop %v1823
      %v1825 = vsel %vm875, %v1824, 0.0
      %1826 = vadd.xlane.f32.xlu0 %v1825
      %v1827 = vpop.xlane.xlu0 %1826
      %v1828 = vrcp.pop %v1827
      %v1829 = vmul.f32 %v1824, %v1828
      %v1830 = vpack.c.bf16 %v1829, %v1829
      %v1831 = vpack.c.bf16 %v1765, %v1765
      %v1833 = vsel %vm875, %v1830, 0
      %v1836 = vsel %vm939, %v1831, 0
      %1838 = vmatprep.subr.bf16.mxu0 0
      %1839 = vmatpush1.bf16.msra.mxu0 %v1836
      %1840 = vmatprep.subr.bf16.mxu0 0
      %1841 = vmatpush1.bf16.msra.mxu0 0
      %1842 = vmatprep.subr.bf16.mxu0 0
      %1843 = vmatpush1.bf16.msra.mxu0 0
      %1844 = vmatprep.subr.bf16.mxu0 0
      %1845 = vmatpush1.bf16.msra.mxu0 0
      %1846 = vmatprep.subr.bf16.mxu0 0
      %1847 = vmatpush1.bf16.msra.mxu0 0
      %1848 = vmatprep.subr.bf16.mxu0 0
      %1849 = vmatpush1.bf16.msra.mxu0 0
      %1850 = vmatprep.subr.bf16.mxu0 0
      %1851 = vmatpush1.bf16.msra.mxu0 0
      %1852 = vmatprep.subr.bf16.mxu0 0
      %1853 = vmatpush1.bf16.msra.mxu0 0
      %1854 = vmatprep.subr.bf16.mxu0 0
      %1855 = vmatpush1.bf16.msra.mxu0 0
      %1856 = vmatprep.subr.bf16.mxu0 0
      %1857 = vmatpush1.bf16.msra.mxu0 0
      %1858 = vmatprep.subr.bf16.mxu0 0
      %1859 = vmatpush1.bf16.msra.mxu0 0
      %1860 = vmatprep.subr.bf16.mxu0 0
      %1861 = vmatpush1.bf16.msra.mxu0 0
      %1862 = vmatprep.subr.bf16.mxu0 0
      %1863 = vmatpush1.bf16.msra.mxu0 0
      %1864 = vmatprep.subr.bf16.mxu0 0
      %1865 = vmatpush1.bf16.msra.mxu0 0
      %1866 = vmatprep.subr.bf16.mxu0 0
      %1867 = vmatpush1.bf16.msra.mxu0 0
      %1868 = vmatprep.subr.bf16.mxu0 0
      %1869 = vmatpush1.bf16.msra.mxu0 0
      %1870 = vmatprep.mubr.bf16.mxu0 0
      %1871 = vmatmul.mubr.bf16.gmra.mrb[0].mxu0 %v1833
      %v1872 = vpop.f32.mrb[0].mxu0
      %v1873 = vadd.f32 0.0, %v1872
      %v1874 = vpop.f32.mrb[0].mxu0
      %v1875 = vpop.f32.mrb[0].mxu0
      %v1876 = vpop.f32.mrb[0].mxu0
      %1877 = vdwg.mxu0
      %1879 = vrot.lane.b32.xlu0 %v1770, 120
      %v1880 = vpop.permute.xlu0 %1879
      %1882 = vrot.lane.b32.xlu0 %v1771, 120
      %v1883 = vpop.permute.xlu0 %1882
      %v1885 = vsel %vm875, %v1880, 0
      %v1888 = vsel %vm875, %v1883, 0
      %1890 = vmatprep.subr.bf16.mxu0 0
      %1891 = vmatpush1.bf16.xpose.msra.mxu0 %v1888
      %1892 = vmatprep.subr.bf16.mxu0 0
      %1893 = vmatpush1.bf16.xpose.msra.mxu0 0
      %1894 = vmatprep.subr.bf16.mxu0 0
      %1895 = vmatpush1.bf16.xpose.msra.mxu0 0
      %1896 = vmatprep.subr.bf16.mxu0 0
      %1897 = vmatpush1.bf16.xpose.msra.mxu0 0
      %1898 = vmatprep.subr.bf16.mxu0 0
      %1899 = vmatpush1.bf16.xpose.msra.mxu0 0
      %1900 = vmatprep.subr.bf16.mxu0 0
      %1901 = vmatpush1.bf16.xpose.msra.mxu0 0
      %1902 = vmatprep.subr.bf16.mxu0 0
      %1903 = vmatpush1.bf16.xpose.msra.mxu0 0
      %1904 = vmatprep.subr.bf16.mxu0 0
      %1905 = vmatpush1.bf16.xpose.msra.mxu0 0
      %1906 = vmatprep.subr.bf16.mxu0 0
      %1907 = vmatpush1.bf16.xpose.msra.mxu0 0
      %1908 = vmatprep.subr.bf16.mxu0 0
      %1909 = vmatpush1.bf16.xpose.msra.mxu0 0
      %1910 = vmatprep.subr.bf16.mxu0 0
      %1911 = vmatpush1.bf16.xpose.msra.mxu0 0
      %1912 = vmatprep.subr.bf16.mxu0 0
      %1913 = vmatpush1.bf16.xpose.msra.mxu0 0
      %1914 = vmatprep.subr.bf16.mxu0 0
      %1915 = vmatpush1.bf16.xpose.msra.mxu0 0
      %1916 = vmatprep.subr.bf16.mxu0 0
      %1917 = vmatpush1.bf16.xpose.msra.mxu0 0
      %1918 = vmatprep.subr.bf16.mxu0 0
      %1919 = vmatpush1.bf16.xpose.msra.mxu0 0
      %1920 = vmatprep.subr.bf16.mxu0 0
      %1921 = vmatpush1.bf16.xpose.msra.mxu0 0
      %1922 = vmatprep.mubr.bf16.mxu0 0
      %1923 = vmatmul.mubr.bf16.gmra.mrb[0].mxu0 %v1885
      %v1924 = vpop.f32.mrb[0].mxu0
      %v1925 = vadd.f32 0.0, %v1924
      %v1926 = vpop.f32.mrb[0].mxu0
      %v1927 = vpop.f32.mrb[0].mxu0
      %v1928 = vpop.f32.mrb[0].mxu0
      %1929 = vdwg.mxu0
      %v1930 = vmul.f32 %v1925, 0.35355338
      %v1931 = vsel %vm875, %v1930, -inf
      %1932 = vmax.xlane.f32.xlu0 %v1931
      %v1933 = vpop.xlane.xlu0 %1932
      %v1934 = vsub.f32 %v1930, %v1933
      %v1935 = vmul.f32 %v1934, 1.442695
      %v1936 = vpow.pop %v1935
      %v1937 = vsel %vm875, %v1936, 0.0
      %1938 = vadd.xlane.f32.xlu0 %v1937
      %v1939 = vpop.xlane.xlu0 %1938
      %v1940 = vrcp.pop %v1939
      %v1941 = vmul.f32 %v1936, %v1940
      %v1942 = vpack.c.bf16 %v1941, %v1941
      %1944 = vrot.lane.b32.xlu0 %v1831, 120
      %v1945 = vpop.permute.xlu0 %1944
      %v1947 = vsel %vm875, %v1942, 0
      %v1950 = vsel %vm939, %v1945, 0
      %1952 = vmatprep.subr.bf16.mxu0 0
      %1953 = vmatpush1.bf16.msra.mxu0 %v1950
      %1954 = vmatprep.subr.bf16.mxu0 0
      %1955 = vmatpush1.bf16.msra.mxu0 0
      %1956 = vmatprep.subr.bf16.mxu0 0
      %1957 = vmatpush1.bf16.msra.mxu0 0
      %1958 = vmatprep.subr.bf16.mxu0 0
      %1959 = vmatpush1.bf16.msra.mxu0 0
      %1960 = vmatprep.subr.bf16.mxu0 0
      %1961 = vmatpush1.bf16.msra.mxu0 0
      %1962 = vmatprep.subr.bf16.mxu0 0
      %1963 = vmatpush1.bf16.msra.mxu0 0
      %1964 = vmatprep.subr.bf16.mxu0 0
      %1965 = vmatpush1.bf16.msra.mxu0 0
      %1966 = vmatprep.subr.bf16.mxu0 0
      %1967 = vmatpush1.bf16.msra.mxu0 0
      %1968 = vmatprep.subr.bf16.mxu0 0
      %1969 = vmatpush1.bf16.msra.mxu0 0
      %1970 = vmatprep.subr.bf16.mxu0 0
      %1971 = vmatpush1.bf16.msra.mxu0 0
      %1972 = vmatprep.subr.bf16.mxu0 0
      %1973 = vmatpush1.bf16.msra.mxu0 0
      %1974 = vmatprep.subr.bf16.mxu0 0
      %1975 = vmatpush1.bf16.msra.mxu0 0
      %1976 = vmatprep.subr.bf16.mxu0 0
      %1977 = vmatpush1.bf16.msra.mxu0 0
      %1978 = vmatprep.subr.bf16.mxu0 0
      %1979 = vmatpush1.bf16.msra.mxu0 0
      %1980 = vmatprep.subr.bf16.mxu0 0
      %1981 = vmatpush1.bf16.msra.mxu0 0
      %1982 = vmatprep.subr.bf16.mxu0 0
      %1983 = vmatpush1.bf16.msra.mxu0 0
      %1984 = vmatprep.mubr.bf16.mxu0 0
      %1985 = vmatmul.mubr.bf16.gmra.mrb[0].mxu0 %v1947
      %v1986 = vpop.f32.mrb[0].mxu0
      %v1987 = vadd.f32 0.0, %v1986
      %v1988 = vpop.f32.mrb[0].mxu0
      %v1989 = vpop.f32.mrb[0].mxu0
      %v1990 = vpop.f32.mrb[0].mxu0
      %1991 = vdwg.mxu0
      %1992 = vrot.lane.b32.xlu0 %v1770, 112
      %v1993 = vpop.permute.xlu0 %1992
      %1994 = vrot.lane.b32.xlu0 %v1771, 112
      %v1995 = vpop.permute.xlu0 %1994
      %v1997 = vsel %vm875, %v1993, 0
      %v2000 = vsel %vm875, %v1995, 0
      %2002 = vmatprep.subr.bf16.mxu0 0
      %2003 = vmatpush1.bf16.xpose.msra.mxu0 %v2000
      %2004 = vmatprep.subr.bf16.mxu0 0
      %2005 = vmatpush1.bf16.xpose.msra.mxu0 0
      %2006 = vmatprep.subr.bf16.mxu0 0
      %2007 = vmatpush1.bf16.xpose.msra.mxu0 0
      %2008 = vmatprep.subr.bf16.mxu0 0
      %2009 = vmatpush1.bf16.xpose.msra.mxu0 0
      %2010 = vmatprep.subr.bf16.mxu0 0
      %2011 = vmatpush1.bf16.xpose.msra.mxu0 0
      %2012 = vmatprep.subr.bf16.mxu0 0
      %2013 = vmatpush1.bf16.xpose.msra.mxu0 0
      %2014 = vmatprep.subr.bf16.mxu0 0
      %2015 = vmatpush1.bf16.xpose.msra.mxu0 0
      %2016 = vmatprep.subr.bf16.mxu0 0
      %2017 = vmatpush1.bf16.xpose.msra.mxu0 0
      %2018 = vmatprep.subr.bf16.mxu0 0
      %2019 = vmatpush1.bf16.xpose.msra.mxu0 0
      %2020 = vmatprep.subr.bf16.mxu0 0
      %2021 = vmatpush1.bf16.xpose.msra.mxu0 0
      %2022 = vmatprep.subr.bf16.mxu0 0
      %2023 = vmatpush1.bf16.xpose.msra.mxu0 0
      %2024 = vmatprep.subr.bf16.mxu0 0
      %2025 = vmatpush1.bf16.xpose.msra.mxu0 0
      %2026 = vmatprep.subr.bf16.mxu0 0
      %2027 = vmatpush1.bf16.xpose.msra.mxu0 0
      %2028 = vmatprep.subr.bf16.mxu0 0
      %2029 = vmatpush1.bf16.xpose.msra.mxu0 0
      %2030 = vmatprep.subr.bf16.mxu0 0
      %2031 = vmatpush1.bf16.xpose.msra.mxu0 0
      %2032 = vmatprep.subr.bf16.mxu0 0
      %2033 = vmatpush1.bf16.xpose.msra.mxu0 0
      %2034 = vmatprep.mubr.bf16.mxu0 0
      %2035 = vmatmul.mubr.bf16.gmra.mrb[0].mxu0 %v1997
      %v2036 = vpop.f32.mrb[0].mxu0
      %v2037 = vadd.f32 0.0, %v2036
      %v2038 = vpop.f32.mrb[0].mxu0
      %v2039 = vpop.f32.mrb[0].mxu0
      %v2040 = vpop.f32.mrb[0].mxu0
      %2041 = vdwg.mxu0
      %v2042 = vmul.f32 %v2037, 0.35355338
      %v2043 = vsel %vm875, %v2042, -inf
      %2044 = vmax.xlane.f32.xlu0 %v2043
      %v2045 = vpop.xlane.xlu0 %2044
      %v2046 = vsub.f32 %v2042, %v2045
      %v2047 = vmul.f32 %v2046, 1.442695
      %v2048 = vpow.pop %v2047
      %v2049 = vsel %vm875, %v2048, 0.0
      %2050 = vadd.xlane.f32.xlu0 %v2049
      %v2051 = vpop.xlane.xlu0 %2050
      %v2052 = vrcp.pop %v2051
      %v2053 = vmul.f32 %v2048, %v2052
      %v2054 = vpack.c.bf16 %v2053, %v2053
      %2055 = vrot.lane.b32.xlu0 %v1831, 112
      %v2056 = vpop.permute.xlu0 %2055
      %v2058 = vsel %vm875, %v2054, 0
      %v2061 = vsel %vm939, %v2056, 0
      %2063 = vmatprep.subr.bf16.mxu0 0
      %2064 = vmatpush1.bf16.msra.mxu0 %v2061
      %2065 = vmatprep.subr.bf16.mxu0 0
      %2066 = vmatpush1.bf16.msra.mxu0 0
      %2067 = vmatprep.subr.bf16.mxu0 0
      %2068 = vmatpush1.bf16.msra.mxu0 0
      %2069 = vmatprep.subr.bf16.mxu0 0
      %2070 = vmatpush1.bf16.msra.mxu0 0
      %2071 = vmatprep.subr.bf16.mxu0 0
      %2072 = vmatpush1.bf16.msra.mxu0 0
      %2073 = vmatprep.subr.bf16.mxu0 0
      %2074 = vmatpush1.bf16.msra.mxu0 0
      %2075 = vmatprep.subr.bf16.mxu0 0
      %2076 = vmatpush1.bf16.msra.mxu0 0
      %2077 = vmatprep.subr.bf16.mxu0 0
      %2078 = vmatpush1.bf16.msra.mxu0 0
      %2079 = vmatprep.subr.bf16.mxu0 0
      %2080 = vmatpush1.bf16.msra.mxu0 0
      %2081 = vmatprep.subr.bf16.mxu0 0
      %2082 = vmatpush1.bf16.msra.mxu0 0
      %2083 = vmatprep.subr.bf16.mxu0 0
      %2084 = vmatpush1.bf16.msra.mxu0 0
      %2085 = vmatprep.subr.bf16.mxu0 0
      %2086 = vmatpush1.bf16.msra.mxu0 0
      %2087 = vmatprep.subr.bf16.mxu0 0
      %2088 = vmatpush1.bf16.msra.mxu0 0
      %2089 = vmatprep.subr.bf16.mxu0 0
      %2090 = vmatpush1.bf16.msra.mxu0 0
      %2091 = vmatprep.subr.bf16.mxu0 0
      %2092 = vmatpush1.bf16.msra.mxu0 0
      %2093 = vmatprep.subr.bf16.mxu0 0
      %2094 = vmatpush1.bf16.msra.mxu0 0
      %2095 = vmatprep.mubr.bf16.mxu0 0
      %2096 = vmatmul.mubr.bf16.gmra.mrb[0].mxu0 %v2058
      %v2097 = vpop.f32.mrb[0].mxu0
      %v2098 = vadd.f32 0.0, %v2097
      %v2099 = vpop.f32.mrb[0].mxu0
      %v2100 = vpop.f32.mrb[0].mxu0
      %v2101 = vpop.f32.mrb[0].mxu0
      %2102 = vdwg.mxu0
      %2103 = vrot.lane.b32.xlu0 %v1770, 104
      %v2104 = vpop.permute.xlu0 %2103
      %2105 = vrot.lane.b32.xlu0 %v1771, 104
      %v2106 = vpop.permute.xlu0 %2105
      %v2108 = vsel %vm875, %v2104, 0
      %v2111 = vsel %vm875, %v2106, 0
      %2113 = vmatprep.subr.bf16.mxu0 0
      %2114 = vmatpush1.bf16.xpose.msra.mxu0 %v2111
      %2115 = vmatprep.subr.bf16.mxu0 0
      %2116 = vmatpush1.bf16.xpose.msra.mxu0 0
      %2117 = vmatprep.subr.bf16.mxu0 0
      %2118 = vmatpush1.bf16.xpose.msra.mxu0 0
      %2119 = vmatprep.subr.bf16.mxu0 0
      %2120 = vmatpush1.bf16.xpose.msra.mxu0 0
      %2121 = vmatprep.subr.bf16.mxu0 0
      %2122 = vmatpush1.bf16.xpose.msra.mxu0 0
      %2123 = vmatprep.subr.bf16.mxu0 0
      %2124 = vmatpush1.bf16.xpose.msra.mxu0 0
      %2125 = vmatprep.subr.bf16.mxu0 0
      %2126 = vmatpush1.bf16.xpose.msra.mxu0 0
      %2127 = vmatprep.subr.bf16.mxu0 0
      %2128 = vmatpush1.bf16.xpose.msra.mxu0 0
      %2129 = vmatprep.subr.bf16.mxu0 0
      %2130 = vmatpush1.bf16.xpose.msra.mxu0 0
      %2131 = vmatprep.subr.bf16.mxu0 0
      %2132 = vmatpush1.bf16.xpose.msra.mxu0 0
      %2133 = vmatprep.subr.bf16.mxu0 0
      %2134 = vmatpush1.bf16.xpose.msra.mxu0 0
      %2135 = vmatprep.subr.bf16.mxu0 0
      %2136 = vmatpush1.bf16.xpose.msra.mxu0 0
      %2137 = vmatprep.subr.bf16.mxu0 0
      %2138 = vmatpush1.bf16.xpose.msra.mxu0 0
      %2139 = vmatprep.subr.bf16.mxu0 0
      %2140 = vmatpush1.bf16.xpose.msra.mxu0 0
      %2141 = vmatprep.subr.bf16.mxu0 0
      %2142 = vmatpush1.bf16.xpose.msra.mxu0 0
      %2143 = vmatprep.subr.bf16.mxu0 0
      %2144 = vmatpush1.bf16.xpose.msra.mxu0 0
      %2145 = vmatprep.mubr.bf16.mxu0 0
      %2146 = vmatmul.mubr.bf16.gmra.mrb[0].mxu0 %v2108
      %v2147 = vpop.f32.mrb[0].mxu0
      %v2148 = vadd.f32 0.0, %v2147
      %v2149 = vpop.f32.mrb[0].mxu0
      %v2150 = vpop.f32.mrb[0].mxu0
      %v2151 = vpop.f32.mrb[0].mxu0
      %2152 = vdwg.mxu0
      %v2153 = vmul.f32 %v2148, 0.35355338
      %v2154 = vsel %vm875, %v2153, -inf
      %2155 = vmax.xlane.f32.xlu0 %v2154
      %v2156 = vpop.xlane.xlu0 %2155
      %v2157 = vsub.f32 %v2153, %v2156
      %v2158 = vmul.f32 %v2157, 1.442695
      %v2159 = vpow.pop %v2158
      %v2160 = vsel %vm875, %v2159, 0.0
      %2161 = vadd.xlane.f32.xlu0 %v2160
      %v2162 = vpop.xlane.xlu0 %2161
      %v2163 = vrcp.pop %v2162
      %v2164 = vmul.f32 %v2159, %v2163
      %v2165 = vpack.c.bf16 %v2164, %v2164
      %2166 = vrot.lane.b32.xlu0 %v1831, 104
      %v2167 = vpop.permute.xlu0 %2166
      %v2169 = vsel %vm875, %v2165, 0
      %v2172 = vsel %vm939, %v2167, 0
      %2174 = vmatprep.subr.bf16.mxu0 0
      %2175 = vmatpush1.bf16.msra.mxu0 %v2172
      %2176 = vmatprep.subr.bf16.mxu0 0
      %2177 = vmatpush1.bf16.msra.mxu0 0
      %2178 = vmatprep.subr.bf16.mxu0 0
      %2179 = vmatpush1.bf16.msra.mxu0 0
      %2180 = vmatprep.subr.bf16.mxu0 0
      %2181 = vmatpush1.bf16.msra.mxu0 0
      %2182 = vmatprep.subr.bf16.mxu0 0
      %2183 = vmatpush1.bf16.msra.mxu0 0
      %2184 = vmatprep.subr.bf16.mxu0 0
      %2185 = vmatpush1.bf16.msra.mxu0 0
      %2186 = vmatprep.subr.bf16.mxu0 0
      %2187 = vmatpush1.bf16.msra.mxu0 0
      %2188 = vmatprep.subr.bf16.mxu0 0
      %2189 = vmatpush1.bf16.msra.mxu0 0
      %2190 = vmatprep.subr.bf16.mxu0 0
      %2191 = vmatpush1.bf16.msra.mxu0 0
      %2192 = vmatprep.subr.bf16.mxu0 0
      %2193 = vmatpush1.bf16.msra.mxu0 0
      %2194 = vmatprep.subr.bf16.mxu0 0
      %2195 = vmatpush1.bf16.msra.mxu0 0
      %2196 = vmatprep.subr.bf16.mxu0 0
      %2197 = vmatpush1.bf16.msra.mxu0 0
      %2198 = vmatprep.subr.bf16.mxu0 0
      %2199 = vmatpush1.bf16.msra.mxu0 0
      %2200 = vmatprep.subr.bf16.mxu0 0
      %2201 = vmatpush1.bf16.msra.mxu0 0
      %2202 = vmatprep.subr.bf16.mxu0 0
      %2203 = vmatpush1.bf16.msra.mxu0 0
      %2204 = vmatprep.subr.bf16.mxu0 0
      %2205 = vmatpush1.bf16.msra.mxu0 0
      %2206 = vmatprep.mubr.bf16.mxu0 0
      %2207 = vmatmul.mubr.bf16.gmra.mrb[0].mxu0 %v2169
      %v2208 = vpop.f32.mrb[0].mxu0
      %v2209 = vadd.f32 0.0, %v2208
      %v2210 = vpop.f32.mrb[0].mxu0
      %v2211 = vpop.f32.mrb[0].mxu0
      %v2212 = vpop.f32.mrb[0].mxu0
      %2213 = vdwg.mxu0
      %2215 = vrot.lane.b32.xlu0 %v1987, 8
      %v2216 = vpop.permute.xlu0 %2215
      %2219 = vrot.lane.b32.xlu0 %v2098, 16
      %v2220 = vpop.permute.xlu0 %2219
      %2223 = vrot.lane.b32.xlu0 %v2209, 24
      %v2224 = vpop.permute.xlu0 %2223
      %v2226 = vsel %vm875, %v1873, %v2216
      %v2227 = vsel %vm374, %v2226, %v2220
      %v2228 = vsel %vm1333, %v2227, %v2224
      %v2229 = vpack.c.bf16 %v2228, %v2228
      %v2230 = vlaneseq
      %v2231 = vshrl.u32 %v2230, 7
      %v2232 = vsub.s32 7, %v2231
      %v2233 = vrot.slane %v1549, %v2232
      %v2238 = vunpack.c.l.b16 %v1563
      %v2239 = vunpack.c.l.b16 %v1564
      %v2240 = vunpack.c.l.b16 %v1565
      %v2241 = vunpack.c.l.b16 %v1566
      %v2242 = vpack.c.b16 %v2239, %v2238
      %v2243 = vpack.c.b16 %v2241, %v2240
      %v2247 = vsel %vm69, %v2229, 0
      %2249 = vmatprep.subr.bf16.mxu0 0
      %2250 = vmatpush1.bf16.msra.mxu0 %v2242
      %2251 = vmatprep.subr.bf16.mxu0 0
      %2252 = vmatpush1.bf16.msra.mxu0 %v2243
      %2253 = vmatprep.subr.bf16.mxu0 0
      %2254 = vmatpush1.bf16.msra.mxu0 0
      %2255 = vmatprep.subr.bf16.mxu0 0
      %2256 = vmatpush1.bf16.msra.mxu0 0
      %2257 = vmatprep.subr.bf16.mxu0 0
      %2258 = vmatpush1.bf16.msra.mxu0 0
      %2259 = vmatprep.subr.bf16.mxu0 0
      %2260 = vmatpush1.bf16.msra.mxu0 0
      %2261 = vmatprep.subr.bf16.mxu0 0
      %2262 = vmatpush1.bf16.msra.mxu0 0
      %2263 = vmatprep.subr.bf16.mxu0 0
      %2264 = vmatpush1.bf16.msra.mxu0 0
      %2265 = vmatprep.subr.bf16.mxu0 0
      %2266 = vmatpush1.bf16.msra.mxu0 0
      %2267 = vmatprep.subr.bf16.mxu0 0
      %2268 = vmatpush1.bf16.msra.mxu0 0
      %2269 = vmatprep.subr.bf16.mxu0 0
      %2270 = vmatpush1.bf16.msra.mxu0 0
      %2271 = vmatprep.subr.bf16.mxu0 0
      %2272 = vmatpush1.bf16.msra.mxu0 0
      %2273 = vmatprep.subr.bf16.mxu0 0
      %2274 = vmatpush1.bf16.msra.mxu0 0
      %2275 = vmatprep.subr.bf16.mxu0 0
      %2276 = vmatpush1.bf16.msra.mxu0 0
      %2277 = vmatprep.subr.bf16.mxu0 0
      %2278 = vmatpush1.bf16.msra.mxu0 0
      %2279 = vmatprep.subr.bf16.mxu0 0
      %2280 = vmatpush1.bf16.msra.mxu0 0
      %2281 = vmatprep.mubr.bf16.mxu0 0
      %2282 = vmatmul.mubr.bf16.gmra.mrb[0].mxu0 %v2247
      %v2283 = vpop.f32.mrb[0].mxu0
      %v2284 = vadd.f32 %v2233, %v2283
      %v2285 = vpop.f32.mrb[0].mxu0
      %v2286 = vpop.f32.mrb[0].mxu0
      %v2287 = vpop.f32.mrb[0].mxu0
      %2288 = vdwg.mxu0
      %v2289 = vadd.f32 %v1548, %v2284
      %v2290 = vsel %vm69, %v2289, 0.0
      %2291 = vadd.xlane.f32.xlu0 %v2290
      %v2292 = vpop.xlane.xlu0 %2291
      %v2293 = vmul.f32 %v2292, %v73
      %v2294 = vsub.f32 %v2289, %v2293
      %v2295 = vmul.f32 %v2294, %v2294
      %v2296 = vsel %vm69, %v2295, 0.0
      %2297 = vadd.xlane.f32.xlu0 %v2296
      %v2298 = vpop.xlane.xlu0 %2297
      %v2299 = vmul.f32 %v2298, %v73
      %v2300 = vadd.f32 %v2299, 1e-05
      %v2301 = vrsqrt.pop %v2300
      %v2302 = vmul.f32 %v2294, %v2301
      %v2303 = vlaneseq
      %v2304 = vshrl.u32 %v2303, 7
      %v2305 = vsub.s32 0, %v2304
      %v2306 = vrot.slane %v1550, %v2305
      %v2307 = vmul.f32 %v2302, %v2306
      %v2308 = vlaneseq
      %v2309 = vshrl.u32 %v2308, 7
      %v2310 = vsub.s32 1, %v2309
      %v2311 = vrot.slane %v1550, %v2310
      %v2312 = vadd.f32 %v2307, %v2311
      %v2313 = vpack.c.bf16 %v2312, %v2312
      %v2314 = vlaneseq
      %v2315 = vshrl.u32 %v2314, 7
      %v2316 = vsub.s32 2, %v2315
      %v2317 = vrot.slane %v1550, %v2316
      %v2322 = vunpack.c.l.b16 %v1567
      %v2323 = vunpack.c.l.b16 %v1568
      %v2324 = vunpack.c.l.b16 %v1569
      %v2325 = vunpack.c.l.b16 %v1570
      %v2326 = vpack.c.b16 %v2323, %v2322
      %v2327 = vpack.c.b16 %v2325, %v2324
      %v2331 = vsel %vm69, %v2313, 0
      %2333 = vmatprep.subr.bf16.mxu0 0
      %2334 = vmatpush1.bf16.msra.mxu0 %v2326
      %2335 = vmatprep.subr.bf16.mxu0 0
      %2336 = vmatpush1.bf16.msra.mxu0 %v2327
      %2337 = vmatprep.subr.bf16.mxu0 0
      %2338 = vmatpush1.bf16.msra.mxu0 0
      %2339 = vmatprep.subr.bf16.mxu0 0
      %2340 = vmatpush1.bf16.msra.mxu0 0
      %2341 = vmatprep.subr.bf16.mxu0 0
      %2342 = vmatpush1.bf16.msra.mxu0 0
      %2343 = vmatprep.subr.bf16.mxu0 0
      %2344 = vmatpush1.bf16.msra.mxu0 0
      %2345 = vmatprep.subr.bf16.mxu0 0
      %2346 = vmatpush1.bf16.msra.mxu0 0
      %2347 = vmatprep.subr.bf16.mxu0 0
      %2348 = vmatpush1.bf16.msra.mxu0 0
      %2349 = vmatprep.subr.bf16.mxu0 0
      %2350 = vmatpush1.bf16.msra.mxu0 0
      %2351 = vmatprep.subr.bf16.mxu0 0
      %2352 = vmatpush1.bf16.msra.mxu0 0
      %2353 = vmatprep.subr.bf16.mxu0 0
      %2354 = vmatpush1.bf16.msra.mxu0 0
      %2355 = vmatprep.subr.bf16.mxu0 0
      %2356 = vmatpush1.bf16.msra.mxu0 0
      %2357 = vmatprep.subr.bf16.mxu0 0
      %2358 = vmatpush1.bf16.msra.mxu0 0
      %2359 = vmatprep.subr.bf16.mxu0 0
      %2360 = vmatpush1.bf16.msra.mxu0 0
      %2361 = vmatprep.subr.bf16.mxu0 0
      %2362 = vmatpush1.bf16.msra.mxu0 0
      %2363 = vmatprep.subr.bf16.mxu0 0
      %2364 = vmatpush1.bf16.msra.mxu0 0
      %2365 = vmatprep.mubr.bf16.mxu0 0
      %2366 = vmatmul.mubr.bf16.gmra.mrb[0].mxu0 %v2331
      %v2367 = vpop.f32.mrb[0].mxu0
      %v2368 = vadd.f32 %v2317, %v2367
      %v2369 = vpop.f32.mrb[0].mxu0
      %v2370 = vpop.f32.mrb[0].mxu0
      %v2371 = vpop.f32.mrb[0].mxu0
      %2372 = vdwg.mxu0
      %v2373 = vmul.f32 %v2368, 0.5
      %v2374 = vmul.f32 %v2368, 0.044715
      %v2375 = vmul.f32 %v2374, %v2368
      %v2376 = vmul.f32 %v2375, %v2368
      %v2377 = vadd.f32 %v2368, %v2376
      %v2378 = vmul.f32 %v2377, 0.7978846
      %v2379 = vtanh.pop %v2378
      %v2380 = vadd.f32 %v2379, 1.0
      %v2381 = vmul.f32 %v2373, %v2380
      %v2382 = vpack.c.bf16 %v2381, %v2381
      %v2383 = vlaneseq
      %v2384 = vshrl.u32 %v2383, 7
      %v2385 = vsub.s32 3, %v2384
      %v2386 = vrot.slane %v1550, %v2385
      %v2391 = vunpack.c.l.b16 %v1571
      %v2392 = vunpack.c.l.b16 %v1572
      %v2393 = vunpack.c.l.b16 %v1573
      %v2394 = vunpack.c.l.b16 %v1574
      %v2395 = vpack.c.b16 %v2392, %v2391
      %v2396 = vpack.c.b16 %v2394, %v2393
      %v2400 = vsel %vm69, %v2382, 0
      %2402 = vmatprep.subr.bf16.mxu0 0
      %2403 = vmatpush1.bf16.msra.mxu0 %v2395
      %2404 = vmatprep.subr.bf16.mxu0 0
      %2405 = vmatpush1.bf16.msra.mxu0 %v2396
      %2406 = vmatprep.subr.bf16.mxu0 0
      %2407 = vmatpush1.bf16.msra.mxu0 0
      %2408 = vmatprep.subr.bf16.mxu0 0
      %2409 = vmatpush1.bf16.msra.mxu0 0
      %2410 = vmatprep.subr.bf16.mxu0 0
      %2411 = vmatpush1.bf16.msra.mxu0 0
      %2412 = vmatprep.subr.bf16.mxu0 0
      %2413 = vmatpush1.bf16.msra.mxu0 0
      %2414 = vmatprep.subr.bf16.mxu0 0
      %2415 = vmatpush1.bf16.msra.mxu0 0
      %2416 = vmatprep.subr.bf16.mxu0 0
      %2417 = vmatpush1.bf16.msra.mxu0 0
      %2418 = vmatprep.subr.bf16.mxu0 0
      %2419 = vmatpush1.bf16.msra.mxu0 0
      %2420 = vmatprep.subr.bf16.mxu0 0
      %2421 = vmatpush1.bf16.msra.mxu0 0
      %2422 = vmatprep.subr.bf16.mxu0 0
      %2423 = vmatpush1.bf16.msra.mxu0 0
      %2424 = vmatprep.subr.bf16.mxu0 0
      %2425 = vmatpush1.bf16.msra.mxu0 0
      %2426 = vmatprep.subr.bf16.mxu0 0
      %2427 = vmatpush1.bf16.msra.mxu0 0
      %2428 = vmatprep.subr.bf16.mxu0 0
      %2429 = vmatpush1.bf16.msra.mxu0 0
      %2430 = vmatprep.subr.bf16.mxu0 0
      %2431 = vmatpush1.bf16.msra.mxu0 0
      %2432 = vmatprep.subr.bf16.mxu0 0
      %2433 = vmatpush1.bf16.msra.mxu0 0
      %2434 = vmatprep.mubr.bf16.mxu0 0
      %2435 = vmatmul.mubr.bf16.gmra.mrb[0].mxu0 %v2400
      %v2436 = vpop.f32.mrb[0].mxu0
      %v2437 = vadd.f32 %v2386, %v2436
      %v2438 = vpop.f32.mrb[0].mxu0
      %v2439 = vpop.f32.mrb[0].mxu0
      %v2440 = vpop.f32.mrb[0].mxu0
      %2441 = vdwg.mxu0
      %v2442 = vadd.f32 %v2289, %v2437
    $region38: #{perceiver_forward.3} parent=1 // loop_footer
      %s650 = sadd.s32 1, %s646
    $region39: #{perceiver_forward.3} parent=1 // loop_footer_branch
      %645 = sbr.rel target = $region35
    $region40: #{perceiver_forward.3} parent=1 // loop_exit
      _
    %v2443 = vld [vmem:[%s4 + $0x30] sm:$0xff]
    %v2444 = vld [vmem:[%s4 + $0x38] sm:$0xff]
    %v2445 = vld [vmem:[%s3 + $0x150] sm:$0xf]
    %v2446 = vld [vmem:[%s3 + $0x154] sm:$0xf]
    %v2447 = vld [vmem:[%s3 + $0x158] sm:$0xf]
    %v2448 = vld [vmem:[%s3 + $0x15c] sm:$0xf]
    %v2449 = vld [vmem:[%s3 + $0x160] sm:$0xf]
    %v2450 = vld [vmem:[%s3 + $0x164] sm:$0xf]
    %v2451 = vld [vmem:[%s3 + $0x168] sm:$0xf]
    %v2452 = vld [vmem:[%s3 + $0x16c] sm:$0xf]
    %v2453 = vld [vmem:[%s3 + $0x178] sm:$0xf]
    %v2454 = vld [vmem:[%s3 + $0x17c] sm:$0xf]
    %v2455 = vld [vmem:[%s3 + $0x180] sm:$0xf]
    %v2456 = vld [vmem:[%s3 + $0x184] sm:$0xf]
    %v2457 = vld [vmem:[%s3 + $0x190] sm:$0xf]
    %v2458 = vld [vmem:[%s3 + $0x194] sm:$0xf]
    %v2459 = vld [vmem:[%s3 + $0x198] sm:$0xf]
    %v2460 = vld [vmem:[%s3 + $0x19c] sm:$0xf]
    %v2461 = vld [vmem:[%s3 + $0x1a0] sm:$0xf]
    %v2462 = vld [vmem:[%s3 + $0x1a4] sm:$0xf]
    %v2463 = vld [vmem:[%s3 + $0x1a8] sm:$0xf]
    %v2464 = vld [vmem:[%s3 + $0x1ac] sm:$0xf]
    %v2465 = vld [vmem:[%s3 + $0x1b0] sm:$0xf]
    %v2466 = vld [vmem:[%s3 + $0x1b4] sm:$0xf]
    %v2467 = vld [vmem:[%s3 + $0x1b8] sm:$0xf]
    %v2468 = vld [vmem:[%s3 + $0x1bc] sm:$0xf]
    %vm2469 = vcmask 253952
    %v2470 = vsel %vm2469, %v32, 0.0
    %2471 = vadd.xlane.f32.xlu0 %v2470
    %v2472 = vpop.xlane.xlu0 %2471
    %v2473 = vmul.f32 %v2472, %v73
    %v2474 = vsub.f32 %v32, %v2473
    %v2475 = vmul.f32 %v2474, %v2474
    %v2476 = vsel %vm2469, %v2475, 0.0
    %2477 = vadd.xlane.f32.xlu0 %v2476
    %v2478 = vpop.xlane.xlu0 %2477
    %v2479 = vmul.f32 %v2478, %v73
    %v2480 = vadd.f32 %v2479, 1e-05
    %v2481 = vrsqrt.pop %v2480
    %v2482 = vmul.f32 %v2474, %v2481
    %v2483 = vmul.f32 %v2482, %v2443
    %v2486 = vunpack.c.l.s4 1966171168
    %v2487 = vunpack.c.0.s8 %v2486
    %v2488 = vlaneseq
    %v2489 = vshrl.u32 %v2488, 7
    %v2490 = vsub.s32 %v2487, %v2489
    %v2491 = vrot.slane %v2443, %v2490
    %v2492 = vcombine.high %v2491, %v2491
    %v2494 = vunpack.c.l.s4 1966171168
    %v2495 = vunpack.c.0.s8 %v2494
    %v2496 = vlaneseq
    %v2497 = vshrl.u32 %v2496, 7
    %v2498 = vsub.s32 %v2495, %v2497
    %v2499 = vrot.slane %v2492, %v2498
    %v2501 = vadd.f32 %v2483, %v2499
    %v2502 = vsel %vm69, %v651, 0.0
    %2503 = vadd.xlane.f32.xlu0 %v2502
    %v2504 = vpop.xlane.xlu0 %2503
    %v2505 = vmul.f32 %v2504, %v73
    %v2506 = vsub.f32 %v651, %v2505
    %v2507 = vmul.f32 %v2506, %v2506
    %v2508 = vsel %vm69, %v2507, 0.0
    %2509 = vadd.xlane.f32.xlu0 %v2508
    %v2510 = vpop.xlane.xlu0 %2509
    %v2511 = vmul.f32 %v2510, %v73
    %v2512 = vadd.f32 %v2511, 1e-05
    %v2513 = vrsqrt.pop %v2512
    %v2514 = vmul.f32 %v2506, %v2513
    %v2515 = vlaneseq
    %v2516 = vshrl.u32 %v2515, 7
    %v2517 = vsub.s32 2, %v2516
    %v2518 = vrot.slane %v2443, %v2517
    %v2519 = vmul.f32 %v2514, %v2518
    %v2520 = vlaneseq
    %v2521 = vshrl.u32 %v2520, 7
    %v2522 = vsub.s32 3, %v2521
    %v2523 = vrot.slane %v2443, %v2522
    %v2524 = vadd.f32 %v2519, %v2523
    %v2525 = vpack.c.bf16 %v2501, %v2501
    %v2530 = vunpack.c.l.b16 %v2445
    %v2531 = vunpack.c.l.b16 %v2446
    %v2532 = vunpack.c.l.b16 %v2447
    %v2533 = vunpack.c.l.b16 %v2448
    %v2534 = vpack.c.b16 %v2531, %v2530
    %v2535 = vpack.c.b16 %v2533, %v2532
    %v2538 = vrot.slane %v2443, 4
    %v2541 = vsel %vm69, %v2525, 0
    %2543 = vmatprep.subr.bf16.mxu0 0
    %2544 = vmatpush1.bf16.msra.mxu0 %v2534
    %2545 = vmatprep.subr.bf16.mxu0 0
    %2546 = vmatpush1.bf16.msra.mxu0 %v2535
    %2547 = vmatprep.subr.bf16.mxu0 0
    %2548 = vmatpush1.bf16.msra.mxu0 0
    %2549 = vmatprep.subr.bf16.mxu0 0
    %2550 = vmatpush1.bf16.msra.mxu0 0
    %2551 = vmatprep.subr.bf16.mxu0 0
    %2552 = vmatpush1.bf16.msra.mxu0 0
    %2553 = vmatprep.subr.bf16.mxu0 0
    %2554 = vmatpush1.bf16.msra.mxu0 0
    %2555 = vmatprep.subr.bf16.mxu0 0
    %2556 = vmatpush1.bf16.msra.mxu0 0
    %2557 = vmatprep.subr.bf16.mxu0 0
    %2558 = vmatpush1.bf16.msra.mxu0 0
    %2559 = vmatprep.subr.bf16.mxu0 0
    %2560 = vmatpush1.bf16.msra.mxu0 0
    %2561 = vmatprep.subr.bf16.mxu0 0
    %2562 = vmatpush1.bf16.msra.mxu0 0
    %2563 = vmatprep.subr.bf16.mxu0 0
    %2564 = vmatpush1.bf16.msra.mxu0 0
    %2565 = vmatprep.subr.bf16.mxu0 0
    %2566 = vmatpush1.bf16.msra.mxu0 0
    %2567 = vmatprep.subr.bf16.mxu0 0
    %2568 = vmatpush1.bf16.msra.mxu0 0
    %2569 = vmatprep.subr.bf16.mxu0 0
    %2570 = vmatpush1.bf16.msra.mxu0 0
    %2571 = vmatprep.subr.bf16.mxu0 0
    %2572 = vmatpush1.bf16.msra.mxu0 0
    %2573 = vmatprep.subr.bf16.mxu0 0
    %2574 = vmatpush1.bf16.msra.mxu0 0
    %2575 = vmatprep.mubr.bf16.mxu0 0
    %2576 = vmatmul.mubr.bf16.gmra.mrb[0].mxu0 %v2541
    %v2577 = vpop.f32.mrb[0].mxu0
    %v2578 = vadd.f32 %v2538, %v2577
    %v2579 = vpop.f32.mrb[0].mxu0
    %v2580 = vpop.f32.mrb[0].mxu0
    %v2581 = vpop.f32.mrb[0].mxu0
    %2582 = vdwg.mxu0
    %v2583 = vpack.c.bf16 %v2524, %v2524
    %v2584 = vlaneseq
    %v2585 = vshrl.u32 %v2584, 7
    %v2586 = vsub.s32 5, %v2585
    %v2587 = vrot.slane %v2443, %v2586
    %v2592 = vunpack.c.l.b16 %v2449
    %v2593 = vunpack.c.l.b16 %v2450
    %v2594 = vunpack.c.l.b16 %v2451
    %v2595 = vunpack.c.l.b16 %v2452
    %v2596 = vpack.c.b16 %v2593, %v2592
    %v2597 = vpack.c.b16 %v2595, %v2594
    %v2601 = vsel %vm69, %v2583, 0
    %2603 = vmatprep.subr.bf16.mxu0 0
    %2604 = vmatpush1.bf16.msra.mxu0 %v2596
    %2605 = vmatprep.subr.bf16.mxu0 0
    %2606 = vmatpush1.bf16.msra.mxu0 %v2597
    %2607 = vmatprep.subr.bf16.mxu0 0
    %2608 = vmatpush1.bf16.msra.mxu0 0
    %2609 = vmatprep.subr.bf16.mxu0 0
    %2610 = vmatpush1.bf16.msra.mxu0 0
    %2611 = vmatprep.subr.bf16.mxu0 0
    %2612 = vmatpush1.bf16.msra.mxu0 0
    %2613 = vmatprep.subr.bf16.mxu0 0
    %2614 = vmatpush1.bf16.msra.mxu0 0
    %2615 = vmatprep.subr.bf16.mxu0 0
    %2616 = vmatpush1.bf16.msra.mxu0 0
    %2617 = vmatprep.subr.bf16.mxu0 0
    %2618 = vmatpush1.bf16.msra.mxu0 0
    %2619 = vmatprep.subr.bf16.mxu0 0
    %2620 = vmatpush1.bf16.msra.mxu0 0
    %2621 = vmatprep.subr.bf16.mxu0 0
    %2622 = vmatpush1.bf16.msra.mxu0 0
    %2623 = vmatprep.subr.bf16.mxu0 0
    %2624 = vmatpush1.bf16.msra.mxu0 0
    %2625 = vmatprep.subr.bf16.mxu0 0
    %2626 = vmatpush1.bf16.msra.mxu0 0
    %2627 = vmatprep.subr.bf16.mxu0 0
    %2628 = vmatpush1.bf16.msra.mxu0 0
    %2629 = vmatprep.subr.bf16.mxu0 0
    %2630 = vmatpush1.bf16.msra.mxu0 0
    %2631 = vmatprep.subr.bf16.mxu0 0
    %2632 = vmatpush1.bf16.msra.mxu0 0
    %2633 = vmatprep.subr.bf16.mxu0 0
    %2634 = vmatpush1.bf16.msra.mxu0 0
    %2635 = vmatprep.mubr.bf16.mxu0 0
    %2636 = vmatmul.mubr.bf16.gmra.mrb[0].mxu0 %v2601
    %v2637 = vpop.f32.mrb[0].mxu0
    %v2638 = vadd.f32 %v2587, %v2637
    %v2639 = vpop.f32.mrb[0].mxu0
    %v2640 = vpop.f32.mrb[0].mxu0
    %v2641 = vpop.f32.mrb[0].mxu0
    %2642 = vdwg.mxu0
    %v2643 = vlaneseq
    %v2644 = vshrl.u32 %v2643, 7
    %v2645 = vsub.s32 6, %v2644
    %v2646 = vrot.slane %v2443, %v2645
    %v2651 = vunpack.c.l.b16 %v2453
    %v2652 = vunpack.c.l.b16 %v2454
    %v2653 = vunpack.c.l.b16 %v2455
    %v2654 = vunpack.c.l.b16 %v2456
    %v2655 = vpack.c.b16 %v2652, %v2651
    %v2656 = vpack.c.b16 %v2654, %v2653
    %2659 = vmatprep.subr.bf16.mxu0 0
    %2660 = vmatpush1.bf16.msra.mxu0 %v2655
    %2661 = vmatprep.subr.bf16.mxu0 0
    %2662 = vmatpush1.bf16.msra.mxu0 %v2656
    %2663 = vmatprep.subr.bf16.mxu0 0
    %2664 = vmatpush1.bf16.msra.mxu0 0
    %2665 = vmatprep.subr.bf16.mxu0 0
    %2666 = vmatpush1.bf16.msra.mxu0 0
    %2667 = vmatprep.subr.bf16.mxu0 0
    %2668 = vmatpush1.bf16.msra.mxu0 0
    %2669 = vmatprep.subr.bf16.mxu0 0
    %2670 = vmatpush1.bf16.msra.mxu0 0
    %2671 = vmatprep.subr.bf16.mxu0 0
    %2672 = vmatpush1.bf16.msra.mxu0 0
    %2673 = vmatprep.subr.bf16.mxu0 0
    %2674 = vmatpush1.bf16.msra.mxu0 0
    %2675 = vmatprep.subr.bf16.mxu0 0
    %2676 = vmatpush1.bf16.msra.mxu0 0
    %2677 = vmatprep.subr.bf16.mxu0 0
    %2678 = vmatpush1.bf16.msra.mxu0 0
    %2679 = vmatprep.subr.bf16.mxu0 0
    %2680 = vmatpush1.bf16.msra.mxu0 0
    %2681 = vmatprep.subr.bf16.mxu0 0
    %2682 = vmatpush1.bf16.msra.mxu0 0
    %2683 = vmatprep.subr.bf16.mxu0 0
    %2684 = vmatpush1.bf16.msra.mxu0 0
    %2685 = vmatprep.subr.bf16.mxu0 0
    %2686 = vmatpush1.bf16.msra.mxu0 0
    %2687 = vmatprep.subr.bf16.mxu0 0
    %2688 = vmatpush1.bf16.msra.mxu0 0
    %2689 = vmatprep.subr.bf16.mxu0 0
    %2690 = vmatpush1.bf16.msra.mxu0 0
    %2691 = vmatprep.mubr.bf16.mxu0 0
    %2692 = vmatmul.mubr.bf16.gmra.mrb[0].mxu0 %v2601
    %v2693 = vpop.f32.mrb[0].mxu0
    %v2694 = vadd.f32 %v2646, %v2693
    %v2695 = vpop.f32.mrb[0].mxu0
    %v2696 = vpop.f32.mrb[0].mxu0
    %v2697 = vpop.f32.mrb[0].mxu0
    %2698 = vdwg.mxu0
    %v2699 = vpack.c.bf16 %v2578, %v2578
    %v2700 = vpack.c.bf16 %v2638, %v2638
    %v2702 = vsel %vm69, %v2699, 0
    %v2705 = vsel %vm69, %v2700, 0
    %2707 = vmatprep.subr.bf16.mxu0 0
    %2708 = vmatpush1.bf16.xpose.msra.mxu0 %v2705
    %2709 = vmatprep.subr.bf16.mxu0 0
    %2710 = vmatpush1.bf16.xpose.msra.mxu0 0
    %2711 = vmatprep.subr.bf16.mxu0 0
    %2712 = vmatpush1.bf16.xpose.msra.mxu0 0
    %2713 = vmatprep.subr.bf16.mxu0 0
    %2714 = vmatpush1.bf16.xpose.msra.mxu0 0
    %2715 = vmatprep.subr.bf16.mxu0 0
    %2716 = vmatpush1.bf16.xpose.msra.mxu0 0
    %2717 = vmatprep.subr.bf16.mxu0 0
    %2718 = vmatpush1.bf16.xpose.msra.mxu0 0
    %2719 = vmatprep.subr.bf16.mxu0 0
    %2720 = vmatpush1.bf16.xpose.msra.mxu0 0
    %2721 = vmatprep.subr.bf16.mxu0 0
    %2722 = vmatpush1.bf16.xpose.msra.mxu0 0
    %2723 = vmatprep.subr.bf16.mxu0 0
    %2724 = vmatpush1.bf16.xpose.msra.mxu0 0
    %2725 = vmatprep.subr.bf16.mxu0 0
    %2726 = vmatpush1.bf16.xpose.msra.mxu0 0
    %2727 = vmatprep.subr.bf16.mxu0 0
    %2728 = vmatpush1.bf16.xpose.msra.mxu0 0
    %2729 = vmatprep.subr.bf16.mxu0 0
    %2730 = vmatpush1.bf16.xpose.msra.mxu0 0
    %2731 = vmatprep.subr.bf16.mxu0 0
    %2732 = vmatpush1.bf16.xpose.msra.mxu0 0
    %2733 = vmatprep.subr.bf16.mxu0 0
    %2734 = vmatpush1.bf16.xpose.msra.mxu0 0
    %2735 = vmatprep.subr.bf16.mxu0 0
    %2736 = vmatpush1.bf16.xpose.msra.mxu0 0
    %2737 = vmatprep.subr.bf16.mxu0 0
    %2738 = vmatpush1.bf16.xpose.msra.mxu0 0
    %2739 = vmatprep.mubr.bf16.mxu0 0
    %2740 = vmatmul.mubr.bf16.gmra.mrb[0].mxu0 %v2702
    %v2741 = vpop.f32.mrb[0].mxu0
    %v2742 = vadd.f32 0.0, %v2741
    %v2743 = vpop.f32.mrb[0].mxu0
    %v2744 = vpop.f32.mrb[0].mxu0
    %v2745 = vpop.f32.mrb[0].mxu0
    %2746 = vdwg.mxu0
    %v2747 = vmul.f32 %v2742, 0.17677669
    %vm2748 = vcmask 57344
    %v2749 = vsel %vm2748, %v2747, -inf
    %2750 = vmax.xlane.f32.xlu0 %v2749
    %v2751 = vpop.xlane.xlu0 %2750
    %v2752 = vsub.f32 %v2747, %v2751
    %v2753 = vmul.f32 %v2752, 1.442695
    %v2754 = vpow.pop %v2753
    %v2755 = vsel %vm2748, %v2754, 0.0
    %2756 = vadd.xlane.f32.xlu0 %v2755
    %v2757 = vpop.xlane.xlu0 %2756
    %v2758 = vrcp.pop %v2757
    %v2759 = vmul.f32 %v2754, %v2758
    %v2760 = vpack.c.bf16 %v2759, %v2759
    %v2761 = vpack.c.bf16 %v2694, %v2694
    %vm2762 = vcmask 64512
    %v2764 = vsel %vm2762, %v2760, 0
    %vm2766 = vcmask 1043456
    %v2768 = vsel %vm2766, %v2761, 0
    %2770 = vmatprep.subr.bf16.mxu0 0
    %2771 = vmatpush1.bf16.msra.mxu0 %v2768
    %2772 = vmatprep.subr.bf16.mxu0 0
    %2773 = vmatpush1.bf16.msra.mxu0 0
    %2774 = vmatprep.subr.bf16.mxu0 0
    %2775 = vmatpush1.bf16.msra.mxu0 0
    %2776 = vmatprep.subr.bf16.mxu0 0
    %2777 = vmatpush1.bf16.msra.mxu0 0
    %2778 = vmatprep.subr.bf16.mxu0 0
    %2779 = vmatpush1.bf16.msra.mxu0 0
    %2780 = vmatprep.subr.bf16.mxu0 0
    %2781 = vmatpush1.bf16.msra.mxu0 0
    %2782 = vmatprep.subr.bf16.mxu0 0
    %2783 = vmatpush1.bf16.msra.mxu0 0
    %2784 = vmatprep.subr.bf16.mxu0 0
    %2785 = vmatpush1.bf16.msra.mxu0 0
    %2786 = vmatprep.subr.bf16.mxu0 0
    %2787 = vmatpush1.bf16.msra.mxu0 0
    %2788 = vmatprep.subr.bf16.mxu0 0
    %2789 = vmatpush1.bf16.msra.mxu0 0
    %2790 = vmatprep.subr.bf16.mxu0 0
    %2791 = vmatpush1.bf16.msra.mxu0 0
    %2792 = vmatprep.subr.bf16.mxu0 0
    %2793 = vmatpush1.bf16.msra.mxu0 0
    %2794 = vmatprep.subr.bf16.mxu0 0
    %2795 = vmatpush1.bf16.msra.mxu0 0
    %2796 = vmatprep.subr.bf16.mxu0 0
    %2797 = vmatpush1.bf16.msra.mxu0 0
    %2798 = vmatprep.subr.bf16.mxu0 0
    %2799 = vmatpush1.bf16.msra.mxu0 0
    %2800 = vmatprep.subr.bf16.mxu0 0
    %2801 = vmatpush1.bf16.msra.mxu0 0
    %2802 = vmatprep.mubr.bf16.mxu0 0
    %2803 = vmatmul.mubr.bf16.gmra.mrb[0].mxu0 %v2764
    %v2804 = vpop.f32.mrb[0].mxu0
    %v2805 = vadd.f32 0.0, %v2804
    %v2806 = vpop.f32.mrb[0].mxu0
    %v2807 = vpop.f32.mrb[0].mxu0
    %v2808 = vpop.f32.mrb[0].mxu0
    %2809 = vdwg.mxu0
    %v2810 = vpack.c.bf16 %v2805, %v2805
    %v2815 = vunpack.c.l.b16 %v2457
    %v2816 = vunpack.c.l.b16 %v2458
    %v2817 = vunpack.c.l.b16 %v2459
    %v2818 = vunpack.c.l.b16 %v2460
    %v2819 = vpack.c.b16 %v2816, %v2815
    %v2820 = vpack.c.b16 %v2818, %v2817
    %v2823 = vrot.slane %v2443, 7
    %v2826 = vsel %vm69, %v2810, 0
    %2828 = vmatprep.subr.bf16.mxu0 0
    %2829 = vmatpush1.bf16.msra.mxu0 %v2819
    %2830 = vmatprep.subr.bf16.mxu0 0
    %2831 = vmatpush1.bf16.msra.mxu0 %v2820
    %2832 = vmatprep.subr.bf16.mxu0 0
    %2833 = vmatpush1.bf16.msra.mxu0 0
    %2834 = vmatprep.subr.bf16.mxu0 0
    %2835 = vmatpush1.bf16.msra.mxu0 0
    %2836 = vmatprep.subr.bf16.mxu0 0
    %2837 = vmatpush1.bf16.msra.mxu0 0
    %2838 = vmatprep.subr.bf16.mxu0 0
    %2839 = vmatpush1.bf16.msra.mxu0 0
    %2840 = vmatprep.subr.bf16.mxu0 0
    %2841 = vmatpush1.bf16.msra.mxu0 0
    %2842 = vmatprep.subr.bf16.mxu0 0
    %2843 = vmatpush1.bf16.msra.mxu0 0
    %2844 = vmatprep.subr.bf16.mxu0 0
    %2845 = vmatpush1.bf16.msra.mxu0 0
    %2846 = vmatprep.subr.bf16.mxu0 0
    %2847 = vmatpush1.bf16.msra.mxu0 0
    %2848 = vmatprep.subr.bf16.mxu0 0
    %2849 = vmatpush1.bf16.msra.mxu0 0
    %2850 = vmatprep.subr.bf16.mxu0 0
    %2851 = vmatpush1.bf16.msra.mxu0 0
    %2852 = vmatprep.subr.bf16.mxu0 0
    %2853 = vmatpush1.bf16.msra.mxu0 0
    %2854 = vmatprep.subr.bf16.mxu0 0
    %2855 = vmatpush1.bf16.msra.mxu0 0
    %2856 = vmatprep.subr.bf16.mxu0 0
    %2857 = vmatpush1.bf16.msra.mxu0 0
    %2858 = vmatprep.subr.bf16.mxu0 0
    %2859 = vmatpush1.bf16.msra.mxu0 0
    %2860 = vmatprep.mubr.bf16.mxu0 0
    %2861 = vmatmul.mubr.bf16.gmra.mrb[0].mxu0 %v2826
    %v2862 = vpop.f32.mrb[0].mxu0
    %v2863 = vadd.f32 %v2823, %v2862
    %v2864 = vpop.f32.mrb[0].mxu0
    %v2865 = vpop.f32.mrb[0].mxu0
    %v2866 = vpop.f32.mrb[0].mxu0
    %2867 = vdwg.mxu0
    %v2868 = vadd.f32 %v32, %v2863
    %v2869 = vsel %vm2469, %v2868, 0.0
    %2870 = vadd.xlane.f32.xlu0 %v2869
    %v2871 = vpop.xlane.xlu0 %2870
    %v2872 = vmul.f32 %v2871, %v73
    %v2873 = vsub.f32 %v2868, %v2872
    %v2874 = vmul.f32 %v2873, %v2873
    %v2875 = vsel %vm2469, %v2874, 0.0
    %2876 = vadd.xlane.f32.xlu0 %v2875
    %v2877 = vpop.xlane.xlu0 %2876
    %v2878 = vmul.f32 %v2877, %v73
    %v2879 = vadd.f32 %v2878, 1e-05
    %v2880 = vrsqrt.pop %v2879
    %v2881 = vmul.f32 %v2873, %v2880
    %v2882 = vmul.f32 %v2881, %v2444
    %v2885 = vunpack.c.l.s4 1966171168
    %v2886 = vunpack.c.0.s8 %v2885
    %v2887 = vlaneseq
    %v2888 = vshrl.u32 %v2887, 7
    %v2889 = vsub.s32 %v2886, %v2888
    %v2890 = vrot.slane %v2444, %v2889
    %v2891 = vcombine.high %v2890, %v2890
    %v2893 = vunpack.c.l.s4 1966171168
    %v2894 = vunpack.c.0.s8 %v2893
    %v2895 = vlaneseq
    %v2896 = vshrl.u32 %v2895, 7
    %v2897 = vsub.s32 %v2894, %v2896
    %v2898 = vrot.slane %v2891, %v2897
    %v2900 = vadd.f32 %v2882, %v2898
    %v2901 = vpack.c.bf16 %v2900, %v2900
    %v2906 = vunpack.c.l.b16 %v2461
    %v2907 = vunpack.c.l.b16 %v2462
    %v2908 = vunpack.c.l.b16 %v2463
    %v2909 = vunpack.c.l.b16 %v2464
    %v2910 = vpack.c.b16 %v2907, %v2906
    %v2911 = vpack.c.b16 %v2909, %v2908
    %v2914 = vrot.slane %v2444, 2
    %v2917 = vsel %vm69, %v2901, 0
    %2919 = vmatprep.subr.bf16.mxu0 0
    %2920 = vmatpush1.bf16.msra.mxu0 %v2910
    %2921 = vmatprep.subr.bf16.mxu0 0
    %2922 = vmatpush1.bf16.msra.mxu0 %v2911
    %2923 = vmatprep.subr.bf16.mxu0 0
    %2924 = vmatpush1.bf16.msra.mxu0 0
    %2925 = vmatprep.subr.bf16.mxu0 0
    %2926 = vmatpush1.bf16.msra.mxu0 0
    %2927 = vmatprep.subr.bf16.mxu0 0
    %2928 = vmatpush1.bf16.msra.mxu0 0
    %2929 = vmatprep.subr.bf16.mxu0 0
    %2930 = vmatpush1.bf16.msra.mxu0 0
    %2931 = vmatprep.subr.bf16.mxu0 0
    %2932 = vmatpush1.bf16.msra.mxu0 0
    %2933 = vmatprep.subr.bf16.mxu0 0
    %2934 = vmatpush1.bf16.msra.mxu0 0
    %2935 = vmatprep.subr.bf16.mxu0 0
    %2936 = vmatpush1.bf16.msra.mxu0 0
    %2937 = vmatprep.subr.bf16.mxu0 0
    %2938 = vmatpush1.bf16.msra.mxu0 0
    %2939 = vmatprep.subr.bf16.mxu0 0
    %2940 = vmatpush1.bf16.msra.mxu0 0
    %2941 = vmatprep.subr.bf16.mxu0 0
    %2942 = vmatpush1.bf16.msra.mxu0 0
    %2943 = vmatprep.subr.bf16.mxu0 0
    %2944 = vmatpush1.bf16.msra.mxu0 0
    %2945 = vmatprep.subr.bf16.mxu0 0
    %2946 = vmatpush1.bf16.msra.mxu0 0
    %2947 = vmatprep.subr.bf16.mxu0 0
    %2948 = vmatpush1.bf16.msra.mxu0 0
    %2949 = vmatprep.subr.bf16.mxu0 0
    %2950 = vmatpush1.bf16.msra.mxu0 0
    %2951 = vmatprep.mubr.bf16.mxu0 0
    %2952 = vmatmul.mubr.bf16.gmra.mrb[0].mxu0 %v2917
    %v2953 = vpop.f32.mrb[0].mxu0
    %v2954 = vadd.f32 %v2914, %v2953
    %v2955 = vpop.f32.mrb[0].mxu0
    %v2956 = vpop.f32.mrb[0].mxu0
    %v2957 = vpop.f32.mrb[0].mxu0
    %2958 = vdwg.mxu0
    %v2959 = vmul.f32 %v2954, 0.5
    %v2960 = vmul.f32 %v2954, 0.044715
    %v2961 = vmul.f32 %v2960, %v2954
    %v2962 = vmul.f32 %v2961, %v2954
    %v2963 = vadd.f32 %v2954, %v2962
    %v2964 = vmul.f32 %v2963, 0.7978846
    %v2965 = vtanh.pop %v2964
    %v2966 = vadd.f32 %v2965, 1.0
    %v2967 = vmul.f32 %v2959, %v2966
    %v2968 = vpack.c.bf16 %v2967, %v2967
    %v2973 = vunpack.c.l.b16 %v2465
    %v2974 = vunpack.c.l.b16 %v2466
    %v2975 = vunpack.c.l.b16 %v2467
    %v2976 = vunpack.c.l.b16 %v2468
    %v2977 = vpack.c.b16 %v2974, %v2973
    %v2978 = vpack.c.b16 %v2976, %v2975
    %v2981 = vrot.slane %v2444, 3
    %v2984 = vsel %vm69, %v2968, 0
    %2986 = vmatprep.subr.bf16.mxu0 0
    %2987 = vmatpush1.bf16.msra.mxu0 %v2977
    %2988 = vmatprep.subr.bf16.mxu0 0
    %2989 = vmatpush1.bf16.msra.mxu0 %v2978
    %2990 = vmatprep.subr.bf16.mxu0 0
    %2991 = vmatpush1.bf16.msra.mxu0 0
    %2992 = vmatprep.subr.bf16.mxu0 0
    %2993 = vmatpush1.bf16.msra.mxu0 0
    %2994 = vmatprep.subr.bf16.mxu0 0
    %2995 = vmatpush1.bf16.msra.mxu0 0
    %2996 = vmatprep.subr.bf16.mxu0 0
    %2997 = vmatpush1.bf16.msra.mxu0 0
    %2998 = vmatprep.subr.bf16.mxu0 0
    %2999 = vmatpush1.bf16.msra.mxu0 0
    %3000 = vmatprep.subr.bf16.mxu0 0
    %3001 = vmatpush1.bf16.msra.mxu0 0
    %3002 = vmatprep.subr.bf16.mxu0 0
    %3003 = vmatpush1.bf16.msra.mxu0 0
    %3004 = vmatprep.subr.bf16.mxu0 0
    %3005 = vmatpush1.bf16.msra.mxu0 0
    %3006 = vmatprep.subr.bf16.mxu0 0
    %3007 = vmatpush1.bf16.msra.mxu0 0
    %3008 = vmatprep.subr.bf16.mxu0 0
    %3009 = vmatpush1.bf16.msra.mxu0 0
    %3010 = vmatprep.subr.bf16.mxu0 0
    %3011 = vmatpush1.bf16.msra.mxu0 0
    %3012 = vmatprep.subr.bf16.mxu0 0
    %3013 = vmatpush1.bf16.msra.mxu0 0
    %3014 = vmatprep.subr.bf16.mxu0 0
    %3015 = vmatpush1.bf16.msra.mxu0 0
    %3016 = vmatprep.subr.bf16.mxu0 0
    %3017 = vmatpush1.bf16.msra.mxu0 0
    %3018 = vmatprep.mubr.bf16.mxu0 0
    %3019 = vmatmul.mubr.bf16.gmra.mrb[0].mxu0 %v2984
    %v3020 = vpop.f32.mrb[0].mxu0
    %v3021 = vadd.f32 %v2981, %v3020
    %v3022 = vpop.f32.mrb[0].mxu0
    %v3023 = vpop.f32.mrb[0].mxu0
    %v3024 = vpop.f32.mrb[0].mxu0
    %3025 = vdwg.mxu0
    %v3026 = vadd.f32 %v2868, %v3021
    %v3027 = vpack.c.bf16 %v3026, %v3026
    %v3032 = vunpack.c.l.b16 %v34
    %v3033 = vunpack.c.l.b16 %v35
    %v3034 = vunpack.c.l.b16 %v36
    %v3035 = vunpack.c.l.b16 %v37
    %v3036 = vpack.c.b16 %v3033, %v3032
    %v3037 = vpack.c.b16 %v3035, %v3034
    %v3041 = vsel %vm69, %v3027, 0
    %3043 = vmatprep.subr.bf16.mxu0 0
    %3044 = vmatpush1.bf16.msra.mxu0 %v3036
    %3045 = vmatprep.subr.bf16.mxu0 0
    %3046 = vmatpush1.bf16.msra.mxu0 %v3037
    %3047 = vmatprep.subr.bf16.mxu0 0
    %3048 = vmatpush1.bf16.msra.mxu0 0
    %3049 = vmatprep.subr.bf16.mxu0 0
    %3050 = vmatpush1.bf16.msra.mxu0 0
    %3051 = vmatprep.subr.bf16.mxu0 0
    %3052 = vmatpush1.bf16.msra.mxu0 0
    %3053 = vmatprep.subr.bf16.mxu0 0
    %3054 = vmatpush1.bf16.msra.mxu0 0
    %3055 = vmatprep.subr.bf16.mxu0 0
    %3056 = vmatpush1.bf16.msra.mxu0 0
    %3057 = vmatprep.subr.bf16.mxu0 0
    %3058 = vmatpush1.bf16.msra.mxu0 0
    %3059 = vmatprep.subr.bf16.mxu0 0
    %3060 = vmatpush1.bf16.msra.mxu0 0
    %3061 = vmatprep.subr.bf16.mxu0 0
    %3062 = vmatpush1.bf16.msra.mxu0 0
    %3063 = vmatprep.subr.bf16.mxu0 0
    %3064 = vmatpush1.bf16.msra.mxu0 0
    %3065 = vmatprep.subr.bf16.mxu0 0
    %3066 = vmatpush1.bf16.msra.mxu0 0
    %3067 = vmatprep.subr.bf16.mxu0 0
    %3068 = vmatpush1.bf16.msra.mxu0 0
    %3069 = vmatprep.subr.bf16.mxu0 0
    %3070 = vmatpush1.bf16.msra.mxu0 0
    %3071 = vmatprep.subr.bf16.mxu0 0
    %3072 = vmatpush1.bf16.msra.mxu0 0
    %3073 = vmatprep.subr.bf16.mxu0 0
    %3074 = vmatpush1.bf16.msra.mxu0 0
    %3075 = vmatprep.mubr.bf16.mxu0 0
    %3076 = vmatmul.mubr.bf16.gmra.mrb[0].mxu0 %v3041
    %v3077 = vpop.f32.mrb[0].mxu0
    %v3078 = vadd.f32 %v38, %v3077
    %v3079 = vpop.f32.mrb[0].mxu0
    %v3080 = vpop.f32.mrb[0].mxu0
    %v3081 = vpop.f32.mrb[0].mxu0
    %3082 = vdwg.mxu0
    %s3083 = scalar_lea.vmem %s0, 16
    %v3084 = vld [vmem:[%s3083] sm:$0xff]
    %v3085 = vld [vmem:[%s3083 + $0x8] sm:$0xff]
    %v3086 = vsel %vm94, %v3084, 0.0
    %3087 = vadd.xlane.f32.xlu0 %v3086
    %v3088 = vpop.xlane.xlu0 %3087
    %v3089 = vsel %vm94, %v3085, 0.0
    %3090 = vadd.xlane.f32.xlu0 %v3089
    %v3091 = vpop.xlane.xlu0 %3090
    %v3092 = vmul.f32 %v3088, %v101
    %v3093 = vmul.f32 %v3091, %v101
    %v3094 = vsub.f32 %v3084, %v3092
    %v3095 = vsub.f32 %v3085, %v3093
    %v3096 = vmul.f32 %v3094, %v3094
    %v3097 = vmul.f32 %v3095, %v3095
    %v3098 = vsel %vm94, %v3096, 0.0
    %3099 = vadd.xlane.f32.xlu0 %v3098
    %v3100 = vpop.xlane.xlu0 %3099
    %v3101 = vsel %vm94, %v3097, 0.0
    %3102 = vadd.xlane.f32.xlu0 %v3101
    %v3103 = vpop.xlane.xlu0 %3102
    %v3104 = vmul.f32 %v3100, %v101
    %v3105 = vmul.f32 %v3103, %v101
    %v3106 = vadd.f32 %v3104, 1e-05
    %v3107 = vadd.f32 %v3105, 1e-05
    %v3108 = vrsqrt.pop %v3106
    %v3109 = vrsqrt.pop %v3107
    %v3110 = vmul.f32 %v3094, %v3108
    %v3111 = vmul.f32 %v3095, %v3109
    %v3112 = vmul.f32 %v3110, %v125
    %v3113 = vmul.f32 %v3111, %v125
    %v3114 = vadd.f32 %v3112, %v131
    %v3115 = vadd.f32 %v3113, %v131
    %v3116 = vpack.c.bf16 %v3115, %v3114
    %v3118 = vsel %vm94, %v3116, 0
    %3120 = vmatprep.subr.bf16.mxu0 0
    %3121 = vmatpush1.bf16.msra.mxu0 %v209
    %3122 = vmatprep.subr.bf16.mxu0 0
    %3123 = vmatpush1.bf16.msra.mxu0 %v210
    %3124 = vmatprep.subr.bf16.mxu0 0
    %3125 = vmatpush1.bf16.msra.mxu0 %v219
    %3126 = vmatprep.subr.bf16.mxu0 0
    %3127 = vmatpush1.bf16.msra.mxu0 0
    %3128 = vmatprep.subr.bf16.mxu0 0
    %3129 = vmatpush1.bf16.msra.mxu0 0
    %3130 = vmatprep.subr.bf16.mxu0 0
    %3131 = vmatpush1.bf16.msra.mxu0 0
    %3132 = vmatprep.subr.bf16.mxu0 0
    %3133 = vmatpush1.bf16.msra.mxu0 0
    %3134 = vmatprep.subr.bf16.mxu0 0
    %3135 = vmatpush1.bf16.msra.mxu0 0
    %3136 = vmatprep.subr.bf16.mxu0 0
    %3137 = vmatpush1.bf16.msra.mxu0 0
    %3138 = vmatprep.subr.bf16.mxu0 0
    %3139 = vmatpush1.bf16.msra.mxu0 0
    %3140 = vmatprep.subr.bf16.mxu0 0
    %3141 = vmatpush1.bf16.msra.mxu0 0
    %3142 = vmatprep.subr.bf16.mxu0 0
    %3143 = vmatpush1.bf16.msra.mxu0 0
    %3144 = vmatprep.subr.bf16.mxu0 0
    %3145 = vmatpush1.bf16.msra.mxu0 0
    %3146 = vmatprep.subr.bf16.mxu0 0
    %3147 = vmatpush1.bf16.msra.mxu0 0
    %3148 = vmatprep.subr.bf16.mxu0 0
    %3149 = vmatpush1.bf16.msra.mxu0 0
    %3150 = vmatprep.subr.bf16.mxu0 0
    %3151 = vmatpush1.bf16.msra.mxu0 0
    %3152 = vmatprep.mubr.bf16.mxu0 0
    %3153 = vmatmul.mubr.bf16.gmra.mrb[0].mxu0 %v3118
    %v3154 = vpop.f32.mrb[0].mxu0
    %v3155 = vadd.f32 %v198, %v3154
    %v3156 = vpop.f32.mrb[0].mxu0
    %v3157 = vpop.f32.mrb[0].mxu0
    %v3158 = vadd.f32 %v198, %v3157
    %v3159 = vpop.f32.mrb[0].mxu0
    %3160 = vdwg.mxu0
    %3161 = vmatprep.subr.bf16.mxu0 0
    %3162 = vmatpush1.bf16.msra.mxu0 %v276
    %3163 = vmatprep.subr.bf16.mxu0 0
    %3164 = vmatpush1.bf16.msra.mxu0 %v277
    %3165 = vmatprep.subr.bf16.mxu0 0
    %3166 = vmatpush1.bf16.msra.mxu0 %v282
    %3167 = vmatprep.subr.bf16.mxu0 0
    %3168 = vmatpush1.bf16.msra.mxu0 0
    %3169 = vmatprep.subr.bf16.mxu0 0
    %3170 = vmatpush1.bf16.msra.mxu0 0
    %3171 = vmatprep.subr.bf16.mxu0 0
    %3172 = vmatpush1.bf16.msra.mxu0 0
    %3173 = vmatprep.subr.bf16.mxu0 0
    %3174 = vmatpush1.bf16.msra.mxu0 0
    %3175 = vmatprep.subr.bf16.mxu0 0
    %3176 = vmatpush1.bf16.msra.mxu0 0
    %3177 = vmatprep.subr.bf16.mxu0 0
    %3178 = vmatpush1.bf16.msra.mxu0 0
    %3179 = vmatprep.subr.bf16.mxu0 0
    %3180 = vmatpush1.bf16.msra.mxu0 0
    %3181 = vmatprep.subr.bf16.mxu0 0
    %3182 = vmatpush1.bf16.msra.mxu0 0
    %3183 = vmatprep.subr.bf16.mxu0 0
    %3184 = vmatpush1.bf16.msra.mxu0 0
    %3185 = vmatprep.subr.bf16.mxu0 0
    %3186 = vmatpush1.bf16.msra.mxu0 0
    %3187 = vmatprep.subr.bf16.mxu0 0
    %3188 = vmatpush1.bf16.msra.mxu0 0
    %3189 = vmatprep.subr.bf16.mxu0 0
    %3190 = vmatpush1.bf16.msra.mxu0 0
    %3191 = vmatprep.subr.bf16.mxu0 0
    %3192 = vmatpush1.bf16.msra.mxu0 0
    %3193 = vmatprep.mubr.bf16.mxu0 0
    %3194 = vmatmul.mubr.bf16.gmra.mrb[0].mxu0 %v3118
    %v3195 = vpop.f32.mrb[0].mxu0
    %v3196 = vadd.f32 %v265, %v3195
    %v3197 = vpop.f32.mrb[0].mxu0
    %v3198 = vpop.f32.mrb[0].mxu0
    %v3199 = vadd.f32 %v265, %v3198
    %v3200 = vpop.f32.mrb[0].mxu0
    %3201 = vdwg.mxu0
    %v3202 = vpack.c.bf16 %v3158, %v3155
    %v3204 = vsel %vm69, %v3202, 0
    %3206 = vmatprep.subr.bf16.mxu0 0
    %3207 = vmatpush1.bf16.xpose.msra.mxu0 %v3204
    %3208 = vmatprep.subr.bf16.mxu0 0
    %3209 = vmatpush1.bf16.xpose.msra.mxu0 0
    %3210 = vmatprep.subr.bf16.mxu0 0
    %3211 = vmatpush1.bf16.xpose.msra.mxu0 0
    %3212 = vmatprep.subr.bf16.mxu0 0
    %3213 = vmatpush1.bf16.xpose.msra.mxu0 0
    %3214 = vmatprep.subr.bf16.mxu0 0
    %3215 = vmatpush1.bf16.xpose.msra.mxu0 0
    %3216 = vmatprep.subr.bf16.mxu0 0
    %3217 = vmatpush1.bf16.xpose.msra.mxu0 0
    %3218 = vmatprep.subr.bf16.mxu0 0
    %3219 = vmatpush1.bf16.xpose.msra.mxu0 0
    %3220 = vmatprep.subr.bf16.mxu0 0
    %3221 = vmatpush1.bf16.xpose.msra.mxu0 0
    %3222 = vmatprep.subr.bf16.mxu0 0
    %3223 = vmatpush1.bf16.xpose.msra.mxu0 0
    %3224 = vmatprep.subr.bf16.mxu0 0
    %3225 = vmatpush1.bf16.xpose.msra.mxu0 0
    %3226 = vmatprep.subr.bf16.mxu0 0
    %3227 = vmatpush1.bf16.xpose.msra.mxu0 0
    %3228 = vmatprep.subr.bf16.mxu0 0
    %3229 = vmatpush1.bf16.xpose.msra.mxu0 0
    %3230 = vmatprep.subr.bf16.mxu0 0
    %3231 = vmatpush1.bf16.xpose.msra.mxu0 0
    %3232 = vmatprep.subr.bf16.mxu0 0
    %3233 = vmatpush1.bf16.xpose.msra.mxu0 0
    %3234 = vmatprep.subr.bf16.mxu0 0
    %3235 = vmatpush1.bf16.xpose.msra.mxu0 0
    %3236 = vmatprep.subr.bf16.mxu0 0
    %3237 = vmatpush1.bf16.xpose.msra.mxu0 0
    %3238 = vmatprep.mubr.bf16.mxu0 0
    %3239 = vmatmul.mubr.bf16.gmra.mrb[0].mxu0 %v328
    %v3240 = vpop.f32.mrb[0].mxu0
    %v3241 = vadd.f32 0.0, %v3240
    %v3242 = vpop.f32.mrb[0].mxu0
    %v3243 = vpop.f32.mrb[0].mxu0
    %v3244 = vpop.f32.mrb[0].mxu0
    %3245 = vdwg.mxu0
    %v3246 = vmul.f32 %v3241, 0.17677669
    %v3247 = vsel %vm374, %v3246, -inf
    %3248 = vmax.xlane.f32.xlu0 %v3247
    %v3249 = vpop.xlane.xlu0 %3248
    %v3250 = vsub.f32 %v3246, %v3249
    %v3251 = vmul.f32 %v3250, 1.442695
    %v3252 = vpow.pop %v3251
    %v3253 = vsel %vm374, %v3252, 0.0
    %3254 = vadd.xlane.f32.xlu0 %v3253
    %v3255 = vpop.xlane.xlu0 %3254
    %v3256 = vrcp.pop %v3255
    %v3257 = vmul.f32 %v3252, %v3256
    %v3258 = vpack.c.bf16 %v3257, %v3257
    %v3259 = vpack.c.bf16 %v3199, %v3196
    %v3261 = vsel %vm374, %v3258, 0
    %3263 = vmatprep.subr.bf16.mxu0 0
    %3264 = vmatpush1.bf16.msra.mxu0 %v3259
    %3265 = vmatprep.subr.bf16.mxu0 0
    %3266 = vmatpush1.bf16.msra.mxu0 0
    %3267 = vmatprep.subr.bf16.mxu0 0
    %3268 = vmatpush1.bf16.msra.mxu0 0
    %3269 = vmatprep.subr.bf16.mxu0 0
    %3270 = vmatpush1.bf16.msra.mxu0 0
    %3271 = vmatprep.subr.bf16.mxu0 0
    %3272 = vmatpush1.bf16.msra.mxu0 0
    %3273 = vmatprep.subr.bf16.mxu0 0
    %3274 = vmatpush1.bf16.msra.mxu0 0
    %3275 = vmatprep.subr.bf16.mxu0 0
    %3276 = vmatpush1.bf16.msra.mxu0 0
    %3277 = vmatprep.subr.bf16.mxu0 0
    %3278 = vmatpush1.bf16.msra.mxu0 0
    %3279 = vmatprep.subr.bf16.mxu0 0
    %3280 = vmatpush1.bf16.msra.mxu0 0
    %3281 = vmatprep.subr.bf16.mxu0 0
    %3282 = vmatpush1.bf16.msra.mxu0 0
    %3283 = vmatprep.subr.bf16.mxu0 0
    %3284 = vmatpush1.bf16.msra.mxu0 0
    %3285 = vmatprep.subr.bf16.mxu0 0
    %3286 = vmatpush1.bf16.msra.mxu0 0
    %3287 = vmatprep.subr.bf16.mxu0 0
    %3288 = vmatpush1.bf16.msra.mxu0 0
    %3289 = vmatprep.subr.bf16.mxu0 0
    %3290 = vmatpush1.bf16.msra.mxu0 0
    %3291 = vmatprep.subr.bf16.mxu0 0
    %3292 = vmatpush1.bf16.msra.mxu0 0
    %3293 = vmatprep.subr.bf16.mxu0 0
    %3294 = vmatpush1.bf16.msra.mxu0 0
    %3295 = vmatprep.mubr.bf16.mxu0 0
    %3296 = vmatmul.mubr.bf16.gmra.mrb[0].mxu0 %v3261
    %v3297 = vpop.f32.mrb[0].mxu0
    %v3298 = vadd.f32 0.0, %v3297
    %v3299 = vpop.f32.mrb[0].mxu0
    %v3300 = vpop.f32.mrb[0].mxu0
    %v3301 = vpop.f32.mrb[0].mxu0
    %3302 = vdwg.mxu0
    %v3303 = vpack.c.bf16 %v3298, %v3298
    %v3305 = vsel %vm69, %v3303, 0
    %3307 = vmatprep.subr.bf16.mxu0 0
    %3308 = vmatpush1.bf16.msra.mxu0 %v444
    %3309 = vmatprep.subr.bf16.mxu0 0
    %3310 = vmatpush1.bf16.msra.mxu0 %v445
    %3311 = vmatprep.subr.bf16.mxu0 0
    %3312 = vmatpush1.bf16.msra.mxu0 0
    %3313 = vmatprep.subr.bf16.mxu0 0
    %3314 = vmatpush1.bf16.msra.mxu0 0
    %3315 = vmatprep.subr.bf16.mxu0 0
    %3316 = vmatpush1.bf16.msra.mxu0 0
    %3317 = vmatprep.subr.bf16.mxu0 0
    %3318 = vmatpush1.bf16.msra.mxu0 0
    %3319 = vmatprep.subr.bf16.mxu0 0
    %3320 = vmatpush1.bf16.msra.mxu0 0
    %3321 = vmatprep.subr.bf16.mxu0 0
    %3322 = vmatpush1.bf16.msra.mxu0 0
    %3323 = vmatprep.subr.bf16.mxu0 0
    %3324 = vmatpush1.bf16.msra.mxu0 0
    %3325 = vmatprep.subr.bf16.mxu0 0
    %3326 = vmatpush1.bf16.msra.mxu0 0
    %3327 = vmatprep.subr.bf16.mxu0 0
    %3328 = vmatpush1.bf16.msra.mxu0 0
    %3329 = vmatprep.subr.bf16.mxu0 0
    %3330 = vmatpush1.bf16.msra.mxu0 0
    %3331 = vmatprep.subr.bf16.mxu0 0
    %3332 = vmatpush1.bf16.msra.mxu0 0
    %3333 = vmatprep.subr.bf16.mxu0 0
    %3334 = vmatpush1.bf16.msra.mxu0 0
    %3335 = vmatprep.subr.bf16.mxu0 0
    %3336 = vmatpush1.bf16.msra.mxu0 0
    %3337 = vmatprep.subr.bf16.mxu0 0
    %3338 = vmatpush1.bf16.msra.mxu0 0
    %3339 = vmatprep.mubr.bf16.mxu0 0
    %3340 = vmatmul.mubr.bf16.gmra.mrb[0].mxu0 %v3305
    %v3341 = vpop.f32.mrb[0].mxu0
    %v3342 = vadd.f32 %v435, %v3341
    %v3343 = vpop.f32.mrb[0].mxu0
    %v3344 = vpop.f32.mrb[0].mxu0
    %v3345 = vpop.f32.mrb[0].mxu0
    %3346 = vdwg.mxu0
    %v3347 = vadd.f32 %v31, %v3342
    %v3348 = vsel %vm69, %v3347, 0.0
    %3349 = vadd.xlane.f32.xlu0 %v3348
    %v3350 = vpop.xlane.xlu0 %3349
    %v3351 = vmul.f32 %v3350, %v73
    %v3352 = vsub.f32 %v3347, %v3351
    %v3353 = vmul.f32 %v3352, %v3352
    %v3354 = vsel %vm69, %v3353, 0.0
    %3355 = vadd.xlane.f32.xlu0 %v3354
    %v3356 = vpop.xlane.xlu0 %3355
    %v3357 = vmul.f32 %v3356, %v73
    %v3358 = vadd.f32 %v3357, 1e-05
    %v3359 = vrsqrt.pop %v3358
    %v3360 = vmul.f32 %v3352, %v3359
    %v3361 = vmul.f32 %v3360, %v508
    %v3362 = vadd.f32 %v3361, %v513
    %v3363 = vpack.c.bf16 %v3362, %v3362
    %v3365 = vsel %vm69, %v3363, 0
    %3367 = vmatprep.subr.bf16.mxu0 0
    %3368 = vmatpush1.bf16.msra.mxu0 %v528
    %3369 = vmatprep.subr.bf16.mxu0 0
    %3370 = vmatpush1.bf16.msra.mxu0 %v529
    %3371 = vmatprep.subr.bf16.mxu0 0
    %3372 = vmatpush1.bf16.msra.mxu0 0
    %3373 = vmatprep.subr.bf16.mxu0 0
    %3374 = vmatpush1.bf16.msra.mxu0 0
    %3375 = vmatprep.subr.bf16.mxu0 0
    %3376 = vmatpush1.bf16.msra.mxu0 0
    %3377 = vmatprep.subr.bf16.mxu0 0
    %3378 = vmatpush1.bf16.msra.mxu0 0
    %3379 = vmatprep.subr.bf16.mxu0 0
    %3380 = vmatpush1.bf16.msra.mxu0 0
    %3381 = vmatprep.subr.bf16.mxu0 0
    %3382 = vmatpush1.bf16.msra.mxu0 0
    %3383 = vmatprep.subr.bf16.mxu0 0
    %3384 = vmatpush1.bf16.msra.mxu0 0
    %3385 = vmatprep.subr.bf16.mxu0 0
    %3386 = vmatpush1.bf16.msra.mxu0 0
    %3387 = vmatprep.subr.bf16.mxu0 0
    %3388 = vmatpush1.bf16.msra.mxu0 0
    %3389 = vmatprep.subr.bf16.mxu0 0
    %3390 = vmatpush1.bf16.msra.mxu0 0
    %3391 = vmatprep.subr.bf16.mxu0 0
    %3392 = vmatpush1.bf16.msra.mxu0 0
    %3393 = vmatprep.subr.bf16.mxu0 0
    %3394 = vmatpush1.bf16.msra.mxu0 0
    %3395 = vmatprep.subr.bf16.mxu0 0
    %3396 = vmatpush1.bf16.msra.mxu0 0
    %3397 = vmatprep.subr.bf16.mxu0 0
    %3398 = vmatpush1.bf16.msra.mxu0 0
    %3399 = vmatprep.mubr.bf16.mxu0 0
    %3400 = vmatmul.mubr.bf16.gmra.mrb[0].mxu0 %v3365
    %v3401 = vpop.f32.mrb[0].mxu0
    %v3402 = vadd.f32 %v519, %v3401
    %v3403 = vpop.f32.mrb[0].mxu0
    %v3404 = vpop.f32.mrb[0].mxu0
    %v3405 = vpop.f32.mrb[0].mxu0
    %3406 = vdwg.mxu0
    %v3407 = vmul.f32 %v3402, 0.5
    %v3408 = vmul.f32 %v3402, 0.044715
    %v3409 = vmul.f32 %v3408, %v3402
    %v3410 = vmul.f32 %v3409, %v3402
    %v3411 = vadd.f32 %v3402, %v3410
    %v3412 = vmul.f32 %v3411, 0.7978846
    %v3413 = vtanh.pop %v3412
    %v3414 = vadd.f32 %v3413, 1.0
    %v3415 = vmul.f32 %v3407, %v3414
    %v3416 = vpack.c.bf16 %v3415, %v3415
    %v3418 = vsel %vm69, %v3416, 0
    %3420 = vmatprep.subr.bf16.mxu0 0
    %3421 = vmatpush1.bf16.msra.mxu0 %v597
    %3422 = vmatprep.subr.bf16.mxu0 0
    %3423 = vmatpush1.bf16.msra.mxu0 %v598
    %3424 = vmatprep.subr.bf16.mxu0 0
    %3425 = vmatpush1.bf16.msra.mxu0 0
    %3426 = vmatprep.subr.bf16.mxu0 0
    %3427 = vmatpush1.bf16.msra.mxu0 0
    %3428 = vmatprep.subr.bf16.mxu0 0
    %3429 = vmatpush1.bf16.msra.mxu0 0
    %3430 = vmatprep.subr.bf16.mxu0 0
    %3431 = vmatpush1.bf16.msra.mxu0 0
    %3432 = vmatprep.subr.bf16.mxu0 0
    %3433 = vmatpush1.bf16.msra.mxu0 0
    %3434 = vmatprep.subr.bf16.mxu0 0
    %3435 = vmatpush1.bf16.msra.mxu0 0
    %3436 = vmatprep.subr.bf16.mxu0 0
    %3437 = vmatpush1.bf16.msra.mxu0 0
    %3438 = vmatprep.subr.bf16.mxu0 0
    %3439 = vmatpush1.bf16.msra.mxu0 0
    %3440 = vmatprep.subr.bf16.mxu0 0
    %3441 = vmatpush1.bf16.msra.mxu0 0
    %3442 = vmatprep.subr.bf16.mxu0 0
    %3443 = vmatpush1.bf16.msra.mxu0 0
    %3444 = vmatprep.subr.bf16.mxu0 0
    %3445 = vmatpush1.bf16.msra.mxu0 0
    %3446 = vmatprep.subr.bf16.mxu0 0
    %3447 = vmatpush1.bf16.msra.mxu0 0
    %3448 = vmatprep.subr.bf16.mxu0 0
    %3449 = vmatpush1.bf16.msra.mxu0 0
    %3450 = vmatprep.subr.bf16.mxu0 0
    %3451 = vmatpush1.bf16.msra.mxu0 0
    %3452 = vmatprep.mubr.bf16.mxu0 0
    %3453 = vmatmul.mubr.bf16.gmra.mrb[0].mxu0 %v3418
    %v3454 = vpop.f32.mrb[0].mxu0
    %v3455 = vadd.f32 %v588, %v3454
    %v3456 = vpop.f32.mrb[0].mxu0
    %v3457 = vpop.f32.mrb[0].mxu0
    %v3458 = vpop.f32.mrb[0].mxu0
    %3459 = vdwg.mxu0
    %v3460 = vadd.f32 %v3347, %v3455
    loop: start=0, step=1, limit=2
    $region41: #{perceiver_forward.3} parent=1 // loop_pre_header
      _
    $region42: #{perceiver_forward.3} parent=1 // loop_header
      %s3462 = sphi 0, %s3466
      %p3463 = scmp.ge.s32.totalorder %s3462, 2
      %v3467 = vphi %v3460, %v5256
    $region43: #{perceiver_forward.3} parent=1 // loop_header_branch
      %3465 = sbr.rel (%p3463) target = $region47
    $region44: #{perceiver_forward.3} parent=1 // loop_body
      %v3468 = vld [vmem:[%s4 + $0x10] sm:$0xff]
      %v3469 = vld [vmem:[%s4 + $0x18] sm:$0xff]
      %v3470 = vld [vmem:[%s3 + $0x70] sm:$0xf]
      %v3471 = vld [vmem:[%s3 + $0x74] sm:$0xf]
      %v3472 = vld [vmem:[%s3 + $0x78] sm:$0xf]
      %v3473 = vld [vmem:[%s3 + $0x7c] sm:$0xf]
      %v3474 = vld [vmem:[%s3 + $0x80] sm:$0xf]
      %v3475 = vld [vmem:[%s3 + $0x84] sm:$0xf]
      %v3476 = vld [vmem:[%s3 + $0x88] sm:$0xf]
      %v3477 = vld [vmem:[%s3 + $0x8c] sm:$0xf]
      %v3478 = vld [vmem:[%s3 + $0x98] sm:$0xf]
      %v3479 = vld [vmem:[%s3 + $0x9c] sm:$0xf]
      %v3480 = vld [vmem:[%s3 + $0xa0] sm:$0xf]
      %v3481 = vld [vmem:[%s3 + $0xa4] sm:$0xf]
      %v3482 = vld [vmem:[%s3 + $0xb0] sm:$0xf]
      %v3483 = vld [vmem:[%s3 + $0xb4] sm:$0xf]
      %v3484 = vld [vmem:[%s3 + $0xb8] sm:$0xf]
      %v3485 = vld [vmem:[%s3 + $0xbc] sm:$0xf]
      %v3486 = vld [vmem:[%s3 + $0xc0] sm:$0xf]
      %v3487 = vld [vmem:[%s3 + $0xc4] sm:$0xf]
      %v3488 = vld [vmem:[%s3 + $0xc8] sm:$0xf]
      %v3489 = vld [vmem:[%s3 + $0xcc] sm:$0xf]
      %v3490 = vld [vmem:[%s3 + $0xd0] sm:$0xf]
      %v3491 = vld [vmem:[%s3 + $0xd4] sm:$0xf]
      %v3492 = vld [vmem:[%s3 + $0xd8] sm:$0xf]
      %v3493 = vld [vmem:[%s3 + $0xdc] sm:$0xf]
      %v3494 = vsel %vm69, %v3467, 0.0
      %3495 = vadd.xlane.f32.xlu0 %v3494
      %v3496 = vpop.xlane.xlu0 %3495
      %v3497 = vmul.f32 %v3496, %v73
      %v3498 = vsub.f32 %v3467, %v3497
      %v3499 = vmul.f32 %v3498, %v3498
      %v3500 = vsel %vm69, %v3499, 0.0
      %3501 = vadd.xlane.f32.xlu0 %v3500
      %v3502 = vpop.xlane.xlu0 %3501
      %v3503 = vmul.f32 %v3502, %v73
      %v3504 = vadd.f32 %v3503, 1e-05
      %v3505 = vrsqrt.pop %v3504
      %v3506 = vmul.f32 %v3498, %v3505
      %v3507 = vlaneseq
      %v3508 = vshrl.u32 %v3507, 7
      %v3509 = vsub.s32 0, %v3508
      %v3510 = vrot.slane %v3468, %v3509
      %v3511 = vmul.f32 %v3506, %v3510
      %v3512 = vlaneseq
      %v3513 = vshrl.u32 %v3512, 7
      %v3514 = vsub.s32 1, %v3513
      %v3515 = vrot.slane %v3468, %v3514
      %v3516 = vadd.f32 %v3511, %v3515
      %v3517 = vpack.c.bf16 %v3516, %v3516
      %v3518 = vlaneseq
      %v3519 = vshrl.u32 %v3518, 7
      %v3520 = vsub.s32 4, %v3519
      %v3521 = vrot.slane %v3468, %v3520
      %v3526 = vunpack.c.l.b16 %v3470
      %v3527 = vunpack.c.l.b16 %v3471
      %v3528 = vunpack.c.l.b16 %v3472
      %v3529 = vunpack.c.l.b16 %v3473
      %v3530 = vpack.c.b16 %v3527, %v3526
      %v3531 = vpack.c.b16 %v3529, %v3528
      %v3535 = vsel %vm69, %v3517, 0
      %3537 = vmatprep.subr.bf16.mxu0 0
      %3538 = vmatpush1.bf16.msra.mxu0 %v3530
      %3539 = vmatprep.subr.bf16.mxu0 0
      %3540 = vmatpush1.bf16.msra.mxu0 %v3531
      %3541 = vmatprep.subr.bf16.mxu0 0
      %3542 = vmatpush1.bf16.msra.mxu0 0
      %3543 = vmatprep.subr.bf16.mxu0 0
      %3544 = vmatpush1.bf16.msra.mxu0 0
      %3545 = vmatprep.subr.bf16.mxu0 0
      %3546 = vmatpush1.bf16.msra.mxu0 0
      %3547 = vmatprep.subr.bf16.mxu0 0
      %3548 = vmatpush1.bf16.msra.mxu0 0
      %3549 = vmatprep.subr.bf16.mxu0 0
      %3550 = vmatpush1.bf16.msra.mxu0 0
      %3551 = vmatprep.subr.bf16.mxu0 0
      %3552 = vmatpush1.bf16.msra.mxu0 0
      %3553 = vmatprep.subr.bf16.mxu0 0
      %3554 = vmatpush1.bf16.msra.mxu0 0
      %3555 = vmatprep.subr.bf16.mxu0 0
      %3556 = vmatpush1.bf16.msra.mxu0 0
      %3557 = vmatprep.subr.bf16.mxu0 0
      %3558 = vmatpush1.bf16.msra.mxu0 0
      %3559 = vmatprep.subr.bf16.mxu0 0
      %3560 = vmatpush1.bf16.msra.mxu0 0
      %3561 = vmatprep.subr.bf16.mxu0 0
      %3562 = vmatpush1.bf16.msra.mxu0 0
      %3563 = vmatprep.subr.bf16.mxu0 0
      %3564 = vmatpush1.bf16.msra.mxu0 0
      %3565 = vmatprep.subr.bf16.mxu0 0
      %3566 = vmatpush1.bf16.msra.mxu0 0
      %3567 = vmatprep.subr.bf16.mxu0 0
      %3568 = vmatpush1.bf16.msra.mxu0 0
      %3569 = vmatprep.mubr.bf16.mxu0 0
      %3570 = vmatmul.mubr.bf16.gmra.mrb[0].mxu0 %v3535
      %v3571 = vpop.f32.mrb[0].mxu0
      %v3572 = vadd.f32 %v3521, %v3571
      %v3573 = vpop.f32.mrb[0].mxu0
      %v3574 = vpop.f32.mrb[0].mxu0
      %v3575 = vpop.f32.mrb[0].mxu0
      %3576 = vdwg.mxu0
      %v3577 = vlaneseq
      %v3578 = vshrl.u32 %v3577, 7
      %v3579 = vsub.s32 5, %v3578
      %v3580 = vrot.slane %v3468, %v3579
      %v3585 = vunpack.c.l.b16 %v3474
      %v3586 = vunpack.c.l.b16 %v3475
      %v3587 = vunpack.c.l.b16 %v3476
      %v3588 = vunpack.c.l.b16 %v3477
      %v3589 = vpack.c.b16 %v3586, %v3585
      %v3590 = vpack.c.b16 %v3588, %v3587
      %3593 = vmatprep.subr.bf16.mxu0 0
      %3594 = vmatpush1.bf16.msra.mxu0 %v3589
      %3595 = vmatprep.subr.bf16.mxu0 0
      %3596 = vmatpush1.bf16.msra.mxu0 %v3590
      %3597 = vmatprep.subr.bf16.mxu0 0
      %3598 = vmatpush1.bf16.msra.mxu0 0
      %3599 = vmatprep.subr.bf16.mxu0 0
      %3600 = vmatpush1.bf16.msra.mxu0 0
      %3601 = vmatprep.subr.bf16.mxu0 0
      %3602 = vmatpush1.bf16.msra.mxu0 0
      %3603 = vmatprep.subr.bf16.mxu0 0
      %3604 = vmatpush1.bf16.msra.mxu0 0
      %3605 = vmatprep.subr.bf16.mxu0 0
      %3606 = vmatpush1.bf16.msra.mxu0 0
      %3607 = vmatprep.subr.bf16.mxu0 0
      %3608 = vmatpush1.bf16.msra.mxu0 0
      %3609 = vmatprep.subr.bf16.mxu0 0
      %3610 = vmatpush1.bf16.msra.mxu0 0
      %3611 = vmatprep.subr.bf16.mxu0 0
      %3612 = vmatpush1.bf16.msra.mxu0 0
      %3613 = vmatprep.subr.bf16.mxu0 0
      %3614 = vmatpush1.bf16.msra.mxu0 0
      %3615 = vmatprep.subr.bf16.mxu0 0
      %3616 = vmatpush1.bf16.msra.mxu0 0
      %3617 = vmatprep.subr.bf16.mxu0 0
      %3618 = vmatpush1.bf16.msra.mxu0 0
      %3619 = vmatprep.subr.bf16.mxu0 0
      %3620 = vmatpush1.bf16.msra.mxu0 0
      %3621 = vmatprep.subr.bf16.mxu0 0
      %3622 = vmatpush1.bf16.msra.mxu0 0
      %3623 = vmatprep.subr.bf16.mxu0 0
      %3624 = vmatpush1.bf16.msra.mxu0 0
      %3625 = vmatprep.mubr.bf16.mxu0 0
      %3626 = vmatmul.mubr.bf16.gmra.mrb[0].mxu0 %v3535
      %v3627 = vpop.f32.mrb[0].mxu0
      %v3628 = vadd.f32 %v3580, %v3627
      %v3629 = vpop.f32.mrb[0].mxu0
      %v3630 = vpop.f32.mrb[0].mxu0
      %v3631 = vpop.f32.mrb[0].mxu0
      %3632 = vdwg.mxu0
      %v3633 = vlaneseq
      %v3634 = vshrl.u32 %v3633, 7
      %v3635 = vsub.s32 6, %v3634
      %v3636 = vrot.slane %v3468, %v3635
      %v3641 = vunpack.c.l.b16 %v3478
      %v3642 = vunpack.c.l.b16 %v3479
      %v3643 = vunpack.c.l.b16 %v3480
      %v3644 = vunpack.c.l.b16 %v3481
      %v3645 = vpack.c.b16 %v3642, %v3641
      %v3646 = vpack.c.b16 %v3644, %v3643
      %3649 = vmatprep.subr.bf16.mxu0 0
      %3650 = vmatpush1.bf16.msra.mxu0 %v3645
      %3651 = vmatprep.subr.bf16.mxu0 0
      %3652 = vmatpush1.bf16.msra.mxu0 %v3646
      %3653 = vmatprep.subr.bf16.mxu0 0
      %3654 = vmatpush1.bf16.msra.mxu0 0
      %3655 = vmatprep.subr.bf16.mxu0 0
      %3656 = vmatpush1.bf16.msra.mxu0 0
      %3657 = vmatprep.subr.bf16.mxu0 0
      %3658 = vmatpush1.bf16.msra.mxu0 0
      %3659 = vmatprep.subr.bf16.mxu0 0
      %3660 = vmatpush1.bf16.msra.mxu0 0
      %3661 = vmatprep.subr.bf16.mxu0 0
      %3662 = vmatpush1.bf16.msra.mxu0 0
      %3663 = vmatprep.subr.bf16.mxu0 0
      %3664 = vmatpush1.bf16.msra.mxu0 0
      %3665 = vmatprep.subr.bf16.mxu0 0
      %3666 = vmatpush1.bf16.msra.mxu0 0
      %3667 = vmatprep.subr.bf16.mxu0 0
      %3668 = vmatpush1.bf16.msra.mxu0 0
      %3669 = vmatprep.subr.bf16.mxu0 0
      %3670 = vmatpush1.bf16.msra.mxu0 0
      %3671 = vmatprep.subr.bf16.mxu0 0
      %3672 = vmatpush1.bf16.msra.mxu0 0
      %3673 = vmatprep.subr.bf16.mxu0 0
      %3674 = vmatpush1.bf16.msra.mxu0 0
      %3675 = vmatprep.subr.bf16.mxu0 0
      %3676 = vmatpush1.bf16.msra.mxu0 0
      %3677 = vmatprep.subr.bf16.mxu0 0
      %3678 = vmatpush1.bf16.msra.mxu0 0
      %3679 = vmatprep.subr.bf16.mxu0 0
      %3680 = vmatpush1.bf16.msra.mxu0 0
      %3681 = vmatprep.mubr.bf16.mxu0 0
      %3682 = vmatmul.mubr.bf16.gmra.mrb[0].mxu0 %v3535
      %v3683 = vpop.f32.mrb[0].mxu0
      %v3684 = vadd.f32 %v3636, %v3683
      %v3685 = vpop.f32.mrb[0].mxu0
      %v3686 = vpop.f32.mrb[0].mxu0
      %v3687 = vpop.f32.mrb[0].mxu0
      %3688 = vdwg.mxu0
      %v3689 = vpack.c.bf16 %v3572, %v3572
      %v3690 = vpack.c.bf16 %v3628, %v3628
      %v3692 = vsel %vm2762, %v3689, 0
      %v3695 = vsel %vm2762, %v3690, 0
      %3697 = vmatprep.subr.bf16.mxu0 0
      %3698 = vmatpush1.bf16.xpose.msra.mxu0 %v3695
      %3699 = vmatprep.subr.bf16.mxu0 0
      %3700 = vmatpush1.bf16.xpose.msra.mxu0 0
      %3701 = vmatprep.subr.bf16.mxu0 0
      %3702 = vmatpush1.bf16.xpose.msra.mxu0 0
      %3703 = vmatprep.subr.bf16.mxu0 0
      %3704 = vmatpush1.bf16.xpose.msra.mxu0 0
      %3705 = vmatprep.subr.bf16.mxu0 0
      %3706 = vmatpush1.bf16.xpose.msra.mxu0 0
      %3707 = vmatprep.subr.bf16.mxu0 0
      %3708 = vmatpush1.bf16.xpose.msra.mxu0 0
      %3709 = vmatprep.subr.bf16.mxu0 0
      %3710 = vmatpush1.bf16.xpose.msra.mxu0 0
      %3711 = vmatprep.subr.bf16.mxu0 0
      %3712 = vmatpush1.bf16.xpose.msra.mxu0 0
      %3713 = vmatprep.subr.bf16.mxu0 0
      %3714 = vmatpush1.bf16.xpose.msra.mxu0 0
      %3715 = vmatprep.subr.bf16.mxu0 0
      %3716 = vmatpush1.bf16.xpose.msra.mxu0 0
      %3717 = vmatprep.subr.bf16.mxu0 0
      %3718 = vmatpush1.bf16.xpose.msra.mxu0 0
      %3719 = vmatprep.subr.bf16.mxu0 0
      %3720 = vmatpush1.bf16.xpose.msra.mxu0 0
      %3721 = vmatprep.subr.bf16.mxu0 0
      %3722 = vmatpush1.bf16.xpose.msra.mxu0 0
      %3723 = vmatprep.subr.bf16.mxu0 0
      %3724 = vmatpush1.bf16.xpose.msra.mxu0 0
      %3725 = vmatprep.subr.bf16.mxu0 0
      %3726 = vmatpush1.bf16.xpose.msra.mxu0 0
      %3727 = vmatprep.subr.bf16.mxu0 0
      %3728 = vmatpush1.bf16.xpose.msra.mxu0 0
      %3729 = vmatprep.mubr.bf16.mxu0 0
      %3730 = vmatmul.mubr.bf16.gmra.mrb[0].mxu0 %v3692
      %v3731 = vpop.f32.mrb[0].mxu0
      %v3732 = vadd.f32 0.0, %v3731
      %v3733 = vpop.f32.mrb[0].mxu0
      %v3734 = vpop.f32.mrb[0].mxu0
      %v3735 = vpop.f32.mrb[0].mxu0
      %3736 = vdwg.mxu0
      %v3737 = vmul.f32 %v3732, 0.35355338
      %v3738 = vsel %vm2762, %v3737, -inf
      %3739 = vmax.xlane.f32.xlu0 %v3738
      %v3740 = vpop.xlane.xlu0 %3739
      %v3741 = vsub.f32 %v3737, %v3740
      %v3742 = vmul.f32 %v3741, 1.442695
      %v3743 = vpow.pop %v3742
      %v3744 = vsel %vm2762, %v3743, 0.0
      %3745 = vadd.xlane.f32.xlu0 %v3744
      %v3746 = vpop.xlane.xlu0 %3745
      %v3747 = vrcp.pop %v3746
      %v3748 = vmul.f32 %v3743, %v3747
      %v3749 = vpack.c.bf16 %v3748, %v3748
      %v3750 = vpack.c.bf16 %v3684, %v3684
      %v3752 = vsel %vm2762, %v3749, 0
      %v3755 = vsel %vm2766, %v3750, 0
      %3757 = vmatprep.subr.bf16.mxu0 0
      %3758 = vmatpush1.bf16.msra.mxu0 %v3755
      %3759 = vmatprep.subr.bf16.mxu0 0
      %3760 = vmatpush1.bf16.msra.mxu0 0
      %3761 = vmatprep.subr.bf16.mxu0 0
      %3762 = vmatpush1.bf16.msra.mxu0 0
      %3763 = vmatprep.subr.bf16.mxu0 0
      %3764 = vmatpush1.bf16.msra.mxu0 0
      %3765 = vmatprep.subr.bf16.mxu0 0
      %3766 = vmatpush1.bf16.msra.mxu0 0
      %3767 = vmatprep.subr.bf16.mxu0 0
      %3768 = vmatpush1.bf16.msra.mxu0 0
      %3769 = vmatprep.subr.bf16.mxu0 0
      %3770 = vmatpush1.bf16.msra.mxu0 0
      %3771 = vmatprep.subr.bf16.mxu0 0
      %3772 = vmatpush1.bf16.msra.mxu0 0
      %3773 = vmatprep.subr.bf16.mxu0 0
      %3774 = vmatpush1.bf16.msra.mxu0 0
      %3775 = vmatprep.subr.bf16.mxu0 0
      %3776 = vmatpush1.bf16.msra.mxu0 0
      %3777 = vmatprep.subr.bf16.mxu0 0
      %3778 = vmatpush1.bf16.msra.mxu0 0
      %3779 = vmatprep.subr.bf16.mxu0 0
      %3780 = vmatpush1.bf16.msra.mxu0 0
      %3781 = vmatprep.subr.bf16.mxu0 0
      %3782 = vmatpush1.bf16.msra.mxu0 0
      %3783 = vmatprep.subr.bf16.mxu0 0
      %3784 = vmatpush1.bf16.msra.mxu0 0
      %3785 = vmatprep.subr.bf16.mxu0 0
      %3786 = vmatpush1.bf16.msra.mxu0 0
      %3787 = vmatprep.subr.bf16.mxu0 0
      %3788 = vmatpush1.bf16.msra.mxu0 0
      %3789 = vmatprep.mubr.bf16.mxu0 0
      %3790 = vmatmul.mubr.bf16.gmra.mrb[0].mxu0 %v3752
      %v3791 = vpop.f32.mrb[0].mxu0
      %v3792 = vadd.f32 0.0, %v3791
      %v3793 = vpop.f32.mrb[0].mxu0
      %v3794 = vpop.f32.mrb[0].mxu0
      %v3795 = vpop.f32.mrb[0].mxu0
      %3796 = vdwg.mxu0
      %3798 = vrot.lane.b32.xlu0 %v3689, 120
      %v3799 = vpop.permute.xlu0 %3798
      %3801 = vrot.lane.b32.xlu0 %v3690, 120
      %v3802 = vpop.permute.xlu0 %3801
      %v3804 = vsel %vm2762, %v3799, 0
      %v3807 = vsel %vm2762, %v3802, 0
      %3809 = vmatprep.subr.bf16.mxu0 0
      %3810 = vmatpush1.bf16.xpose.msra.mxu0 %v3807
      %3811 = vmatprep.subr.bf16.mxu0 0
      %3812 = vmatpush1.bf16.xpose.msra.mxu0 0
      %3813 = vmatprep.subr.bf16.mxu0 0
      %3814 = vmatpush1.bf16.xpose.msra.mxu0 0
      %3815 = vmatprep.subr.bf16.mxu0 0
      %3816 = vmatpush1.bf16.xpose.msra.mxu0 0
      %3817 = vmatprep.subr.bf16.mxu0 0
      %3818 = vmatpush1.bf16.xpose.msra.mxu0 0
      %3819 = vmatprep.subr.bf16.mxu0 0
      %3820 = vmatpush1.bf16.xpose.msra.mxu0 0
      %3821 = vmatprep.subr.bf16.mxu0 0
      %3822 = vmatpush1.bf16.xpose.msra.mxu0 0
      %3823 = vmatprep.subr.bf16.mxu0 0
      %3824 = vmatpush1.bf16.xpose.msra.mxu0 0
      %3825 = vmatprep.subr.bf16.mxu0 0
      %3826 = vmatpush1.bf16.xpose.msra.mxu0 0
      %3827 = vmatprep.subr.bf16.mxu0 0
      %3828 = vmatpush1.bf16.xpose.msra.mxu0 0
      %3829 = vmatprep.subr.bf16.mxu0 0
      %3830 = vmatpush1.bf16.xpose.msra.mxu0 0
      %3831 = vmatprep.subr.bf16.mxu0 0
      %3832 = vmatpush1.bf16.xpose.msra.mxu0 0
      %3833 = vmatprep.subr.bf16.mxu0 0
      %3834 = vmatpush1.bf16.xpose.msra.mxu0 0
      %3835 = vmatprep.subr.bf16.mxu0 0
      %3836 = vmatpush1.bf16.xpose.msra.mxu0 0
      %3837 = vmatprep.subr.bf16.mxu0 0
      %3838 = vmatpush1.bf16.xpose.msra.mxu0 0
      %3839 = vmatprep.subr.bf16.mxu0 0
      %3840 = vmatpush1.bf16.xpose.msra.mxu0 0
      %3841 = vmatprep.mubr.bf16.mxu0 0
      %3842 = vmatmul.mubr.bf16.gmra.mrb[0].mxu0 %v3804
      %v3843 = vpop.f32.mrb[0].mxu0
      %v3844 = vadd.f32 0.0, %v3843
      %v3845 = vpop.f32.mrb[0].mxu0
      %v3846 = vpop.f32.mrb[0].mxu0
      %v3847 = vpop.f32.mrb[0].mxu0
      %3848 = vdwg.mxu0
      %v3849 = vmul.f32 %v3844, 0.35355338
      %v3850 = vsel %vm2762, %v3849, -inf
      %3851 = vmax.xlane.f32.xlu0 %v3850
      %v3852 = vpop.xlane.xlu0 %3851
      %v3853 = vsub.f32 %v3849, %v3852
      %v3854 = vmul.f32 %v3853, 1.442695
      %v3855 = vpow.pop %v3854
      %v3856 = vsel %vm2762, %v3855, 0.0
      %3857 = vadd.xlane.f32.xlu0 %v3856
      %v3858 = vpop.xlane.xlu0 %3857
      %v3859 = vrcp.pop %v3858
      %v3860 = vmul.f32 %v3855, %v3859
      %v3861 = vpack.c.bf16 %v3860, %v3860
      %3863 = vrot.lane.b32.xlu0 %v3750, 120
      %v3864 = vpop.permute.xlu0 %3863
      %v3866 = vsel %vm2762, %v3861, 0
      %v3869 = vsel %vm2766, %v3864, 0
      %3871 = vmatprep.subr.bf16.mxu0 0
      %3872 = vmatpush1.bf16.msra.mxu0 %v3869
      %3873 = vmatprep.subr.bf16.mxu0 0
      %3874 = vmatpush1.bf16.msra.mxu0 0
      %3875 = vmatprep.subr.bf16.mxu0 0
      %3876 = vmatpush1.bf16.msra.mxu0 0
      %3877 = vmatprep.subr.bf16.mxu0 0
      %3878 = vmatpush1.bf16.msra.mxu0 0
      %3879 = vmatprep.subr.bf16.mxu0 0
      %3880 = vmatpush1.bf16.msra.mxu0 0
      %3881 = vmatprep.subr.bf16.mxu0 0
      %3882 = vmatpush1.bf16.msra.mxu0 0
      %3883 = vmatprep.subr.bf16.mxu0 0
      %3884 = vmatpush1.bf16.msra.mxu0 0
      %3885 = vmatprep.subr.bf16.mxu0 0
      %3886 = vmatpush1.bf16.msra.mxu0 0
      %3887 = vmatprep.subr.bf16.mxu0 0
      %3888 = vmatpush1.bf16.msra.mxu0 0
      %3889 = vmatprep.subr.bf16.mxu0 0
      %3890 = vmatpush1.bf16.msra.mxu0 0
      %3891 = vmatprep.subr.bf16.mxu0 0
      %3892 = vmatpush1.bf16.msra.mxu0 0
      %3893 = vmatprep.subr.bf16.mxu0 0
      %3894 = vmatpush1.bf16.msra.mxu0 0
      %3895 = vmatprep.subr.bf16.mxu0 0
      %3896 = vmatpush1.bf16.msra.mxu0 0
      %3897 = vmatprep.subr.bf16.mxu0 0
      %3898 = vmatpush1.bf16.msra.mxu0 0
      %3899 = vmatprep.subr.bf16.mxu0 0
      %3900 = vmatpush1.bf16.msra.mxu0 0
      %3901 = vmatprep.subr.bf16.mxu0 0
      %3902 = vmatpush1.bf16.msra.mxu0 0
      %3903 = vmatprep.mubr.bf16.mxu0 0
      %3904 = vmatmul.mubr.bf16.gmra.mrb[0].mxu0 %v3866
      %v3905 = vpop.f32.mrb[0].mxu0
      %v3906 = vadd.f32 0.0, %v3905
      %v3907 = vpop.f32.mrb[0].mxu0
      %v3908 = vpop.f32.mrb[0].mxu0
      %v3909 = vpop.f32.mrb[0].mxu0
      %3910 = vdwg.mxu0
      %3911 = vrot.lane.b32.xlu0 %v3689, 112
      %v3912 = vpop.permute.xlu0 %3911
      %3913 = vrot.lane.b32.xlu0 %v3690, 112
      %v3914 = vpop.permute.xlu0 %3913
      %v3916 = vsel %vm2762, %v3912, 0
      %v3919 = vsel %vm2762, %v3914, 0
      %3921 = vmatprep.subr.bf16.mxu0 0
      %3922 = vmatpush1.bf16.xpose.msra.mxu0 %v3919
      %3923 = vmatprep.subr.bf16.mxu0 0
      %3924 = vmatpush1.bf16.xpose.msra.mxu0 0
      %3925 = vmatprep.subr.bf16.mxu0 0
      %3926 = vmatpush1.bf16.xpose.msra.mxu0 0
      %3927 = vmatprep.subr.bf16.mxu0 0
      %3928 = vmatpush1.bf16.xpose.msra.mxu0 0
      %3929 = vmatprep.subr.bf16.mxu0 0
      %3930 = vmatpush1.bf16.xpose.msra.mxu0 0
      %3931 = vmatprep.subr.bf16.mxu0 0
      %3932 = vmatpush1.bf16.xpose.msra.mxu0 0
      %3933 = vmatprep.subr.bf16.mxu0 0
      %3934 = vmatpush1.bf16.xpose.msra.mxu0 0
      %3935 = vmatprep.subr.bf16.mxu0 0
      %3936 = vmatpush1.bf16.xpose.msra.mxu0 0
      %3937 = vmatprep.subr.bf16.mxu0 0
      %3938 = vmatpush1.bf16.xpose.msra.mxu0 0
      %3939 = vmatprep.subr.bf16.mxu0 0
      %3940 = vmatpush1.bf16.xpose.msra.mxu0 0
      %3941 = vmatprep.subr.bf16.mxu0 0
      %3942 = vmatpush1.bf16.xpose.msra.mxu0 0
      %3943 = vmatprep.subr.bf16.mxu0 0
      %3944 = vmatpush1.bf16.xpose.msra.mxu0 0
      %3945 = vmatprep.subr.bf16.mxu0 0
      %3946 = vmatpush1.bf16.xpose.msra.mxu0 0
      %3947 = vmatprep.subr.bf16.mxu0 0
      %3948 = vmatpush1.bf16.xpose.msra.mxu0 0
      %3949 = vmatprep.subr.bf16.mxu0 0
      %3950 = vmatpush1.bf16.xpose.msra.mxu0 0
      %3951 = vmatprep.subr.bf16.mxu0 0
      %3952 = vmatpush1.bf16.xpose.msra.mxu0 0
      %3953 = vmatprep.mubr.bf16.mxu0 0
      %3954 = vmatmul.mubr.bf16.gmra.mrb[0].mxu0 %v3916
      %v3955 = vpop.f32.mrb[0].mxu0
      %v3956 = vadd.f32 0.0, %v3955
      %v3957 = vpop.f32.mrb[0].mxu0
      %v3958 = vpop.f32.mrb[0].mxu0
      %v3959 = vpop.f32.mrb[0].mxu0
      %3960 = vdwg.mxu0
      %v3961 = vmul.f32 %v3956, 0.35355338
      %v3962 = vsel %vm2762, %v3961, -inf
      %3963 = vmax.xlane.f32.xlu0 %v3962
      %v3964 = vpop.xlane.xlu0 %3963
      %v3965 = vsub.f32 %v3961, %v3964
      %v3966 = vmul.f32 %v3965, 1.442695
      %v3967 = vpow.pop %v3966
      %v3968 = vsel %vm2762, %v3967, 0.0
      %3969 = vadd.xlane.f32.xlu0 %v3968
      %v3970 = vpop.xlane.xlu0 %3969
      %v3971 = vrcp.pop %v3970
      %v3972 = vmul.f32 %v3967, %v3971
      %v3973 = vpack.c.bf16 %v3972, %v3972
      %3974 = vrot.lane.b32.xlu0 %v3750, 112
      %v3975 = vpop.permute.xlu0 %3974
      %v3977 = vsel %vm2762, %v3973, 0
      %v3980 = vsel %vm2766, %v3975, 0
      %3982 = vmatprep.subr.bf16.mxu0 0
      %3983 = vmatpush1.bf16.msra.mxu0 %v3980
      %3984 = vmatprep.subr.bf16.mxu0 0
      %3985 = vmatpush1.bf16.msra.mxu0 0
      %3986 = vmatprep.subr.bf16.mxu0 0
      %3987 = vmatpush1.bf16.msra.mxu0 0
      %3988 = vmatprep.subr.bf16.mxu0 0
      %3989 = vmatpush1.bf16.msra.mxu0 0
      %3990 = vmatprep.subr.bf16.mxu0 0
      %3991 = vmatpush1.bf16.msra.mxu0 0
      %3992 = vmatprep.subr.bf16.mxu0 0
      %3993 = vmatpush1.bf16.msra.mxu0 0
      %3994 = vmatprep.subr.bf16.mxu0 0
      %3995 = vmatpush1.bf16.msra.mxu0 0
      %3996 = vmatprep.subr.bf16.mxu0 0
      %3997 = vmatpush1.bf16.msra.mxu0 0
      %3998 = vmatprep.subr.bf16.mxu0 0
      %3999 = vmatpush1.bf16.msra.mxu0 0
      %4000 = vmatprep.subr.bf16.mxu0 0
      %4001 = vmatpush1.bf16.msra.mxu0 0
      %4002 = vmatprep.subr.bf16.mxu0 0
      %4003 = vmatpush1.bf16.msra.mxu0 0
      %4004 = vmatprep.subr.bf16.mxu0 0
      %4005 = vmatpush1.bf16.msra.mxu0 0
      %4006 = vmatprep.subr.bf16.mxu0 0
      %4007 = vmatpush1.bf16.msra.mxu0 0
      %4008 = vmatprep.subr.bf16.mxu0 0
      %4009 = vmatpush1.bf16.msra.mxu0 0
      %4010 = vmatprep.subr.bf16.mxu0 0
      %4011 = vmatpush1.bf16.msra.mxu0 0
      %4012 = vmatprep.subr.bf16.mxu0 0
      %4013 = vmatpush1.bf16.msra.mxu0 0
      %4014 = vmatprep.mubr.bf16.mxu0 0
      %4015 = vmatmul.mubr.bf16.gmra.mrb[0].mxu0 %v3977
      %v4016 = vpop.f32.mrb[0].mxu0
      %v4017 = vadd.f32 0.0, %v4016
      %v4018 = vpop.f32.mrb[0].mxu0
      %v4019 = vpop.f32.mrb[0].mxu0
      %v4020 = vpop.f32.mrb[0].mxu0
      %4021 = vdwg.mxu0
      %4022 = vrot.lane.b32.xlu0 %v3689, 104
      %v4023 = vpop.permute.xlu0 %4022
      %4024 = vrot.lane.b32.xlu0 %v3690, 104
      %v4025 = vpop.permute.xlu0 %4024
      %v4027 = vsel %vm2762, %v4023, 0
      %v4030 = vsel %vm2762, %v4025, 0
      %4032 = vmatprep.subr.bf16.mxu0 0
      %4033 = vmatpush1.bf16.xpose.msra.mxu0 %v4030
      %4034 = vmatprep.subr.bf16.mxu0 0
      %4035 = vmatpush1.bf16.xpose.msra.mxu0 0
      %4036 = vmatprep.subr.bf16.mxu0 0
      %4037 = vmatpush1.bf16.xpose.msra.mxu0 0
      %4038 = vmatprep.subr.bf16.mxu0 0
      %4039 = vmatpush1.bf16.xpose.msra.mxu0 0
      %4040 = vmatprep.subr.bf16.mxu0 0
      %4041 = vmatpush1.bf16.xpose.msra.mxu0 0
      %4042 = vmatprep.subr.bf16.mxu0 0
      %4043 = vmatpush1.bf16.xpose.msra.mxu0 0
      %4044 = vmatprep.subr.bf16.mxu0 0
      %4045 = vmatpush1.bf16.xpose.msra.mxu0 0
      %4046 = vmatprep.subr.bf16.mxu0 0
      %4047 = vmatpush1.bf16.xpose.msra.mxu0 0
      %4048 = vmatprep.subr.bf16.mxu0 0
      %4049 = vmatpush1.bf16.xpose.msra.mxu0 0
      %4050 = vmatprep.subr.bf16.mxu0 0
      %4051 = vmatpush1.bf16.xpose.msra.mxu0 0
      %4052 = vmatprep.subr.bf16.mxu0 0
      %4053 = vmatpush1.bf16.xpose.msra.mxu0 0
      %4054 = vmatprep.subr.bf16.mxu0 0
      %4055 = vmatpush1.bf16.xpose.msra.mxu0 0
      %4056 = vmatprep.subr.bf16.mxu0 0
      %4057 = vmatpush1.bf16.xpose.msra.mxu0 0
      %4058 = vmatprep.subr.bf16.mxu0 0
      %4059 = vmatpush1.bf16.xpose.msra.mxu0 0
      %4060 = vmatprep.subr.bf16.mxu0 0
      %4061 = vmatpush1.bf16.xpose.msra.mxu0 0
      %4062 = vmatprep.subr.bf16.mxu0 0
      %4063 = vmatpush1.bf16.xpose.msra.mxu0 0
      %4064 = vmatprep.mubr.bf16.mxu0 0
      %4065 = vmatmul.mubr.bf16.gmra.mrb[0].mxu0 %v4027
      %v4066 = vpop.f32.mrb[0].mxu0
      %v4067 = vadd.f32 0.0, %v4066
      %v4068 = vpop.f32.mrb[0].mxu0
      %v4069 = vpop.f32.mrb[0].mxu0
      %v4070 = vpop.f32.mrb[0].mxu0
      %4071 = vdwg.mxu0
      %v4072 = vmul.f32 %v4067, 0.35355338
      %v4073 = vsel %vm2762, %v4072, -inf
      %4074 = vmax.xlane.f32.xlu0 %v4073
      %v4075 = vpop.xlane.xlu0 %4074
      %v4076 = vsub.f32 %v4072, %v4075
      %v4077 = vmul.f32 %v4076, 1.442695
      %v4078 = vpow.pop %v4077
      %v4079 = vsel %vm2762, %v4078, 0.0
      %4080 = vadd.xlane.f32.xlu0 %v4079
      %v4081 = vpop.xlane.xlu0 %4080
      %v4082 = vrcp.pop %v4081
      %v4083 = vmul.f32 %v4078, %v4082
      %v4084 = vpack.c.bf16 %v4083, %v4083
      %4085 = vrot.lane.b32.xlu0 %v3750, 104
      %v4086 = vpop.permute.xlu0 %4085
      %v4088 = vsel %vm2762, %v4084, 0
      %v4091 = vsel %vm2766, %v4086, 0
      %4093 = vmatprep.subr.bf16.mxu0 0
      %4094 = vmatpush1.bf16.msra.mxu0 %v4091
      %4095 = vmatprep.subr.bf16.mxu0 0
      %4096 = vmatpush1.bf16.msra.mxu0 0
      %4097 = vmatprep.subr.bf16.mxu0 0
      %4098 = vmatpush1.bf16.msra.mxu0 0
      %4099 = vmatprep.subr.bf16.mxu0 0
      %4100 = vmatpush1.bf16.msra.mxu0 0
      %4101 = vmatprep.subr.bf16.mxu0 0
      %4102 = vmatpush1.bf16.msra.mxu0 0
      %4103 = vmatprep.subr.bf16.mxu0 0
      %4104 = vmatpush1.bf16.msra.mxu0 0
      %4105 = vmatprep.subr.bf16.mxu0 0
      %4106 = vmatpush1.bf16.msra.mxu0 0
      %4107 = vmatprep.subr.bf16.mxu0 0
      %4108 = vmatpush1.bf16.msra.mxu0 0
      %4109 = vmatprep.subr.bf16.mxu0 0
      %4110 = vmatpush1.bf16.msra.mxu0 0
      %4111 = vmatprep.subr.bf16.mxu0 0
      %4112 = vmatpush1.bf16.msra.mxu0 0
      %4113 = vmatprep.subr.bf16.mxu0 0
      %4114 = vmatpush1.bf16.msra.mxu0 0
      %4115 = vmatprep.subr.bf16.mxu0 0
      %4116 = vmatpush1.bf16.msra.mxu0 0
      %4117 = vmatprep.subr.bf16.mxu0 0
      %4118 = vmatpush1.bf16.msra.mxu0 0
      %4119 = vmatprep.subr.bf16.mxu0 0
      %4120 = vmatpush1.bf16.msra.mxu0 0
      %4121 = vmatprep.subr.bf16.mxu0 0
      %4122 = vmatpush1.bf16.msra.mxu0 0
      %4123 = vmatprep.subr.bf16.mxu0 0
      %4124 = vmatpush1.bf16.msra.mxu0 0
      %4125 = vmatprep.mubr.bf16.mxu0 0
      %4126 = vmatmul.mubr.bf16.gmra.mrb[0].mxu0 %v4088
      %v4127 = vpop.f32.mrb[0].mxu0
      %v4128 = vadd.f32 0.0, %v4127
      %v4129 = vpop.f32.mrb[0].mxu0
      %v4130 = vpop.f32.mrb[0].mxu0
      %v4131 = vpop.f32.mrb[0].mxu0
      %4132 = vdwg.mxu0
      %4134 = vrot.lane.b32.xlu0 %v3906, 8
      %v4135 = vpop.permute.xlu0 %4134
      %4138 = vrot.lane.b32.xlu0 %v4017, 16
      %v4139 = vpop.permute.xlu0 %4138
      %4142 = vrot.lane.b32.xlu0 %v4128, 24
      %v4143 = vpop.permute.xlu0 %4142
      %v4145 = vsel %vm2762, %v3792, %v4135
      %v4146 = vsel %vm374, %v4145, %v4139
      %vm4147 = vcmask 195584
      %v4148 = vsel %vm4147, %v4146, %v4143
      %v4149 = vpack.c.bf16 %v4148, %v4148
      %v4150 = vlaneseq
      %v4151 = vshrl.u32 %v4150, 7
      %v4152 = vsub.s32 7, %v4151
      %v4153 = vrot.slane %v3468, %v4152
      %v4158 = vunpack.c.l.b16 %v3482
      %v4159 = vunpack.c.l.b16 %v3483
      %v4160 = vunpack.c.l.b16 %v3484
      %v4161 = vunpack.c.l.b16 %v3485
      %v4162 = vpack.c.b16 %v4159, %v4158
      %v4163 = vpack.c.b16 %v4161, %v4160
      %v4167 = vsel %vm69, %v4149, 0
      %4169 = vmatprep.subr.bf16.mxu0 0
      %4170 = vmatpush1.bf16.msra.mxu0 %v4162
      %4171 = vmatprep.subr.bf16.mxu0 0
      %4172 = vmatpush1.bf16.msra.mxu0 %v4163
      %4173 = vmatprep.subr.bf16.mxu0 0
      %4174 = vmatpush1.bf16.msra.mxu0 0
      %4175 = vmatprep.subr.bf16.mxu0 0
      %4176 = vmatpush1.bf16.msra.mxu0 0
      %4177 = vmatprep.subr.bf16.mxu0 0
      %4178 = vmatpush1.bf16.msra.mxu0 0
      %4179 = vmatprep.subr.bf16.mxu0 0
      %4180 = vmatpush1.bf16.msra.mxu0 0
      %4181 = vmatprep.subr.bf16.mxu0 0
      %4182 = vmatpush1.bf16.msra.mxu0 0
      %4183 = vmatprep.subr.bf16.mxu0 0
      %4184 = vmatpush1.bf16.msra.mxu0 0
      %4185 = vmatprep.subr.bf16.mxu0 0
      %4186 = vmatpush1.bf16.msra.mxu0 0
      %4187 = vmatprep.subr.bf16.mxu0 0
      %4188 = vmatpush1.bf16.msra.mxu0 0
      %4189 = vmatprep.subr.bf16.mxu0 0
      %4190 = vmatpush1.bf16.msra.mxu0 0
      %4191 = vmatprep.subr.bf16.mxu0 0
      %4192 = vmatpush1.bf16.msra.mxu0 0
      %4193 = vmatprep.subr.bf16.mxu0 0
      %4194 = vmatpush1.bf16.msra.mxu0 0
      %4195 = vmatprep.subr.bf16.mxu0 0
      %4196 = vmatpush1.bf16.msra.mxu0 0
      %4197 = vmatprep.subr.bf16.mxu0 0
      %4198 = vmatpush1.bf16.msra.mxu0 0
      %4199 = vmatprep.subr.bf16.mxu0 0
      %4200 = vmatpush1.bf16.msra.mxu0 0
      %4201 = vmatprep.mubr.bf16.mxu0 0
      %4202 = vmatmul.mubr.bf16.gmra.mrb[0].mxu0 %v4167
      %v4203 = vpop.f32.mrb[0].mxu0
      %v4204 = vadd.f32 %v4153, %v4203
      %v4205 = vpop.f32.mrb[0].mxu0
      %v4206 = vpop.f32.mrb[0].mxu0
      %v4207 = vpop.f32.mrb[0].mxu0
      %4208 = vdwg.mxu0
      %v4209 = vadd.f32 %v3467, %v4204
      %v4210 = vsel %vm69, %v4209, 0.0
      %4211 = vadd.xlane.f32.xlu0 %v4210
      %v4212 = vpop.xlane.xlu0 %4211
      %v4213 = vmul.f32 %v4212, %v73
      %v4214 = vsub.f32 %v4209, %v4213
      %v4215 = vmul.f32 %v4214, %v4214
      %v4216 = vsel %vm69, %v4215, 0.0
      %4217 = vadd.xlane.f32.xlu0 %v4216
      %v4218 = vpop.xlane.xlu0 %4217
      %v4219 = vmul.f32 %v4218, %v73
      %v4220 = vadd.f32 %v4219, 1e-05
      %v4221 = vrsqrt.pop %v4220
      %v4222 = vmul.f32 %v4214, %v4221
      %v4223 = vlaneseq
      %v4224 = vshrl.u32 %v4223, 7
      %v4225 = vsub.s32 0, %v4224
      %v4226 = vrot.slane %v3469, %v4225
      %v4227 = vmul.f32 %v4222, %v4226
      %v4228 = vlaneseq
      %v4229 = vshrl.u32 %v4228, 7
      %v4230 = vsub.s32 1, %v4229
      %v4231 = vrot.slane %v3469, %v4230
      %v4232 = vadd.f32 %v4227, %v4231
      %v4233 = vpack.c.bf16 %v4232, %v4232
      %v4234 = vlaneseq
      %v4235 = vshrl.u32 %v4234, 7
      %v4236 = vsub.s32 2, %v4235
      %v4237 = vrot.slane %v3469, %v4236
      %v4242 = vunpack.c.l.b16 %v3486
      %v4243 = vunpack.c.l.b16 %v3487
      %v4244 = vunpack.c.l.b16 %v3488
      %v4245 = vunpack.c.l.b16 %v3489
      %v4246 = vpack.c.b16 %v4243, %v4242
      %v4247 = vpack.c.b16 %v4245, %v4244
      %v4251 = vsel %vm69, %v4233, 0
      %4253 = vmatprep.subr.bf16.mxu0 0
      %4254 = vmatpush1.bf16.msra.mxu0 %v4246
      %4255 = vmatprep.subr.bf16.mxu0 0
      %4256 = vmatpush1.bf16.msra.mxu0 %v4247
      %4257 = vmatprep.subr.bf16.mxu0 0
      %4258 = vmatpush1.bf16.msra.mxu0 0
      %4259 = vmatprep.subr.bf16.mxu0 0
      %4260 = vmatpush1.bf16.msra.mxu0 0
      %4261 = vmatprep.subr.bf16.mxu0 0
      %4262 = vmatpush1.bf16.msra.mxu0 0
      %4263 = vmatprep.subr.bf16.mxu0 0
      %4264 = vmatpush1.bf16.msra.mxu0 0
      %4265 = vmatprep.subr.bf16.mxu0 0
      %4266 = vmatpush1.bf16.msra.mxu0 0
      %4267 = vmatprep.subr.bf16.mxu0 0
      %4268 = vmatpush1.bf16.msra.mxu0 0
      %4269 = vmatprep.subr.bf16.mxu0 0
      %4270 = vmatpush1.bf16.msra.mxu0 0
      %4271 = vmatprep.subr.bf16.mxu0 0
      %4272 = vmatpush1.bf16.msra.mxu0 0
      %4273 = vmatprep.subr.bf16.mxu0 0
      %4274 = vmatpush1.bf16.msra.mxu0 0
      %4275 = vmatprep.subr.bf16.mxu0 0
      %4276 = vmatpush1.bf16.msra.mxu0 0
      %4277 = vmatprep.subr.bf16.mxu0 0
      %4278 = vmatpush1.bf16.msra.mxu0 0
      %4279 = vmatprep.subr.bf16.mxu0 0
      %4280 = vmatpush1.bf16.msra.mxu0 0
      %4281 = vmatprep.subr.bf16.mxu0 0
      %4282 = vmatpush1.bf16.msra.mxu0 0
      %4283 = vmatprep.subr.bf16.mxu0 0
      %4284 = vmatpush1.bf16.msra.mxu0 0
      %4285 = vmatprep.mubr.bf16.mxu0 0
      %4286 = vmatmul.mubr.bf16.gmra.mrb[0].mxu0 %v4251
      %v4287 = vpop.f32.mrb[0].mxu0
      %v4288 = vadd.f32 %v4237, %v4287
      %v4289 = vpop.f32.mrb[0].mxu0
      %v4290 = vpop.f32.mrb[0].mxu0
      %v4291 = vpop.f32.mrb[0].mxu0
      %4292 = vdwg.mxu0
      %v4293 = vmul.f32 %v4288, 0.5
      %v4294 = vmul.f32 %v4288, 0.044715
      %v4295 = vmul.f32 %v4294, %v4288
      %v4296 = vmul.f32 %v4295, %v4288
      %v4297 = vadd.f32 %v4288, %v4296
      %v4298 = vmul.f32 %v4297, 0.7978846
      %v4299 = vtanh.pop %v4298
      %v4300 = vadd.f32 %v4299, 1.0
      %v4301 = vmul.f32 %v4293, %v4300
      %v4302 = vpack.c.bf16 %v4301, %v4301
      %v4303 = vlaneseq
      %v4304 = vshrl.u32 %v4303, 7
      %v4305 = vsub.s32 3, %v4304
      %v4306 = vrot.slane %v3469, %v4305
      %v4311 = vunpack.c.l.b16 %v3490
      %v4312 = vunpack.c.l.b16 %v3491
      %v4313 = vunpack.c.l.b16 %v3492
      %v4314 = vunpack.c.l.b16 %v3493
      %v4315 = vpack.c.b16 %v4312, %v4311
      %v4316 = vpack.c.b16 %v4314, %v4313
      %v4320 = vsel %vm69, %v4302, 0
      %4322 = vmatprep.subr.bf16.mxu0 0
      %4323 = vmatpush1.bf16.msra.mxu0 %v4315
      %4324 = vmatprep.subr.bf16.mxu0 0
      %4325 = vmatpush1.bf16.msra.mxu0 %v4316
      %4326 = vmatprep.subr.bf16.mxu0 0
      %4327 = vmatpush1.bf16.msra.mxu0 0
      %4328 = vmatprep.subr.bf16.mxu0 0
      %4329 = vmatpush1.bf16.msra.mxu0 0
      %4330 = vmatprep.subr.bf16.mxu0 0
      %4331 = vmatpush1.bf16.msra.mxu0 0
      %4332 = vmatprep.subr.bf16.mxu0 0
      %4333 = vmatpush1.bf16.msra.mxu0 0
      %4334 = vmatprep.subr.bf16.mxu0 0
      %4335 = vmatpush1.bf16.msra.mxu0 0
      %4336 = vmatprep.subr.bf16.mxu0 0
      %4337 = vmatpush1.bf16.msra.mxu0 0
      %4338 = vmatprep.subr.bf16.mxu0 0
      %4339 = vmatpush1.bf16.msra.mxu0 0
      %4340 = vmatprep.subr.bf16.mxu0 0
      %4341 = vmatpush1.bf16.msra.mxu0 0
      %4342 = vmatprep.subr.bf16.mxu0 0
      %4343 = vmatpush1.bf16.msra.mxu0 0
      %4344 = vmatprep.subr.bf16.mxu0 0
      %4345 = vmatpush1.bf16.msra.mxu0 0
      %4346 = vmatprep.subr.bf16.mxu0 0
      %4347 = vmatpush1.bf16.msra.mxu0 0
      %4348 = vmatprep.subr.bf16.mxu0 0
      %4349 = vmatpush1.bf16.msra.mxu0 0
      %4350 = vmatprep.subr.bf16.mxu0 0
      %4351 = vmatpush1.bf16.msra.mxu0 0
      %4352 = vmatprep.subr.bf16.mxu0 0
      %4353 = vmatpush1.bf16.msra.mxu0 0
      %4354 = vmatprep.mubr.bf16.mxu0 0
      %4355 = vmatmul.mubr.bf16.gmra.mrb[0].mxu0 %v4320
      %v4356 = vpop.f32.mrb[0].mxu0
      %v4357 = vadd.f32 %v4306, %v4356
      %v4358 = vpop.f32.mrb[0].mxu0
      %v4359 = vpop.f32.mrb[0].mxu0
      %v4360 = vpop.f32.mrb[0].mxu0
      %4361 = vdwg.mxu0
      %v4362 = vadd.f32 %v4209, %v4357
      %v4363 = vld [vmem:[%s4 + $0x20] sm:$0xff]
      %v4364 = vld [vmem:[%s4 + $0x28] sm:$0xff]
      %v4365 = vld [vmem:[%s3 + $0xe0] sm:$0xf]
      %v4366 = vld [vmem:[%s3 + $0xe4] sm:$0xf]
      %v4367 = vld [vmem:[%s3 + $0xe8] sm:$0xf]
      %v4368 = vld [vmem:[%s3 + $0xec] sm:$0xf]
      %v4369 = vld [vmem:[%s3 + $0xf0] sm:$0xf]
      %v4370 = vld [vmem:[%s3 + $0xf4] sm:$0xf]
      %v4371 = vld [vmem:[%s3 + $0xf8] sm:$0xf]
      %v4372 = vld [vmem:[%s3 + $0xfc] sm:$0xf]
      %v4373 = vld [vmem:[%s3 + $0x108] sm:$0xf]
      %v4374 = vld [vmem:[%s3 + $0x10c] sm:$0xf]
      %v4375 = vld [vmem:[%s3 + $0x110] sm:$0xf]
      %v4376 = vld [vmem:[%s3 + $0x114] sm:$0xf]
      %v4377 = vld [vmem:[%s3 + $0x120] sm:$0xf]
      %v4378 = vld [vmem:[%s3 + $0x124] sm:$0xf]
      %v4379 = vld [vmem:[%s3 + $0x128] sm:$0xf]
      %v4380 = vld [vmem:[%s3 + $0x12c] sm:$0xf]
      %v4381 = vld [vmem:[%s3 + $0x130] sm:$0xf]
      %v4382 = vld [vmem:[%s3 + $0x134] sm:$0xf]
      %v4383 = vld [vmem:[%s3 + $0x138] sm:$0xf]
      %v4384 = vld [vmem:[%s3 + $0x13c] sm:$0xf]
      %v4385 = vld [vmem:[%s3 + $0x140] sm:$0xf]
      %v4386 = vld [vmem:[%s3 + $0x144] sm:$0xf]
      %v4387 = vld [vmem:[%s3 + $0x148] sm:$0xf]
      %v4388 = vld [vmem:[%s3 + $0x14c] sm:$0xf]
      %v4389 = vsel %vm69, %v4362, 0.0
      %4390 = vadd.xlane.f32.xlu0 %v4389
      %v4391 = vpop.xlane.xlu0 %4390
      %v4392 = vmul.f32 %v4391, %v73
      %v4393 = vsub.f32 %v4362, %v4392
      %v4394 = vmul.f32 %v4393, %v4393
      %v4395 = vsel %vm69, %v4394, 0.0
      %4396 = vadd.xlane.f32.xlu0 %v4395
      %v4397 = vpop.xlane.xlu0 %4396
      %v4398 = vmul.f32 %v4397, %v73
      %v4399 = vadd.f32 %v4398, 1e-05
      %v4400 = vrsqrt.pop %v4399
      %v4401 = vmul.f32 %v4393, %v4400
      %v4402 = vlaneseq
      %v4403 = vshrl.u32 %v4402, 7
      %v4404 = vsub.s32 0, %v4403
      %v4405 = vrot.slane %v4363, %v4404
      %v4406 = vmul.f32 %v4401, %v4405
      %v4407 = vlaneseq
      %v4408 = vshrl.u32 %v4407, 7
      %v4409 = vsub.s32 1, %v4408
      %v4410 = vrot.slane %v4363, %v4409
      %v4411 = vadd.f32 %v4406, %v4410
      %v4412 = vpack.c.bf16 %v4411, %v4411
      %v4413 = vlaneseq
      %v4414 = vshrl.u32 %v4413, 7
      %v4415 = vsub.s32 4, %v4414
      %v4416 = vrot.slane %v4363, %v4415
      %v4421 = vunpack.c.l.b16 %v4365
      %v4422 = vunpack.c.l.b16 %v4366
      %v4423 = vunpack.c.l.b16 %v4367
      %v4424 = vunpack.c.l.b16 %v4368
      %v4425 = vpack.c.b16 %v4422, %v4421
      %v4426 = vpack.c.b16 %v4424, %v4423
      %v4430 = vsel %vm69, %v4412, 0
      %4432 = vmatprep.subr.bf16.mxu0 0
      %4433 = vmatpush1.bf16.msra.mxu0 %v4425
      %4434 = vmatprep.subr.bf16.mxu0 0
      %4435 = vmatpush1.bf16.msra.mxu0 %v4426
      %4436 = vmatprep.subr.bf16.mxu0 0
      %4437 = vmatpush1.bf16.msra.mxu0 0
      %4438 = vmatprep.subr.bf16.mxu0 0
      %4439 = vmatpush1.bf16.msra.mxu0 0
      %4440 = vmatprep.subr.bf16.mxu0 0
      %4441 = vmatpush1.bf16.msra.mxu0 0
      %4442 = vmatprep.subr.bf16.mxu0 0
      %4443 = vmatpush1.bf16.msra.mxu0 0
      %4444 = vmatprep.subr.bf16.mxu0 0
      %4445 = vmatpush1.bf16.msra.mxu0 0
      %4446 = vmatprep.subr.bf16.mxu0 0
      %4447 = vmatpush1.bf16.msra.mxu0 0
      %4448 = vmatprep.subr.bf16.mxu0 0
      %4449 = vmatpush1.bf16.msra.mxu0 0
      %4450 = vmatprep.subr.bf16.mxu0 0
      %4451 = vmatpush1.bf16.msra.mxu0 0
      %4452 = vmatprep.subr.bf16.mxu0 0
      %4453 = vmatpush1.bf16.msra.mxu0 0
      %4454 = vmatprep.subr.bf16.mxu0 0
      %4455 = vmatpush1.bf16.msra.mxu0 0
      %4456 = vmatprep.subr.bf16.mxu0 0
      %4457 = vmatpush1.bf16.msra.mxu0 0
      %4458 = vmatprep.subr.bf16.mxu0 0
      %4459 = vmatpush1.bf16.msra.mxu0 0
      %4460 = vmatprep.subr.bf16.mxu0 0
      %4461 = vmatpush1.bf16.msra.mxu0 0
      %4462 = vmatprep.subr.bf16.mxu0 0
      %4463 = vmatpush1.bf16.msra.mxu0 0
      %4464 = vmatprep.mubr.bf16.mxu0 0
      %4465 = vmatmul.mubr.bf16.gmra.mrb[0].mxu0 %v4430
      %v4466 = vpop.f32.mrb[0].mxu0
      %v4467 = vadd.f32 %v4416, %v4466
      %v4468 = vpop.f32.mrb[0].mxu0
      %v4469 = vpop.f32.mrb[0].mxu0
      %v4470 = vpop.f32.mrb[0].mxu0
      %4471 = vdwg.mxu0
      %v4472 = vlaneseq
      %v4473 = vshrl.u32 %v4472, 7
      %v4474 = vsub.s32 5, %v4473
      %v4475 = vrot.slane %v4363, %v4474
      %v4480 = vunpack.c.l.b16 %v4369
      %v4481 = vunpack.c.l.b16 %v4370
      %v4482 = vunpack.c.l.b16 %v4371
      %v4483 = vunpack.c.l.b16 %v4372
      %v4484 = vpack.c.b16 %v4481, %v4480
      %v4485 = vpack.c.b16 %v4483, %v4482
      %4488 = vmatprep.subr.bf16.mxu0 0
      %4489 = vmatpush1.bf16.msra.mxu0 %v4484
      %4490 = vmatprep.subr.bf16.mxu0 0
      %4491 = vmatpush1.bf16.msra.mxu0 %v4485
      %4492 = vmatprep.subr.bf16.mxu0 0
      %4493 = vmatpush1.bf16.msra.mxu0 0
      %4494 = vmatprep.subr.bf16.mxu0 0
      %4495 = vmatpush1.bf16.msra.mxu0 0
      %4496 = vmatprep.subr.bf16.mxu0 0
      %4497 = vmatpush1.bf16.msra.mxu0 0
      %4498 = vmatprep.subr.bf16.mxu0 0
      %4499 = vmatpush1.bf16.msra.mxu0 0
      %4500 = vmatprep.subr.bf16.mxu0 0
      %4501 = vmatpush1.bf16.msra.mxu0 0
      %4502 = vmatprep.subr.bf16.mxu0 0
      %4503 = vmatpush1.bf16.msra.mxu0 0
      %4504 = vmatprep.subr.bf16.mxu0 0
      %4505 = vmatpush1.bf16.msra.mxu0 0
      %4506 = vmatprep.subr.bf16.mxu0 0
      %4507 = vmatpush1.bf16.msra.mxu0 0
      %4508 = vmatprep.subr.bf16.mxu0 0
      %4509 = vmatpush1.bf16.msra.mxu0 0
      %4510 = vmatprep.subr.bf16.mxu0 0
      %4511 = vmatpush1.bf16.msra.mxu0 0
      %4512 = vmatprep.subr.bf16.mxu0 0
      %4513 = vmatpush1.bf16.msra.mxu0 0
      %4514 = vmatprep.subr.bf16.mxu0 0
      %4515 = vmatpush1.bf16.msra.mxu0 0
      %4516 = vmatprep.subr.bf16.mxu0 0
      %4517 = vmatpush1.bf16.msra.mxu0 0
      %4518 = vmatprep.subr.bf16.mxu0 0
      %4519 = vmatpush1.bf16.msra.mxu0 0
      %4520 = vmatprep.mubr.bf16.mxu0 0
      %4521 = vmatmul.mubr.bf16.gmra.mrb[0].mxu0 %v4430
      %v4522 = vpop.f32.mrb[0].mxu0
      %v4523 = vadd.f32 %v4475, %v4522
      %v4524 = vpop.f32.mrb[0].mxu0
      %v4525 = vpop.f32.mrb[0].mxu0
      %v4526 = vpop.f32.mrb[0].mxu0
      %4527 = vdwg.mxu0
      %v4528 = vlaneseq
      %v4529 = vshrl.u32 %v4528, 7
      %v4530 = vsub.s32 6, %v4529
      %v4531 = vrot.slane %v4363, %v4530
      %v4536 = vunpack.c.l.b16 %v4373
      %v4537 = vunpack.c.l.b16 %v4374
      %v4538 = vunpack.c.l.b16 %v4375
      %v4539 = vunpack.c.l.b16 %v4376
      %v4540 = vpack.c.b16 %v4537, %v4536
      %v4541 = vpack.c.b16 %v4539, %v4538
      %4544 = vmatprep.subr.bf16.mxu0 0
      %4545 = vmatpush1.bf16.msra.mxu0 %v4540
      %4546 = vmatprep.subr.bf16.mxu0 0
      %4547 = vmatpush1.bf16.msra.mxu0 %v4541
      %4548 = vmatprep.subr.bf16.mxu0 0
      %4549 = vmatpush1.bf16.msra.mxu0 0
      %4550 = vmatprep.subr.bf16.mxu0 0
      %4551 = vmatpush1.bf16.msra.mxu0 0
      %4552 = vmatprep.subr.bf16.mxu0 0
      %4553 = vmatpush1.bf16.msra.mxu0 0
      %4554 = vmatprep.subr.bf16.mxu0 0
      %4555 = vmatpush1.bf16.msra.mxu0 0
      %4556 = vmatprep.subr.bf16.mxu0 0
      %4557 = vmatpush1.bf16.msra.mxu0 0
      %4558 = vmatprep.subr.bf16.mxu0 0
      %4559 = vmatpush1.bf16.msra.mxu0 0
      %4560 = vmatprep.subr.bf16.mxu0 0
      %4561 = vmatpush1.bf16.msra.mxu0 0
      %4562 = vmatprep.subr.bf16.mxu0 0
      %4563 = vmatpush1.bf16.msra.mxu0 0
      %4564 = vmatprep.subr.bf16.mxu0 0
      %4565 = vmatpush1.bf16.msra.mxu0 0
      %4566 = vmatprep.subr.bf16.mxu0 0
      %4567 = vmatpush1.bf16.msra.mxu0 0
      %4568 = vmatprep.subr.bf16.mxu0 0
      %4569 = vmatpush1.bf16.msra.mxu0 0
      %4570 = vmatprep.subr.bf16.mxu0 0
      %4571 = vmatpush1.bf16.msra.mxu0 0
      %4572 = vmatprep.subr.bf16.mxu0 0
      %4573 = vmatpush1.bf16.msra.mxu0 0
      %4574 = vmatprep.subr.bf16.mxu0 0
      %4575 = vmatpush1.bf16.msra.mxu0 0
      %4576 = vmatprep.mubr.bf16.mxu0 0
      %4577 = vmatmul.mubr.bf16.gmra.mrb[0].mxu0 %v4430
      %v4578 = vpop.f32.mrb[0].mxu0
      %v4579 = vadd.f32 %v4531, %v4578
      %v4580 = vpop.f32.mrb[0].mxu0
      %v4581 = vpop.f32.mrb[0].mxu0
      %v4582 = vpop.f32.mrb[0].mxu0
      %4583 = vdwg.mxu0
      %v4584 = vpack.c.bf16 %v4467, %v4467
      %v4585 = vpack.c.bf16 %v4523, %v4523
      %v4587 = vsel %vm2762, %v4584, 0
      %v4590 = vsel %vm2762, %v4585, 0
      %4592 = vmatprep.subr.bf16.mxu0 0
      %4593 = vmatpush1.bf16.xpose.msra.mxu0 %v4590
      %4594 = vmatprep.subr.bf16.mxu0 0
      %4595 = vmatpush1.bf16.xpose.msra.mxu0 0
      %4596 = vmatprep.subr.bf16.mxu0 0
      %4597 = vmatpush1.bf16.xpose.msra.mxu0 0
      %4598 = vmatprep.subr.bf16.mxu0 0
      %4599 = vmatpush1.bf16.xpose.msra.mxu0 0
      %4600 = vmatprep.subr.bf16.mxu0 0
      %4601 = vmatpush1.bf16.xpose.msra.mxu0 0
      %4602 = vmatprep.subr.bf16.mxu0 0
      %4603 = vmatpush1.bf16.xpose.msra.mxu0 0
      %4604 = vmatprep.subr.bf16.mxu0 0
      %4605 = vmatpush1.bf16.xpose.msra.mxu0 0
      %4606 = vmatprep.subr.bf16.mxu0 0
      %4607 = vmatpush1.bf16.xpose.msra.mxu0 0
      %4608 = vmatprep.subr.bf16.mxu0 0
      %4609 = vmatpush1.bf16.xpose.msra.mxu0 0
      %4610 = vmatprep.subr.bf16.mxu0 0
      %4611 = vmatpush1.bf16.xpose.msra.mxu0 0
      %4612 = vmatprep.subr.bf16.mxu0 0
      %4613 = vmatpush1.bf16.xpose.msra.mxu0 0
      %4614 = vmatprep.subr.bf16.mxu0 0
      %4615 = vmatpush1.bf16.xpose.msra.mxu0 0
      %4616 = vmatprep.subr.bf16.mxu0 0
      %4617 = vmatpush1.bf16.xpose.msra.mxu0 0
      %4618 = vmatprep.subr.bf16.mxu0 0
      %4619 = vmatpush1.bf16.xpose.msra.mxu0 0
      %4620 = vmatprep.subr.bf16.mxu0 0
      %4621 = vmatpush1.bf16.xpose.msra.mxu0 0
      %4622 = vmatprep.subr.bf16.mxu0 0
      %4623 = vmatpush1.bf16.xpose.msra.mxu0 0
      %4624 = vmatprep.mubr.bf16.mxu0 0
      %4625 = vmatmul.mubr.bf16.gmra.mrb[0].mxu0 %v4587
      %v4626 = vpop.f32.mrb[0].mxu0
      %v4627 = vadd.f32 0.0, %v4626
      %v4628 = vpop.f32.mrb[0].mxu0
      %v4629 = vpop.f32.mrb[0].mxu0
      %v4630 = vpop.f32.mrb[0].mxu0
      %4631 = vdwg.mxu0
      %v4632 = vmul.f32 %v4627, 0.35355338
      %v4633 = vsel %vm2762, %v4632, -inf
      %4634 = vmax.xlane.f32.xlu0 %v4633
      %v4635 = vpop.xlane.xlu0 %4634
      %v4636 = vsub.f32 %v4632, %v4635
      %v4637 = vmul.f32 %v4636, 1.442695
      %v4638 = vpow.pop %v4637
      %v4639 = vsel %vm2762, %v4638, 0.0
      %4640 = vadd.xlane.f32.xlu0 %v4639
      %v4641 = vpop.xlane.xlu0 %4640
      %v4642 = vrcp.pop %v4641
      %v4643 = vmul.f32 %v4638, %v4642
      %v4644 = vpack.c.bf16 %v4643, %v4643
      %v4645 = vpack.c.bf16 %v4579, %v4579
      %v4647 = vsel %vm2762, %v4644, 0
      %v4650 = vsel %vm2766, %v4645, 0
      %4652 = vmatprep.subr.bf16.mxu0 0
      %4653 = vmatpush1.bf16.msra.mxu0 %v4650
      %4654 = vmatprep.subr.bf16.mxu0 0
      %4655 = vmatpush1.bf16.msra.mxu0 0
      %4656 = vmatprep.subr.bf16.mxu0 0
      %4657 = vmatpush1.bf16.msra.mxu0 0
      %4658 = vmatprep.subr.bf16.mxu0 0
      %4659 = vmatpush1.bf16.msra.mxu0 0
      %4660 = vmatprep.subr.bf16.mxu0 0
      %4661 = vmatpush1.bf16.msra.mxu0 0
      %4662 = vmatprep.subr.bf16.mxu0 0
      %4663 = vmatpush1.bf16.msra.mxu0 0
      %4664 = vmatprep.subr.bf16.mxu0 0
      %4665 = vmatpush1.bf16.msra.mxu0 0
      %4666 = vmatprep.subr.bf16.mxu0 0
      %4667 = vmatpush1.bf16.msra.mxu0 0
      %4668 = vmatprep.subr.bf16.mxu0 0
      %4669 = vmatpush1.bf16.msra.mxu0 0
      %4670 = vmatprep.subr.bf16.mxu0 0
      %4671 = vmatpush1.bf16.msra.mxu0 0
      %4672 = vmatprep.subr.bf16.mxu0 0
      %4673 = vmatpush1.bf16.msra.mxu0 0
      %4674 = vmatprep.subr.bf16.mxu0 0
      %4675 = vmatpush1.bf16.msra.mxu0 0
      %4676 = vmatprep.subr.bf16.mxu0 0
      %4677 = vmatpush1.bf16.msra.mxu0 0
      %4678 = vmatprep.subr.bf16.mxu0 0
      %4679 = vmatpush1.bf16.msra.mxu0 0
      %4680 = vmatprep.subr.bf16.mxu0 0
      %4681 = vmatpush1.bf16.msra.mxu0 0
      %4682 = vmatprep.subr.bf16.mxu0 0
      %4683 = vmatpush1.bf16.msra.mxu0 0
      %4684 = vmatprep.mubr.bf16.mxu0 0
      %4685 = vmatmul.mubr.bf16.gmra.mrb[0].mxu0 %v4647
      %v4686 = vpop.f32.mrb[0].mxu0
      %v4687 = vadd.f32 0.0, %v4686
      %v4688 = vpop.f32.mrb[0].mxu0
      %v4689 = vpop.f32.mrb[0].mxu0
      %v4690 = vpop.f32.mrb[0].mxu0
      %4691 = vdwg.mxu0
      %4693 = vrot.lane.b32.xlu0 %v4584, 120
      %v4694 = vpop.permute.xlu0 %4693
      %4696 = vrot.lane.b32.xlu0 %v4585, 120
      %v4697 = vpop.permute.xlu0 %4696
      %v4699 = vsel %vm2762, %v4694, 0
      %v4702 = vsel %vm2762, %v4697, 0
      %4704 = vmatprep.subr.bf16.mxu0 0
      %4705 = vmatpush1.bf16.xpose.msra.mxu0 %v4702
      %4706 = vmatprep.subr.bf16.mxu0 0
      %4707 = vmatpush1.bf16.xpose.msra.mxu0 0
      %4708 = vmatprep.subr.bf16.mxu0 0
      %4709 = vmatpush1.bf16.xpose.msra.mxu0 0
      %4710 = vmatprep.subr.bf16.mxu0 0
      %4711 = vmatpush1.bf16.xpose.msra.mxu0 0
      %4712 = vmatprep.subr.bf16.mxu0 0
      %4713 = vmatpush1.bf16.xpose.msra.mxu0 0
      %4714 = vmatprep.subr.bf16.mxu0 0
      %4715 = vmatpush1.bf16.xpose.msra.mxu0 0
      %4716 = vmatprep.subr.bf16.mxu0 0
      %4717 = vmatpush1.bf16.xpose.msra.mxu0 0
      %4718 = vmatprep.subr.bf16.mxu0 0
      %4719 = vmatpush1.bf16.xpose.msra.mxu0 0
      %4720 = vmatprep.subr.bf16.mxu0 0
      %4721 = vmatpush1.bf16.xpose.msra.mxu0 0
      %4722 = vmatprep.subr.bf16.mxu0 0
      %4723 = vmatpush1.bf16.xpose.msra.mxu0 0
      %4724 = vmatprep.subr.bf16.mxu0 0
      %4725 = vmatpush1.bf16.xpose.msra.mxu0 0
      %4726 = vmatprep.subr.bf16.mxu0 0
      %4727 = vmatpush1.bf16.xpose.msra.mxu0 0
      %4728 = vmatprep.subr.bf16.mxu0 0
      %4729 = vmatpush1.bf16.xpose.msra.mxu0 0
      %4730 = vmatprep.subr.bf16.mxu0 0
      %4731 = vmatpush1.bf16.xpose.msra.mxu0 0
      %4732 = vmatprep.subr.bf16.mxu0 0
      %4733 = vmatpush1.bf16.xpose.msra.mxu0 0
      %4734 = vmatprep.subr.bf16.mxu0 0
      %4735 = vmatpush1.bf16.xpose.msra.mxu0 0
      %4736 = vmatprep.mubr.bf16.mxu0 0
      %4737 = vmatmul.mubr.bf16.gmra.mrb[0].mxu0 %v4699
      %v4738 = vpop.f32.mrb[0].mxu0
      %v4739 = vadd.f32 0.0, %v4738
      %v4740 = vpop.f32.mrb[0].mxu0
      %v4741 = vpop.f32.mrb[0].mxu0
      %v4742 = vpop.f32.mrb[0].mxu0
      %4743 = vdwg.mxu0
      %v4744 = vmul.f32 %v4739, 0.35355338
      %v4745 = vsel %vm2762, %v4744, -inf
      %4746 = vmax.xlane.f32.xlu0 %v4745
      %v4747 = vpop.xlane.xlu0 %4746
      %v4748 = vsub.f32 %v4744, %v4747
      %v4749 = vmul.f32 %v4748, 1.442695
      %v4750 = vpow.pop %v4749
      %v4751 = vsel %vm2762, %v4750, 0.0
      %4752 = vadd.xlane.f32.xlu0 %v4751
      %v4753 = vpop.xlane.xlu0 %4752
      %v4754 = vrcp.pop %v4753
      %v4755 = vmul.f32 %v4750, %v4754
      %v4756 = vpack.c.bf16 %v4755, %v4755
      %4758 = vrot.lane.b32.xlu0 %v4645, 120
      %v4759 = vpop.permute.xlu0 %4758
      %v4761 = vsel %vm2762, %v4756, 0
      %v4764 = vsel %vm2766, %v4759, 0
      %4766 = vmatprep.subr.bf16.mxu0 0
      %4767 = vmatpush1.bf16.msra.mxu0 %v4764
      %4768 = vmatprep.subr.bf16.mxu0 0
      %4769 = vmatpush1.bf16.msra.mxu0 0
      %4770 = vmatprep.subr.bf16.mxu0 0
      %4771 = vmatpush1.bf16.msra.mxu0 0
      %4772 = vmatprep.subr.bf16.mxu0 0
      %4773 = vmatpush1.bf16.msra.mxu0 0
      %4774 = vmatprep.subr.bf16.mxu0 0
      %4775 = vmatpush1.bf16.msra.mxu0 0
      %4776 = vmatprep.subr.bf16.mxu0 0
      %4777 = vmatpush1.bf16.msra.mxu0 0
      %4778 = vmatprep.subr.bf16.mxu0 0
      %4779 = vmatpush1.bf16.msra.mxu0 0
      %4780 = vmatprep.subr.bf16.mxu0 0
      %4781 = vmatpush1.bf16.msra.mxu0 0
      %4782 = vmatprep.subr.bf16.mxu0 0
      %4783 = vmatpush1.bf16.msra.mxu0 0
      %4784 = vmatprep.subr.bf16.mxu0 0
      %4785 = vmatpush1.bf16.msra.mxu0 0
      %4786 = vmatprep.subr.bf16.mxu0 0
      %4787 = vmatpush1.bf16.msra.mxu0 0
      %4788 = vmatprep.subr.bf16.mxu0 0
      %4789 = vmatpush1.bf16.msra.mxu0 0
      %4790 = vmatprep.subr.bf16.mxu0 0
      %4791 = vmatpush1.bf16.msra.mxu0 0
      %4792 = vmatprep.subr.bf16.mxu0 0
      %4793 = vmatpush1.bf16.msra.mxu0 0
      %4794 = vmatprep.subr.bf16.mxu0 0
      %4795 = vmatpush1.bf16.msra.mxu0 0
      %4796 = vmatprep.subr.bf16.mxu0 0
      %4797 = vmatpush1.bf16.msra.mxu0 0
      %4798 = vmatprep.mubr.bf16.mxu0 0
      %4799 = vmatmul.mubr.bf16.gmra.mrb[0].mxu0 %v4761
      %v4800 = vpop.f32.mrb[0].mxu0
      %v4801 = vadd.f32 0.0, %v4800
      %v4802 = vpop.f32.mrb[0].mxu0
      %v4803 = vpop.f32.mrb[0].mxu0
      %v4804 = vpop.f32.mrb[0].mxu0
      %4805 = vdwg.mxu0
      %4806 = vrot.lane.b32.xlu0 %v4584, 112
      %v4807 = vpop.permute.xlu0 %4806
      %4808 = vrot.lane.b32.xlu0 %v4585, 112
      %v4809 = vpop.permute.xlu0 %4808
      %v4811 = vsel %vm2762, %v4807, 0
      %v4814 = vsel %vm2762, %v4809, 0
      %4816 = vmatprep.subr.bf16.mxu0 0
      %4817 = vmatpush1.bf16.xpose.msra.mxu0 %v4814
      %4818 = vmatprep.subr.bf16.mxu0 0
      %4819 = vmatpush1.bf16.xpose.msra.mxu0 0
      %4820 = vmatprep.subr.bf16.mxu0 0
      %4821 = vmatpush1.bf16.xpose.msra.mxu0 0
      %4822 = vmatprep.subr.bf16.mxu0 0
      %4823 = vmatpush1.bf16.xpose.msra.mxu0 0
      %4824 = vmatprep.subr.bf16.mxu0 0
      %4825 = vmatpush1.bf16.xpose.msra.mxu0 0
      %4826 = vmatprep.subr.bf16.mxu0 0
      %4827 = vmatpush1.bf16.xpose.msra.mxu0 0
      %4828 = vmatprep.subr.bf16.mxu0 0
      %4829 = vmatpush1.bf16.xpose.msra.mxu0 0
      %4830 = vmatprep.subr.bf16.mxu0 0
      %4831 = vmatpush1.bf16.xpose.msra.mxu0 0
      %4832 = vmatprep.subr.bf16.mxu0 0
      %4833 = vmatpush1.bf16.xpose.msra.mxu0 0
      %4834 = vmatprep.subr.bf16.mxu0 0
      %4835 = vmatpush1.bf16.xpose.msra.mxu0 0
      %4836 = vmatprep.subr.bf16.mxu0 0
      %4837 = vmatpush1.bf16.xpose.msra.mxu0 0
      %4838 = vmatprep.subr.bf16.mxu0 0
      %4839 = vmatpush1.bf16.xpose.msra.mxu0 0
      %4840 = vmatprep.subr.bf16.mxu0 0
      %4841 = vmatpush1.bf16.xpose.msra.mxu0 0
      %4842 = vmatprep.subr.bf16.mxu0 0
      %4843 = vmatpush1.bf16.xpose.msra.mxu0 0
      %4844 = vmatprep.subr.bf16.mxu0 0
      %4845 = vmatpush1.bf16.xpose.msra.mxu0 0
      %4846 = vmatprep.subr.bf16.mxu0 0
      %4847 = vmatpush1.bf16.xpose.msra.mxu0 0
      %4848 = vmatprep.mubr.bf16.mxu0 0
      %4849 = vmatmul.mubr.bf16.gmra.mrb[0].mxu0 %v4811
      %v4850 = vpop.f32.mrb[0].mxu0
      %v4851 = vadd.f32 0.0, %v4850
      %v4852 = vpop.f32.mrb[0].mxu0
      %v4853 = vpop.f32.mrb[0].mxu0
      %v4854 = vpop.f32.mrb[0].mxu0
      %4855 = vdwg.mxu0
      %v4856 = vmul.f32 %v4851, 0.35355338
      %v4857 = vsel %vm2762, %v4856, -inf
      %4858 = vmax.xlane.f32.xlu0 %v4857
      %v4859 = vpop.xlane.xlu0 %4858
      %v4860 = vsub.f32 %v4856, %v4859
      %v4861 = vmul.f32 %v4860, 1.442695
      %v4862 = vpow.pop %v4861
      %v4863 = vsel %vm2762, %v4862, 0.0
      %4864 = vadd.xlane.f32.xlu0 %v4863
      %v4865 = vpop.xlane.xlu0 %4864
      %v4866 = vrcp.pop %v4865
      %v4867 = vmul.f32 %v4862, %v4866
      %v4868 = vpack.c.bf16 %v4867, %v4867
      %4869 = vrot.lane.b32.xlu0 %v4645, 112
      %v4870 = vpop.permute.xlu0 %4869
      %v4872 = vsel %vm2762, %v4868, 0
      %v4875 = vsel %vm2766, %v4870, 0
      %4877 = vmatprep.subr.bf16.mxu0 0
      %4878 = vmatpush1.bf16.msra.mxu0 %v4875
      %4879 = vmatprep.subr.bf16.mxu0 0
      %4880 = vmatpush1.bf16.msra.mxu0 0
      %4881 = vmatprep.subr.bf16.mxu0 0
      %4882 = vmatpush1.bf16.msra.mxu0 0
      %4883 = vmatprep.subr.bf16.mxu0 0
      %4884 = vmatpush1.bf16.msra.mxu0 0
      %4885 = vmatprep.subr.bf16.mxu0 0
      %4886 = vmatpush1.bf16.msra.mxu0 0
      %4887 = vmatprep.subr.bf16.mxu0 0
      %4888 = vmatpush1.bf16.msra.mxu0 0
      %4889 = vmatprep.subr.bf16.mxu0 0
      %4890 = vmatpush1.bf16.msra.mxu0 0
      %4891 = vmatprep.subr.bf16.mxu0 0
      %4892 = vmatpush1.bf16.msra.mxu0 0
      %4893 = vmatprep.subr.bf16.mxu0 0
      %4894 = vmatpush1.bf16.msra.mxu0 0
      %4895 = vmatprep.subr.bf16.mxu0 0
      %4896 = vmatpush1.bf16.msra.mxu0 0
      %4897 = vmatprep.subr.bf16.mxu0 0
      %4898 = vmatpush1.bf16.msra.mxu0 0
      %4899 = vmatprep.subr.bf16.mxu0 0
      %4900 = vmatpush1.bf16.msra.mxu0 0
      %4901 = vmatprep.subr.bf16.mxu0 0
      %4902 = vmatpush1.bf16.msra.mxu0 0
      %4903 = vmatprep.subr.bf16.mxu0 0
      %4904 = vmatpush1.bf16.msra.mxu0 0
      %4905 = vmatprep.subr.bf16.mxu0 0
      %4906 = vmatpush1.bf16.msra.mxu0 0
      %4907 = vmatprep.subr.bf16.mxu0 0
      %4908 = vmatpush1.bf16.msra.mxu0 0
      %4909 = vmatprep.mubr.bf16.mxu0 0
      %4910 = vmatmul.mubr.bf16.gmra.mrb[0].mxu0 %v4872
      %v4911 = vpop.f32.mrb[0].mxu0
      %v4912 = vadd.f32 0.0, %v4911
      %v4913 = vpop.f32.mrb[0].mxu0
      %v4914 = vpop.f32.mrb[0].mxu0
      %v4915 = vpop.f32.mrb[0].mxu0
      %4916 = vdwg.mxu0
      %4917 = vrot.lane.b32.xlu0 %v4584, 104
      %v4918 = vpop.permute.xlu0 %4917
      %4919 = vrot.lane.b32.xlu0 %v4585, 104
      %v4920 = vpop.permute.xlu0 %4919
      %v4922 = vsel %vm2762, %v4918, 0
      %v4925 = vsel %vm2762, %v4920, 0
      %4927 = vmatprep.subr.bf16.mxu0 0
      %4928 = vmatpush1.bf16.xpose.msra.mxu0 %v4925
      %4929 = vmatprep.subr.bf16.mxu0 0
      %4930 = vmatpush1.bf16.xpose.msra.mxu0 0
      %4931 = vmatprep.subr.bf16.mxu0 0
      %4932 = vmatpush1.bf16.xpose.msra.mxu0 0
      %4933 = vmatprep.subr.bf16.mxu0 0
      %4934 = vmatpush1.bf16.xpose.msra.mxu0 0
      %4935 = vmatprep.subr.bf16.mxu0 0
      %4936 = vmatpush1.bf16.xpose.msra.mxu0 0
      %4937 = vmatprep.subr.bf16.mxu0 0
      %4938 = vmatpush1.bf16.xpose.msra.mxu0 0
      %4939 = vmatprep.subr.bf16.mxu0 0
      %4940 = vmatpush1.bf16.xpose.msra.mxu0 0
      %4941 = vmatprep.subr.bf16.mxu0 0
      %4942 = vmatpush1.bf16.xpose.msra.mxu0 0
      %4943 = vmatprep.subr.bf16.mxu0 0
      %4944 = vmatpush1.bf16.xpose.msra.mxu0 0
      %4945 = vmatprep.subr.bf16.mxu0 0
      %4946 = vmatpush1.bf16.xpose.msra.mxu0 0
      %4947 = vmatprep.subr.bf16.mxu0 0
      %4948 = vmatpush1.bf16.xpose.msra.mxu0 0
      %4949 = vmatprep.subr.bf16.mxu0 0
      %4950 = vmatpush1.bf16.xpose.msra.mxu0 0
      %4951 = vmatprep.subr.bf16.mxu0 0
      %4952 = vmatpush1.bf16.xpose.msra.mxu0 0
      %4953 = vmatprep.subr.bf16.mxu0 0
      %4954 = vmatpush1.bf16.xpose.msra.mxu0 0
      %4955 = vmatprep.subr.bf16.mxu0 0
      %4956 = vmatpush1.bf16.xpose.msra.mxu0 0
      %4957 = vmatprep.subr.bf16.mxu0 0
      %4958 = vmatpush1.bf16.xpose.msra.mxu0 0
      %4959 = vmatprep.mubr.bf16.mxu0 0
      %4960 = vmatmul.mubr.bf16.gmra.mrb[0].mxu0 %v4922
      %v4961 = vpop.f32.mrb[0].mxu0
      %v4962 = vadd.f32 0.0, %v4961
      %v4963 = vpop.f32.mrb[0].mxu0
      %v4964 = vpop.f32.mrb[0].mxu0
      %v4965 = vpop.f32.mrb[0].mxu0
      %4966 = vdwg.mxu0
      %v4967 = vmul.f32 %v4962, 0.35355338
      %v4968 = vsel %vm2762, %v4967, -inf
      %4969 = vmax.xlane.f32.xlu0 %v4968
      %v4970 = vpop.xlane.xlu0 %4969
      %v4971 = vsub.f32 %v4967, %v4970
      %v4972 = vmul.f32 %v4971, 1.442695
      %v4973 = vpow.pop %v4972
      %v4974 = vsel %vm2762, %v4973, 0.0
      %4975 = vadd.xlane.f32.xlu0 %v4974
      %v4976 = vpop.xlane.xlu0 %4975
      %v4977 = vrcp.pop %v4976
      %v4978 = vmul.f32 %v4973, %v4977
      %v4979 = vpack.c.bf16 %v4978, %v4978
      %4980 = vrot.lane.b32.xlu0 %v4645, 104
      %v4981 = vpop.permute.xlu0 %4980
      %v4983 = vsel %vm2762, %v4979, 0
      %v4986 = vsel %vm2766, %v4981, 0
      %4988 = vmatprep.subr.bf16.mxu0 0
      %4989 = vmatpush1.bf16.msra.mxu0 %v4986
      %4990 = vmatprep.subr.bf16.mxu0 0
      %4991 = vmatpush1.bf16.msra.mxu0 0
      %4992 = vmatprep.subr.bf16.mxu0 0
      %4993 = vmatpush1.bf16.msra.mxu0 0
      %4994 = vmatprep.subr.bf16.mxu0 0
      %4995 = vmatpush1.bf16.msra.mxu0 0
      %4996 = vmatprep.subr.bf16.mxu0 0
      %4997 = vmatpush1.bf16.msra.mxu0 0
      %4998 = vmatprep.subr.bf16.mxu0 0
      %4999 = vmatpush1.bf16.msra.mxu0 0
      %5000 = vmatprep.subr.bf16.mxu0 0
      %5001 = vmatpush1.bf16.msra.mxu0 0
      %5002 = vmatprep.subr.bf16.mxu0 0
      %5003 = vmatpush1.bf16.msra.mxu0 0
      %5004 = vmatprep.subr.bf16.mxu0 0
      %5005 = vmatpush1.bf16.msra.mxu0 0
      %5006 = vmatprep.subr.bf16.mxu0 0
      %5007 = vmatpush1.bf16.msra.mxu0 0
      %5008 = vmatprep.subr.bf16.mxu0 0
      %5009 = vmatpush1.bf16.msra.mxu0 0
      %5010 = vmatprep.subr.bf16.mxu0 0
      %5011 = vmatpush1.bf16.msra.mxu0 0
      %5012 = vmatprep.subr.bf16.mxu0 0
      %5013 = vmatpush1.bf16.msra.mxu0 0
      %5014 = vmatprep.subr.bf16.mxu0 0
      %5015 = vmatpush1.bf16.msra.mxu0 0
      %5016 = vmatprep.subr.bf16.mxu0 0
      %5017 = vmatpush1.bf16.msra.mxu0 0
      %5018 = vmatprep.subr.bf16.mxu0 0
      %5019 = vmatpush1.bf16.msra.mxu0 0
      %5020 = vmatprep.mubr.bf16.mxu0 0
      %5021 = vmatmul.mubr.bf16.gmra.mrb[0].mxu0 %v4983
      %v5022 = vpop.f32.mrb[0].mxu0
      %v5023 = vadd.f32 0.0, %v5022
      %v5024 = vpop.f32.mrb[0].mxu0
      %v5025 = vpop.f32.mrb[0].mxu0
      %v5026 = vpop.f32.mrb[0].mxu0
      %5027 = vdwg.mxu0
      %5029 = vrot.lane.b32.xlu0 %v4801, 8
      %v5030 = vpop.permute.xlu0 %5029
      %5033 = vrot.lane.b32.xlu0 %v4912, 16
      %v5034 = vpop.permute.xlu0 %5033
      %5037 = vrot.lane.b32.xlu0 %v5023, 24
      %v5038 = vpop.permute.xlu0 %5037
      %v5040 = vsel %vm2762, %v4687, %v5030
      %v5041 = vsel %vm374, %v5040, %v5034
      %v5042 = vsel %vm4147, %v5041, %v5038
      %v5043 = vpack.c.bf16 %v5042, %v5042
      %v5044 = vlaneseq
      %v5045 = vshrl.u32 %v5044, 7
      %v5046 = vsub.s32 7, %v5045
      %v5047 = vrot.slane %v4363, %v5046
      %v5052 = vunpack.c.l.b16 %v4377
      %v5053 = vunpack.c.l.b16 %v4378
      %v5054 = vunpack.c.l.b16 %v4379
      %v5055 = vunpack.c.l.b16 %v4380
      %v5056 = vpack.c.b16 %v5053, %v5052
      %v5057 = vpack.c.b16 %v5055, %v5054
      %v5061 = vsel %vm69, %v5043, 0
      %5063 = vmatprep.subr.bf16.mxu0 0
      %5064 = vmatpush1.bf16.msra.mxu0 %v5056
      %5065 = vmatprep.subr.bf16.mxu0 0
      %5066 = vmatpush1.bf16.msra.mxu0 %v5057
      %5067 = vmatprep.subr.bf16.mxu0 0
      %5068 = vmatpush1.bf16.msra.mxu0 0
      %5069 = vmatprep.subr.bf16.mxu0 0
      %5070 = vmatpush1.bf16.msra.mxu0 0
      %5071 = vmatprep.subr.bf16.mxu0 0
      %5072 = vmatpush1.bf16.msra.mxu0 0
      %5073 = vmatprep.subr.bf16.mxu0 0
      %5074 = vmatpush1.bf16.msra.mxu0 0
      %5075 = vmatprep.subr.bf16.mxu0 0
      %5076 = vmatpush1.bf16.msra.mxu0 0
      %5077 = vmatprep.subr.bf16.mxu0 0
      %5078 = vmatpush1.bf16.msra.mxu0 0
      %5079 = vmatprep.subr.bf16.mxu0 0
      %5080 = vmatpush1.bf16.msra.mxu0 0
      %5081 = vmatprep.subr.bf16.mxu0 0
      %5082 = vmatpush1.bf16.msra.mxu0 0
      %5083 = vmatprep.subr.bf16.mxu0 0
      %5084 = vmatpush1.bf16.msra.mxu0 0
      %5085 = vmatprep.subr.bf16.mxu0 0
      %5086 = vmatpush1.bf16.msra.mxu0 0
      %5087 = vmatprep.subr.bf16.mxu0 0
      %5088 = vmatpush1.bf16.msra.mxu0 0
      %5089 = vmatprep.subr.bf16.mxu0 0
      %5090 = vmatpush1.bf16.msra.mxu0 0
      %5091 = vmatprep.subr.bf16.mxu0 0
      %5092 = vmatpush1.bf16.msra.mxu0 0
      %5093 = vmatprep.subr.bf16.mxu0 0
      %5094 = vmatpush1.bf16.msra.mxu0 0
      %5095 = vmatprep.mubr.bf16.mxu0 0
      %5096 = vmatmul.mubr.bf16.gmra.mrb[0].mxu0 %v5061
      %v5097 = vpop.f32.mrb[0].mxu0
      %v5098 = vadd.f32 %v5047, %v5097
      %v5099 = vpop.f32.mrb[0].mxu0
      %v5100 = vpop.f32.mrb[0].mxu0
      %v5101 = vpop.f32.mrb[0].mxu0
      %5102 = vdwg.mxu0
      %v5103 = vadd.f32 %v4362, %v5098
      %v5104 = vsel %vm69, %v5103, 0.0
      %5105 = vadd.xlane.f32.xlu0 %v5104
      %v5106 = vpop.xlane.xlu0 %5105
      %v5107 = vmul.f32 %v5106, %v73
      %v5108 = vsub.f32 %v5103, %v5107
      %v5109 = vmul.f32 %v5108, %v5108
      %v5110 = vsel %vm69, %v5109, 0.0
      %5111 = vadd.xlane.f32.xlu0 %v5110
      %v5112 = vpop.xlane.xlu0 %5111
      %v5113 = vmul.f32 %v5112, %v73
      %v5114 = vadd.f32 %v5113, 1e-05
      %v5115 = vrsqrt.pop %v5114
      %v5116 = vmul.f32 %v5108, %v5115
      %v5117 = vlaneseq
      %v5118 = vshrl.u32 %v5117, 7
      %v5119 = vsub.s32 0, %v5118
      %v5120 = vrot.slane %v4364, %v5119
      %v5121 = vmul.f32 %v5116, %v5120
      %v5122 = vlaneseq
      %v5123 = vshrl.u32 %v5122, 7
      %v5124 = vsub.s32 1, %v5123
      %v5125 = vrot.slane %v4364, %v5124
      %v5126 = vadd.f32 %v5121, %v5125
      %v5127 = vpack.c.bf16 %v5126, %v5126
      %v5128 = vlaneseq
      %v5129 = vshrl.u32 %v5128, 7
      %v5130 = vsub.s32 2, %v5129
      %v5131 = vrot.slane %v4364, %v5130
      %v5136 = vunpack.c.l.b16 %v4381
      %v5137 = vunpack.c.l.b16 %v4382
      %v5138 = vunpack.c.l.b16 %v4383
      %v5139 = vunpack.c.l.b16 %v4384
      %v5140 = vpack.c.b16 %v5137, %v5136
      %v5141 = vpack.c.b16 %v5139, %v5138
      %v5145 = vsel %vm69, %v5127, 0
      %5147 = vmatprep.subr.bf16.mxu0 0
      %5148 = vmatpush1.bf16.msra.mxu0 %v5140
      %5149 = vmatprep.subr.bf16.mxu0 0
      %5150 = vmatpush1.bf16.msra.mxu0 %v5141
      %5151 = vmatprep.subr.bf16.mxu0 0
      %5152 = vmatpush1.bf16.msra.mxu0 0
      %5153 = vmatprep.subr.bf16.mxu0 0
      %5154 = vmatpush1.bf16.msra.mxu0 0
      %5155 = vmatprep.subr.bf16.mxu0 0
      %5156 = vmatpush1.bf16.msra.mxu0 0
      %5157 = vmatprep.subr.bf16.mxu0 0
      %5158 = vmatpush1.bf16.msra.mxu0 0
      %5159 = vmatprep.subr.bf16.mxu0 0
      %5160 = vmatpush1.bf16.msra.mxu0 0
      %5161 = vmatprep.subr.bf16.mxu0 0
      %5162 = vmatpush1.bf16.msra.mxu0 0
      %5163 = vmatprep.subr.bf16.mxu0 0
      %5164 = vmatpush1.bf16.msra.mxu0 0
      %5165 = vmatprep.subr.bf16.mxu0 0
      %5166 = vmatpush1.bf16.msra.mxu0 0
      %5167 = vmatprep.subr.bf16.mxu0 0
      %5168 = vmatpush1.bf16.msra.mxu0 0
      %5169 = vmatprep.subr.bf16.mxu0 0
      %5170 = vmatpush1.bf16.msra.mxu0 0
      %5171 = vmatprep.subr.bf16.mxu0 0
      %5172 = vmatpush1.bf16.msra.mxu0 0
      %5173 = vmatprep.subr.bf16.mxu0 0
      %5174 = vmatpush1.bf16.msra.mxu0 0
      %5175 = vmatprep.subr.bf16.mxu0 0
      %5176 = vmatpush1.bf16.msra.mxu0 0
      %5177 = vmatprep.subr.bf16.mxu0 0
      %5178 = vmatpush1.bf16.msra.mxu0 0
      %5179 = vmatprep.mubr.bf16.mxu0 0
      %5180 = vmatmul.mubr.bf16.gmra.mrb[0].mxu0 %v5145
      %v5181 = vpop.f32.mrb[0].mxu0
      %v5182 = vadd.f32 %v5131, %v5181
      %v5183 = vpop.f32.mrb[0].mxu0
      %v5184 = vpop.f32.mrb[0].mxu0
      %v5185 = vpop.f32.mrb[0].mxu0
      %5186 = vdwg.mxu0
      %v5187 = vmul.f32 %v5182, 0.5
      %v5188 = vmul.f32 %v5182, 0.044715
      %v5189 = vmul.f32 %v5188, %v5182
      %v5190 = vmul.f32 %v5189, %v5182
      %v5191 = vadd.f32 %v5182, %v5190
      %v5192 = vmul.f32 %v5191, 0.7978846
      %v5193 = vtanh.pop %v5192
      %v5194 = vadd.f32 %v5193, 1.0
      %v5195 = vmul.f32 %v5187, %v5194
      %v5196 = vpack.c.bf16 %v5195, %v5195
      %v5197 = vlaneseq
      %v5198 = vshrl.u32 %v5197, 7
      %v5199 = vsub.s32 3, %v5198
      %v5200 = vrot.slane %v4364, %v5199
      %v5205 = vunpack.c.l.b16 %v4385
      %v5206 = vunpack.c.l.b16 %v4386
      %v5207 = vunpack.c.l.b16 %v4387
      %v5208 = vunpack.c.l.b16 %v4388
      %v5209 = vpack.c.b16 %v5206, %v5205
      %v5210 = vpack.c.b16 %v5208, %v5207
      %v5214 = vsel %vm69, %v5196, 0
      %5216 = vmatprep.subr.bf16.mxu0 0
      %5217 = vmatpush1.bf16.msra.mxu0 %v5209
      %5218 = vmatprep.subr.bf16.mxu0 0
      %5219 = vmatpush1.bf16.msra.mxu0 %v5210
      %5220 = vmatprep.subr.bf16.mxu0 0
      %5221 = vmatpush1.bf16.msra.mxu0 0
      %5222 = vmatprep.subr.bf16.mxu0 0
      %5223 = vmatpush1.bf16.msra.mxu0 0
      %5224 = vmatprep.subr.bf16.mxu0 0
      %5225 = vmatpush1.bf16.msra.mxu0 0
      %5226 = vmatprep.subr.bf16.mxu0 0
      %5227 = vmatpush1.bf16.msra.mxu0 0
      %5228 = vmatprep.subr.bf16.mxu0 0
      %5229 = vmatpush1.bf16.msra.mxu0 0
      %5230 = vmatprep.subr.bf16.mxu0 0
      %5231 = vmatpush1.bf16.msra.mxu0 0
      %5232 = vmatprep.subr.bf16.mxu0 0
      %5233 = vmatpush1.bf16.msra.mxu0 0
      %5234 = vmatprep.subr.bf16.mxu0 0
      %5235 = vmatpush1.bf16.msra.mxu0 0
      %5236 = vmatprep.subr.bf16.mxu0 0
      %5237 = vmatpush1.bf16.msra.mxu0 0
      %5238 = vmatprep.subr.bf16.mxu0 0
      %5239 = vmatpush1.bf16.msra.mxu0 0
      %5240 = vmatprep.subr.bf16.mxu0 0
      %5241 = vmatpush1.bf16.msra.mxu0 0
      %5242 = vmatprep.subr.bf16.mxu0 0
      %5243 = vmatpush1.bf16.msra.mxu0 0
      %5244 = vmatprep.subr.bf16.mxu0 0
      %5245 = vmatpush1.bf16.msra.mxu0 0
      %5246 = vmatprep.subr.bf16.mxu0 0
      %5247 = vmatpush1.bf16.msra.mxu0 0
      %5248 = vmatprep.mubr.bf16.mxu0 0
      %5249 = vmatmul.mubr.bf16.gmra.mrb[0].mxu0 %v5214
      %v5250 = vpop.f32.mrb[0].mxu0
      %v5251 = vadd.f32 %v5200, %v5250
      %v5252 = vpop.f32.mrb[0].mxu0
      %v5253 = vpop.f32.mrb[0].mxu0
      %v5254 = vpop.f32.mrb[0].mxu0
      %5255 = vdwg.mxu0
      %v5256 = vadd.f32 %v5103, %v5251
    $region45: #{perceiver_forward.3} parent=1 // loop_footer
      %s3466 = sadd.s32 1, %s3462
    $region46: #{perceiver_forward.3} parent=1 // loop_footer_branch
      %3461 = sbr.rel target = $region42
    $region47: #{perceiver_forward.3} parent=1 // loop_exit
      _
    %v5257 = vsel %vm69, %v3467, 0.0
    %5258 = vadd.xlane.f32.xlu0 %v5257
    %v5259 = vpop.xlane.xlu0 %5258
    %v5260 = vmul.f32 %v5259, %v73
    %v5261 = vsub.f32 %v3467, %v5260
    %v5262 = vmul.f32 %v5261, %v5261
    %v5263 = vsel %vm69, %v5262, 0.0
    %5264 = vadd.xlane.f32.xlu0 %v5263
    %v5265 = vpop.xlane.xlu0 %5264
    %v5266 = vmul.f32 %v5265, %v73
    %v5267 = vadd.f32 %v5266, 1e-05
    %v5268 = vrsqrt.pop %v5267
    %v5269 = vmul.f32 %v5261, %v5268
    %v5270 = vmul.f32 %v5269, %v2518
    %v5271 = vadd.f32 %v5270, %v2523
    %v5272 = vpack.c.bf16 %v5271, %v5271
    %v5274 = vsel %vm69, %v5272, 0
    %5276 = vmatprep.subr.bf16.mxu0 0
    %5277 = vmatpush1.bf16.msra.mxu0 %v2596
    %5278 = vmatprep.subr.bf16.mxu0 0
    %5279 = vmatpush1.bf16.msra.mxu0 %v2597
    %5280 = vmatprep.subr.bf16.mxu0 0
    %5281 = vmatpush1.bf16.msra.mxu0 0
    %5282 = vmatprep.subr.bf16.mxu0 0
    %5283 = vmatpush1.bf16.msra.mxu0 0
    %5284 = vmatprep.subr.bf16.mxu0 0
    %5285 = vmatpush1.bf16.msra.mxu0 0
    %5286 = vmatprep.subr.bf16.mxu0 0
    %5287 = vmatpush1.bf16.msra.mxu0 0
    %5288 = vmatprep.subr.bf16.mxu0 0
    %5289 = vmatpush1.bf16.msra.mxu0 0
    %5290 = vmatprep.subr.bf16.mxu0 0
    %5291 = vmatpush1.bf16.msra.mxu0 0
    %5292 = vmatprep.subr.bf16.mxu0 0
    %5293 = vmatpush1.bf16.msra.mxu0 0
    %5294 = vmatprep.subr.bf16.mxu0 0
    %5295 = vmatpush1.bf16.msra.mxu0 0
    %5296 = vmatprep.subr.bf16.mxu0 0
    %5297 = vmatpush1.bf16.msra.mxu0 0
    %5298 = vmatprep.subr.bf16.mxu0 0
    %5299 = vmatpush1.bf16.msra.mxu0 0
    %5300 = vmatprep.subr.bf16.mxu0 0
    %5301 = vmatpush1.bf16.msra.mxu0 0
    %5302 = vmatprep.subr.bf16.mxu0 0
    %5303 = vmatpush1.bf16.msra.mxu0 0
    %5304 = vmatprep.subr.bf16.mxu0 0
    %5305 = vmatpush1.bf16.msra.mxu0 0
    %5306 = vmatprep.subr.bf16.mxu0 0
    %5307 = vmatpush1.bf16.msra.mxu0 0
    %5308 = vmatprep.mubr.bf16.mxu0 0
    %5309 = vmatmul.mubr.bf16.gmra.mrb[0].mxu0 %v5274
    %v5310 = vpop.f32.mrb[0].mxu0
    %v5311 = vadd.f32 %v2587, %v5310
    %v5312 = vpop.f32.mrb[0].mxu0
    %v5313 = vpop.f32.mrb[0].mxu0
    %v5314 = vpop.f32.mrb[0].mxu0
    %5315 = vdwg.mxu0
    %5316 = vmatprep.subr.bf16.mxu0 0
    %5317 = vmatpush1.bf16.msra.mxu0 %v2655
    %5318 = vmatprep.subr.bf16.mxu0 0
    %5319 = vmatpush1.bf16.msra.mxu0 %v2656
    %5320 = vmatprep.subr.bf16.mxu0 0
    %5321 = vmatpush1.bf16.msra.mxu0 0
    %5322 = vmatprep.subr.bf16.mxu0 0
    %5323 = vmatpush1.bf16.msra.mxu0 0
    %5324 = vmatprep.subr.bf16.mxu0 0
    %5325 = vmatpush1.bf16.msra.mxu0 0
    %5326 = vmatprep.subr.bf16.mxu0 0
    %5327 = vmatpush1.bf16.msra.mxu0 0
    %5328 = vmatprep.subr.bf16.mxu0 0
    %5329 = vmatpush1.bf16.msra.mxu0 0
    %5330 = vmatprep.subr.bf16.mxu0 0
    %5331 = vmatpush1.bf16.msra.mxu0 0
    %5332 = vmatprep.subr.bf16.mxu0 0
    %5333 = vmatpush1.bf16.msra.mxu0 0
    %5334 = vmatprep.subr.bf16.mxu0 0
    %5335 = vmatpush1.bf16.msra.mxu0 0
    %5336 = vmatprep.subr.bf16.mxu0 0
    %5337 = vmatpush1.bf16.msra.mxu0 0
    %5338 = vmatprep.subr.bf16.mxu0 0
    %5339 = vmatpush1.bf16.msra.mxu0 0
    %5340 = vmatprep.subr.bf16.mxu0 0
    %5341 = vmatpush1.bf16.msra.mxu0 0
    %5342 = vmatprep.subr.bf16.mxu0 0
    %5343 = vmatpush1.bf16.msra.mxu0 0
    %5344 = vmatprep.subr.bf16.mxu0 0
    %5345 = vmatpush1.bf16.msra.mxu0 0
    %5346 = vmatprep.subr.bf16.mxu0 0
    %5347 = vmatpush1.bf16.msra.mxu0 0
    %5348 = vmatprep.mubr.bf16.mxu0 0
    %5349 = vmatmul.mubr.bf16.gmra.mrb[0].mxu0 %v5274
    %v5350 = vpop.f32.mrb[0].mxu0
    %v5351 = vadd.f32 %v2646, %v5350
    %v5352 = vpop.f32.mrb[0].mxu0
    %v5353 = vpop.f32.mrb[0].mxu0
    %v5354 = vpop.f32.mrb[0].mxu0
    %5355 = vdwg.mxu0
    %v5356 = vpack.c.bf16 %v5311, %v5311
    %v5358 = vsel %vm69, %v5356, 0
    %5360 = vmatprep.subr.bf16.mxu0 0
    %5361 = vmatpush1.bf16.xpose.msra.mxu0 %v5358
    %5362 = vmatprep.subr.bf16.mxu0 0
    %5363 = vmatpush1.bf16.xpose.msra.mxu0 0
    %5364 = vmatprep.subr.bf16.mxu0 0
    %5365 = vmatpush1.bf16.xpose.msra.mxu0 0
    %5366 = vmatprep.subr.bf16.mxu0 0
    %5367 = vmatpush1.bf16.xpose.msra.mxu0 0
    %5368 = vmatprep.subr.bf16.mxu0 0
    %5369 = vmatpush1.bf16.xpose.msra.mxu0 0
    %5370 = vmatprep.subr.bf16.mxu0 0
    %5371 = vmatpush1.bf16.xpose.msra.mxu0 0
    %5372 = vmatprep.subr.bf16.mxu0 0
    %5373 = vmatpush1.bf16.xpose.msra.mxu0 0
    %5374 = vmatprep.subr.bf16.mxu0 0
    %5375 = vmatpush1.bf16.xpose.msra.mxu0 0
    %5376 = vmatprep.subr.bf16.mxu0 0
    %5377 = vmatpush1.bf16.xpose.msra.mxu0 0
    %5378 = vmatprep.subr.bf16.mxu0 0
    %5379 = vmatpush1.bf16.xpose.msra.mxu0 0
    %5380 = vmatprep.subr.bf16.mxu0 0
    %5381 = vmatpush1.bf16.xpose.msra.mxu0 0
    %5382 = vmatprep.subr.bf16.mxu0 0
    %5383 = vmatpush1.bf16.xpose.msra.mxu0 0
    %5384 = vmatprep.subr.bf16.mxu0 0
    %5385 = vmatpush1.bf16.xpose.msra.mxu0 0
    %5386 = vmatprep.subr.bf16.mxu0 0
    %5387 = vmatpush1.bf16.xpose.msra.mxu0 0
    %5388 = vmatprep.subr.bf16.mxu0 0
    %5389 = vmatpush1.bf16.xpose.msra.mxu0 0
    %5390 = vmatprep.subr.bf16.mxu0 0
    %5391 = vmatpush1.bf16.xpose.msra.mxu0 0
    %5392 = vmatprep.mubr.bf16.mxu0 0
    %5393 = vmatmul.mubr.bf16.gmra.mrb[0].mxu0 %v2702
    %v5394 = vpop.f32.mrb[0].mxu0
    %v5395 = vadd.f32 0.0, %v5394
    %v5396 = vpop.f32.mrb[0].mxu0
    %v5397 = vpop.f32.mrb[0].mxu0
    %v5398 = vpop.f32.mrb[0].mxu0
    %5399 = vdwg.mxu0
    %v5400 = vmul.f32 %v5395, 0.17677669
    %v5401 = vsel %vm2748, %v5400, -inf
    %5402 = vmax.xlane.f32.xlu0 %v5401
    %v5403 = vpop.xlane.xlu0 %5402
    %v5404 = vsub.f32 %v5400, %v5403
    %v5405 = vmul.f32 %v5404, 1.442695
    %v5406 = vpow.pop %v5405
    %v5407 = vsel %vm2748, %v5406, 0.0
    %5408 = vadd.xlane.f32.xlu0 %v5407
    %v5409 = vpop.xlane.xlu0 %5408
    %v5410 = vrcp.pop %v5409
    %v5411 = vmul.f32 %v5406, %v5410
    %v5412 = vpack.c.bf16 %v5411, %v5411
    %v5413 = vpack.c.bf16 %v5351, %v5351
    %v5415 = vsel %vm2762, %v5412, 0
    %v5418 = vsel %vm2766, %v5413, 0
    %5420 = vmatprep.subr.bf16.mxu0 0
    %5421 = vmatpush1.bf16.msra.mxu0 %v5418
    %5422 = vmatprep.subr.bf16.mxu0 0
    %5423 = vmatpush1.bf16.msra.mxu0 0
    %5424 = vmatprep.subr.bf16.mxu0 0
    %5425 = vmatpush1.bf16.msra.mxu0 0
    %5426 = vmatprep.subr.bf16.mxu0 0
    %5427 = vmatpush1.bf16.msra.mxu0 0
    %5428 = vmatprep.subr.bf16.mxu0 0
    %5429 = vmatpush1.bf16.msra.mxu0 0
    %5430 = vmatprep.subr.bf16.mxu0 0
    %5431 = vmatpush1.bf16.msra.mxu0 0
    %5432 = vmatprep.subr.bf16.mxu0 0
    %5433 = vmatpush1.bf16.msra.mxu0 0
    %5434 = vmatprep.subr.bf16.mxu0 0
    %5435 = vmatpush1.bf16.msra.mxu0 0
    %5436 = vmatprep.subr.bf16.mxu0 0
    %5437 = vmatpush1.bf16.msra.mxu0 0
    %5438 = vmatprep.subr.bf16.mxu0 0
    %5439 = vmatpush1.bf16.msra.mxu0 0
    %5440 = vmatprep.subr.bf16.mxu0 0
    %5441 = vmatpush1.bf16.msra.mxu0 0
    %5442 = vmatprep.subr.bf16.mxu0 0
    %5443 = vmatpush1.bf16.msra.mxu0 0
    %5444 = vmatprep.subr.bf16.mxu0 0
    %5445 = vmatpush1.bf16.msra.mxu0 0
    %5446 = vmatprep.subr.bf16.mxu0 0
    %5447 = vmatpush1.bf16.msra.mxu0 0
    %5448 = vmatprep.subr.bf16.mxu0 0
    %5449 = vmatpush1.bf16.msra.mxu0 0
    %5450 = vmatprep.subr.bf16.mxu0 0
    %5451 = vmatpush1.bf16.msra.mxu0 0
    %5452 = vmatprep.mubr.bf16.mxu0 0
    %5453 = vmatmul.mubr.bf16.gmra.mrb[0].mxu0 %v5415
    %v5454 = vpop.f32.mrb[0].mxu0
    %v5455 = vadd.f32 0.0, %v5454
    %v5456 = vpop.f32.mrb[0].mxu0
    %v5457 = vpop.f32.mrb[0].mxu0
    %v5458 = vpop.f32.mrb[0].mxu0
    %5459 = vdwg.mxu0
    %v5460 = vpack.c.bf16 %v5455, %v5455
    %v5462 = vsel %vm69, %v5460, 0
    %5464 = vmatprep.subr.bf16.mxu0 0
    %5465 = vmatpush1.bf16.msra.mxu0 %v2819
    %5466 = vmatprep.subr.bf16.mxu0 0
    %5467 = vmatpush1.bf16.msra.mxu0 %v2820
    %5468 = vmatprep.subr.bf16.mxu0 0
    %5469 = vmatpush1.bf16.msra.mxu0 0
    %5470 = vmatprep.subr.bf16.mxu0 0
    %5471 = vmatpush1.bf16.msra.mxu0 0
    %5472 = vmatprep.subr.bf16.mxu0 0
    %5473 = vmatpush1.bf16.msra.mxu0 0
    %5474 = vmatprep.subr.bf16.mxu0 0
    %5475 = vmatpush1.bf16.msra.mxu0 0
    %5476 = vmatprep.subr.bf16.mxu0 0
    %5477 = vmatpush1.bf16.msra.mxu0 0
    %5478 = vmatprep.subr.bf16.mxu0 0
    %5479 = vmatpush1.bf16.msra.mxu0 0
    %5480 = vmatprep.subr.bf16.mxu0 0
    %5481 = vmatpush1.bf16.msra.mxu0 0
    %5482 = vmatprep.subr.bf16.mxu0 0
    %5483 = vmatpush1.bf16.msra.mxu0 0
    %5484 = vmatprep.subr.bf16.mxu0 0
    %5485 = vmatpush1.bf16.msra.mxu0 0
    %5486 = vmatprep.subr.bf16.mxu0 0
    %5487 = vmatpush1.bf16.msra.mxu0 0
    %5488 = vmatprep.subr.bf16.mxu0 0
    %5489 = vmatpush1.bf16.msra.mxu0 0
    %5490 = vmatprep.subr.bf16.mxu0 0
    %5491 = vmatpush1.bf16.msra.mxu0 0
    %5492 = vmatprep.subr.bf16.mxu0 0
    %5493 = vmatpush1.bf16.msra.mxu0 0
    %5494 = vmatprep.subr.bf16.mxu0 0
    %5495 = vmatpush1.bf16.msra.mxu0 0
    %5496 = vmatprep.mubr.bf16.mxu0 0
    %5497 = vmatmul.mubr.bf16.gmra.mrb[0].mxu0 %v5462
    %v5498 = vpop.f32.mrb[0].mxu0
    %v5499 = vadd.f32 %v2823, %v5498
    %v5500 = vpop.f32.mrb[0].mxu0
    %v5501 = vpop.f32.mrb[0].mxu0
    %v5502 = vpop.f32.mrb[0].mxu0
    %5503 = vdwg.mxu0
    %v5504 = vadd.f32 %v32, %v5499
    %v5505 = vsel %vm2469, %v5504, 0.0
    %5506 = vadd.xlane.f32.xlu0 %v5505
    %v5507 = vpop.xlane.xlu0 %5506
    %v5508 = vmul.f32 %v5507, %v73
    %v5509 = vsub.f32 %v5504, %v5508
    %v5510 = vmul.f32 %v5509, %v5509
    %v5511 = vsel %vm2469, %v5510, 0.0
    %5512 = vadd.xlane.f32.xlu0 %v5511
    %v5513 = vpop.xlane.xlu0 %5512
    %v5514 = vmul.f32 %v5513, %v73
    %v5515 = vadd.f32 %v5514, 1e-05
    %v5516 = vrsqrt.pop %v5515
    %v5517 = vmul.f32 %v5509, %v5516
    %v5518 = vmul.f32 %v5517, %v2444
    %v5519 = vadd.f32 %v5518, %v2898
    %v5520 = vpack.c.bf16 %v5519, %v5519
    %v5522 = vsel %vm69, %v5520, 0
    %5524 = vmatprep.subr.bf16.mxu0 0
    %5525 = vmatpush1.bf16.msra.mxu0 %v2910
    %5526 = vmatprep.subr.bf16.mxu0 0
    %5527 = vmatpush1.bf16.msra.mxu0 %v2911
    %5528 = vmatprep.subr.bf16.mxu0 0
    %5529 = vmatpush1.bf16.msra.mxu0 0
    %5530 = vmatprep.subr.bf16.mxu0 0
    %5531 = vmatpush1.bf16.msra.mxu0 0
    %5532 = vmatprep.subr.bf16.mxu0 0
    %5533 = vmatpush1.bf16.msra.mxu0 0
    %5534 = vmatprep.subr.bf16.mxu0 0
    %5535 = vmatpush1.bf16.msra.mxu0 0
    %5536 = vmatprep.subr.bf16.mxu0 0
    %5537 = vmatpush1.bf16.msra.mxu0 0
    %5538 = vmatprep.subr.bf16.mxu0 0
    %5539 = vmatpush1.bf16.msra.mxu0 0
    %5540 = vmatprep.subr.bf16.mxu0 0
    %5541 = vmatpush1.bf16.msra.mxu0 0
    %5542 = vmatprep.subr.bf16.mxu0 0
    %5543 = vmatpush1.bf16.msra.mxu0 0
    %5544 = vmatprep.subr.bf16.mxu0 0
    %5545 = vmatpush1.bf16.msra.mxu0 0
    %5546 = vmatprep.subr.bf16.mxu0 0
    %5547 = vmatpush1.bf16.msra.mxu0 0
    %5548 = vmatprep.subr.bf16.mxu0 0
    %5549 = vmatpush1.bf16.msra.mxu0 0
    %5550 = vmatprep.subr.bf16.mxu0 0
    %5551 = vmatpush1.bf16.msra.mxu0 0
    %5552 = vmatprep.subr.bf16.mxu0 0
    %5553 = vmatpush1.bf16.msra.mxu0 0
    %5554 = vmatprep.subr.bf16.mxu0 0
    %5555 = vmatpush1.bf16.msra.mxu0 0
    %5556 = vmatprep.mubr.bf16.mxu0 0
    %5557 = vmatmul.mubr.bf16.gmra.mrb[0].mxu0 %v5522
    %v5558 = vpop.f32.mrb[0].mxu0
    %v5559 = vadd.f32 %v2914, %v5558
    %v5560 = vpop.f32.mrb[0].mxu0
    %v5561 = vpop.f32.mrb[0].mxu0
    %v5562 = vpop.f32.mrb[0].mxu0
    %5563 = vdwg.mxu0
    %v5564 = vmul.f32 %v5559, 0.5
    %v5565 = vmul.f32 %v5559, 0.044715
    %v5566 = vmul.f32 %v5565, %v5559
    %v5567 = vmul.f32 %v5566, %v5559
    %v5568 = vadd.f32 %v5559, %v5567
    %v5569 = vmul.f32 %v5568, 0.7978846
    %v5570 = vtanh.pop %v5569
    %v5571 = vadd.f32 %v5570, 1.0
    %v5572 = vmul.f32 %v5564, %v5571
    %v5573 = vpack.c.bf16 %v5572, %v5572
    %v5575 = vsel %vm69, %v5573, 0
    %5577 = vmatprep.subr.bf16.mxu0 0
    %5578 = vmatpush1.bf16.msra.mxu0 %v2977
    %5579 = vmatprep.subr.bf16.mxu0 0
    %5580 = vmatpush1.bf16.msra.mxu0 %v2978
    %5581 = vmatprep.subr.bf16.mxu0 0
    %5582 = vmatpush1.bf16.msra.mxu0 0
    %5583 = vmatprep.subr.bf16.mxu0 0
    %5584 = vmatpush1.bf16.msra.mxu0 0
    %5585 = vmatprep.subr.bf16.mxu0 0
    %5586 = vmatpush1.bf16.msra.mxu0 0
    %5587 = vmatprep.subr.bf16.mxu0 0
    %5588 = vmatpush1.bf16.msra.mxu0 0
    %5589 = vmatprep.subr.bf16.mxu0 0
    %5590 = vmatpush1.bf16.msra.mxu0 0
    %5591 = vmatprep.subr.bf16.mxu0 0
    %5592 = vmatpush1.bf16.msra.mxu0 0
    %5593 = vmatprep.subr.bf16.mxu0 0
    %5594 = vmatpush1.bf16.msra.mxu0 0
    %5595 = vmatprep.subr.bf16.mxu0 0
    %5596 = vmatpush1.bf16.msra.mxu0 0
    %5597 = vmatprep.subr.bf16.mxu0 0
    %5598 = vmatpush1.bf16.msra.mxu0 0
    %5599 = vmatprep.subr.bf16.mxu0 0
    %5600 = vmatpush1.bf16.msra.mxu0 0
    %5601 = vmatprep.subr.bf16.mxu0 0
    %5602 = vmatpush1.bf16.msra.mxu0 0
    %5603 = vmatprep.subr.bf16.mxu0 0
    %5604 = vmatpush1.bf16.msra.mxu0 0
    %5605 = vmatprep.subr.bf16.mxu0 0
    %5606 = vmatpush1.bf16.msra.mxu0 0
    %5607 = vmatprep.subr.bf16.mxu0 0
    %5608 = vmatpush1.bf16.msra.mxu0 0
    %5609 = vmatprep.mubr.bf16.mxu0 0
    %5610 = vmatmul.mubr.bf16.gmra.mrb[0].mxu0 %v5575
    %v5611 = vpop.f32.mrb[0].mxu0
    %v5612 = vadd.f32 %v2981, %v5611
    %v5613 = vpop.f32.mrb[0].mxu0
    %v5614 = vpop.f32.mrb[0].mxu0
    %v5615 = vpop.f32.mrb[0].mxu0
    %5616 = vdwg.mxu0
    %v5617 = vadd.f32 %v5504, %v5612
    %v5618 = vpack.c.bf16 %v5617, %v5617
    %v5620 = vsel %vm69, %v5618, 0
    %5622 = vmatprep.subr.bf16.mxu0 0
    %5623 = vmatpush1.bf16.msra.mxu0 %v3036
    %5624 = vmatprep.subr.bf16.mxu0 0
    %5625 = vmatpush1.bf16.msra.mxu0 %v3037
    %5626 = vmatprep.subr.bf16.mxu0 0
    %5627 = vmatpush1.bf16.msra.mxu0 0
    %5628 = vmatprep.subr.bf16.mxu0 0
    %5629 = vmatpush1.bf16.msra.mxu0 0
    %5630 = vmatprep.subr.bf16.mxu0 0
    %5631 = vmatpush1.bf16.msra.mxu0 0
    %5632 = vmatprep.subr.bf16.mxu0 0
    %5633 = vmatpush1.bf16.msra.mxu0 0
    %5634 = vmatprep.subr.bf16.mxu0 0
    %5635 = vmatpush1.bf16.msra.mxu0 0
    %5636 = vmatprep.subr.bf16.mxu0 0
    %5637 = vmatpush1.bf16.msra.mxu0 0
    %5638 = vmatprep.subr.bf16.mxu0 0
    %5639 = vmatpush1.bf16.msra.mxu0 0
    %5640 = vmatprep.subr.bf16.mxu0 0
    %5641 = vmatpush1.bf16.msra.mxu0 0
    %5642 = vmatprep.subr.bf16.mxu0 0
    %5643 = vmatpush1.bf16.msra.mxu0 0
    %5644 = vmatprep.subr.bf16.mxu0 0
    %5645 = vmatpush1.bf16.msra.mxu0 0
    %5646 = vmatprep.subr.bf16.mxu0 0
    %5647 = vmatpush1.bf16.msra.mxu0 0
    %5648 = vmatprep.subr.bf16.mxu0 0
    %5649 = vmatpush1.bf16.msra.mxu0 0
    %5650 = vmatprep.subr.bf16.mxu0 0
    %5651 = vmatpush1.bf16.msra.mxu0 0
    %5652 = vmatprep.subr.bf16.mxu0 0
    %5653 = vmatpush1.bf16.msra.mxu0 0
    %5654 = vmatprep.mubr.bf16.mxu0 0
    %5655 = vmatmul.mubr.bf16.gmra.mrb[0].mxu0 %v5620
    %v5656 = vpop.f32.mrb[0].mxu0
    %v5657 = vadd.f32 %v38, %v5656
    %v5658 = vpop.f32.mrb[0].mxu0
    %v5659 = vpop.f32.mrb[0].mxu0
    %v5660 = vpop.f32.mrb[0].mxu0
    %5661 = vdwg.mxu0
    %v5663 = vrot.slane %v5657, 7
    %v5665 = vsel %vm217, %v3078, %v5663
    %5666 = vst [vmem:[#allocation2] sm:$0x3] %v5665
    // Predicated region
    $region48: #{perceiver_forward.3} parent=1 // pred_check
      _
    $region49: #{perceiver_forward.3} parent=1 // pred_check_branch
      %5668 = sbr.rel (0) target = $region51
    $region50: #{perceiver_forward.3} parent=1 // pred_region
      %s5670 = ssub.s32 32, 32
      %5671 = vsyncadd [#allocation3], %s5670
      %s5673 = sshll.u32 [#allocation2], 4
      %s5674 = int_to_ptr.vmem [resolvable:$true] %s5673
      %5676 = dma.vmem_to_hbm [thread:$0]  %s5674, 32, %s8, [#allocation3]
    $region51: #{perceiver_forward.3} parent=1 // pred_fallthru
      _
    // Predicated region
    $region52: #{perceiver_forward.3} parent=1 // pred_check
      _
    $region53: #{perceiver_forward.3} parent=1 // pred_check_branch
      %5678 = sbr.rel (0) target = $region55
    $region54: #{perceiver_forward.3} parent=1 // pred_region
      %5679 = dma.done [#allocation3], 32
    $region55: #{perceiver_forward.3} parent=1 // pred_fallthru
      _
    %5680 = vsyncpa [#allocation3], 1

</llo_original>
